<compile_context>
chip_gen: v7x
topology: tpu7x:2x2x1
jax: 0.10.0
libtpu: 0.0.40
codegen_flags: <defaults>
</compile_context>

<pallas_src>
import jax
import jax.numpy as jnp
from jax.experimental import pallas as pl
from jax.experimental.pallas import tpu as pltpu


def _bias_relu_pool(acc, b, n, h, w):
    """acc: (n*h*w, C) f32 conv output (rows ordered (n, y, x)); b: (1, C) f32 bias.

    Returns the bias+ReLU+2x2/stride-2 max-pooled activation, (n, h//2, w//2, C) f32.
    """
    c = acc.shape[-1]
    act = jnp.maximum(acc + b, 0.0)
    # Pool rows: row-major re-chunk puts row pairs (2i, 2i+1) side by side along axis 1.
    act = act.reshape(n * (h // 2), 2 * w, c)
    hm = jnp.maximum(act[:, :w, :], act[:, w:, :])                    # (n*h/2, w, c)
    # Pool cols: pair adjacent columns along a tiny sublane axis and reduce it.
    vm = jnp.max(hm.reshape(n * (h // 2) * (w // 2), 2, c), axis=1)   # (n*h/2*w/2, c)
    return vm.reshape(n, h // 2, w // 2, c)


def _store_padded(pad_ref, a):
    """Write activation `a` (n, h, w, c) into the interior of a pre-zeroed padded buffer."""
    _, hp, wp, _ = pad_ref.shape
    pad_ref[:, pl.ds(1, hp - 2), pl.ds(1, wp - 2), :] = a.astype(pad_ref.dtype)


def _conv3x3_relu_pool(pad_ref, w_ref, b_ref, n):
    """Conv2d(3x3, pad=1) + ReLU + MaxPool(2x2) from a zero-padded VMEM activation.

    pad_ref: (n, h+2, w+2, cin) bf16 scratch holding the zero-padded input activation.
    w_ref:   (9*cin, cout) bf16 weights, tap-major ((dy,dx) blocks of cin rows).
    b_ref:   (1, cout) f32 bias.
    Returns (n, h//2, w//2, cout) f32.
    """
    _, hp, wp, cin = pad_ref.shape
    h, w = hp - 2, wp - 2
    cout = w_ref.shape[-1]
    acc = jnp.zeros((n * h * w, cout), jnp.float32)
    # 9 accumulated K=cin matmuls: avoids the 9-way lane concat / deep-K im2col relayout.
    for dy in range(3):
        for dx in range(3):
            t = 3 * dy + dx
            tap = pad_ref[:, pl.ds(dy, h), pl.ds(dx, w), :].reshape(n * h * w, cin)
            acc = acc + jnp.dot(tap, w_ref[pl.ds(t * cin, cin), :],
                                preferred_element_type=jnp.float32)
    return _bias_relu_pool(acc, b_ref[...], n, h, w)


def _encoder_kernel(xc_ref, w1_ref, b1_ref, w2_ref, b2_ref, w3_hbm, b3_ref,
                    w4_hbm, b4_ref, o_ref,
                    w3_vmem, w4_vmem, sem, pad2, pad3, pad4):
    """Fused 4-layer encoder, whole batch in one invocation."""
    # --- Kick off manual prefetch of the two largest weight tensors (layers 3 & 4) so
    # their HBM->VMEM DMA overlaps with layer-1/2/3 compute. ---
    w3_cp = pltpu.make_async_copy(w3_hbm, w3_vmem, sem.at[0])
    w4_cp = pltpu.make_async_copy(w4_hbm, w4_vmem, sem.at[1])
    w3_cp.start()
    w4_cp.start()

    n = pad2.shape[0]
    h = (pad2.shape[1] - 2) * 2            # layer-1 spatial height
    w = (pad2.shape[2] - 2) * 2            # layer-1 spatial width

    # Pre-zero the padded-activation scratch buffers (only the 1-px halo actually
    # needs zeros; interiors are overwritten below).
    pad2[...] = jnp.zeros_like(pad2)
    pad3[...] = jnp.zeros_like(pad3)
    pad4[...] = jnp.zeros_like(pad4)

    # --- Layer 1: Conv(1->64) as ONE MXU matmul on the prebuilt im2col LHS (M=n*h*w, K=9).
    acc1 = jnp.dot(xc_ref[...], w1_ref[...], preferred_element_type=jnp.float32)
    a = _bias_relu_pool(acc1, b1_ref[...], n, h, w)            # (n, h/2, w/2, 64) f32
    _store_padded(pad2, a)

    # --- Layer 2: Conv(64->128) ---
    a = _conv3x3_relu_pool(pad2, w2_ref, b2_ref, n)            # (n, h/4, w/4, 128)
    _store_padded(pad3, a)

    # --- Layer 3: wait for its prefetched weights only now ---
    w3_cp.wait()
    a = _conv3x3_relu_pool(pad3, w3_vmem, b3_ref, n)           # (n, h/8, w/8, 256)
    _store_padded(pad4, a)

    # --- Layer 4 ---
    w4_cp.wait()
    a = _conv3x3_relu_pool(pad4, w4_vmem, b4_ref, n)           # (n, h/16, w/16, 512)
    o_ref[...] = a.astype(o_ref.dtype)                         # lane-dense (last dim 512)


def prepare_params(params):
    """One-time prep: HWIO (3,3,Cin,Cout) -> (9*Cin, Cout); bf16 for MXU layers, f32 bias."""
    prepped = []
    for w, b in params:
        kh, kw, cin, cout = w.shape
        wf = w.reshape(kh * kw * cin, cout)
        wf = wf.astype(jnp.float32) if cin == 1 else wf.astype(jnp.bfloat16)
        prepped.append((wf, b.reshape(1, cout).astype(jnp.float32)))
    return prepped


def custom_encoder(x_nchw, prepped):
    """Equivalent of CustomEncoder.forward. x_nchw: (N, 1, H, W) -> (N, 512, H/16, W/16)."""
    N, C0, H, W = x_nchw.shape
    assert C0 == 1, "CustomEncoder expects a single input channel"
    assert H % 16 == 0 and W % 16 == 0, "spatial dims must survive 4 halvings"
    n_layers = len(prepped)

    # Layer-1 im2col of the tiny (N, H, W) input, built by XLA (layout plumbing only):
    x = x_nchw.reshape(N, H, W).astype(jnp.float32)
    xp = jnp.pad(x, ((0, 0), (1, 1), (1, 1)))
    xc = jnp.stack([xp[:, dy:dy + H, dx:dx + W]
                    for dy in range(3) for dx in range(3)], axis=-1).reshape(N * H * W, 9)

    (w1, b1), (w2, b2), (w3, b3), (w4, b4) = prepped
    c1, c2, c3, c4 = w1.shape[-1], w2.shape[-1], w3.shape[-1], w4.shape[-1]
    hf, wf = H >> n_layers, W >> n_layers

    out = pl.pallas_call(
        _encoder_kernel,
        out_shape=jax.ShapeDtypeStruct((N, hf, wf, c4), jnp.float32),
        grid=(1,),
        in_specs=[
            pl.BlockSpec(xc.shape, lambda i: (0, 0)),            # im2col'd input
            pl.BlockSpec(w1.shape, lambda i: (0, 0)),            # w1 (9, 64) f32
            pl.BlockSpec(b1.shape, lambda i: (0, 0)),
            pl.BlockSpec(w2.shape, lambda i: (0, 0)),            # w2 (576, 128) bf16
            pl.BlockSpec(b2.shape, lambda i: (0, 0)),
            pl.BlockSpec(memory_space=pl.ANY),                   # w3: stays in HBM, manual DMA
            pl.BlockSpec(b3.shape, lambda i: (0, 0)),
            pl.BlockSpec(memory_space=pl.ANY),                   # w4: stays in HBM, manual DMA
            pl.BlockSpec(b4.shape, lambda i: (0, 0)),
        ],
        out_specs=pl.BlockSpec((N, hf, wf, c4), lambda i: (0, 0, 0, 0)),
        scratch_shapes=[
            pltpu.VMEM(w3.shape, w3.dtype),                      # layer-3 weight landing buffer
            pltpu.VMEM(w4.shape, w4.dtype),                      # layer-4 weight landing buffer
            pltpu.SemaphoreType.DMA((2,)),
            pltpu.VMEM((N, H // 2 + 2, W // 2 + 2, c1), jnp.bfloat16),   # padded act -> layer 2
            pltpu.VMEM((N, H // 4 + 2, W // 4 + 2, c2), jnp.bfloat16),   # padded act -> layer 3
            pltpu.VMEM((N, H // 8 + 2, W // 8 + 2, c3), jnp.bfloat16),   # padded act -> layer 4
        ],
        compiler_params=pltpu.CompilerParams(dimension_semantics=("arbitrary",)),
    )(xc, w1, b1, w2, b2, w3, b3, w4, b4)

    return jnp.transpose(out, (0, 3, 1, 2))                      # NHWC -> NCHW


def init_params(key):
    """Deterministic params matching nn.Conv2d defaults' shapes (HWIO here)."""
    channels = [(1, 64), (64, 128), (128, 256), (256, 512)]
    params = []
    for cin, cout in channels:
        key, kw, kb = jax.random.split(key, 3)
        bound = 1.0 / jnp.sqrt(cin * 3 * 3)
        w = jax.random.uniform(kw, (3, 3, cin, cout), jnp.float32, -bound, bound)
        b = jax.random.uniform(kb, (cout,), jnp.float32, -bound, bound)
        params.append((w, b))
    return params


def _reference_encoder(x_nchw, params):
    """Pure-JAX (XLA, f32) reference for a correctness check."""
    x = jnp.transpose(x_nchw, (0, 2, 3, 1))
    for w, b in params:
        y = jax.lax.conv_general_dilated(
            x, w, window_strides=(1, 1), padding=((1, 1), (1, 1)),
            dimension_numbers=("NHWC", "HWIO", "NHWC"))
        y = jnp.maximum(y + b, 0.0)
        x = jax.lax.reduce_window(y, -jnp.inf, jax.lax.max,
                                  (1, 2, 2, 1), (1, 2, 2, 1), "VALID")
    return jnp.transpose(x, (0, 3, 1, 2))


if __name__ == "__main__":
    key = jax.random.PRNGKey(0)
    key, kx = jax.random.split(key)
    # PyTorch-style NCHW input: batch=2, channels=1, 16x16 spatial
    x = jax.random.normal(kx, (2, 1, 16, 16), jnp.float32)
    params = init_params(key)
    prepped = prepare_params(params)   # one-time weight reshape/cast, outside the hot path

    enc = jax.jit(custom_encoder)
    out = jax.block_until_ready(enc(x, prepped))
    assert out.shape == (2, 512, 1, 1), out.shape

    ref = jax.block_until_ready(_reference_encoder(x, params))
    # Tolerance accounts for bf16 matmul inputs / bf16 inter-layer activations
    # (f32 accumulation) in layers 2-4.
    err = float(jnp.max(jnp.abs(out - ref)))
    assert jnp.allclose(out, ref, atol=2e-2, rtol=2e-2), err

    print("KERNEL_OK")
</pallas_src>

<mosaic_0001>
module attributes {stable_mosaic.version = 11 : i64} {
  func.func @_encoder_kernel(%arg0: i32, %arg1: memref<512x9xf32, #tpu.memory_space<vmem>>, %arg2: memref<9x64xf32, #tpu.memory_space<vmem>>, %arg3: memref<1x64xf32, #tpu.memory_space<vmem>>, %arg4: memref<576x128xbf16, #tpu.memory_space<vmem>>, %arg5: memref<1x128xf32, #tpu.memory_space<vmem>>, %arg6: memref<1152x256xbf16, #tpu.memory_space<any>>, %arg7: memref<1x256xf32, #tpu.memory_space<vmem>>, %arg8: memref<2304x512xbf16, #tpu.memory_space<any>>, %arg9: memref<1x512xf32, #tpu.memory_space<vmem>>, %arg10: memref<2x1x1x512xf32, #tpu.memory_space<vmem>>, %arg11: memref<1152x256xbf16, #tpu.memory_space<vmem>>, %arg12: memref<2304x512xbf16, #tpu.memory_space<vmem>>, %arg13: memref<2x!tpu.dma_semaphore, #tpu.memory_space<semaphore_mem>>, %arg14: memref<2x10x10x64xbf16, #tpu.memory_space<vmem>>, %arg15: memref<2x6x6x128xbf16, #tpu.memory_space<vmem>>, %arg16: memref<2x4x4x256xbf16, #tpu.memory_space<vmem>>) attributes {dimension_semantics = [#tpu.dimension_semantics<arbitrary>], iteration_bounds = array<i64: 1>, scalar_prefetch = 0 : i64, scratch_operands = 6 : i64, tpu.core_type = #tpu.core_type<tc>, window_params = [{pipeline_mode = #tpu.pipeline_mode<synchronous>, transform_indices = @transform_0, window_bounds = array<i64: 512, 9>}, {pipeline_mode = #tpu.pipeline_mode<synchronous>, transform_indices = @transform_1, window_bounds = array<i64: 9, 64>}, {pipeline_mode = #tpu.pipeline_mode<synchronous>, transform_indices = @transform_2, window_bounds = array<i64: 1, 64>}, {pipeline_mode = #tpu.pipeline_mode<synchronous>, transform_indices = @transform_3, window_bounds = array<i64: 576, 128>}, {pipeline_mode = #tpu.pipeline_mode<synchronous>, transform_indices = @transform_4, window_bounds = array<i64: 1, 128>}, {}, {pipeline_mode = #tpu.pipeline_mode<synchronous>, transform_indices = @transform_6, window_bounds = array<i64: 1, 256>}, {}, {pipeline_mode = #tpu.pipeline_mode<synchronous>, transform_indices = @transform_8, window_bounds = array<i64: 1, 512>}, {pipeline_mode = #tpu.pipeline_mode<synchronous>, transform_indices = @transform_9, window_bounds = array<i64: 2, 1, 1, 512>}]} {
    %c0_i32 = arith.constant 0 : i32
    %0 = tpu.memref_slice %arg13[%c0_i32] : memref<2x!tpu.dma_semaphore, #tpu.memory_space<semaphore_mem>> -> memref<1x!tpu.dma_semaphore, #tpu.memory_space<semaphore_mem>>
    %1 = tpu.memref_squeeze %0 : memref<1x!tpu.dma_semaphore, #tpu.memory_space<semaphore_mem>> -> memref<!tpu.dma_semaphore, #tpu.memory_space<semaphore_mem>>
    tpu.enqueue_dma source(%arg6 : memref<1152x256xbf16, #tpu.memory_space<any>>) target(%arg11 : memref<1152x256xbf16, #tpu.memory_space<vmem>>) target_semaphore(%1 : memref<!tpu.dma_semaphore, #tpu.memory_space<semaphore_mem>>)
    %c1_i32 = arith.constant 1 : i32
    %2 = tpu.memref_slice %arg13[%c1_i32] : memref<2x!tpu.dma_semaphore, #tpu.memory_space<semaphore_mem>> -> memref<1x!tpu.dma_semaphore, #tpu.memory_space<semaphore_mem>>
    %3 = tpu.memref_squeeze %2 : memref<1x!tpu.dma_semaphore, #tpu.memory_space<semaphore_mem>> -> memref<!tpu.dma_semaphore, #tpu.memory_space<semaphore_mem>>
    tpu.enqueue_dma source(%arg8 : memref<2304x512xbf16, #tpu.memory_space<any>>) target(%arg12 : memref<2304x512xbf16, #tpu.memory_space<vmem>>) target_semaphore(%3 : memref<!tpu.dma_semaphore, #tpu.memory_space<semaphore_mem>>)
    %cst = arith.constant 0.000000e+00 : bf16
    %4 = vector.broadcast %cst : bf16 to vector<2x10x10x64xbf16>
    %c0 = arith.constant 0 : index
    %c0_0 = arith.constant 0 : index
    %c0_1 = arith.constant 0 : index
    %c0_2 = arith.constant 0 : index
    %5 = vector.load %arg14[%c0, %c0_0, %c0_1, %c0_2] : memref<2x10x10x64xbf16, #tpu.memory_space<vmem>>, vector<2x10x10x64xbf16>
    tpu.vector_store %arg14[%c0, %c0_0, %c0_1, %c0_2], %4 {strides = array<i32>} : memref<2x10x10x64xbf16, #tpu.memory_space<vmem>>, vector<2x10x10x64xbf16>,
    %cst_3 = arith.constant 0.000000e+00 : bf16
    %6 = vector.broadcast %cst_3 : bf16 to vector<2x6x6x128xbf16>
    %c0_4 = arith.constant 0 : index
    %c0_5 = arith.constant 0 : index
    %c0_6 = arith.constant 0 : index
    %c0_7 = arith.constant 0 : index
    %7 = vector.load %arg15[%c0_4, %c0_5, %c0_6, %c0_7] : memref<2x6x6x128xbf16, #tpu.memory_space<vmem>>, vector<2x6x6x128xbf16>
    tpu.vector_store %arg15[%c0_4, %c0_5, %c0_6, %c0_7], %6 {strides = array<i32>} : memref<2x6x6x128xbf16, #tpu.memory_space<vmem>>, vector<2x6x6x128xbf16>,
    %cst_8 = arith.constant 0.000000e+00 : bf16
    %8 = vector.broadcast %cst_8 : bf16 to vector<2x4x4x256xbf16>
    %c0_9 = arith.constant 0 : index
    %c0_10 = arith.constant 0 : index
    %c0_11 = arith.constant 0 : index
    %c0_12 = arith.constant 0 : index
    %9 = vector.load %arg16[%c0_9, %c0_10, %c0_11, %c0_12] : memref<2x4x4x256xbf16, #tpu.memory_space<vmem>>, vector<2x4x4x256xbf16>
    tpu.vector_store %arg16[%c0_9, %c0_10, %c0_11, %c0_12], %8 {strides = array<i32>} : memref<2x4x4x256xbf16, #tpu.memory_space<vmem>>, vector<2x4x4x256xbf16>,
    %c0_13 = arith.constant 0 : index
    %c0_14 = arith.constant 0 : index
    %10 = vector.load %arg1[%c0_13, %c0_14] : memref<512x9xf32, #tpu.memory_space<vmem>>, vector<512x9xf32>
    %c0_15 = arith.constant 0 : index
    %c0_16 = arith.constant 0 : index
    %11 = vector.load %arg2[%c0_15, %c0_16] : memref<9x64xf32, #tpu.memory_space<vmem>>, vector<9x64xf32>
    %cst_17 = arith.constant dense<0.000000e+00> : vector<512x64xf32>
    %12 = tpu.matmul %10, %11, %cst_17 {dimension_numbers = #tpu.dot_dimension_numbers<[1], [0], [0], [1], [0, 0, 1, 1], [], []>} : vector<512x9xf32>, vector<9x64xf32>, vector<512x64xf32> -> vector<512x64xf32>
    %c0_18 = arith.constant 0 : index
    %c0_19 = arith.constant 0 : index
    %13 = vector.load %arg3[%c0_18, %c0_19] : memref<1x64xf32, #tpu.memory_space<vmem>>, vector<1x64xf32>
    %14 = vector.broadcast %13 : vector<1x64xf32> to vector<512x64xf32>
    %15 = arith.addf %12, %14 : vector<512x64xf32>
    %cst_20 = arith.constant 0.000000e+00 : f32
    %16 = vector.broadcast %cst_20 : f32 to vector<512x64xf32>
    %17 = arith.maximumf %15, %16 : vector<512x64xf32>
    %18 = vector.shape_cast %17 : vector<512x64xf32> to vector<16x32x64xf32>
    %19 = vector.extract_strided_slice %18 {offsets = [0, 0, 0], sizes = [16, 16, 64], strides = [1, 1, 1]} : vector<16x32x64xf32> to vector<16x16x64xf32>
    %20 = vector.extract_strided_slice %18 {offsets = [0, 16, 0], sizes = [16, 16, 64], strides = [1, 1, 1]} : vector<16x32x64xf32> to vector<16x16x64xf32>
    %21 = arith.maximumf %19, %20 : vector<16x16x64xf32>
    %22 = vector.shape_cast %21 : vector<16x16x64xf32> to vector<128x2x64xf32>
    %cst_21 = arith.constant dense<0xFF800000> : vector<128x64xf32>
    %23 = vector.multi_reduction <maximumf>, %22, %cst_21 [1] : vector<128x2x64xf32> to vector<128x64xf32>
    %24 = vector.shape_cast %23 : vector<128x64xf32> to vector<2x8x8x64xf32>
    %25 = arith.truncf %24 : vector<2x8x8x64xf32> to vector<2x8x8x64xbf16>
    %c0_22 = arith.constant 0 : index
    %c1 = arith.constant 1 : index
    %c1_23 = arith.constant 1 : index
    %c0_24 = arith.constant 0 : index
    %26 = vector.load %arg14[%c0_22, %c1, %c1_23, %c0_24] : memref<2x10x10x64xbf16, #tpu.memory_space<vmem>>, vector<2x8x8x64xbf16>
    tpu.vector_store %arg14[%c0_22, %c1, %c1_23, %c0_24], %25 {strides = array<i32>} : memref<2x10x10x64xbf16, #tpu.memory_space<vmem>>, vector<2x8x8x64xbf16>,
    %cst_25 = arith.constant 0.000000e+00 : f32
    %27 = vector.broadcast %cst_25 : f32 to vector<128x128xf32>
    %c0_26 = arith.constant 0 : index
    %c0_27 = arith.constant 0 : index
    %c0_28 = arith.constant 0 : index
    %c0_29 = arith.constant 0 : index
    %28 = vector.load %arg14[%c0_26, %c0_27, %c0_28, %c0_29] : memref<2x10x10x64xbf16, #tpu.memory_space<vmem>>, vector<2x8x8x64xbf16>
    %29 = vector.shape_cast %28 : vector<2x8x8x64xbf16> to vector<128x64xbf16>
    %c0_30 = arith.constant 0 : index
    %c0_31 = arith.constant 0 : index
    %30 = vector.load %arg4[%c0_30, %c0_31] : memref<576x128xbf16, #tpu.memory_space<vmem>>, vector<64x128xbf16>
    %cst_32 = arith.constant dense<0.000000e+00> : vector<128x128xf32>
    %31 = tpu.matmul %29, %30, %cst_32 {dimension_numbers = #tpu.dot_dimension_numbers<[1], [0], [0], [1], [0, 0, 1, 1], [], []>} : vector<128x64xbf16>, vector<64x128xbf16>, vector<128x128xf32> -> vector<128x128xf32>
    %32 = arith.addf %27, %31 : vector<128x128xf32>
    %c0_33 = arith.constant 0 : index
    %c0_34 = arith.constant 0 : index
    %c1_35 = arith.constant 1 : index
    %c0_36 = arith.constant 0 : index
    %33 = vector.load %arg14[%c0_33, %c0_34, %c1_35, %c0_36] : memref<2x10x10x64xbf16, #tpu.memory_space<vmem>>, vector<2x8x8x64xbf16>
    %34 = vector.shape_cast %33 : vector<2x8x8x64xbf16> to vector<128x64xbf16>
    %c64 = arith.constant 64 : index
    %c0_37 = arith.constant 0 : index
    %35 = vector.load %arg4[%c64, %c0_37] : memref<576x128xbf16, #tpu.memory_space<vmem>>, vector<64x128xbf16>
    %cst_38 = arith.constant dense<0.000000e+00> : vector<128x128xf32>
    %36 = tpu.matmul %34, %35, %cst_38 {dimension_numbers = #tpu.dot_dimension_numbers<[1], [0], [0], [1], [0, 0, 1, 1], [], []>} : vector<128x64xbf16>, vector<64x128xbf16>, vector<128x128xf32> -> vector<128x128xf32>
    %37 = arith.addf %32, %36 : vector<128x128xf32>
    %c0_39 = arith.constant 0 : index
    %c0_40 = arith.constant 0 : index
    %c2 = arith.constant 2 : index
    %c0_41 = arith.constant 0 : index
    %38 = vector.load %arg14[%c0_39, %c0_40, %c2, %c0_41] : memref<2x10x10x64xbf16, #tpu.memory_space<vmem>>, vector<2x8x8x64xbf16>
    %39 = vector.shape_cast %38 : vector<2x8x8x64xbf16> to vector<128x64xbf16>
    %c128 = arith.constant 128 : index
    %c0_42 = arith.constant 0 : index
    %40 = vector.load %arg4[%c128, %c0_42] : memref<576x128xbf16, #tpu.memory_space<vmem>>, vector<64x128xbf16>
    %cst_43 = arith.constant dense<0.000000e+00> : vector<128x128xf32>
    %41 = tpu.matmul %39, %40, %cst_43 {dimension_numbers = #tpu.dot_dimension_numbers<[1], [0], [0], [1], [0, 0, 1, 1], [], []>} : vector<128x64xbf16>, vector<64x128xbf16>, vector<128x128xf32> -> vector<128x128xf32>
    %42 = arith.addf %37, %41 : vector<128x128xf32>
    %c0_44 = arith.constant 0 : index
    %c1_45 = arith.constant 1 : index
    %c0_46 = arith.constant 0 : index
    %c0_47 = arith.constant 0 : index
    %43 = vector.load %arg14[%c0_44, %c1_45, %c0_46, %c0_47] : memref<2x10x10x64xbf16, #tpu.memory_space<vmem>>, vector<2x8x8x64xbf16>
    %44 = vector.shape_cast %43 : vector<2x8x8x64xbf16> to vector<128x64xbf16>
    %c192 = arith.constant 192 : index
    %c0_48 = arith.constant 0 : index
    %45 = vector.load %arg4[%c192, %c0_48] : memref<576x128xbf16, #tpu.memory_space<vmem>>, vector<64x128xbf16>
    %cst_49 = arith.constant dense<0.000000e+00> : vector<128x128xf32>
    %46 = tpu.matmul %44, %45, %cst_49 {dimension_numbers = #tpu.dot_dimension_numbers<[1], [0], [0], [1], [0, 0, 1, 1], [], []>} : vector<128x64xbf16>, vector<64x128xbf16>, vector<128x128xf32> -> vector<128x128xf32>
    %47 = arith.addf %42, %46 : vector<128x128xf32>
    %c0_50 = arith.constant 0 : index
    %c1_51 = arith.constant 1 : index
    %c1_52 = arith.constant 1 : index
    %c0_53 = arith.constant 0 : index
    %48 = vector.load %arg14[%c0_50, %c1_51, %c1_52, %c0_53] : memref<2x10x10x64xbf16, #tpu.memory_space<vmem>>, vector<2x8x8x64xbf16>
    %49 = vector.shape_cast %48 : vector<2x8x8x64xbf16> to vector<128x64xbf16>
    %c256 = arith.constant 256 : index
    %c0_54 = arith.constant 0 : index
    %50 = vector.load %arg4[%c256, %c0_54] : memref<576x128xbf16, #tpu.memory_space<vmem>>, vector<64x128xbf16>
    %cst_55 = arith.constant dense<0.000000e+00> : vector<128x128xf32>
    %51 = tpu.matmul %49, %50, %cst_55 {dimension_numbers = #tpu.dot_dimension_numbers<[1], [0], [0], [1], [0, 0, 1, 1], [], []>} : vector<128x64xbf16>, vector<64x128xbf16>, vector<128x128xf32> -> vector<128x128xf32>
    %52 = arith.addf %47, %51 : vector<128x128xf32>
    %c0_56 = arith.constant 0 : index
    %c1_57 = arith.constant 1 : index
    %c2_58 = arith.constant 2 : index
    %c0_59 = arith.constant 0 : index
    %53 = vector.load %arg14[%c0_56, %c1_57, %c2_58, %c0_59] : memref<2x10x10x64xbf16, #tpu.memory_space<vmem>>, vector<2x8x8x64xbf16>
    %54 = vector.shape_cast %53 : vector<2x8x8x64xbf16> to vector<128x64xbf16>
    %c320 = arith.constant 320 : index
    %c0_60 = arith.constant 0 : index
    %55 = vector.load %arg4[%c320, %c0_60] : memref<576x128xbf16, #tpu.memory_space<vmem>>, vector<64x128xbf16>
    %cst_61 = arith.constant dense<0.000000e+00> : vector<128x128xf32>
    %56 = tpu.matmul %54, %55, %cst_61 {dimension_numbers = #tpu.dot_dimension_numbers<[1], [0], [0], [1], [0, 0, 1, 1], [], []>} : vector<128x64xbf16>, vector<64x128xbf16>, vector<128x128xf32> -> vector<128x128xf32>
    %57 = arith.addf %52, %56 : vector<128x128xf32>
    %c0_62 = arith.constant 0 : index
    %c2_63 = arith.constant 2 : index
    %c0_64 = arith.constant 0 : index
    %c0_65 = arith.constant 0 : index
    %58 = vector.load %arg14[%c0_62, %c2_63, %c0_64, %c0_65] : memref<2x10x10x64xbf16, #tpu.memory_space<vmem>>, vector<2x8x8x64xbf16>
    %59 = vector.shape_cast %58 : vector<2x8x8x64xbf16> to vector<128x64xbf16>
    %c384 = arith.constant 384 : index
    %c0_66 = arith.constant 0 : index
    %60 = vector.load %arg4[%c384, %c0_66] : memref<576x128xbf16, #tpu.memory_space<vmem>>, vector<64x128xbf16>
    %cst_67 = arith.constant dense<0.000000e+00> : vector<128x128xf32>
    %61 = tpu.matmul %59, %60, %cst_67 {dimension_numbers = #tpu.dot_dimension_numbers<[1], [0], [0], [1], [0, 0, 1, 1], [], []>} : vector<128x64xbf16>, vector<64x128xbf16>, vector<128x128xf32> -> vector<128x128xf32>
    %62 = arith.addf %57, %61 : vector<128x128xf32>
    %c0_68 = arith.constant 0 : index
    %c2_69 = arith.constant 2 : index
    %c1_70 = arith.constant 1 : index
    %c0_71 = arith.constant 0 : index
    %63 = vector.load %arg14[%c0_68, %c2_69, %c1_70, %c0_71] : memref<2x10x10x64xbf16, #tpu.memory_space<vmem>>, vector<2x8x8x64xbf16>
    %64 = vector.shape_cast %63 : vector<2x8x8x64xbf16> to vector<128x64xbf16>
    %c448 = arith.constant 448 : index
    %c0_72 = arith.constant 0 : index
    %65 = vector.load %arg4[%c448, %c0_72] : memref<576x128xbf16, #tpu.memory_space<vmem>>, vector<64x128xbf16>
    %cst_73 = arith.constant dense<0.000000e+00> : vector<128x128xf32>
    %66 = tpu.matmul %64, %65, %cst_73 {dimension_numbers = #tpu.dot_dimension_numbers<[1], [0], [0], [1], [0, 0, 1, 1], [], []>} : vector<128x64xbf16>, vector<64x128xbf16>, vector<128x128xf32> -> vector<128x128xf32>
    %67 = arith.addf %62, %66 : vector<128x128xf32>
    %c0_74 = arith.constant 0 : index
    %c2_75 = arith.constant 2 : index
    %c2_76 = arith.constant 2 : index
    %c0_77 = arith.constant 0 : index
    %68 = vector.load %arg14[%c0_74, %c2_75, %c2_76, %c0_77] : memref<2x10x10x64xbf16, #tpu.memory_space<vmem>>, vector<2x8x8x64xbf16>
    %69 = vector.shape_cast %68 : vector<2x8x8x64xbf16> to vector<128x64xbf16>
    %c512 = arith.constant 512 : index
    %c0_78 = arith.constant 0 : index
    %70 = vector.load %arg4[%c512, %c0_78] : memref<576x128xbf16, #tpu.memory_space<vmem>>, vector<64x128xbf16>
    %cst_79 = arith.constant dense<0.000000e+00> : vector<128x128xf32>
    %71 = tpu.matmul %69, %70, %cst_79 {dimension_numbers = #tpu.dot_dimension_numbers<[1], [0], [0], [1], [0, 0, 1, 1], [], []>} : vector<128x64xbf16>, vector<64x128xbf16>, vector<128x128xf32> -> vector<128x128xf32>
    %72 = arith.addf %67, %71 : vector<128x128xf32>
    %c0_80 = arith.constant 0 : index
    %c0_81 = arith.constant 0 : index
    %73 = vector.load %arg5[%c0_80, %c0_81] : memref<1x128xf32, #tpu.memory_space<vmem>>, vector<1x128xf32>
    %74 = vector.broadcast %73 : vector<1x128xf32> to vector<128x128xf32>
    %75 = arith.addf %72, %74 : vector<128x128xf32>
    %cst_82 = arith.constant 0.000000e+00 : f32
    %76 = vector.broadcast %cst_82 : f32 to vector<128x128xf32>
    %77 = arith.maximumf %75, %76 : vector<128x128xf32>
    %78 = vector.shape_cast %77 : vector<128x128xf32> to vector<8x16x128xf32>
    %79 = vector.extract_strided_slice %78 {offsets = [0, 0, 0], sizes = [8, 8, 128], strides = [1, 1, 1]} : vector<8x16x128xf32> to vector<8x8x128xf32>
    %80 = vector.extract_strided_slice %78 {offsets = [0, 8, 0], sizes = [8, 8, 128], strides = [1, 1, 1]} : vector<8x16x128xf32> to vector<8x8x128xf32>
    %81 = arith.maximumf %79, %80 : vector<8x8x128xf32>
    %82 = vector.shape_cast %81 : vector<8x8x128xf32> to vector<32x2x128xf32>
    %cst_83 = arith.constant dense<0xFF800000> : vector<32x128xf32>
    %83 = vector.multi_reduction <maximumf>, %82, %cst_83 [1] : vector<32x2x128xf32> to vector<32x128xf32>
    %84 = vector.shape_cast %83 : vector<32x128xf32> to vector<2x4x4x128xf32>
    %85 = arith.truncf %84 : vector<2x4x4x128xf32> to vector<2x4x4x128xbf16>
    %c0_84 = arith.constant 0 : index
    %c1_85 = arith.constant 1 : index
    %c1_86 = arith.constant 1 : index
    %c0_87 = arith.constant 0 : index
    %86 = vector.load %arg15[%c0_84, %c1_85, %c1_86, %c0_87] : memref<2x6x6x128xbf16, #tpu.memory_space<vmem>>, vector<2x4x4x128xbf16>
    tpu.vector_store %arg15[%c0_84, %c1_85, %c1_86, %c0_87], %85 {strides = array<i32>} : memref<2x6x6x128xbf16, #tpu.memory_space<vmem>>, vector<2x4x4x128xbf16>,
    %c0_i32_88 = arith.constant 0 : i32
    %87 = tpu.memref_slice %arg13[%c0_i32_88] : memref<2x!tpu.dma_semaphore, #tpu.memory_space<semaphore_mem>> -> memref<1x!tpu.dma_semaphore, #tpu.memory_space<semaphore_mem>>
    %88 = tpu.memref_squeeze %87 : memref<1x!tpu.dma_semaphore, #tpu.memory_space<semaphore_mem>> -> memref<!tpu.dma_semaphore, #tpu.memory_space<semaphore_mem>>
    tpu.wait_dma2 semaphore(%88 : memref<!tpu.dma_semaphore, #tpu.memory_space<semaphore_mem>>) src(%arg6 : memref<1152x256xbf16, #tpu.memory_space<any>>) dst(%arg11 : memref<1152x256xbf16, #tpu.memory_space<vmem>>)
    %cst_89 = arith.constant 0.000000e+00 : f32
    %89 = vector.broadcast %cst_89 : f32 to vector<32x256xf32>
    %c0_90 = arith.constant 0 : index
    %c0_91 = arith.constant 0 : index
    %c0_92 = arith.constant 0 : index
    %c0_93 = arith.constant 0 : index
    %90 = vector.load %arg15[%c0_90, %c0_91, %c0_92, %c0_93] : memref<2x6x6x128xbf16, #tpu.memory_space<vmem>>, vector<2x4x4x128xbf16>
    %91 = vector.shape_cast %90 : vector<2x4x4x128xbf16> to vector<32x128xbf16>
    %c0_94 = arith.constant 0 : index
    %c0_95 = arith.constant 0 : index
    %92 = vector.load %arg11[%c0_94, %c0_95] : memref<1152x256xbf16, #tpu.memory_space<vmem>>, vector<128x256xbf16>
    %cst_96 = arith.constant dense<0.000000e+00> : vector<32x256xf32>
    %93 = tpu.matmul %91, %92, %cst_96 {dimension_numbers = #tpu.dot_dimension_numbers<[1], [0], [0], [1], [0, 0, 1, 1], [], []>} : vector<32x128xbf16>, vector<128x256xbf16>, vector<32x256xf32> -> vector<32x256xf32>
    %94 = arith.addf %89, %93 : vector<32x256xf32>
    %c0_97 = arith.constant 0 : index
    %c0_98 = arith.constant 0 : index
    %c1_99 = arith.constant 1 : index
    %c0_100 = arith.constant 0 : index
    %95 = vector.load %arg15[%c0_97, %c0_98, %c1_99, %c0_100] : memref<2x6x6x128xbf16, #tpu.memory_space<vmem>>, vector<2x4x4x128xbf16>
    %96 = vector.shape_cast %95 : vector<2x4x4x128xbf16> to vector<32x128xbf16>
    %c128_101 = arith.constant 128 : index
    %c0_102 = arith.constant 0 : index
    %97 = vector.load %arg11[%c128_101, %c0_102] : memref<1152x256xbf16, #tpu.memory_space<vmem>>, vector<128x256xbf16>
    %cst_103 = arith.constant dense<0.000000e+00> : vector<32x256xf32>
    %98 = tpu.matmul %96, %97, %cst_103 {dimension_numbers = #tpu.dot_dimension_numbers<[1], [0], [0], [1], [0, 0, 1, 1], [], []>} : vector<32x128xbf16>, vector<128x256xbf16>, vector<32x256xf32> -> vector<32x256xf32>
    %99 = arith.addf %94, %98 : vector<32x256xf32>
    %c0_104 = arith.constant 0 : index
    %c0_105 = arith.constant 0 : index
    %c2_106 = arith.constant 2 : index
    %c0_107 = arith.constant 0 : index
    %100 = vector.load %arg15[%c0_104, %c0_105, %c2_106, %c0_107] : memref<2x6x6x128xbf16, #tpu.memory_space<vmem>>, vector<2x4x4x128xbf16>
    %101 = vector.shape_cast %100 : vector<2x4x4x128xbf16> to vector<32x128xbf16>
    %c256_108 = arith.constant 256 : index
    %c0_109 = arith.constant 0 : index
    %102 = vector.load %arg11[%c256_108, %c0_109] : memref<1152x256xbf16, #tpu.memory_space<vmem>>, vector<128x256xbf16>
    %cst_110 = arith.constant dense<0.000000e+00> : vector<32x256xf32>
    %103 = tpu.matmul %101, %102, %cst_110 {dimension_numbers = #tpu.dot_dimension_numbers<[1], [0], [0], [1], [0, 0, 1, 1], [], []>} : vector<32x128xbf16>, vector<128x256xbf16>, vector<32x256xf32> -> vector<32x256xf32>
    %104 = arith.addf %99, %103 : vector<32x256xf32>
    %c0_111 = arith.constant 0 : index
    %c1_112 = arith.constant 1 : index
    %c0_113 = arith.constant 0 : index
    %c0_114 = arith.constant 0 : index
    %105 = vector.load %arg15[%c0_111, %c1_112, %c0_113, %c0_114] : memref<2x6x6x128xbf16, #tpu.memory_space<vmem>>, vector<2x4x4x128xbf16>
    %106 = vector.shape_cast %105 : vector<2x4x4x128xbf16> to vector<32x128xbf16>
    %c384_115 = arith.constant 384 : index
    %c0_116 = arith.constant 0 : index
    %107 = vector.load %arg11[%c384_115, %c0_116] : memref<1152x256xbf16, #tpu.memory_space<vmem>>, vector<128x256xbf16>
    %cst_117 = arith.constant dense<0.000000e+00> : vector<32x256xf32>
    %108 = tpu.matmul %106, %107, %cst_117 {dimension_numbers = #tpu.dot_dimension_numbers<[1], [0], [0], [1], [0, 0, 1, 1], [], []>} : vector<32x128xbf16>, vector<128x256xbf16>, vector<32x256xf32> -> vector<32x256xf32>
    %109 = arith.addf %104, %108 : vector<32x256xf32>
    %c0_118 = arith.constant 0 : index
    %c1_119 = arith.constant 1 : index
    %c1_120 = arith.constant 1 : index
    %c0_121 = arith.constant 0 : index
    %110 = vector.load %arg15[%c0_118, %c1_119, %c1_120, %c0_121] : memref<2x6x6x128xbf16, #tpu.memory_space<vmem>>, vector<2x4x4x128xbf16>
    %111 = vector.shape_cast %110 : vector<2x4x4x128xbf16> to vector<32x128xbf16>
    %c512_122 = arith.constant 512 : index
    %c0_123 = arith.constant 0 : index
    %112 = vector.load %arg11[%c512_122, %c0_123] : memref<1152x256xbf16, #tpu.memory_space<vmem>>, vector<128x256xbf16>
    %cst_124 = arith.constant dense<0.000000e+00> : vector<32x256xf32>
    %113 = tpu.matmul %111, %112, %cst_124 {dimension_numbers = #tpu.dot_dimension_numbers<[1], [0], [0], [1], [0, 0, 1, 1], [], []>} : vector<32x128xbf16>, vector<128x256xbf16>, vector<32x256xf32> -> vector<32x256xf32>
    %114 = arith.addf %109, %113 : vector<32x256xf32>
    %c0_125 = arith.constant 0 : index
    %c1_126 = arith.constant 1 : index
    %c2_127 = arith.constant 2 : index
    %c0_128 = arith.constant 0 : index
    %115 = vector.load %arg15[%c0_125, %c1_126, %c2_127, %c0_128] : memref<2x6x6x128xbf16, #tpu.memory_space<vmem>>, vector<2x4x4x128xbf16>
    %116 = vector.shape_cast %115 : vector<2x4x4x128xbf16> to vector<32x128xbf16>
    %c640 = arith.constant 640 : index
    %c0_129 = arith.constant 0 : index
    %117 = vector.load %arg11[%c640, %c0_129] : memref<1152x256xbf16, #tpu.memory_space<vmem>>, vector<128x256xbf16>
    %cst_130 = arith.constant dense<0.000000e+00> : vector<32x256xf32>
    %118 = tpu.matmul %116, %117, %cst_130 {dimension_numbers = #tpu.dot_dimension_numbers<[1], [0], [0], [1], [0, 0, 1, 1], [], []>} : vector<32x128xbf16>, vector<128x256xbf16>, vector<32x256xf32> -> vector<32x256xf32>
    %119 = arith.addf %114, %118 : vector<32x256xf32>
    %c0_131 = arith.constant 0 : index
    %c2_132 = arith.constant 2 : index
    %c0_133 = arith.constant 0 : index
    %c0_134 = arith.constant 0 : index
    %120 = vector.load %arg15[%c0_131, %c2_132, %c0_133, %c0_134] : memref<2x6x6x128xbf16, #tpu.memory_space<vmem>>, vector<2x4x4x128xbf16>
    %121 = vector.shape_cast %120 : vector<2x4x4x128xbf16> to vector<32x128xbf16>
    %c768 = arith.constant 768 : index
    %c0_135 = arith.constant 0 : index
    %122 = vector.load %arg11[%c768, %c0_135] : memref<1152x256xbf16, #tpu.memory_space<vmem>>, vector<128x256xbf16>
    %cst_136 = arith.constant dense<0.000000e+00> : vector<32x256xf32>
    %123 = tpu.matmul %121, %122, %cst_136 {dimension_numbers = #tpu.dot_dimension_numbers<[1], [0], [0], [1], [0, 0, 1, 1], [], []>} : vector<32x128xbf16>, vector<128x256xbf16>, vector<32x256xf32> -> vector<32x256xf32>
    %124 = arith.addf %119, %123 : vector<32x256xf32>
    %c0_137 = arith.constant 0 : index
    %c2_138 = arith.constant 2 : index
    %c1_139 = arith.constant 1 : index
    %c0_140 = arith.constant 0 : index
    %125 = vector.load %arg15[%c0_137, %c2_138, %c1_139, %c0_140] : memref<2x6x6x128xbf16, #tpu.memory_space<vmem>>, vector<2x4x4x128xbf16>
    %126 = vector.shape_cast %125 : vector<2x4x4x128xbf16> to vector<32x128xbf16>
    %c896 = arith.constant 896 : index
    %c0_141 = arith.constant 0 : index
    %127 = vector.load %arg11[%c896, %c0_141] : memref<1152x256xbf16, #tpu.memory_space<vmem>>, vector<128x256xbf16>
    %cst_142 = arith.constant dense<0.000000e+00> : vector<32x256xf32>
    %128 = tpu.matmul %126, %127, %cst_142 {dimension_numbers = #tpu.dot_dimension_numbers<[1], [0], [0], [1], [0, 0, 1, 1], [], []>} : vector<32x128xbf16>, vector<128x256xbf16>, vector<32x256xf32> -> vector<32x256xf32>
    %129 = arith.addf %124, %128 : vector<32x256xf32>
    %c0_143 = arith.constant 0 : index
    %c2_144 = arith.constant 2 : index
    %c2_145 = arith.constant 2 : index
    %c0_146 = arith.constant 0 : index
    %130 = vector.load %arg15[%c0_143, %c2_144, %c2_145, %c0_146] : memref<2x6x6x128xbf16, #tpu.memory_space<vmem>>, vector<2x4x4x128xbf16>
    %131 = vector.shape_cast %130 : vector<2x4x4x128xbf16> to vector<32x128xbf16>
    %c1024 = arith.constant 1024 : index
    %c0_147 = arith.constant 0 : index
    %132 = vector.load %arg11[%c1024, %c0_147] : memref<1152x256xbf16, #tpu.memory_space<vmem>>, vector<128x256xbf16>
    %cst_148 = arith.constant dense<0.000000e+00> : vector<32x256xf32>
    %133 = tpu.matmul %131, %132, %cst_148 {dimension_numbers = #tpu.dot_dimension_numbers<[1], [0], [0], [1], [0, 0, 1, 1], [], []>} : vector<32x128xbf16>, vector<128x256xbf16>, vector<32x256xf32> -> vector<32x256xf32>
    %134 = arith.addf %129, %133 : vector<32x256xf32>
    %c0_149 = arith.constant 0 : index
    %c0_150 = arith.constant 0 : index
    %135 = vector.load %arg7[%c0_149, %c0_150] : memref<1x256xf32, #tpu.memory_space<vmem>>, vector<1x256xf32>
    %136 = vector.broadcast %135 : vector<1x256xf32> to vector<32x256xf32>
    %137 = arith.addf %134, %136 : vector<32x256xf32>
    %cst_151 = arith.constant 0.000000e+00 : f32
    %138 = vector.broadcast %cst_151 : f32 to vector<32x256xf32>
    %139 = arith.maximumf %137, %138 : vector<32x256xf32>
    %140 = vector.shape_cast %139 : vector<32x256xf32> to vector<4x8x256xf32>
    %141 = vector.extract_strided_slice %140 {offsets = [0, 0, 0], sizes = [4, 4, 256], strides = [1, 1, 1]} : vector<4x8x256xf32> to vector<4x4x256xf32>
    %142 = vector.extract_strided_slice %140 {offsets = [0, 4, 0], sizes = [4, 4, 256], strides = [1, 1, 1]} : vector<4x8x256xf32> to vector<4x4x256xf32>
    %143 = arith.maximumf %141, %142 : vector<4x4x256xf32>
    %144 = vector.shape_cast %143 : vector<4x4x256xf32> to vector<8x2x256xf32>
    %cst_152 = arith.constant dense<0xFF800000> : vector<8x256xf32>
    %145 = vector.multi_reduction <maximumf>, %144, %cst_152 [1] : vector<8x2x256xf32> to vector<8x256xf32>
    %146 = vector.shape_cast %145 : vector<8x256xf32> to vector<2x2x2x256xf32>
    %147 = arith.truncf %146 : vector<2x2x2x256xf32> to vector<2x2x2x256xbf16>
    %c0_153 = arith.constant 0 : index
    %c1_154 = arith.constant 1 : index
    %c1_155 = arith.constant 1 : index
    %c0_156 = arith.constant 0 : index
    %148 = vector.load %arg16[%c0_153, %c1_154, %c1_155, %c0_156] : memref<2x4x4x256xbf16, #tpu.memory_space<vmem>>, vector<2x2x2x256xbf16>
    tpu.vector_store %arg16[%c0_153, %c1_154, %c1_155, %c0_156], %147 {strides = array<i32>} : memref<2x4x4x256xbf16, #tpu.memory_space<vmem>>, vector<2x2x2x256xbf16>,
    %c1_i32_157 = arith.constant 1 : i32
    %149 = tpu.memref_slice %arg13[%c1_i32_157] : memref<2x!tpu.dma_semaphore, #tpu.memory_space<semaphore_mem>> -> memref<1x!tpu.dma_semaphore, #tpu.memory_space<semaphore_mem>>
    %150 = tpu.memref_squeeze %149 : memref<1x!tpu.dma_semaphore, #tpu.memory_space<semaphore_mem>> -> memref<!tpu.dma_semaphore, #tpu.memory_space<semaphore_mem>>
    tpu.wait_dma2 semaphore(%150 : memref<!tpu.dma_semaphore, #tpu.memory_space<semaphore_mem>>) src(%arg8 : memref<2304x512xbf16, #tpu.memory_space<any>>) dst(%arg12 : memref<2304x512xbf16, #tpu.memory_space<vmem>>)
    %cst_158 = arith.constant 0.000000e+00 : f32
    %151 = vector.broadcast %cst_158 : f32 to vector<8x512xf32>
    %c0_159 = arith.constant 0 : index
    %c0_160 = arith.constant 0 : index
    %c0_161 = arith.constant 0 : index
    %c0_162 = arith.constant 0 : index
    %152 = vector.load %arg16[%c0_159, %c0_160, %c0_161, %c0_162] : memref<2x4x4x256xbf16, #tpu.memory_space<vmem>>, vector<2x2x2x256xbf16>
    %153 = vector.shape_cast %152 : vector<2x2x2x256xbf16> to vector<8x256xbf16>
    %c0_163 = arith.constant 0 : index
    %c0_164 = arith.constant 0 : index
    %154 = vector.load %arg12[%c0_163, %c0_164] : memref<2304x512xbf16, #tpu.memory_space<vmem>>, vector<256x512xbf16>
    %cst_165 = arith.constant dense<0.000000e+00> : vector<8x512xf32>
    %155 = tpu.matmul %153, %154, %cst_165 {dimension_numbers = #tpu.dot_dimension_numbers<[1], [0], [0], [1], [0, 0, 1, 1], [], []>} : vector<8x256xbf16>, vector<256x512xbf16>, vector<8x512xf32> -> vector<8x512xf32>
    %156 = arith.addf %151, %155 : vector<8x512xf32>
    %c0_166 = arith.constant 0 : index
    %c0_167 = arith.constant 0 : index
    %c1_168 = arith.constant 1 : index
    %c0_169 = arith.constant 0 : index
    %157 = vector.load %arg16[%c0_166, %c0_167, %c1_168, %c0_169] : memref<2x4x4x256xbf16, #tpu.memory_space<vmem>>, vector<2x2x2x256xbf16>
    %158 = vector.shape_cast %157 : vector<2x2x2x256xbf16> to vector<8x256xbf16>
    %c256_170 = arith.constant 256 : index
    %c0_171 = arith.constant 0 : index
    %159 = vector.load %arg12[%c256_170, %c0_171] : memref<2304x512xbf16, #tpu.memory_space<vmem>>, vector<256x512xbf16>
    %cst_172 = arith.constant dense<0.000000e+00> : vector<8x512xf32>
    %160 = tpu.matmul %158, %159, %cst_172 {dimension_numbers = #tpu.dot_dimension_numbers<[1], [0], [0], [1], [0, 0, 1, 1], [], []>} : vector<8x256xbf16>, vector<256x512xbf16>, vector<8x512xf32> -> vector<8x512xf32>
    %161 = arith.addf %156, %160 : vector<8x512xf32>
    %c0_173 = arith.constant 0 : index
    %c0_174 = arith.constant 0 : index
    %c2_175 = arith.constant 2 : index
    %c0_176 = arith.constant 0 : index
    %162 = vector.load %arg16[%c0_173, %c0_174, %c2_175, %c0_176] : memref<2x4x4x256xbf16, #tpu.memory_space<vmem>>, vector<2x2x2x256xbf16>
    %163 = vector.shape_cast %162 : vector<2x2x2x256xbf16> to vector<8x256xbf16>
    %c512_177 = arith.constant 512 : index
    %c0_178 = arith.constant 0 : index
    %164 = vector.load %arg12[%c512_177, %c0_178] : memref<2304x512xbf16, #tpu.memory_space<vmem>>, vector<256x512xbf16>
    %cst_179 = arith.constant dense<0.000000e+00> : vector<8x512xf32>
    %165 = tpu.matmul %163, %164, %cst_179 {dimension_numbers = #tpu.dot_dimension_numbers<[1], [0], [0], [1], [0, 0, 1, 1], [], []>} : vector<8x256xbf16>, vector<256x512xbf16>, vector<8x512xf32> -> vector<8x512xf32>
    %166 = arith.addf %161, %165 : vector<8x512xf32>
    %c0_180 = arith.constant 0 : index
    %c1_181 = arith.constant 1 : index
    %c0_182 = arith.constant 0 : index
    %c0_183 = arith.constant 0 : index
    %167 = vector.load %arg16[%c0_180, %c1_181, %c0_182, %c0_183] : memref<2x4x4x256xbf16, #tpu.memory_space<vmem>>, vector<2x2x2x256xbf16>
    %168 = vector.shape_cast %167 : vector<2x2x2x256xbf16> to vector<8x256xbf16>
    %c768_184 = arith.constant 768 : index
    %c0_185 = arith.constant 0 : index
    %169 = vector.load %arg12[%c768_184, %c0_185] : memref<2304x512xbf16, #tpu.memory_space<vmem>>, vector<256x512xbf16>
    %cst_186 = arith.constant dense<0.000000e+00> : vector<8x512xf32>
    %170 = tpu.matmul %168, %169, %cst_186 {dimension_numbers = #tpu.dot_dimension_numbers<[1], [0], [0], [1], [0, 0, 1, 1], [], []>} : vector<8x256xbf16>, vector<256x512xbf16>, vector<8x512xf32> -> vector<8x512xf32>
    %171 = arith.addf %166, %170 : vector<8x512xf32>
    %c0_187 = arith.constant 0 : index
    %c1_188 = arith.constant 1 : index
    %c1_189 = arith.constant 1 : index
    %c0_190 = arith.constant 0 : index
    %172 = vector.load %arg16[%c0_187, %c1_188, %c1_189, %c0_190] : memref<2x4x4x256xbf16, #tpu.memory_space<vmem>>, vector<2x2x2x256xbf16>
    %173 = vector.shape_cast %172 : vector<2x2x2x256xbf16> to vector<8x256xbf16>
    %c1024_191 = arith.constant 1024 : index
    %c0_192 = arith.constant 0 : index
    %174 = vector.load %arg12[%c1024_191, %c0_192] : memref<2304x512xbf16, #tpu.memory_space<vmem>>, vector<256x512xbf16>
    %cst_193 = arith.constant dense<0.000000e+00> : vector<8x512xf32>
    %175 = tpu.matmul %173, %174, %cst_193 {dimension_numbers = #tpu.dot_dimension_numbers<[1], [0], [0], [1], [0, 0, 1, 1], [], []>} : vector<8x256xbf16>, vector<256x512xbf16>, vector<8x512xf32> -> vector<8x512xf32>
    %176 = arith.addf %171, %175 : vector<8x512xf32>
    %c0_194 = arith.constant 0 : index
    %c1_195 = arith.constant 1 : index
    %c2_196 = arith.constant 2 : index
    %c0_197 = arith.constant 0 : index
    %177 = vector.load %arg16[%c0_194, %c1_195, %c2_196, %c0_197] : memref<2x4x4x256xbf16, #tpu.memory_space<vmem>>, vector<2x2x2x256xbf16>
    %178 = vector.shape_cast %177 : vector<2x2x2x256xbf16> to vector<8x256xbf16>
    %c1280 = arith.constant 1280 : index
    %c0_198 = arith.constant 0 : index
    %179 = vector.load %arg12[%c1280, %c0_198] : memref<2304x512xbf16, #tpu.memory_space<vmem>>, vector<256x512xbf16>
    %cst_199 = arith.constant dense<0.000000e+00> : vector<8x512xf32>
    %180 = tpu.matmul %178, %179, %cst_199 {dimension_numbers = #tpu.dot_dimension_numbers<[1], [0], [0], [1], [0, 0, 1, 1], [], []>} : vector<8x256xbf16>, vector<256x512xbf16>, vector<8x512xf32> -> vector<8x512xf32>
    %181 = arith.addf %176, %180 : vector<8x512xf32>
    %c0_200 = arith.constant 0 : index
    %c2_201 = arith.constant 2 : index
    %c0_202 = arith.constant 0 : index
    %c0_203 = arith.constant 0 : index
    %182 = vector.load %arg16[%c0_200, %c2_201, %c0_202, %c0_203] : memref<2x4x4x256xbf16, #tpu.memory_space<vmem>>, vector<2x2x2x256xbf16>
    %183 = vector.shape_cast %182 : vector<2x2x2x256xbf16> to vector<8x256xbf16>
    %c1536 = arith.constant 1536 : index
    %c0_204 = arith.constant 0 : index
    %184 = vector.load %arg12[%c1536, %c0_204] : memref<2304x512xbf16, #tpu.memory_space<vmem>>, vector<256x512xbf16>
    %cst_205 = arith.constant dense<0.000000e+00> : vector<8x512xf32>
    %185 = tpu.matmul %183, %184, %cst_205 {dimension_numbers = #tpu.dot_dimension_numbers<[1], [0], [0], [1], [0, 0, 1, 1], [], []>} : vector<8x256xbf16>, vector<256x512xbf16>, vector<8x512xf32> -> vector<8x512xf32>
    %186 = arith.addf %181, %185 : vector<8x512xf32>
    %c0_206 = arith.constant 0 : index
    %c2_207 = arith.constant 2 : index
    %c1_208 = arith.constant 1 : index
    %c0_209 = arith.constant 0 : index
    %187 = vector.load %arg16[%c0_206, %c2_207, %c1_208, %c0_209] : memref<2x4x4x256xbf16, #tpu.memory_space<vmem>>, vector<2x2x2x256xbf16>
    %188 = vector.shape_cast %187 : vector<2x2x2x256xbf16> to vector<8x256xbf16>
    %c1792 = arith.constant 1792 : index
    %c0_210 = arith.constant 0 : index
    %189 = vector.load %arg12[%c1792, %c0_210] : memref<2304x512xbf16, #tpu.memory_space<vmem>>, vector<256x512xbf16>
    %cst_211 = arith.constant dense<0.000000e+00> : vector<8x512xf32>
    %190 = tpu.matmul %188, %189, %cst_211 {dimension_numbers = #tpu.dot_dimension_numbers<[1], [0], [0], [1], [0, 0, 1, 1], [], []>} : vector<8x256xbf16>, vector<256x512xbf16>, vector<8x512xf32> -> vector<8x512xf32>
    %191 = arith.addf %186, %190 : vector<8x512xf32>
    %c0_212 = arith.constant 0 : index
    %c2_213 = arith.constant 2 : index
    %c2_214 = arith.constant 2 : index
    %c0_215 = arith.constant 0 : index
    %192 = vector.load %arg16[%c0_212, %c2_213, %c2_214, %c0_215] : memref<2x4x4x256xbf16, #tpu.memory_space<vmem>>, vector<2x2x2x256xbf16>
    %193 = vector.shape_cast %192 : vector<2x2x2x256xbf16> to vector<8x256xbf16>
    %c2048 = arith.constant 2048 : index
    %c0_216 = arith.constant 0 : index
    %194 = vector.load %arg12[%c2048, %c0_216] : memref<2304x512xbf16, #tpu.memory_space<vmem>>, vector<256x512xbf16>
    %cst_217 = arith.constant dense<0.000000e+00> : vector<8x512xf32>
    %195 = tpu.matmul %193, %194, %cst_217 {dimension_numbers = #tpu.dot_dimension_numbers<[1], [0], [0], [1], [0, 0, 1, 1], [], []>} : vector<8x256xbf16>, vector<256x512xbf16>, vector<8x512xf32> -> vector<8x512xf32>
    %196 = arith.addf %191, %195 : vector<8x512xf32>
    %c0_218 = arith.constant 0 : index
    %c0_219 = arith.constant 0 : index
    %197 = vector.load %arg9[%c0_218, %c0_219] : memref<1x512xf32, #tpu.memory_space<vmem>>, vector<1x512xf32>
    %198 = vector.broadcast %197 : vector<1x512xf32> to vector<8x512xf32>
    %199 = arith.addf %196, %198 : vector<8x512xf32>
    %cst_220 = arith.constant 0.000000e+00 : f32
    %200 = vector.broadcast %cst_220 : f32 to vector<8x512xf32>
    %201 = arith.maximumf %199, %200 : vector<8x512xf32>
    %202 = vector.shape_cast %201 : vector<8x512xf32> to vector<2x4x512xf32>
    %203 = vector.extract_strided_slice %202 {offsets = [0, 0, 0], sizes = [2, 2, 512], strides = [1, 1, 1]} : vector<2x4x512xf32> to vector<2x2x512xf32>
    %204 = vector.extract_strided_slice %202 {offsets = [0, 2, 0], sizes = [2, 2, 512], strides = [1, 1, 1]} : vector<2x4x512xf32> to vector<2x2x512xf32>
    %205 = arith.maximumf %203, %204 : vector<2x2x512xf32>
    %cst_221 = arith.constant dense<0xFF800000> : vector<2x512xf32>
    %206 = vector.multi_reduction <maximumf>, %205, %cst_221 [1] : vector<2x2x512xf32> to vector<2x512xf32>
    %207 = vector.shape_cast %206 : vector<2x512xf32> to vector<2x1x1x512xf32>
    %c0_222 = arith.constant 0 : index
    %c0_223 = arith.constant 0 : index
    %c0_224 = arith.constant 0 : index
    %c0_225 = arith.constant 0 : index
    %208 = vector.load %arg10[%c0_222, %c0_223, %c0_224, %c0_225] : memref<2x1x1x512xf32, #tpu.memory_space<vmem>>, vector<2x1x1x512xf32>
    tpu.vector_store %arg10[%c0_222, %c0_223, %c0_224, %c0_225], %207 {strides = array<i32>} : memref<2x1x1x512xf32, #tpu.memory_space<vmem>>, vector<2x1x1x512xf32>,
    return
  }
  func.func @transform_0(%arg0: i32) -> (i32, i32) {
    %c0_i32 = arith.constant 0 : i32
    %c0_i32_0 = arith.constant 0 : i32
    %c0_i32_1 = arith.constant 0 : i32
    return %c0_i32, %c0_i32_0 : i32, i32
  }
  func.func @transform_1(%arg0: i32) -> (i32, i32) {
    %c0_i32 = arith.constant 0 : i32
    %c0_i32_0 = arith.constant 0 : i32
    %c0_i32_1 = arith.constant 0 : i32
    return %c0_i32, %c0_i32_0 : i32, i32
  }
  func.func @transform_2(%arg0: i32) -> (i32, i32) {
    %c0_i32 = arith.constant 0 : i32
    %c0_i32_0 = arith.constant 0 : i32
    %c0_i32_1 = arith.constant 0 : i32
    return %c0_i32, %c0_i32_0 : i32, i32
  }
  func.func @transform_3(%arg0: i32) -> (i32, i32) {
    %c0_i32 = arith.constant 0 : i32
    %c0_i32_0 = arith.constant 0 : i32
    %c0_i32_1 = arith.constant 0 : i32
    return %c0_i32, %c0_i32_0 : i32, i32
  }
  func.func @transform_4(%arg0: i32) -> (i32, i32) {
    %c0_i32 = arith.constant 0 : i32
    %c0_i32_0 = arith.constant 0 : i32
    %c0_i32_1 = arith.constant 0 : i32
    return %c0_i32, %c0_i32_0 : i32, i32
  }
  func.func @transform_6(%arg0: i32) -> (i32, i32) {
    %c0_i32 = arith.constant 0 : i32
    %c0_i32_0 = arith.constant 0 : i32
    %c0_i32_1 = arith.constant 0 : i32
    return %c0_i32, %c0_i32_0 : i32, i32
  }
  func.func @transform_8(%arg0: i32) -> (i32, i32) {
    %c0_i32 = arith.constant 0 : i32
    %c0_i32_0 = arith.constant 0 : i32
    %c0_i32_1 = arith.constant 0 : i32
    return %c0_i32, %c0_i32_0 : i32, i32
  }
  func.func @transform_9(%arg0: i32) -> (i32, i32, i32, i32) {
    %c0_i32 = arith.constant 0 : i32
    %c0_i32_0 = arith.constant 0 : i32
    %c0_i32_1 = arith.constant 0 : i32
    %c0_i32_2 = arith.constant 0 : i32
    %c0_i32_3 = arith.constant 0 : i32
    return %c0_i32, %c0_i32_0, %c0_i32_1, %c0_i32_2 : i32, i32, i32, i32
  }
}

</mosaic_0001>

<llo_original>
// kernel: custom_encoder.1
$region0: #{custom_encoder.1}
  #allocation0 [shape = 'u32[]', space=smem, size = 0x4, offset = 0x4, fixed_abs, tag = 'smem constant byte address 0x4 - core index']
  #allocation1 [shape = 'u32[144,128]{1,0:T(1,128)}', space=vmem, size = 0x12000, scoped, tag = 'internal scratch']
  #allocation2 [shape = 'bf16[1152,256]{1,0:T(16,128)(2,1)}', space=vmem, size = 0x90000, scoped, tag = 'scratch operand']
  #allocation3 [shape = 'bf16[2304,512]{1,0:T(16,128)(2,1)}', space=vmem, size = 0x240000, scoped, tag = 'scratch operand']
  #allocation4 [shape = 's32[2]{0}', space=sflag, size = 0x8, scoped, tag = 'scratch operand']
  #allocation5 [shape = 'bf16[2,10,10,64]{3,2,1,0:T(8,128)(2,1)}', space=vmem, size = 0x14000, scoped, tag = 'scratch operand']
  #allocation6 [shape = 'bf16[2,6,6,128]{3,2,1,0:T(8,128)(2,1)}', space=vmem, size = 0x6000, scoped, tag = 'scratch operand']
  #allocation7 [shape = 'bf16[2,4,4,256]{3,2,1,0:T(4,128)(2,1)}', space=vmem, size = 0x4000, scoped, tag = 'scratch operand']
  #allocation20 [shape = 's32[]', space=sflag, size = 0x4, offset = 0, fixed_abs, tag = 'sflag constant byte address 0x0 - dummy sync flag']
  #allocation22 [shape = 's32[]', space=sflag, size = 0x4, offset = 0, fixed_abs, tag = 'sflag constant byte address 0x0 - dummy sync flag']
  %s0 = inlined_call_operand.vmem [shape: f32[512,9], index: 0, kind: input, shape index: {}]
  %s1 = inlined_call_operand.hbm [shape: f32[9,64], index: 1, kind: input, shape index: {}]
  %s2 = inlined_call_operand.hbm [shape: f32[1,64], index: 2, kind: input, shape index: {}]
  %s3 = inlined_call_operand.hbm [shape: bf16[576,128], index: 3, kind: input, shape index: {}]
  %s4 = inlined_call_operand.hbm [shape: f32[1,128], index: 4, kind: input, shape index: {}]
  %s5 = inlined_call_operand.hbm [shape: bf16[1152,256], index: 5, kind: input, shape index: {}]
  %s6 = inlined_call_operand.hbm [shape: f32[1,256], index: 6, kind: input, shape index: {}]
  %s7 = inlined_call_operand.hbm [shape: bf16[2304,512], index: 7, kind: input, shape index: {}]
  %s8 = inlined_call_operand.hbm [shape: f32[1,512], index: 8, kind: input, shape index: {}]
  %s9 = inlined_call_operand.hbm [shape: f32[2,1,1,512], index: 9, kind: output, shape index: {}]
  %s10 = sld [smem:[#allocation0]]
  $region62: #{custom_encoder.1} parent=0
    _
  %s12 = ssub.s32 1, %s10
  %s13 = scalar_select 0, %s12, %s10
  $region1: #{custom_encoder.1} parent=0
    #allocation8 [shape = 'u8[8192]{0}', space=vmem, size = 0x2000, scoped, tag = 'input window, operand 1, single buffered']
    #allocation9 [shape = 's32[1]{0}', space=sflag, size = 0x4, scoped, tag = 'scoped memory for custom_encoder.1']
    #allocation10 [shape = 's32[1]{0}', space=sflag, size = 0x4, scoped, tag = 'scoped memory for custom_encoder.1']
    #allocation11 [shape = 'u8[512]{0}', space=vmem, size = 0x400, scoped, tag = 'input window, operand 2, single buffered']
    #allocation12 [shape = 's32[1]{0}', space=sflag, size = 0x4, scoped, tag = 'scoped memory for custom_encoder.1']
    #allocation13 [shape = 'u8[147456]{0}', space=vmem, size = 0x24000, scoped, tag = 'input window, operand 3, single buffered']
    #allocation14 [shape = 'u8[512]{0}', space=vmem, size = 0x400, scoped, tag = 'input window, operand 4, single buffered']
    #allocation15 [shape = 's32[1]{0}', space=sflag, size = 0x4, scoped, tag = 'scoped memory for custom_encoder.1']
    #allocation16 [shape = 'u8[1024]{0}', space=vmem, size = 0x400, scoped, tag = 'input window, operand 6, single buffered']
    #allocation17 [shape = 'u8[2048]{0}', space=vmem, size = 0x800, scoped, tag = 'input window, operand 8, single buffered']
    #allocation18 [shape = 's32[1]{0}', space=sflag, size = 0x4, scoped, tag = 'scoped memory for custom_encoder.1']
    #allocation19 [shape = 'u8[4096]{0}', space=vmem, size = 0x1000, scoped, tag = 'output window, operand 0, single buffered']
    #allocation21 [shape = 'u32[9]{0}', space=smem, size = 0x24, scoped, tag = 'DMA stride descriptor']
    #allocation23 [shape = 'u32[9]{0}', space=smem, size = 0x24, scoped, tag = 'DMA stride descriptor']
    %14 = vsyncpa [#allocation9], 0
    %15 = vsyncpa [#allocation12], 0
    %16 = vsyncpa [#allocation15], 0
    %17 = vsyncpa [#allocation18], 0
    %18 = vsyncpa [#allocation10], 0
    // Predicated region
    $region2: #{custom_encoder.1} parent=1 // pred_check
      _
    $region3: #{custom_encoder.1} parent=1 // pred_check_branch
      %20 = sbr.rel (0) target = $region5
    $region4: #{custom_encoder.1} parent=1 // pred_region
      _
    $region5: #{custom_encoder.1} parent=1 // pred_fallthru
      _
    // Predicated region
    $region6: #{custom_encoder.1} parent=1 // pred_check
      _
    $region7: #{custom_encoder.1} parent=1 // pred_check_branch
      %22 = sbr.rel (0) target = $region9
    $region8: #{custom_encoder.1} parent=1 // pred_region
      %s24 = ssub.s32 256, 256
      %25 = vsyncadd [#allocation9], %s24
      %s26 = sshll.u32 [#allocation8], 4
      %s27 = int_to_ptr.vmem [resolvable:$true] %s26
      %32 = dma.hbm_to_vmem [thread:$0]  %s1, 256, %s27, [#allocation9], 128, 128, 8
    $region9: #{custom_encoder.1} parent=1 // pred_fallthru
      _
    // Predicated region
    $region10: #{custom_encoder.1} parent=1 // pred_check
      _
    $region11: #{custom_encoder.1} parent=1 // pred_check_branch
      %34 = sbr.rel (0) target = $region13
    $region12: #{custom_encoder.1} parent=1 // pred_region
      %s36 = ssub.s32 16, 16
      %37 = vsyncadd [#allocation12], %s36
      %s39 = sshll.u32 [#allocation11], 4
      %s40 = int_to_ptr.vmem [resolvable:$true] %s39
      %42 = dma.hbm_to_vmem [thread:$0]  %s2, 16, %s40, [#allocation12]
    $region13: #{custom_encoder.1} parent=1 // pred_fallthru
      _
    // Predicated region
    $region14: #{custom_encoder.1} parent=1 // pred_check
      _
    $region15: #{custom_encoder.1} parent=1 // pred_check_branch
      %44 = sbr.rel (0) target = $region17
    $region16: #{custom_encoder.1} parent=1 // pred_region
      %s46 = ssub.s32 4608, 4608
      %47 = vsyncadd [#allocation12], %s46
      %s48 = sshll.u32 [#allocation13], 4
      %s49 = int_to_ptr.vmem [resolvable:$true] %s48
      %54 = dma.hbm_to_vmem [thread:$0]  %s3, 4608, %s49, [#allocation12], 64, 64, 4
    $region17: #{custom_encoder.1} parent=1 // pred_fallthru
      _
    // Predicated region
    $region18: #{custom_encoder.1} parent=1 // pred_check
      _
    $region19: #{custom_encoder.1} parent=1 // pred_check_branch
      %56 = sbr.rel (0) target = $region21
    $region20: #{custom_encoder.1} parent=1 // pred_region
      %s58 = ssub.s32 16, 16
      %59 = vsyncadd [#allocation15], %s58
      %s61 = sshll.u32 [#allocation14], 4
      %s62 = int_to_ptr.vmem [resolvable:$true] %s61
      %64 = dma.hbm_to_vmem [thread:$0]  %s4, 16, %s62, [#allocation15]
    $region21: #{custom_encoder.1} parent=1 // pred_fallthru
      _
    // Predicated region
    $region22: #{custom_encoder.1} parent=1 // pred_check
      _
    $region23: #{custom_encoder.1} parent=1 // pred_check_branch
      %66 = sbr.rel (0) target = $region25
    $region24: #{custom_encoder.1} parent=1 // pred_region
      %s68 = ssub.s32 32, 32
      %69 = vsyncadd [#allocation15], %s68
      %s71 = sshll.u32 [#allocation16], 4
      %s72 = int_to_ptr.vmem [resolvable:$true] %s71
      %74 = dma.hbm_to_vmem [thread:$0]  %s6, 32, %s72, [#allocation15]
    $region25: #{custom_encoder.1} parent=1 // pred_fallthru
      _
    // Predicated region
    $region26: #{custom_encoder.1} parent=1 // pred_check
      _
    $region27: #{custom_encoder.1} parent=1 // pred_check_branch
      %76 = sbr.rel (0) target = $region29
    $region28: #{custom_encoder.1} parent=1 // pred_region
      %s78 = ssub.s32 64, 64
      %79 = vsyncadd [#allocation18], %s78
      %s81 = sshll.u32 [#allocation17], 4
      %s82 = int_to_ptr.vmem [resolvable:$true] %s81
      %84 = dma.hbm_to_vmem [thread:$0]  %s8, 64, %s82, [#allocation18]
    $region29: #{custom_encoder.1} parent=1 // pred_fallthru
      _
    // Predicated region
    $region30: #{custom_encoder.1} parent=1 // pred_check
      _
    $region31: #{custom_encoder.1} parent=1 // pred_check_branch
      %86 = sbr.rel (0) target = $region33
    $region32: #{custom_encoder.1} parent=1 // pred_region
      %87 = dma.done [#allocation9], 256
    $region33: #{custom_encoder.1} parent=1 // pred_fallthru
      _
    // Predicated region
    $region34: #{custom_encoder.1} parent=1 // pred_check
      _
    $region35: #{custom_encoder.1} parent=1 // pred_check_branch
      %89 = sbr.rel (0) target = $region37
    $region36: #{custom_encoder.1} parent=1 // pred_region
      %90 = dma.done [#allocation12], 16
    $region37: #{custom_encoder.1} parent=1 // pred_fallthru
      _
    // Predicated region
    $region38: #{custom_encoder.1} parent=1 // pred_check
      _
    $region39: #{custom_encoder.1} parent=1 // pred_check_branch
      %92 = sbr.rel (0) target = $region41
    $region40: #{custom_encoder.1} parent=1 // pred_region
      %93 = dma.done [#allocation12], 4608
    $region41: #{custom_encoder.1} parent=1 // pred_fallthru
      _
    // Predicated region
    $region42: #{custom_encoder.1} parent=1 // pred_check
      _
    $region43: #{custom_encoder.1} parent=1 // pred_check_branch
      %95 = sbr.rel (0) target = $region45
    $region44: #{custom_encoder.1} parent=1 // pred_region
      %96 = dma.done [#allocation15], 16
    $region45: #{custom_encoder.1} parent=1 // pred_fallthru
      _
    // Predicated region
    $region46: #{custom_encoder.1} parent=1 // pred_check
      _
    $region47: #{custom_encoder.1} parent=1 // pred_check_branch
      %98 = sbr.rel (0) target = $region49
    $region48: #{custom_encoder.1} parent=1 // pred_region
      %99 = dma.done [#allocation15], 32
    $region49: #{custom_encoder.1} parent=1 // pred_fallthru
      _
    // Predicated region
    $region50: #{custom_encoder.1} parent=1 // pred_check
      _
    $region51: #{custom_encoder.1} parent=1 // pred_check_branch
      %101 = sbr.rel (0) target = $region53
    $region52: #{custom_encoder.1} parent=1 // pred_region
      %102 = dma.done [#allocation18], 64
    $region53: #{custom_encoder.1} parent=1 // pred_fallthru
      _
    %s105 = sshll.u32 1, 14
    %s106 = sxor.u32 4294967295, %s105
    %s108 = sld [smem:[#allocation0]]
    %s109 = sadd.s32 2, %s108
    %s111 = sshll.u32 7, 26
    %s112 = sxor.u32 4294967295, %s111
    %s113 = sand.u32 0, %s112
    %s114 = sshll.u32 %s109, 26
    %s115 = sor.u32 %s113, %s114
    %s116 = sshll.u32 [#allocation2], 4
    %s117 = int_to_ptr.vmem [resolvable:$true] %s116
    %120 = sst [smem:[#allocation21]] 256
    %s121 = scalar_lea.smem [#allocation21], 1
    %122 = sst [smem:[%s121]] 256
    %s123 = scalar_lea.smem [#allocation21], 2
    %124 = sst [smem:[%s123]] 2
    %s125 = scalar_lea.smem [#allocation21], 3
    %126 = sst [smem:[%s125]] 64
    %s127 = scalar_lea.smem [#allocation21], 4
    %128 = sst [smem:[%s127]] 128
    %s129 = scalar_lea.smem [#allocation21], 5
    %130 = sst [smem:[%s129]] 2
    %s131 = scalar_lea.smem [#allocation21], 6
    %132 = sst [smem:[%s131]] 128
    %s133 = scalar_lea.smem [#allocation21], 7
    %134 = sst [smem:[%s133]] 64
    %s135 = scalar_lea.smem [#allocation21], 8
    %136 = sst [smem:[%s135]] 4
    %138 = dma.general %s5, 18432, %s117, [#allocation4], [#allocation20], [#allocation21], %s115, 0
    %s139 = scalar_lea.sflag [#allocation4], 1
    %s141 = sshll.u32 1, 14
    %s142 = sxor.u32 4294967295, %s141
    %s144 = sadd.s32 2, %s108
    %s146 = sshll.u32 7, 26
    %s147 = sxor.u32 4294967295, %s146
    %s148 = sand.u32 0, %s147
    %s149 = sshll.u32 %s144, 26
    %s150 = sor.u32 %s148, %s149
    %s151 = sshll.u32 [#allocation3], 4
    %s152 = int_to_ptr.vmem [resolvable:$true] %s151
    %155 = sst [smem:[#allocation23]] 512
    %s156 = scalar_lea.smem [#allocation23], 1
    %157 = sst [smem:[%s156]] 512
    %s158 = scalar_lea.smem [#allocation23], 2
    %159 = sst [smem:[%s158]] 4
    %s160 = scalar_lea.smem [#allocation23], 3
    %161 = sst [smem:[%s160]] 64
    %s162 = scalar_lea.smem [#allocation23], 4
    %163 = sst [smem:[%s162]] 128
    %s164 = scalar_lea.smem [#allocation23], 5
    %165 = sst [smem:[%s164]] 2
    %s166 = scalar_lea.smem [#allocation23], 6
    %167 = sst [smem:[%s166]] 256
    %s168 = scalar_lea.smem [#allocation23], 7
    %169 = sst [smem:[%s168]] 64
    %s170 = scalar_lea.smem [#allocation23], 8
    %171 = sst [smem:[%s170]] 4
    %173 = dma.general %s7, 73728, %s152, %s139, [#allocation22], [#allocation23], %s150, 0
    %vm174 = vcmask 519168
    %175 = vst.msk [vmem:[#allocation5] sm:$0xf] %vm174, 0
    %vm176 = vcmask 516096
    %177 = vst.msk [vmem:[#allocation5 + $0x4] sm:$0x1] %vm176, 0
    %178 = vst.msk [vmem:[#allocation5 + $0x8] sm:$0xf] %vm174, 0
    %179 = vst.msk [vmem:[#allocation5 + $0xc] sm:$0x1] %vm176, 0
    %180 = vst.msk [vmem:[#allocation5 + $0x10] sm:$0xf] %vm174, 0
    %181 = vst.msk [vmem:[#allocation5 + $0x14] sm:$0x1] %vm176, 0
    %182 = vst.msk [vmem:[#allocation5 + $0x18] sm:$0xf] %vm174, 0
    %183 = vst.msk [vmem:[#allocation5 + $0x1c] sm:$0x1] %vm176, 0
    %184 = vst.msk [vmem:[#allocation5 + $0x20] sm:$0xf] %vm174, 0
    %185 = vst.msk [vmem:[#allocation5 + $0x24] sm:$0x1] %vm176, 0
    %186 = vst.msk [vmem:[#allocation5 + $0x28] sm:$0xf] %vm174, 0
    %187 = vst.msk [vmem:[#allocation5 + $0x2c] sm:$0x1] %vm176, 0
    %188 = vst.msk [vmem:[#allocation5 + $0x30] sm:$0xf] %vm174, 0
    %189 = vst.msk [vmem:[#allocation5 + $0x34] sm:$0x1] %vm176, 0
    %190 = vst.msk [vmem:[#allocation5 + $0x38] sm:$0xf] %vm174, 0
    %191 = vst.msk [vmem:[#allocation5 + $0x3c] sm:$0x1] %vm176, 0
    %192 = vst.msk [vmem:[#allocation5 + $0x40] sm:$0xf] %vm174, 0
    %193 = vst.msk [vmem:[#allocation5 + $0x44] sm:$0x1] %vm176, 0
    %194 = vst.msk [vmem:[#allocation5 + $0x48] sm:$0xf] %vm174, 0
    %195 = vst.msk [vmem:[#allocation5 + $0x4c] sm:$0x1] %vm176, 0
    %196 = vst.msk [vmem:[#allocation5 + $0x50] sm:$0xf] %vm174, 0
    %197 = vst.msk [vmem:[#allocation5 + $0x54] sm:$0x1] %vm176, 0
    %198 = vst.msk [vmem:[#allocation5 + $0x58] sm:$0xf] %vm174, 0
    %199 = vst.msk [vmem:[#allocation5 + $0x5c] sm:$0x1] %vm176, 0
    %200 = vst.msk [vmem:[#allocation5 + $0x60] sm:$0xf] %vm174, 0
    %201 = vst.msk [vmem:[#allocation5 + $0x64] sm:$0x1] %vm176, 0
    %202 = vst.msk [vmem:[#allocation5 + $0x68] sm:$0xf] %vm174, 0
    %203 = vst.msk [vmem:[#allocation5 + $0x6c] sm:$0x1] %vm176, 0
    %204 = vst.msk [vmem:[#allocation5 + $0x70] sm:$0xf] %vm174, 0
    %205 = vst.msk [vmem:[#allocation5 + $0x74] sm:$0x1] %vm176, 0
    %206 = vst.msk [vmem:[#allocation5 + $0x78] sm:$0xf] %vm174, 0
    %207 = vst.msk [vmem:[#allocation5 + $0x7c] sm:$0x1] %vm176, 0
    %208 = vst.msk [vmem:[#allocation5 + $0x80] sm:$0xf] %vm174, 0
    %209 = vst.msk [vmem:[#allocation5 + $0x84] sm:$0x1] %vm176, 0
    %210 = vst.msk [vmem:[#allocation5 + $0x88] sm:$0xf] %vm174, 0
    %211 = vst.msk [vmem:[#allocation5 + $0x8c] sm:$0x1] %vm176, 0
    %212 = vst.msk [vmem:[#allocation5 + $0x90] sm:$0xf] %vm174, 0
    %213 = vst.msk [vmem:[#allocation5 + $0x94] sm:$0x1] %vm176, 0
    %214 = vst.msk [vmem:[#allocation5 + $0x98] sm:$0xf] %vm174, 0
    %215 = vst.msk [vmem:[#allocation5 + $0x9c] sm:$0x1] %vm176, 0
    %216 = vst [vmem:[#allocation6] sm:$0x7] 0
    %217 = vst [vmem:[#allocation6 + $0x4] sm:$0x7] 0
    %218 = vst [vmem:[#allocation6 + $0x8] sm:$0x7] 0
    %219 = vst [vmem:[#allocation6 + $0xc] sm:$0x7] 0
    %220 = vst [vmem:[#allocation6 + $0x10] sm:$0x7] 0
    %221 = vst [vmem:[#allocation6 + $0x14] sm:$0x7] 0
    %222 = vst [vmem:[#allocation6 + $0x18] sm:$0x7] 0
    %223 = vst [vmem:[#allocation6 + $0x1c] sm:$0x7] 0
    %224 = vst [vmem:[#allocation6 + $0x20] sm:$0x7] 0
    %225 = vst [vmem:[#allocation6 + $0x24] sm:$0x7] 0
    %226 = vst [vmem:[#allocation6 + $0x28] sm:$0x7] 0
    %227 = vst [vmem:[#allocation6 + $0x2c] sm:$0x7] 0
    %228 = vst [vmem:[#allocation7] sm:$0xf] 0
    %229 = vst [vmem:[#allocation7 + $0x4] sm:$0xf] 0
    %230 = vst [vmem:[#allocation7 + $0x8] sm:$0xf] 0
    %231 = vst [vmem:[#allocation7 + $0xc] sm:$0xf] 0
    %232 = vst [vmem:[#allocation7 + $0x10] sm:$0xf] 0
    %233 = vst [vmem:[#allocation7 + $0x14] sm:$0xf] 0
    %234 = vst [vmem:[#allocation7 + $0x18] sm:$0xf] 0
    %235 = vst [vmem:[#allocation7 + $0x1c] sm:$0xf] 0
    %v236 = vld [vmem:[%s0] sm:$0xff]
    %v237 = vld [vmem:[%s0 + $0x8] sm:$0xff]
    %v238 = vld [vmem:[%s0 + $0x10] sm:$0xff]
    %v239 = vld [vmem:[%s0 + $0x18] sm:$0xff]
    %v240 = vld [vmem:[%s0 + $0x20] sm:$0xff]
    %v241 = vld [vmem:[%s0 + $0x28] sm:$0xff]
    %v242 = vld [vmem:[%s0 + $0x30] sm:$0xff]
    %v243 = vld [vmem:[%s0 + $0x38] sm:$0xff]
    %v244 = vld [vmem:[%s0 + $0x40] sm:$0xff]
    %v245 = vld [vmem:[%s0 + $0x48] sm:$0xff]
    %v246 = vld [vmem:[%s0 + $0x50] sm:$0xff]
    %v247 = vld [vmem:[%s0 + $0x58] sm:$0xff]
    %v248 = vld [vmem:[%s0 + $0x60] sm:$0xff]
    %v249 = vld [vmem:[%s0 + $0x68] sm:$0xff]
    %v250 = vld [vmem:[%s0 + $0x70] sm:$0xff]
    %v251 = vld [vmem:[%s0 + $0x78] sm:$0xff]
    %v252 = vld [vmem:[%s0 + $0x80] sm:$0xff]
    %v253 = vld [vmem:[%s0 + $0x88] sm:$0xff]
    %v254 = vld [vmem:[%s0 + $0x90] sm:$0xff]
    %v255 = vld [vmem:[%s0 + $0x98] sm:$0xff]
    %v256 = vld [vmem:[%s0 + $0xa0] sm:$0xff]
    %v257 = vld [vmem:[%s0 + $0xa8] sm:$0xff]
    %v258 = vld [vmem:[%s0 + $0xb0] sm:$0xff]
    %v259 = vld [vmem:[%s0 + $0xb8] sm:$0xff]
    %v260 = vld [vmem:[%s0 + $0xc0] sm:$0xff]
    %v261 = vld [vmem:[%s0 + $0xc8] sm:$0xff]
    %v262 = vld [vmem:[%s0 + $0xd0] sm:$0xff]
    %v263 = vld [vmem:[%s0 + $0xd8] sm:$0xff]
    %v264 = vld [vmem:[%s0 + $0xe0] sm:$0xff]
    %v265 = vld [vmem:[%s0 + $0xe8] sm:$0xff]
    %v266 = vld [vmem:[%s0 + $0xf0] sm:$0xff]
    %v267 = vld [vmem:[%s0 + $0xf8] sm:$0xff]
    %v268 = vld [vmem:[%s0 + $0x100] sm:$0xff]
    %v269 = vld [vmem:[%s0 + $0x108] sm:$0xff]
    %v270 = vld [vmem:[%s0 + $0x110] sm:$0xff]
    %v271 = vld [vmem:[%s0 + $0x118] sm:$0xff]
    %v272 = vld [vmem:[%s0 + $0x120] sm:$0xff]
    %v273 = vld [vmem:[%s0 + $0x128] sm:$0xff]
    %v274 = vld [vmem:[%s0 + $0x130] sm:$0xff]
    %v275 = vld [vmem:[%s0 + $0x138] sm:$0xff]
    %v276 = vld [vmem:[%s0 + $0x140] sm:$0xff]
    %v277 = vld [vmem:[%s0 + $0x148] sm:$0xff]
    %v278 = vld [vmem:[%s0 + $0x150] sm:$0xff]
    %v279 = vld [vmem:[%s0 + $0x158] sm:$0xff]
    %v280 = vld [vmem:[%s0 + $0x160] sm:$0xff]
    %v281 = vld [vmem:[%s0 + $0x168] sm:$0xff]
    %v282 = vld [vmem:[%s0 + $0x170] sm:$0xff]
    %v283 = vld [vmem:[%s0 + $0x178] sm:$0xff]
    %v284 = vld [vmem:[%s0 + $0x180] sm:$0xff]
    %v285 = vld [vmem:[%s0 + $0x188] sm:$0xff]
    %v286 = vld [vmem:[%s0 + $0x190] sm:$0xff]
    %v287 = vld [vmem:[%s0 + $0x198] sm:$0xff]
    %v288 = vld [vmem:[%s0 + $0x1a0] sm:$0xff]
    %v289 = vld [vmem:[%s0 + $0x1a8] sm:$0xff]
    %v290 = vld [vmem:[%s0 + $0x1b0] sm:$0xff]
    %v291 = vld [vmem:[%s0 + $0x1b8] sm:$0xff]
    %v292 = vld [vmem:[%s0 + $0x1c0] sm:$0xff]
    %v293 = vld [vmem:[%s0 + $0x1c8] sm:$0xff]
    %v294 = vld [vmem:[%s0 + $0x1d0] sm:$0xff]
    %v295 = vld [vmem:[%s0 + $0x1d8] sm:$0xff]
    %v296 = vld [vmem:[%s0 + $0x1e0] sm:$0xff]
    %v297 = vld [vmem:[%s0 + $0x1e8] sm:$0xff]
    %v298 = vld [vmem:[%s0 + $0x1f0] sm:$0xff]
    %v299 = vld [vmem:[%s0 + $0x1f8] sm:$0xff]
    %v300 = vld [vmem:[#allocation8] sm:$0xff]
    %v301 = vld [vmem:[#allocation8 + $0x8] sm:$0x1]
    %v302 = vld [vmem:[#allocation11] sm:$0x1]
    %v304 = vlaneseq
    %v305 = vshrl.u32 %v304, 7
    %v306 = vsub.s32 0, %v305
    %v307 = vrot.slane %v302, %v306
    %vm309 = vcmask 72704
    %v311 = vsel %vm309, %v236, 0
    %v314 = vsel %vm309, %v237, 0
    %v317 = vsel %vm309, %v238, 0
    %v320 = vsel %vm309, %v239, 0
    %v323 = vsel %vm309, %v240, 0
    %v326 = vsel %vm309, %v241, 0
    %v329 = vsel %vm309, %v242, 0
    %v332 = vsel %vm309, %v243, 0
    %v335 = vsel %vm309, %v244, 0
    %v338 = vsel %vm309, %v245, 0
    %v341 = vsel %vm309, %v246, 0
    %v344 = vsel %vm309, %v247, 0
    %v347 = vsel %vm309, %v248, 0
    %v350 = vsel %vm309, %v249, 0
    %v353 = vsel %vm309, %v250, 0
    %v356 = vsel %vm309, %v251, 0
    %v359 = vsel %vm309, %v252, 0
    %v362 = vsel %vm309, %v253, 0
    %v365 = vsel %vm309, %v254, 0
    %v368 = vsel %vm309, %v255, 0
    %v371 = vsel %vm309, %v256, 0
    %v374 = vsel %vm309, %v257, 0
    %v377 = vsel %vm309, %v258, 0
    %v380 = vsel %vm309, %v259, 0
    %v383 = vsel %vm309, %v260, 0
    %v386 = vsel %vm309, %v261, 0
    %v389 = vsel %vm309, %v262, 0
    %v392 = vsel %vm309, %v263, 0
    %v395 = vsel %vm309, %v264, 0
    %v398 = vsel %vm309, %v265, 0
    %v401 = vsel %vm309, %v266, 0
    %v404 = vsel %vm309, %v267, 0
    %v407 = vsel %vm309, %v268, 0
    %v410 = vsel %vm309, %v269, 0
    %v413 = vsel %vm309, %v270, 0
    %v416 = vsel %vm309, %v271, 0
    %v419 = vsel %vm309, %v272, 0
    %v422 = vsel %vm309, %v273, 0
    %v425 = vsel %vm309, %v274, 0
    %v428 = vsel %vm309, %v275, 0
    %v431 = vsel %vm309, %v276, 0
    %v434 = vsel %vm309, %v277, 0
    %v437 = vsel %vm309, %v278, 0
    %v440 = vsel %vm309, %v279, 0
    %v443 = vsel %vm309, %v280, 0
    %v446 = vsel %vm309, %v281, 0
    %v449 = vsel %vm309, %v282, 0
    %v452 = vsel %vm309, %v283, 0
    %v455 = vsel %vm309, %v284, 0
    %v458 = vsel %vm309, %v285, 0
    %v461 = vsel %vm309, %v286, 0
    %v464 = vsel %vm309, %v287, 0
    %v467 = vsel %vm309, %v288, 0
    %v470 = vsel %vm309, %v289, 0
    %v473 = vsel %vm309, %v290, 0
    %v476 = vsel %vm309, %v291, 0
    %v479 = vsel %vm309, %v292, 0
    %v482 = vsel %vm309, %v293, 0
    %v485 = vsel %vm309, %v294, 0
    %v488 = vsel %vm309, %v295, 0
    %v491 = vsel %vm309, %v296, 0
    %v494 = vsel %vm309, %v297, 0
    %v497 = vsel %vm309, %v298, 0
    %v500 = vsel %vm309, %v299, 0
    %vm502 = vcmask 1040384
    %v504 = vsel %vm502, %v301, 0
    %506 = vmatprep.subr.mxu0 0.0
    %507 = vmatpush1.msra.mxu0 %v300
    %508 = vmatprep.subr.mxu0 0.0
    %509 = vmatpush1.msra.mxu0 %v504
    %510 = vmatprep.subr.mxu0 0.0
    %511 = vmatpush1.msra.mxu0 0.0
    %512 = vmatprep.subr.mxu0 0.0
    %513 = vmatpush1.msra.mxu0 0.0
    %514 = vmatprep.subr.mxu0 0.0
    %515 = vmatpush1.msra.mxu0 0.0
    %516 = vmatprep.subr.mxu0 0.0
    %517 = vmatpush1.msra.mxu0 0.0
    %518 = vmatprep.subr.mxu0 0.0
    %519 = vmatpush1.msra.mxu0 0.0
    %520 = vmatprep.subr.mxu0 0.0
    %521 = vmatpush1.msra.mxu0 0.0
    %522 = vmatprep.subr.mxu0 0.0
    %523 = vmatpush1.msra.mxu0 0.0
    %524 = vmatprep.subr.mxu0 0.0
    %525 = vmatpush1.msra.mxu0 0.0
    %526 = vmatprep.subr.mxu0 0.0
    %527 = vmatpush1.msra.mxu0 0.0
    %528 = vmatprep.subr.mxu0 0.0
    %529 = vmatpush1.msra.mxu0 0.0
    %530 = vmatprep.subr.mxu0 0.0
    %531 = vmatpush1.msra.mxu0 0.0
    %532 = vmatprep.subr.mxu0 0.0
    %533 = vmatpush1.msra.mxu0 0.0
    %534 = vmatprep.subr.mxu0 0.0
    %535 = vmatpush1.msra.mxu0 0.0
    %536 = vmatprep.subr.mxu0 0.0
    %537 = vmatpush1.msra.mxu0 0.0
    %538 = vmatprep.subr.mxu0 0.0
    %539 = vmatpush1.msra.mxu0 0.0
    %540 = vmatprep.subr.mxu0 0.0
    %541 = vmatpush1.msra.mxu0 0.0
    %542 = vmatprep.subr.mxu0 0.0
    %543 = vmatpush1.msra.mxu0 0.0
    %544 = vmatprep.subr.mxu0 0.0
    %545 = vmatpush1.msra.mxu0 0.0
    %546 = vmatprep.subr.mxu0 0.0
    %547 = vmatpush1.msra.mxu0 0.0
    %548 = vmatprep.subr.mxu0 0.0
    %549 = vmatpush1.msra.mxu0 0.0
    %550 = vmatprep.subr.mxu0 0.0
    %551 = vmatpush1.msra.mxu0 0.0
    %552 = vmatprep.subr.mxu0 0.0
    %553 = vmatpush1.msra.mxu0 0.0
    %554 = vmatprep.subr.mxu0 0.0
    %555 = vmatpush1.msra.mxu0 0.0
    %556 = vmatprep.subr.mxu0 0.0
    %557 = vmatpush1.msra.mxu0 0.0
    %558 = vmatprep.subr.mxu0 0.0
    %559 = vmatpush1.msra.mxu0 0.0
    %560 = vmatprep.subr.mxu0 0.0
    %561 = vmatpush1.msra.mxu0 0.0
    %562 = vmatprep.subr.mxu0 0.0
    %563 = vmatpush1.msra.mxu0 0.0
    %564 = vmatprep.subr.mxu0 0.0
    %565 = vmatpush1.msra.mxu0 0.0
    %566 = vmatprep.subr.mxu0 0.0
    %567 = vmatpush1.msra.mxu0 0.0
    %568 = vmatprep.subr.mxu0 0.0
    %569 = vmatpush1.msra.mxu0 0.0
    %570 = vmatprep.mubr.f32.mxu0 0.0
    %571 = vmatmul.mubr.f32.gmra.mrb[0].mxu0 %v311
    %v572 = vpop.f32.mrb[0].mxu0
    %v573 = vadd.f32 %v307, %v572
    %v574 = vpop.f32.mrb[0].mxu0
    %575 = vmatprep.mubr.f32.mxu0 0.0
    %576 = vmatmul.mubr.f32.gmra.mrb[0].mxu0 %v314
    %v577 = vpop.f32.mrb[0].mxu0
    %v578 = vadd.f32 %v307, %v577
    %v579 = vpop.f32.mrb[0].mxu0
    %580 = vmatprep.mubr.f32.mxu0 0.0
    %581 = vmatmul.mubr.f32.gmra.mrb[0].mxu0 %v317
    %v582 = vpop.f32.mrb[0].mxu0
    %v583 = vadd.f32 %v307, %v582
    %v584 = vpop.f32.mrb[0].mxu0
    %585 = vmatprep.mubr.f32.mxu0 0.0
    %586 = vmatmul.mubr.f32.gmra.mrb[0].mxu0 %v320
    %v587 = vpop.f32.mrb[0].mxu0
    %v588 = vadd.f32 %v307, %v587
    %v589 = vpop.f32.mrb[0].mxu0
    %590 = vmatprep.mubr.f32.mxu0 0.0
    %591 = vmatmul.mubr.f32.gmra.mrb[0].mxu0 %v323
    %v592 = vpop.f32.mrb[0].mxu0
    %v593 = vadd.f32 %v307, %v592
    %v594 = vpop.f32.mrb[0].mxu0
    %595 = vmatprep.mubr.f32.mxu0 0.0
    %596 = vmatmul.mubr.f32.gmra.mrb[0].mxu0 %v326
    %v597 = vpop.f32.mrb[0].mxu0
    %v598 = vadd.f32 %v307, %v597
    %v599 = vpop.f32.mrb[0].mxu0
    %600 = vmatprep.mubr.f32.mxu0 0.0
    %601 = vmatmul.mubr.f32.gmra.mrb[0].mxu0 %v329
    %v602 = vpop.f32.mrb[0].mxu0
    %v603 = vadd.f32 %v307, %v602
    %v604 = vpop.f32.mrb[0].mxu0
    %605 = vmatprep.mubr.f32.mxu0 0.0
    %606 = vmatmul.mubr.f32.gmra.mrb[0].mxu0 %v332
    %v607 = vpop.f32.mrb[0].mxu0
    %v608 = vadd.f32 %v307, %v607
    %v609 = vpop.f32.mrb[0].mxu0
    %610 = vmatprep.mubr.f32.mxu0 0.0
    %611 = vmatmul.mubr.f32.gmra.mrb[0].mxu0 %v335
    %v612 = vpop.f32.mrb[0].mxu0
    %v613 = vadd.f32 %v307, %v612
    %v614 = vpop.f32.mrb[0].mxu0
    %615 = vmatprep.mubr.f32.mxu0 0.0
    %616 = vmatmul.mubr.f32.gmra.mrb[0].mxu0 %v338
    %v617 = vpop.f32.mrb[0].mxu0
    %v618 = vadd.f32 %v307, %v617
    %v619 = vpop.f32.mrb[0].mxu0
    %620 = vmatprep.mubr.f32.mxu0 0.0
    %621 = vmatmul.mubr.f32.gmra.mrb[0].mxu0 %v341
    %v622 = vpop.f32.mrb[0].mxu0
    %v623 = vadd.f32 %v307, %v622
    %v624 = vpop.f32.mrb[0].mxu0
    %625 = vmatprep.mubr.f32.mxu0 0.0
    %626 = vmatmul.mubr.f32.gmra.mrb[0].mxu0 %v344
    %v627 = vpop.f32.mrb[0].mxu0
    %v628 = vadd.f32 %v307, %v627
    %v629 = vpop.f32.mrb[0].mxu0
    %630 = vmatprep.mubr.f32.mxu0 0.0
    %631 = vmatmul.mubr.f32.gmra.mrb[0].mxu0 %v347
    %v632 = vpop.f32.mrb[0].mxu0
    %v633 = vadd.f32 %v307, %v632
    %v634 = vpop.f32.mrb[0].mxu0
    %635 = vmatprep.mubr.f32.mxu0 0.0
    %636 = vmatmul.mubr.f32.gmra.mrb[0].mxu0 %v350
    %v637 = vpop.f32.mrb[0].mxu0
    %v638 = vadd.f32 %v307, %v637
    %v639 = vpop.f32.mrb[0].mxu0
    %640 = vmatprep.mubr.f32.mxu0 0.0
    %641 = vmatmul.mubr.f32.gmra.mrb[0].mxu0 %v353
    %v642 = vpop.f32.mrb[0].mxu0
    %v643 = vadd.f32 %v307, %v642
    %v644 = vpop.f32.mrb[0].mxu0
    %645 = vmatprep.mubr.f32.mxu0 0.0
    %646 = vmatmul.mubr.f32.gmra.mrb[0].mxu0 %v356
    %v647 = vpop.f32.mrb[0].mxu0
    %v648 = vadd.f32 %v307, %v647
    %v649 = vpop.f32.mrb[0].mxu0
    %650 = vmatprep.mubr.f32.mxu0 0.0
    %651 = vmatmul.mubr.f32.gmra.mrb[0].mxu0 %v359
    %v652 = vpop.f32.mrb[0].mxu0
    %v653 = vadd.f32 %v307, %v652
    %v654 = vpop.f32.mrb[0].mxu0
    %655 = vmatprep.mubr.f32.mxu0 0.0
    %656 = vmatmul.mubr.f32.gmra.mrb[0].mxu0 %v362
    %v657 = vpop.f32.mrb[0].mxu0
    %v658 = vadd.f32 %v307, %v657
    %v659 = vpop.f32.mrb[0].mxu0
    %660 = vmatprep.mubr.f32.mxu0 0.0
    %661 = vmatmul.mubr.f32.gmra.mrb[0].mxu0 %v365
    %v662 = vpop.f32.mrb[0].mxu0
    %v663 = vadd.f32 %v307, %v662
    %v664 = vpop.f32.mrb[0].mxu0
    %665 = vmatprep.mubr.f32.mxu0 0.0
    %666 = vmatmul.mubr.f32.gmra.mrb[0].mxu0 %v368
    %v667 = vpop.f32.mrb[0].mxu0
    %v668 = vadd.f32 %v307, %v667
    %v669 = vpop.f32.mrb[0].mxu0
    %670 = vmatprep.mubr.f32.mxu0 0.0
    %671 = vmatmul.mubr.f32.gmra.mrb[0].mxu0 %v371
    %v672 = vpop.f32.mrb[0].mxu0
    %v673 = vadd.f32 %v307, %v672
    %v674 = vpop.f32.mrb[0].mxu0
    %675 = vmatprep.mubr.f32.mxu0 0.0
    %676 = vmatmul.mubr.f32.gmra.mrb[0].mxu0 %v374
    %v677 = vpop.f32.mrb[0].mxu0
    %v678 = vadd.f32 %v307, %v677
    %v679 = vpop.f32.mrb[0].mxu0
    %680 = vmatprep.mubr.f32.mxu0 0.0
    %681 = vmatmul.mubr.f32.gmra.mrb[0].mxu0 %v377
    %v682 = vpop.f32.mrb[0].mxu0
    %v683 = vadd.f32 %v307, %v682
    %v684 = vpop.f32.mrb[0].mxu0
    %685 = vmatprep.mubr.f32.mxu0 0.0
    %686 = vmatmul.mubr.f32.gmra.mrb[0].mxu0 %v380
    %v687 = vpop.f32.mrb[0].mxu0
    %v688 = vadd.f32 %v307, %v687
    %v689 = vpop.f32.mrb[0].mxu0
    %690 = vmatprep.mubr.f32.mxu0 0.0
    %691 = vmatmul.mubr.f32.gmra.mrb[0].mxu0 %v383
    %v692 = vpop.f32.mrb[0].mxu0
    %v693 = vadd.f32 %v307, %v692
    %v694 = vpop.f32.mrb[0].mxu0
    %695 = vmatprep.mubr.f32.mxu0 0.0
    %696 = vmatmul.mubr.f32.gmra.mrb[0].mxu0 %v386
    %v697 = vpop.f32.mrb[0].mxu0
    %v698 = vadd.f32 %v307, %v697
    %v699 = vpop.f32.mrb[0].mxu0
    %700 = vmatprep.mubr.f32.mxu0 0.0
    %701 = vmatmul.mubr.f32.gmra.mrb[0].mxu0 %v389
    %v702 = vpop.f32.mrb[0].mxu0
    %v703 = vadd.f32 %v307, %v702
    %v704 = vpop.f32.mrb[0].mxu0
    %705 = vmatprep.mubr.f32.mxu0 0.0
    %706 = vmatmul.mubr.f32.gmra.mrb[0].mxu0 %v392
    %v707 = vpop.f32.mrb[0].mxu0
    %v708 = vadd.f32 %v307, %v707
    %v709 = vpop.f32.mrb[0].mxu0
    %710 = vmatprep.mubr.f32.mxu0 0.0
    %711 = vmatmul.mubr.f32.gmra.mrb[0].mxu0 %v395
    %v712 = vpop.f32.mrb[0].mxu0
    %v713 = vadd.f32 %v307, %v712
    %v714 = vpop.f32.mrb[0].mxu0
    %715 = vmatprep.mubr.f32.mxu0 0.0
    %716 = vmatmul.mubr.f32.gmra.mrb[0].mxu0 %v398
    %v717 = vpop.f32.mrb[0].mxu0
    %v718 = vadd.f32 %v307, %v717
    %v719 = vpop.f32.mrb[0].mxu0
    %720 = vmatprep.mubr.f32.mxu0 0.0
    %721 = vmatmul.mubr.f32.gmra.mrb[0].mxu0 %v401
    %v722 = vpop.f32.mrb[0].mxu0
    %v723 = vadd.f32 %v307, %v722
    %v724 = vpop.f32.mrb[0].mxu0
    %725 = vmatprep.mubr.f32.mxu0 0.0
    %726 = vmatmul.mubr.f32.gmra.mrb[0].mxu0 %v404
    %v727 = vpop.f32.mrb[0].mxu0
    %v728 = vadd.f32 %v307, %v727
    %v729 = vpop.f32.mrb[0].mxu0
    %730 = vmatprep.mubr.f32.mxu0 0.0
    %731 = vmatmul.mubr.f32.gmra.mrb[0].mxu0 %v407
    %v732 = vpop.f32.mrb[0].mxu0
    %v733 = vadd.f32 %v307, %v732
    %v734 = vpop.f32.mrb[0].mxu0
    %735 = vmatprep.mubr.f32.mxu0 0.0
    %736 = vmatmul.mubr.f32.gmra.mrb[0].mxu0 %v410
    %v737 = vpop.f32.mrb[0].mxu0
    %v738 = vadd.f32 %v307, %v737
    %v739 = vpop.f32.mrb[0].mxu0
    %740 = vmatprep.mubr.f32.mxu0 0.0
    %741 = vmatmul.mubr.f32.gmra.mrb[0].mxu0 %v413
    %v742 = vpop.f32.mrb[0].mxu0
    %v743 = vadd.f32 %v307, %v742
    %v744 = vpop.f32.mrb[0].mxu0
    %745 = vmatprep.mubr.f32.mxu0 0.0
    %746 = vmatmul.mubr.f32.gmra.mrb[0].mxu0 %v416
    %v747 = vpop.f32.mrb[0].mxu0
    %v748 = vadd.f32 %v307, %v747
    %v749 = vpop.f32.mrb[0].mxu0
    %750 = vmatprep.mubr.f32.mxu0 0.0
    %751 = vmatmul.mubr.f32.gmra.mrb[0].mxu0 %v419
    %v752 = vpop.f32.mrb[0].mxu0
    %v753 = vadd.f32 %v307, %v752
    %v754 = vpop.f32.mrb[0].mxu0
    %755 = vmatprep.mubr.f32.mxu0 0.0
    %756 = vmatmul.mubr.f32.gmra.mrb[0].mxu0 %v422
    %v757 = vpop.f32.mrb[0].mxu0
    %v758 = vadd.f32 %v307, %v757
    %v759 = vpop.f32.mrb[0].mxu0
    %760 = vmatprep.mubr.f32.mxu0 0.0
    %761 = vmatmul.mubr.f32.gmra.mrb[0].mxu0 %v425
    %v762 = vpop.f32.mrb[0].mxu0
    %v763 = vadd.f32 %v307, %v762
    %v764 = vpop.f32.mrb[0].mxu0
    %765 = vmatprep.mubr.f32.mxu0 0.0
    %766 = vmatmul.mubr.f32.gmra.mrb[0].mxu0 %v428
    %v767 = vpop.f32.mrb[0].mxu0
    %v768 = vadd.f32 %v307, %v767
    %v769 = vpop.f32.mrb[0].mxu0
    %770 = vmatprep.mubr.f32.mxu0 0.0
    %771 = vmatmul.mubr.f32.gmra.mrb[0].mxu0 %v431
    %v772 = vpop.f32.mrb[0].mxu0
    %v773 = vadd.f32 %v307, %v772
    %v774 = vpop.f32.mrb[0].mxu0
    %775 = vmatprep.mubr.f32.mxu0 0.0
    %776 = vmatmul.mubr.f32.gmra.mrb[0].mxu0 %v434
    %v777 = vpop.f32.mrb[0].mxu0
    %v778 = vadd.f32 %v307, %v777
    %v779 = vpop.f32.mrb[0].mxu0
    %780 = vmatprep.mubr.f32.mxu0 0.0
    %781 = vmatmul.mubr.f32.gmra.mrb[0].mxu0 %v437
    %v782 = vpop.f32.mrb[0].mxu0
    %v783 = vadd.f32 %v307, %v782
    %v784 = vpop.f32.mrb[0].mxu0
    %785 = vmatprep.mubr.f32.mxu0 0.0
    %786 = vmatmul.mubr.f32.gmra.mrb[0].mxu0 %v440
    %v787 = vpop.f32.mrb[0].mxu0
    %v788 = vadd.f32 %v307, %v787
    %v789 = vpop.f32.mrb[0].mxu0
    %790 = vmatprep.mubr.f32.mxu0 0.0
    %791 = vmatmul.mubr.f32.gmra.mrb[0].mxu0 %v443
    %v792 = vpop.f32.mrb[0].mxu0
    %v793 = vadd.f32 %v307, %v792
    %v794 = vpop.f32.mrb[0].mxu0
    %795 = vmatprep.mubr.f32.mxu0 0.0
    %796 = vmatmul.mubr.f32.gmra.mrb[0].mxu0 %v446
    %v797 = vpop.f32.mrb[0].mxu0
    %v798 = vadd.f32 %v307, %v797
    %v799 = vpop.f32.mrb[0].mxu0
    %800 = vmatprep.mubr.f32.mxu0 0.0
    %801 = vmatmul.mubr.f32.gmra.mrb[0].mxu0 %v449
    %v802 = vpop.f32.mrb[0].mxu0
    %v803 = vadd.f32 %v307, %v802
    %v804 = vpop.f32.mrb[0].mxu0
    %805 = vmatprep.mubr.f32.mxu0 0.0
    %806 = vmatmul.mubr.f32.gmra.mrb[0].mxu0 %v452
    %v807 = vpop.f32.mrb[0].mxu0
    %v808 = vadd.f32 %v307, %v807
    %v809 = vpop.f32.mrb[0].mxu0
    %810 = vmatprep.mubr.f32.mxu0 0.0
    %811 = vmatmul.mubr.f32.gmra.mrb[0].mxu0 %v455
    %v812 = vpop.f32.mrb[0].mxu0
    %v813 = vadd.f32 %v307, %v812
    %v814 = vpop.f32.mrb[0].mxu0
    %815 = vmatprep.mubr.f32.mxu0 0.0
    %816 = vmatmul.mubr.f32.gmra.mrb[0].mxu0 %v458
    %v817 = vpop.f32.mrb[0].mxu0
    %v818 = vadd.f32 %v307, %v817
    %v819 = vpop.f32.mrb[0].mxu0
    %820 = vmatprep.mubr.f32.mxu0 0.0
    %821 = vmatmul.mubr.f32.gmra.mrb[0].mxu0 %v461
    %v822 = vpop.f32.mrb[0].mxu0
    %v823 = vadd.f32 %v307, %v822
    %v824 = vpop.f32.mrb[0].mxu0
    %825 = vmatprep.mubr.f32.mxu0 0.0
    %826 = vmatmul.mubr.f32.gmra.mrb[0].mxu0 %v464
    %v827 = vpop.f32.mrb[0].mxu0
    %v828 = vadd.f32 %v307, %v827
    %v829 = vpop.f32.mrb[0].mxu0
    %830 = vmatprep.mubr.f32.mxu0 0.0
    %831 = vmatmul.mubr.f32.gmra.mrb[0].mxu0 %v467
    %v832 = vpop.f32.mrb[0].mxu0
    %v833 = vadd.f32 %v307, %v832
    %v834 = vpop.f32.mrb[0].mxu0
    %835 = vmatprep.mubr.f32.mxu0 0.0
    %836 = vmatmul.mubr.f32.gmra.mrb[0].mxu0 %v470
    %v837 = vpop.f32.mrb[0].mxu0
    %v838 = vadd.f32 %v307, %v837
    %v839 = vpop.f32.mrb[0].mxu0
    %840 = vmatprep.mubr.f32.mxu0 0.0
    %841 = vmatmul.mubr.f32.gmra.mrb[0].mxu0 %v473
    %v842 = vpop.f32.mrb[0].mxu0
    %v843 = vadd.f32 %v307, %v842
    %v844 = vpop.f32.mrb[0].mxu0
    %845 = vmatprep.mubr.f32.mxu0 0.0
    %846 = vmatmul.mubr.f32.gmra.mrb[0].mxu0 %v476
    %v847 = vpop.f32.mrb[0].mxu0
    %v848 = vadd.f32 %v307, %v847
    %v849 = vpop.f32.mrb[0].mxu0
    %850 = vmatprep.mubr.f32.mxu0 0.0
    %851 = vmatmul.mubr.f32.gmra.mrb[0].mxu0 %v479
    %v852 = vpop.f32.mrb[0].mxu0
    %v853 = vadd.f32 %v307, %v852
    %v854 = vpop.f32.mrb[0].mxu0
    %855 = vmatprep.mubr.f32.mxu0 0.0
    %856 = vmatmul.mubr.f32.gmra.mrb[0].mxu0 %v482
    %v857 = vpop.f32.mrb[0].mxu0
    %v858 = vadd.f32 %v307, %v857
    %v859 = vpop.f32.mrb[0].mxu0
    %860 = vmatprep.mubr.f32.mxu0 0.0
    %861 = vmatmul.mubr.f32.gmra.mrb[0].mxu0 %v485
    %v862 = vpop.f32.mrb[0].mxu0
    %v863 = vadd.f32 %v307, %v862
    %v864 = vpop.f32.mrb[0].mxu0
    %865 = vmatprep.mubr.f32.mxu0 0.0
    %866 = vmatmul.mubr.f32.gmra.mrb[0].mxu0 %v488
    %v867 = vpop.f32.mrb[0].mxu0
    %v868 = vadd.f32 %v307, %v867
    %v869 = vpop.f32.mrb[0].mxu0
    %870 = vmatprep.mubr.f32.mxu0 0.0
    %871 = vmatmul.mubr.f32.gmra.mrb[0].mxu0 %v491
    %v872 = vpop.f32.mrb[0].mxu0
    %v873 = vadd.f32 %v307, %v872
    %v874 = vpop.f32.mrb[0].mxu0
    %875 = vmatprep.mubr.f32.mxu0 0.0
    %876 = vmatmul.mubr.f32.gmra.mrb[0].mxu0 %v494
    %v877 = vpop.f32.mrb[0].mxu0
    %v878 = vadd.f32 %v307, %v877
    %v879 = vpop.f32.mrb[0].mxu0
    %880 = vmatprep.mubr.f32.mxu0 0.0
    %881 = vmatmul.mubr.f32.gmra.mrb[0].mxu0 %v497
    %v882 = vpop.f32.mrb[0].mxu0
    %v883 = vadd.f32 %v307, %v882
    %v884 = vpop.f32.mrb[0].mxu0
    %885 = vmatprep.mubr.f32.mxu0 0.0
    %886 = vmatmul.mubr.f32.gmra.mrb[0].mxu0 %v500
    %v887 = vpop.f32.mrb[0].mxu0
    %v888 = vadd.f32 %v307, %v887
    %v889 = vpop.f32.mrb[0].mxu0
    %890 = vdwg.mxu0
    %v891 = vmax.f32 %v573, 0.0
    %v892 = vmax.f32 %v578, 0.0
    %v893 = vmax.f32 %v583, 0.0
    %v894 = vmax.f32 %v588, 0.0
    %v895 = vmax.f32 %v593, 0.0
    %v896 = vmax.f32 %v598, 0.0
    %v897 = vmax.f32 %v603, 0.0
    %v898 = vmax.f32 %v608, 0.0
    %v899 = vmax.f32 %v613, 0.0
    %v900 = vmax.f32 %v618, 0.0
    %v901 = vmax.f32 %v623, 0.0
    %v902 = vmax.f32 %v628, 0.0
    %v903 = vmax.f32 %v633, 0.0
    %v904 = vmax.f32 %v638, 0.0
    %v905 = vmax.f32 %v643, 0.0
    %v906 = vmax.f32 %v648, 0.0
    %v907 = vmax.f32 %v653, 0.0
    %v908 = vmax.f32 %v658, 0.0
    %v909 = vmax.f32 %v663, 0.0
    %v910 = vmax.f32 %v668, 0.0
    %v911 = vmax.f32 %v673, 0.0
    %v912 = vmax.f32 %v678, 0.0
    %v913 = vmax.f32 %v683, 0.0
    %v914 = vmax.f32 %v688, 0.0
    %v915 = vmax.f32 %v693, 0.0
    %v916 = vmax.f32 %v698, 0.0
    %v917 = vmax.f32 %v703, 0.0
    %v918 = vmax.f32 %v708, 0.0
    %v919 = vmax.f32 %v713, 0.0
    %v920 = vmax.f32 %v718, 0.0
    %v921 = vmax.f32 %v723, 0.0
    %v922 = vmax.f32 %v728, 0.0
    %v923 = vmax.f32 %v733, 0.0
    %v924 = vmax.f32 %v738, 0.0
    %v925 = vmax.f32 %v743, 0.0
    %v926 = vmax.f32 %v748, 0.0
    %v927 = vmax.f32 %v753, 0.0
    %v928 = vmax.f32 %v758, 0.0
    %v929 = vmax.f32 %v763, 0.0
    %v930 = vmax.f32 %v768, 0.0
    %v931 = vmax.f32 %v773, 0.0
    %v932 = vmax.f32 %v778, 0.0
    %v933 = vmax.f32 %v783, 0.0
    %v934 = vmax.f32 %v788, 0.0
    %v935 = vmax.f32 %v793, 0.0
    %v936 = vmax.f32 %v798, 0.0
    %v937 = vmax.f32 %v803, 0.0
    %v938 = vmax.f32 %v808, 0.0
    %v939 = vmax.f32 %v813, 0.0
    %v940 = vmax.f32 %v818, 0.0
    %v941 = vmax.f32 %v823, 0.0
    %v942 = vmax.f32 %v828, 0.0
    %v943 = vmax.f32 %v833, 0.0
    %v944 = vmax.f32 %v838, 0.0
    %v945 = vmax.f32 %v843, 0.0
    %v946 = vmax.f32 %v848, 0.0
    %v947 = vmax.f32 %v853, 0.0
    %v948 = vmax.f32 %v858, 0.0
    %v949 = vmax.f32 %v863, 0.0
    %v950 = vmax.f32 %v868, 0.0
    %v951 = vmax.f32 %v873, 0.0
    %v952 = vmax.f32 %v878, 0.0
    %v953 = vmax.f32 %v883, 0.0
    %v954 = vmax.f32 %v888, 0.0
    %v955 = vmax.f32 %v891, %v893
    %v956 = vmax.f32 %v892, %v894
    %v957 = vmax.f32 %v895, %v897
    %v958 = vmax.f32 %v896, %v898
    %v959 = vmax.f32 %v899, %v901
    %v960 = vmax.f32 %v900, %v902
    %v961 = vmax.f32 %v903, %v905
    %v962 = vmax.f32 %v904, %v906
    %v963 = vmax.f32 %v907, %v909
    %v964 = vmax.f32 %v908, %v910
    %v965 = vmax.f32 %v911, %v913
    %v966 = vmax.f32 %v912, %v914
    %v967 = vmax.f32 %v915, %v917
    %v968 = vmax.f32 %v916, %v918
    %v969 = vmax.f32 %v919, %v921
    %v970 = vmax.f32 %v920, %v922
    %v971 = vmax.f32 %v923, %v925
    %v972 = vmax.f32 %v924, %v926
    %v973 = vmax.f32 %v927, %v929
    %v974 = vmax.f32 %v928, %v930
    %v975 = vmax.f32 %v931, %v933
    %v976 = vmax.f32 %v932, %v934
    %v977 = vmax.f32 %v935, %v937
    %v978 = vmax.f32 %v936, %v938
    %v979 = vmax.f32 %v939, %v941
    %v980 = vmax.f32 %v940, %v942
    %v981 = vmax.f32 %v943, %v945
    %v982 = vmax.f32 %v944, %v946
    %v983 = vmax.f32 %v947, %v949
    %v984 = vmax.f32 %v948, %v950
    %v985 = vmax.f32 %v951, %v953
    %v986 = vmax.f32 %v952, %v954
    %v1019 = vcombine.high %v955, %v955
    %v1021 = vunpack.c.l.s4 1983009808
    %v1022 = vunpack.c.0.s8 %v1021
    %v1023 = vlaneseq
    %v1024 = vshrl.u32 %v1023, 7
    %v1025 = vsub.s32 %v1022, %v1024
    %v1026 = vrot.slane %v955, %v1025
    %v1028 = vunpack.c.l.s4 1983009808
    %v1029 = vunpack.c.0.s8 %v1028
    %v1030 = vlaneseq
    %v1031 = vshrl.u32 %v1030, 7
    %v1032 = vsub.s32 %v1029, %v1031
    %v1033 = vrot.slane %v1019, %v1032
    %v1034 = vcombine.high %v1026, %v1026
    %v1035 = vcombine.high %v1033, %v1033
    %v1036 = vcombine.high %v956, %v956
    %v1038 = vunpack.c.l.s4 1983009808
    %v1039 = vunpack.c.0.s8 %v1038
    %v1040 = vlaneseq
    %v1041 = vshrl.u32 %v1040, 7
    %v1042 = vsub.s32 %v1039, %v1041
    %v1043 = vrot.slane %v956, %v1042
    %v1045 = vunpack.c.l.s4 1983009808
    %v1046 = vunpack.c.0.s8 %v1045
    %v1047 = vlaneseq
    %v1048 = vshrl.u32 %v1047, 7
    %v1049 = vsub.s32 %v1046, %v1048
    %v1050 = vrot.slane %v1036, %v1049
    %v1051 = vcombine.high %v1043, %v1043
    %v1052 = vcombine.high %v1050, %v1050
    %v1053 = vcombine.high %v957, %v957
    %v1055 = vunpack.c.l.s4 1983009808
    %v1056 = vunpack.c.0.s8 %v1055
    %v1057 = vlaneseq
    %v1058 = vshrl.u32 %v1057, 7
    %v1059 = vsub.s32 %v1056, %v1058
    %v1060 = vrot.slane %v957, %v1059
    %v1062 = vunpack.c.l.s4 1983009808
    %v1063 = vunpack.c.0.s8 %v1062
    %v1064 = vlaneseq
    %v1065 = vshrl.u32 %v1064, 7
    %v1066 = vsub.s32 %v1063, %v1065
    %v1067 = vrot.slane %v1053, %v1066
    %v1068 = vcombine.high %v1060, %v1060
    %v1069 = vcombine.high %v1067, %v1067
    %v1070 = vcombine.high %v958, %v958
    %v1072 = vunpack.c.l.s4 1983009808
    %v1073 = vunpack.c.0.s8 %v1072
    %v1074 = vlaneseq
    %v1075 = vshrl.u32 %v1074, 7
    %v1076 = vsub.s32 %v1073, %v1075
    %v1077 = vrot.slane %v958, %v1076
    %v1079 = vunpack.c.l.s4 1983009808
    %v1080 = vunpack.c.0.s8 %v1079
    %v1081 = vlaneseq
    %v1082 = vshrl.u32 %v1081, 7
    %v1083 = vsub.s32 %v1080, %v1082
    %v1084 = vrot.slane %v1070, %v1083
    %v1085 = vcombine.high %v1077, %v1077
    %v1086 = vcombine.high %v1084, %v1084
    %v1087 = vcombine.high %v959, %v959
    %v1089 = vunpack.c.l.s4 1983009808
    %v1090 = vunpack.c.0.s8 %v1089
    %v1091 = vlaneseq
    %v1092 = vshrl.u32 %v1091, 7
    %v1093 = vsub.s32 %v1090, %v1092
    %v1094 = vrot.slane %v959, %v1093
    %v1096 = vunpack.c.l.s4 1983009808
    %v1097 = vunpack.c.0.s8 %v1096
    %v1098 = vlaneseq
    %v1099 = vshrl.u32 %v1098, 7
    %v1100 = vsub.s32 %v1097, %v1099
    %v1101 = vrot.slane %v1087, %v1100
    %v1102 = vcombine.high %v1094, %v1094
    %v1103 = vcombine.high %v1101, %v1101
    %v1104 = vcombine.high %v960, %v960
    %v1106 = vunpack.c.l.s4 1983009808
    %v1107 = vunpack.c.0.s8 %v1106
    %v1108 = vlaneseq
    %v1109 = vshrl.u32 %v1108, 7
    %v1110 = vsub.s32 %v1107, %v1109
    %v1111 = vrot.slane %v960, %v1110
    %v1113 = vunpack.c.l.s4 1983009808
    %v1114 = vunpack.c.0.s8 %v1113
    %v1115 = vlaneseq
    %v1116 = vshrl.u32 %v1115, 7
    %v1117 = vsub.s32 %v1114, %v1116
    %v1118 = vrot.slane %v1104, %v1117
    %v1119 = vcombine.high %v1111, %v1111
    %v1120 = vcombine.high %v1118, %v1118
    %v1121 = vcombine.high %v961, %v961
    %v1123 = vunpack.c.l.s4 1983009808
    %v1124 = vunpack.c.0.s8 %v1123
    %v1125 = vlaneseq
    %v1126 = vshrl.u32 %v1125, 7
    %v1127 = vsub.s32 %v1124, %v1126
    %v1128 = vrot.slane %v961, %v1127
    %v1130 = vunpack.c.l.s4 1983009808
    %v1131 = vunpack.c.0.s8 %v1130
    %v1132 = vlaneseq
    %v1133 = vshrl.u32 %v1132, 7
    %v1134 = vsub.s32 %v1131, %v1133
    %v1135 = vrot.slane %v1121, %v1134
    %v1136 = vcombine.high %v1128, %v1128
    %v1137 = vcombine.high %v1135, %v1135
    %v1138 = vcombine.high %v962, %v962
    %v1140 = vunpack.c.l.s4 1983009808
    %v1141 = vunpack.c.0.s8 %v1140
    %v1142 = vlaneseq
    %v1143 = vshrl.u32 %v1142, 7
    %v1144 = vsub.s32 %v1141, %v1143
    %v1145 = vrot.slane %v962, %v1144
    %v1147 = vunpack.c.l.s4 1983009808
    %v1148 = vunpack.c.0.s8 %v1147
    %v1149 = vlaneseq
    %v1150 = vshrl.u32 %v1149, 7
    %v1151 = vsub.s32 %v1148, %v1150
    %v1152 = vrot.slane %v1138, %v1151
    %v1153 = vcombine.high %v1145, %v1145
    %v1154 = vcombine.high %v1152, %v1152
    %v1155 = vcombine.high %v963, %v963
    %v1157 = vunpack.c.l.s4 1983009808
    %v1158 = vunpack.c.0.s8 %v1157
    %v1159 = vlaneseq
    %v1160 = vshrl.u32 %v1159, 7
    %v1161 = vsub.s32 %v1158, %v1160
    %v1162 = vrot.slane %v963, %v1161
    %v1164 = vunpack.c.l.s4 1983009808
    %v1165 = vunpack.c.0.s8 %v1164
    %v1166 = vlaneseq
    %v1167 = vshrl.u32 %v1166, 7
    %v1168 = vsub.s32 %v1165, %v1167
    %v1169 = vrot.slane %v1155, %v1168
    %v1170 = vcombine.high %v1162, %v1162
    %v1171 = vcombine.high %v1169, %v1169
    %v1172 = vcombine.high %v964, %v964
    %v1174 = vunpack.c.l.s4 1983009808
    %v1175 = vunpack.c.0.s8 %v1174
    %v1176 = vlaneseq
    %v1177 = vshrl.u32 %v1176, 7
    %v1178 = vsub.s32 %v1175, %v1177
    %v1179 = vrot.slane %v964, %v1178
    %v1181 = vunpack.c.l.s4 1983009808
    %v1182 = vunpack.c.0.s8 %v1181
    %v1183 = vlaneseq
    %v1184 = vshrl.u32 %v1183, 7
    %v1185 = vsub.s32 %v1182, %v1184
    %v1186 = vrot.slane %v1172, %v1185
    %v1187 = vcombine.high %v1179, %v1179
    %v1188 = vcombine.high %v1186, %v1186
    %v1189 = vcombine.high %v965, %v965
    %v1191 = vunpack.c.l.s4 1983009808
    %v1192 = vunpack.c.0.s8 %v1191
    %v1193 = vlaneseq
    %v1194 = vshrl.u32 %v1193, 7
    %v1195 = vsub.s32 %v1192, %v1194
    %v1196 = vrot.slane %v965, %v1195
    %v1198 = vunpack.c.l.s4 1983009808
    %v1199 = vunpack.c.0.s8 %v1198
    %v1200 = vlaneseq
    %v1201 = vshrl.u32 %v1200, 7
    %v1202 = vsub.s32 %v1199, %v1201
    %v1203 = vrot.slane %v1189, %v1202
    %v1204 = vcombine.high %v1196, %v1196
    %v1205 = vcombine.high %v1203, %v1203
    %v1206 = vcombine.high %v966, %v966
    %v1208 = vunpack.c.l.s4 1983009808
    %v1209 = vunpack.c.0.s8 %v1208
    %v1210 = vlaneseq
    %v1211 = vshrl.u32 %v1210, 7
    %v1212 = vsub.s32 %v1209, %v1211
    %v1213 = vrot.slane %v966, %v1212
    %v1215 = vunpack.c.l.s4 1983009808
    %v1216 = vunpack.c.0.s8 %v1215
    %v1217 = vlaneseq
    %v1218 = vshrl.u32 %v1217, 7
    %v1219 = vsub.s32 %v1216, %v1218
    %v1220 = vrot.slane %v1206, %v1219
    %v1221 = vcombine.high %v1213, %v1213
    %v1222 = vcombine.high %v1220, %v1220
    %v1223 = vcombine.high %v967, %v967
    %v1225 = vunpack.c.l.s4 1983009808
    %v1226 = vunpack.c.0.s8 %v1225
    %v1227 = vlaneseq
    %v1228 = vshrl.u32 %v1227, 7
    %v1229 = vsub.s32 %v1226, %v1228
    %v1230 = vrot.slane %v967, %v1229
    %v1232 = vunpack.c.l.s4 1983009808
    %v1233 = vunpack.c.0.s8 %v1232
    %v1234 = vlaneseq
    %v1235 = vshrl.u32 %v1234, 7
    %v1236 = vsub.s32 %v1233, %v1235
    %v1237 = vrot.slane %v1223, %v1236
    %v1238 = vcombine.high %v1230, %v1230
    %v1239 = vcombine.high %v1237, %v1237
    %v1240 = vcombine.high %v968, %v968
    %v1242 = vunpack.c.l.s4 1983009808
    %v1243 = vunpack.c.0.s8 %v1242
    %v1244 = vlaneseq
    %v1245 = vshrl.u32 %v1244, 7
    %v1246 = vsub.s32 %v1243, %v1245
    %v1247 = vrot.slane %v968, %v1246
    %v1249 = vunpack.c.l.s4 1983009808
    %v1250 = vunpack.c.0.s8 %v1249
    %v1251 = vlaneseq
    %v1252 = vshrl.u32 %v1251, 7
    %v1253 = vsub.s32 %v1250, %v1252
    %v1254 = vrot.slane %v1240, %v1253
    %v1255 = vcombine.high %v1247, %v1247
    %v1256 = vcombine.high %v1254, %v1254
    %v1257 = vcombine.high %v969, %v969
    %v1259 = vunpack.c.l.s4 1983009808
    %v1260 = vunpack.c.0.s8 %v1259
    %v1261 = vlaneseq
    %v1262 = vshrl.u32 %v1261, 7
    %v1263 = vsub.s32 %v1260, %v1262
    %v1264 = vrot.slane %v969, %v1263
    %v1266 = vunpack.c.l.s4 1983009808
    %v1267 = vunpack.c.0.s8 %v1266
    %v1268 = vlaneseq
    %v1269 = vshrl.u32 %v1268, 7
    %v1270 = vsub.s32 %v1267, %v1269
    %v1271 = vrot.slane %v1257, %v1270
    %v1272 = vcombine.high %v1264, %v1264
    %v1273 = vcombine.high %v1271, %v1271
    %v1274 = vcombine.high %v970, %v970
    %v1276 = vunpack.c.l.s4 1983009808
    %v1277 = vunpack.c.0.s8 %v1276
    %v1278 = vlaneseq
    %v1279 = vshrl.u32 %v1278, 7
    %v1280 = vsub.s32 %v1277, %v1279
    %v1281 = vrot.slane %v970, %v1280
    %v1283 = vunpack.c.l.s4 1983009808
    %v1284 = vunpack.c.0.s8 %v1283
    %v1285 = vlaneseq
    %v1286 = vshrl.u32 %v1285, 7
    %v1287 = vsub.s32 %v1284, %v1286
    %v1288 = vrot.slane %v1274, %v1287
    %v1289 = vcombine.high %v1281, %v1281
    %v1290 = vcombine.high %v1288, %v1288
    %v1291 = vcombine.high %v971, %v971
    %v1293 = vunpack.c.l.s4 1983009808
    %v1294 = vunpack.c.0.s8 %v1293
    %v1295 = vlaneseq
    %v1296 = vshrl.u32 %v1295, 7
    %v1297 = vsub.s32 %v1294, %v1296
    %v1298 = vrot.slane %v971, %v1297
    %v1300 = vunpack.c.l.s4 1983009808
    %v1301 = vunpack.c.0.s8 %v1300
    %v1302 = vlaneseq
    %v1303 = vshrl.u32 %v1302, 7
    %v1304 = vsub.s32 %v1301, %v1303
    %v1305 = vrot.slane %v1291, %v1304
    %v1306 = vcombine.high %v1298, %v1298
    %v1307 = vcombine.high %v1305, %v1305
    %v1308 = vcombine.high %v972, %v972
    %v1310 = vunpack.c.l.s4 1983009808
    %v1311 = vunpack.c.0.s8 %v1310
    %v1312 = vlaneseq
    %v1313 = vshrl.u32 %v1312, 7
    %v1314 = vsub.s32 %v1311, %v1313
    %v1315 = vrot.slane %v972, %v1314
    %v1317 = vunpack.c.l.s4 1983009808
    %v1318 = vunpack.c.0.s8 %v1317
    %v1319 = vlaneseq
    %v1320 = vshrl.u32 %v1319, 7
    %v1321 = vsub.s32 %v1318, %v1320
    %v1322 = vrot.slane %v1308, %v1321
    %v1323 = vcombine.high %v1315, %v1315
    %v1324 = vcombine.high %v1322, %v1322
    %v1325 = vcombine.high %v973, %v973
    %v1327 = vunpack.c.l.s4 1983009808
    %v1328 = vunpack.c.0.s8 %v1327
    %v1329 = vlaneseq
    %v1330 = vshrl.u32 %v1329, 7
    %v1331 = vsub.s32 %v1328, %v1330
    %v1332 = vrot.slane %v973, %v1331
    %v1334 = vunpack.c.l.s4 1983009808
    %v1335 = vunpack.c.0.s8 %v1334
    %v1336 = vlaneseq
    %v1337 = vshrl.u32 %v1336, 7
    %v1338 = vsub.s32 %v1335, %v1337
    %v1339 = vrot.slane %v1325, %v1338
    %v1340 = vcombine.high %v1332, %v1332
    %v1341 = vcombine.high %v1339, %v1339
    %v1342 = vcombine.high %v974, %v974
    %v1344 = vunpack.c.l.s4 1983009808
    %v1345 = vunpack.c.0.s8 %v1344
    %v1346 = vlaneseq
    %v1347 = vshrl.u32 %v1346, 7
    %v1348 = vsub.s32 %v1345, %v1347
    %v1349 = vrot.slane %v974, %v1348
    %v1351 = vunpack.c.l.s4 1983009808
    %v1352 = vunpack.c.0.s8 %v1351
    %v1353 = vlaneseq
    %v1354 = vshrl.u32 %v1353, 7
    %v1355 = vsub.s32 %v1352, %v1354
    %v1356 = vrot.slane %v1342, %v1355
    %v1357 = vcombine.high %v1349, %v1349
    %v1358 = vcombine.high %v1356, %v1356
    %v1359 = vcombine.high %v975, %v975
    %v1361 = vunpack.c.l.s4 1983009808
    %v1362 = vunpack.c.0.s8 %v1361
    %v1363 = vlaneseq
    %v1364 = vshrl.u32 %v1363, 7
    %v1365 = vsub.s32 %v1362, %v1364
    %v1366 = vrot.slane %v975, %v1365
    %v1368 = vunpack.c.l.s4 1983009808
    %v1369 = vunpack.c.0.s8 %v1368
    %v1370 = vlaneseq
    %v1371 = vshrl.u32 %v1370, 7
    %v1372 = vsub.s32 %v1369, %v1371
    %v1373 = vrot.slane %v1359, %v1372
    %v1374 = vcombine.high %v1366, %v1366
    %v1375 = vcombine.high %v1373, %v1373
    %v1376 = vcombine.high %v976, %v976
    %v1378 = vunpack.c.l.s4 1983009808
    %v1379 = vunpack.c.0.s8 %v1378
    %v1380 = vlaneseq
    %v1381 = vshrl.u32 %v1380, 7
    %v1382 = vsub.s32 %v1379, %v1381
    %v1383 = vrot.slane %v976, %v1382
    %v1385 = vunpack.c.l.s4 1983009808
    %v1386 = vunpack.c.0.s8 %v1385
    %v1387 = vlaneseq
    %v1388 = vshrl.u32 %v1387, 7
    %v1389 = vsub.s32 %v1386, %v1388
    %v1390 = vrot.slane %v1376, %v1389
    %v1391 = vcombine.high %v1383, %v1383
    %v1392 = vcombine.high %v1390, %v1390
    %v1393 = vcombine.high %v977, %v977
    %v1395 = vunpack.c.l.s4 1983009808
    %v1396 = vunpack.c.0.s8 %v1395
    %v1397 = vlaneseq
    %v1398 = vshrl.u32 %v1397, 7
    %v1399 = vsub.s32 %v1396, %v1398
    %v1400 = vrot.slane %v977, %v1399
    %v1402 = vunpack.c.l.s4 1983009808
    %v1403 = vunpack.c.0.s8 %v1402
    %v1404 = vlaneseq
    %v1405 = vshrl.u32 %v1404, 7
    %v1406 = vsub.s32 %v1403, %v1405
    %v1407 = vrot.slane %v1393, %v1406
    %v1408 = vcombine.high %v1400, %v1400
    %v1409 = vcombine.high %v1407, %v1407
    %v1410 = vcombine.high %v978, %v978
    %v1412 = vunpack.c.l.s4 1983009808
    %v1413 = vunpack.c.0.s8 %v1412
    %v1414 = vlaneseq
    %v1415 = vshrl.u32 %v1414, 7
    %v1416 = vsub.s32 %v1413, %v1415
    %v1417 = vrot.slane %v978, %v1416
    %v1419 = vunpack.c.l.s4 1983009808
    %v1420 = vunpack.c.0.s8 %v1419
    %v1421 = vlaneseq
    %v1422 = vshrl.u32 %v1421, 7
    %v1423 = vsub.s32 %v1420, %v1422
    %v1424 = vrot.slane %v1410, %v1423
    %v1425 = vcombine.high %v1417, %v1417
    %v1426 = vcombine.high %v1424, %v1424
    %v1427 = vcombine.high %v979, %v979
    %v1429 = vunpack.c.l.s4 1983009808
    %v1430 = vunpack.c.0.s8 %v1429
    %v1431 = vlaneseq
    %v1432 = vshrl.u32 %v1431, 7
    %v1433 = vsub.s32 %v1430, %v1432
    %v1434 = vrot.slane %v979, %v1433
    %v1436 = vunpack.c.l.s4 1983009808
    %v1437 = vunpack.c.0.s8 %v1436
    %v1438 = vlaneseq
    %v1439 = vshrl.u32 %v1438, 7
    %v1440 = vsub.s32 %v1437, %v1439
    %v1441 = vrot.slane %v1427, %v1440
    %v1442 = vcombine.high %v1434, %v1434
    %v1443 = vcombine.high %v1441, %v1441
    %v1444 = vcombine.high %v980, %v980
    %v1446 = vunpack.c.l.s4 1983009808
    %v1447 = vunpack.c.0.s8 %v1446
    %v1448 = vlaneseq
    %v1449 = vshrl.u32 %v1448, 7
    %v1450 = vsub.s32 %v1447, %v1449
    %v1451 = vrot.slane %v980, %v1450
    %v1453 = vunpack.c.l.s4 1983009808
    %v1454 = vunpack.c.0.s8 %v1453
    %v1455 = vlaneseq
    %v1456 = vshrl.u32 %v1455, 7
    %v1457 = vsub.s32 %v1454, %v1456
    %v1458 = vrot.slane %v1444, %v1457
    %v1459 = vcombine.high %v1451, %v1451
    %v1460 = vcombine.high %v1458, %v1458
    %v1461 = vcombine.high %v981, %v981
    %v1463 = vunpack.c.l.s4 1983009808
    %v1464 = vunpack.c.0.s8 %v1463
    %v1465 = vlaneseq
    %v1466 = vshrl.u32 %v1465, 7
    %v1467 = vsub.s32 %v1464, %v1466
    %v1468 = vrot.slane %v981, %v1467
    %v1470 = vunpack.c.l.s4 1983009808
    %v1471 = vunpack.c.0.s8 %v1470
    %v1472 = vlaneseq
    %v1473 = vshrl.u32 %v1472, 7
    %v1474 = vsub.s32 %v1471, %v1473
    %v1475 = vrot.slane %v1461, %v1474
    %v1476 = vcombine.high %v1468, %v1468
    %v1477 = vcombine.high %v1475, %v1475
    %v1478 = vcombine.high %v982, %v982
    %v1480 = vunpack.c.l.s4 1983009808
    %v1481 = vunpack.c.0.s8 %v1480
    %v1482 = vlaneseq
    %v1483 = vshrl.u32 %v1482, 7
    %v1484 = vsub.s32 %v1481, %v1483
    %v1485 = vrot.slane %v982, %v1484
    %v1487 = vunpack.c.l.s4 1983009808
    %v1488 = vunpack.c.0.s8 %v1487
    %v1489 = vlaneseq
    %v1490 = vshrl.u32 %v1489, 7
    %v1491 = vsub.s32 %v1488, %v1490
    %v1492 = vrot.slane %v1478, %v1491
    %v1493 = vcombine.high %v1485, %v1485
    %v1494 = vcombine.high %v1492, %v1492
    %v1495 = vcombine.high %v983, %v983
    %v1497 = vunpack.c.l.s4 1983009808
    %v1498 = vunpack.c.0.s8 %v1497
    %v1499 = vlaneseq
    %v1500 = vshrl.u32 %v1499, 7
    %v1501 = vsub.s32 %v1498, %v1500
    %v1502 = vrot.slane %v983, %v1501
    %v1504 = vunpack.c.l.s4 1983009808
    %v1505 = vunpack.c.0.s8 %v1504
    %v1506 = vlaneseq
    %v1507 = vshrl.u32 %v1506, 7
    %v1508 = vsub.s32 %v1505, %v1507
    %v1509 = vrot.slane %v1495, %v1508
    %v1510 = vcombine.high %v1502, %v1502
    %v1511 = vcombine.high %v1509, %v1509
    %v1512 = vcombine.high %v984, %v984
    %v1514 = vunpack.c.l.s4 1983009808
    %v1515 = vunpack.c.0.s8 %v1514
    %v1516 = vlaneseq
    %v1517 = vshrl.u32 %v1516, 7
    %v1518 = vsub.s32 %v1515, %v1517
    %v1519 = vrot.slane %v984, %v1518
    %v1521 = vunpack.c.l.s4 1983009808
    %v1522 = vunpack.c.0.s8 %v1521
    %v1523 = vlaneseq
    %v1524 = vshrl.u32 %v1523, 7
    %v1525 = vsub.s32 %v1522, %v1524
    %v1526 = vrot.slane %v1512, %v1525
    %v1527 = vcombine.high %v1519, %v1519
    %v1528 = vcombine.high %v1526, %v1526
    %v1529 = vcombine.high %v985, %v985
    %v1531 = vunpack.c.l.s4 1983009808
    %v1532 = vunpack.c.0.s8 %v1531
    %v1533 = vlaneseq
    %v1534 = vshrl.u32 %v1533, 7
    %v1535 = vsub.s32 %v1532, %v1534
    %v1536 = vrot.slane %v985, %v1535
    %v1538 = vunpack.c.l.s4 1983009808
    %v1539 = vunpack.c.0.s8 %v1538
    %v1540 = vlaneseq
    %v1541 = vshrl.u32 %v1540, 7
    %v1542 = vsub.s32 %v1539, %v1541
    %v1543 = vrot.slane %v1529, %v1542
    %v1544 = vcombine.high %v1536, %v1536
    %v1545 = vcombine.high %v1543, %v1543
    %v1546 = vcombine.high %v986, %v986
    %v1548 = vunpack.c.l.s4 1983009808
    %v1549 = vunpack.c.0.s8 %v1548
    %v1550 = vlaneseq
    %v1551 = vshrl.u32 %v1550, 7
    %v1552 = vsub.s32 %v1549, %v1551
    %v1553 = vrot.slane %v986, %v1552
    %v1555 = vunpack.c.l.s4 1983009808
    %v1556 = vunpack.c.0.s8 %v1555
    %v1557 = vlaneseq
    %v1558 = vshrl.u32 %v1557, 7
    %v1559 = vsub.s32 %v1556, %v1558
    %v1560 = vrot.slane %v1546, %v1559
    %v1561 = vcombine.high %v1553, %v1553
    %v1562 = vcombine.high %v1560, %v1560
    %vm1691 = vcmask 517120
    %v1692 = vsel %vm1691, %v1026, -inf
    %v1693 = vrot.slane %v1692, 4
    %v1694 = vmax.f32 %v1692, %v1693
    %v1695 = vrot.slane %v1694, 2
    %v1696 = vmax.f32 %v1694, %v1695
    %v1697 = vrot.slane %v1696, 1
    %v1698 = vmax.f32 %v1696, %v1697
    %v1699 = vsel %vm1691, %v1034, -inf
    %v1700 = vrot.slane %v1699, 4
    %v1701 = vmax.f32 %v1699, %v1700
    %v1702 = vrot.slane %v1701, 2
    %v1703 = vmax.f32 %v1701, %v1702
    %v1704 = vrot.slane %v1703, 1
    %v1705 = vmax.f32 %v1703, %v1704
    %v1706 = vsel %vm1691, %v1033, -inf
    %v1707 = vrot.slane %v1706, 4
    %v1708 = vmax.f32 %v1706, %v1707
    %v1709 = vrot.slane %v1708, 2
    %v1710 = vmax.f32 %v1708, %v1709
    %v1711 = vrot.slane %v1710, 1
    %v1712 = vmax.f32 %v1710, %v1711
    %v1713 = vsel %vm1691, %v1035, -inf
    %v1714 = vrot.slane %v1713, 4
    %v1715 = vmax.f32 %v1713, %v1714
    %v1716 = vrot.slane %v1715, 2
    %v1717 = vmax.f32 %v1715, %v1716
    %v1718 = vrot.slane %v1717, 1
    %v1719 = vmax.f32 %v1717, %v1718
    %v1720 = vsel %vm1691, %v1043, -inf
    %v1721 = vrot.slane %v1720, 4
    %v1722 = vmax.f32 %v1720, %v1721
    %v1723 = vrot.slane %v1722, 2
    %v1724 = vmax.f32 %v1722, %v1723
    %v1725 = vrot.slane %v1724, 1
    %v1726 = vmax.f32 %v1724, %v1725
    %v1727 = vsel %vm1691, %v1051, -inf
    %v1728 = vrot.slane %v1727, 4
    %v1729 = vmax.f32 %v1727, %v1728
    %v1730 = vrot.slane %v1729, 2
    %v1731 = vmax.f32 %v1729, %v1730
    %v1732 = vrot.slane %v1731, 1
    %v1733 = vmax.f32 %v1731, %v1732
    %v1734 = vsel %vm1691, %v1050, -inf
    %v1735 = vrot.slane %v1734, 4
    %v1736 = vmax.f32 %v1734, %v1735
    %v1737 = vrot.slane %v1736, 2
    %v1738 = vmax.f32 %v1736, %v1737
    %v1739 = vrot.slane %v1738, 1
    %v1740 = vmax.f32 %v1738, %v1739
    %v1741 = vsel %vm1691, %v1052, -inf
    %v1742 = vrot.slane %v1741, 4
    %v1743 = vmax.f32 %v1741, %v1742
    %v1744 = vrot.slane %v1743, 2
    %v1745 = vmax.f32 %v1743, %v1744
    %v1746 = vrot.slane %v1745, 1
    %v1747 = vmax.f32 %v1745, %v1746
    %v1748 = vsel %vm1691, %v1060, -inf
    %v1749 = vrot.slane %v1748, 4
    %v1750 = vmax.f32 %v1748, %v1749
    %v1751 = vrot.slane %v1750, 2
    %v1752 = vmax.f32 %v1750, %v1751
    %v1753 = vrot.slane %v1752, 1
    %v1754 = vmax.f32 %v1752, %v1753
    %v1755 = vsel %vm1691, %v1068, -inf
    %v1756 = vrot.slane %v1755, 4
    %v1757 = vmax.f32 %v1755, %v1756
    %v1758 = vrot.slane %v1757, 2
    %v1759 = vmax.f32 %v1757, %v1758
    %v1760 = vrot.slane %v1759, 1
    %v1761 = vmax.f32 %v1759, %v1760
    %v1762 = vsel %vm1691, %v1067, -inf
    %v1763 = vrot.slane %v1762, 4
    %v1764 = vmax.f32 %v1762, %v1763
    %v1765 = vrot.slane %v1764, 2
    %v1766 = vmax.f32 %v1764, %v1765
    %v1767 = vrot.slane %v1766, 1
    %v1768 = vmax.f32 %v1766, %v1767
    %v1769 = vsel %vm1691, %v1069, -inf
    %v1770 = vrot.slane %v1769, 4
    %v1771 = vmax.f32 %v1769, %v1770
    %v1772 = vrot.slane %v1771, 2
    %v1773 = vmax.f32 %v1771, %v1772
    %v1774 = vrot.slane %v1773, 1
    %v1775 = vmax.f32 %v1773, %v1774
    %v1776 = vsel %vm1691, %v1077, -inf
    %v1777 = vrot.slane %v1776, 4
    %v1778 = vmax.f32 %v1776, %v1777
    %v1779 = vrot.slane %v1778, 2
    %v1780 = vmax.f32 %v1778, %v1779
    %v1781 = vrot.slane %v1780, 1
    %v1782 = vmax.f32 %v1780, %v1781
    %v1783 = vsel %vm1691, %v1085, -inf
    %v1784 = vrot.slane %v1783, 4
    %v1785 = vmax.f32 %v1783, %v1784
    %v1786 = vrot.slane %v1785, 2
    %v1787 = vmax.f32 %v1785, %v1786
    %v1788 = vrot.slane %v1787, 1
    %v1789 = vmax.f32 %v1787, %v1788
    %v1790 = vsel %vm1691, %v1084, -inf
    %v1791 = vrot.slane %v1790, 4
    %v1792 = vmax.f32 %v1790, %v1791
    %v1793 = vrot.slane %v1792, 2
    %v1794 = vmax.f32 %v1792, %v1793
    %v1795 = vrot.slane %v1794, 1
    %v1796 = vmax.f32 %v1794, %v1795
    %v1797 = vsel %vm1691, %v1086, -inf
    %v1798 = vrot.slane %v1797, 4
    %v1799 = vmax.f32 %v1797, %v1798
    %v1800 = vrot.slane %v1799, 2
    %v1801 = vmax.f32 %v1799, %v1800
    %v1802 = vrot.slane %v1801, 1
    %v1803 = vmax.f32 %v1801, %v1802
    %v1804 = vsel %vm1691, %v1094, -inf
    %v1805 = vrot.slane %v1804, 4
    %v1806 = vmax.f32 %v1804, %v1805
    %v1807 = vrot.slane %v1806, 2
    %v1808 = vmax.f32 %v1806, %v1807
    %v1809 = vrot.slane %v1808, 1
    %v1810 = vmax.f32 %v1808, %v1809
    %v1811 = vsel %vm1691, %v1102, -inf
    %v1812 = vrot.slane %v1811, 4
    %v1813 = vmax.f32 %v1811, %v1812
    %v1814 = vrot.slane %v1813, 2
    %v1815 = vmax.f32 %v1813, %v1814
    %v1816 = vrot.slane %v1815, 1
    %v1817 = vmax.f32 %v1815, %v1816
    %v1818 = vsel %vm1691, %v1101, -inf
    %v1819 = vrot.slane %v1818, 4
    %v1820 = vmax.f32 %v1818, %v1819
    %v1821 = vrot.slane %v1820, 2
    %v1822 = vmax.f32 %v1820, %v1821
    %v1823 = vrot.slane %v1822, 1
    %v1824 = vmax.f32 %v1822, %v1823
    %v1825 = vsel %vm1691, %v1103, -inf
    %v1826 = vrot.slane %v1825, 4
    %v1827 = vmax.f32 %v1825, %v1826
    %v1828 = vrot.slane %v1827, 2
    %v1829 = vmax.f32 %v1827, %v1828
    %v1830 = vrot.slane %v1829, 1
    %v1831 = vmax.f32 %v1829, %v1830
    %v1832 = vsel %vm1691, %v1111, -inf
    %v1833 = vrot.slane %v1832, 4
    %v1834 = vmax.f32 %v1832, %v1833
    %v1835 = vrot.slane %v1834, 2
    %v1836 = vmax.f32 %v1834, %v1835
    %v1837 = vrot.slane %v1836, 1
    %v1838 = vmax.f32 %v1836, %v1837
    %v1839 = vsel %vm1691, %v1119, -inf
    %v1840 = vrot.slane %v1839, 4
    %v1841 = vmax.f32 %v1839, %v1840
    %v1842 = vrot.slane %v1841, 2
    %v1843 = vmax.f32 %v1841, %v1842
    %v1844 = vrot.slane %v1843, 1
    %v1845 = vmax.f32 %v1843, %v1844
    %v1846 = vsel %vm1691, %v1118, -inf
    %v1847 = vrot.slane %v1846, 4
    %v1848 = vmax.f32 %v1846, %v1847
    %v1849 = vrot.slane %v1848, 2
    %v1850 = vmax.f32 %v1848, %v1849
    %v1851 = vrot.slane %v1850, 1
    %v1852 = vmax.f32 %v1850, %v1851
    %v1853 = vsel %vm1691, %v1120, -inf
    %v1854 = vrot.slane %v1853, 4
    %v1855 = vmax.f32 %v1853, %v1854
    %v1856 = vrot.slane %v1855, 2
    %v1857 = vmax.f32 %v1855, %v1856
    %v1858 = vrot.slane %v1857, 1
    %v1859 = vmax.f32 %v1857, %v1858
    %v1860 = vsel %vm1691, %v1128, -inf
    %v1861 = vrot.slane %v1860, 4
    %v1862 = vmax.f32 %v1860, %v1861
    %v1863 = vrot.slane %v1862, 2
    %v1864 = vmax.f32 %v1862, %v1863
    %v1865 = vrot.slane %v1864, 1
    %v1866 = vmax.f32 %v1864, %v1865
    %v1867 = vsel %vm1691, %v1136, -inf
    %v1868 = vrot.slane %v1867, 4
    %v1869 = vmax.f32 %v1867, %v1868
    %v1870 = vrot.slane %v1869, 2
    %v1871 = vmax.f32 %v1869, %v1870
    %v1872 = vrot.slane %v1871, 1
    %v1873 = vmax.f32 %v1871, %v1872
    %v1874 = vsel %vm1691, %v1135, -inf
    %v1875 = vrot.slane %v1874, 4
    %v1876 = vmax.f32 %v1874, %v1875
    %v1877 = vrot.slane %v1876, 2
    %v1878 = vmax.f32 %v1876, %v1877
    %v1879 = vrot.slane %v1878, 1
    %v1880 = vmax.f32 %v1878, %v1879
    %v1881 = vsel %vm1691, %v1137, -inf
    %v1882 = vrot.slane %v1881, 4
    %v1883 = vmax.f32 %v1881, %v1882
    %v1884 = vrot.slane %v1883, 2
    %v1885 = vmax.f32 %v1883, %v1884
    %v1886 = vrot.slane %v1885, 1
    %v1887 = vmax.f32 %v1885, %v1886
    %v1888 = vsel %vm1691, %v1145, -inf
    %v1889 = vrot.slane %v1888, 4
    %v1890 = vmax.f32 %v1888, %v1889
    %v1891 = vrot.slane %v1890, 2
    %v1892 = vmax.f32 %v1890, %v1891
    %v1893 = vrot.slane %v1892, 1
    %v1894 = vmax.f32 %v1892, %v1893
    %v1895 = vsel %vm1691, %v1153, -inf
    %v1896 = vrot.slane %v1895, 4
    %v1897 = vmax.f32 %v1895, %v1896
    %v1898 = vrot.slane %v1897, 2
    %v1899 = vmax.f32 %v1897, %v1898
    %v1900 = vrot.slane %v1899, 1
    %v1901 = vmax.f32 %v1899, %v1900
    %v1902 = vsel %vm1691, %v1152, -inf
    %v1903 = vrot.slane %v1902, 4
    %v1904 = vmax.f32 %v1902, %v1903
    %v1905 = vrot.slane %v1904, 2
    %v1906 = vmax.f32 %v1904, %v1905
    %v1907 = vrot.slane %v1906, 1
    %v1908 = vmax.f32 %v1906, %v1907
    %v1909 = vsel %vm1691, %v1154, -inf
    %v1910 = vrot.slane %v1909, 4
    %v1911 = vmax.f32 %v1909, %v1910
    %v1912 = vrot.slane %v1911, 2
    %v1913 = vmax.f32 %v1911, %v1912
    %v1914 = vrot.slane %v1913, 1
    %v1915 = vmax.f32 %v1913, %v1914
    %v1916 = vsel %vm1691, %v1162, -inf
    %v1917 = vrot.slane %v1916, 4
    %v1918 = vmax.f32 %v1916, %v1917
    %v1919 = vrot.slane %v1918, 2
    %v1920 = vmax.f32 %v1918, %v1919
    %v1921 = vrot.slane %v1920, 1
    %v1922 = vmax.f32 %v1920, %v1921
    %v1923 = vsel %vm1691, %v1170, -inf
    %v1924 = vrot.slane %v1923, 4
    %v1925 = vmax.f32 %v1923, %v1924
    %v1926 = vrot.slane %v1925, 2
    %v1927 = vmax.f32 %v1925, %v1926
    %v1928 = vrot.slane %v1927, 1
    %v1929 = vmax.f32 %v1927, %v1928
    %v1930 = vsel %vm1691, %v1169, -inf
    %v1931 = vrot.slane %v1930, 4
    %v1932 = vmax.f32 %v1930, %v1931
    %v1933 = vrot.slane %v1932, 2
    %v1934 = vmax.f32 %v1932, %v1933
    %v1935 = vrot.slane %v1934, 1
    %v1936 = vmax.f32 %v1934, %v1935
    %v1937 = vsel %vm1691, %v1171, -inf
    %v1938 = vrot.slane %v1937, 4
    %v1939 = vmax.f32 %v1937, %v1938
    %v1940 = vrot.slane %v1939, 2
    %v1941 = vmax.f32 %v1939, %v1940
    %v1942 = vrot.slane %v1941, 1
    %v1943 = vmax.f32 %v1941, %v1942
    %v1944 = vsel %vm1691, %v1179, -inf
    %v1945 = vrot.slane %v1944, 4
    %v1946 = vmax.f32 %v1944, %v1945
    %v1947 = vrot.slane %v1946, 2
    %v1948 = vmax.f32 %v1946, %v1947
    %v1949 = vrot.slane %v1948, 1
    %v1950 = vmax.f32 %v1948, %v1949
    %v1951 = vsel %vm1691, %v1187, -inf
    %v1952 = vrot.slane %v1951, 4
    %v1953 = vmax.f32 %v1951, %v1952
    %v1954 = vrot.slane %v1953, 2
    %v1955 = vmax.f32 %v1953, %v1954
    %v1956 = vrot.slane %v1955, 1
    %v1957 = vmax.f32 %v1955, %v1956
    %v1958 = vsel %vm1691, %v1186, -inf
    %v1959 = vrot.slane %v1958, 4
    %v1960 = vmax.f32 %v1958, %v1959
    %v1961 = vrot.slane %v1960, 2
    %v1962 = vmax.f32 %v1960, %v1961
    %v1963 = vrot.slane %v1962, 1
    %v1964 = vmax.f32 %v1962, %v1963
    %v1965 = vsel %vm1691, %v1188, -inf
    %v1966 = vrot.slane %v1965, 4
    %v1967 = vmax.f32 %v1965, %v1966
    %v1968 = vrot.slane %v1967, 2
    %v1969 = vmax.f32 %v1967, %v1968
    %v1970 = vrot.slane %v1969, 1
    %v1971 = vmax.f32 %v1969, %v1970
    %v1972 = vsel %vm1691, %v1196, -inf
    %v1973 = vrot.slane %v1972, 4
    %v1974 = vmax.f32 %v1972, %v1973
    %v1975 = vrot.slane %v1974, 2
    %v1976 = vmax.f32 %v1974, %v1975
    %v1977 = vrot.slane %v1976, 1
    %v1978 = vmax.f32 %v1976, %v1977
    %v1979 = vsel %vm1691, %v1204, -inf
    %v1980 = vrot.slane %v1979, 4
    %v1981 = vmax.f32 %v1979, %v1980
    %v1982 = vrot.slane %v1981, 2
    %v1983 = vmax.f32 %v1981, %v1982
    %v1984 = vrot.slane %v1983, 1
    %v1985 = vmax.f32 %v1983, %v1984
    %v1986 = vsel %vm1691, %v1203, -inf
    %v1987 = vrot.slane %v1986, 4
    %v1988 = vmax.f32 %v1986, %v1987
    %v1989 = vrot.slane %v1988, 2
    %v1990 = vmax.f32 %v1988, %v1989
    %v1991 = vrot.slane %v1990, 1
    %v1992 = vmax.f32 %v1990, %v1991
    %v1993 = vsel %vm1691, %v1205, -inf
    %v1994 = vrot.slane %v1993, 4
    %v1995 = vmax.f32 %v1993, %v1994
    %v1996 = vrot.slane %v1995, 2
    %v1997 = vmax.f32 %v1995, %v1996
    %v1998 = vrot.slane %v1997, 1
    %v1999 = vmax.f32 %v1997, %v1998
    %v2000 = vsel %vm1691, %v1213, -inf
    %v2001 = vrot.slane %v2000, 4
    %v2002 = vmax.f32 %v2000, %v2001
    %v2003 = vrot.slane %v2002, 2
    %v2004 = vmax.f32 %v2002, %v2003
    %v2005 = vrot.slane %v2004, 1
    %v2006 = vmax.f32 %v2004, %v2005
    %v2007 = vsel %vm1691, %v1221, -inf
    %v2008 = vrot.slane %v2007, 4
    %v2009 = vmax.f32 %v2007, %v2008
    %v2010 = vrot.slane %v2009, 2
    %v2011 = vmax.f32 %v2009, %v2010
    %v2012 = vrot.slane %v2011, 1
    %v2013 = vmax.f32 %v2011, %v2012
    %v2014 = vsel %vm1691, %v1220, -inf
    %v2015 = vrot.slane %v2014, 4
    %v2016 = vmax.f32 %v2014, %v2015
    %v2017 = vrot.slane %v2016, 2
    %v2018 = vmax.f32 %v2016, %v2017
    %v2019 = vrot.slane %v2018, 1
    %v2020 = vmax.f32 %v2018, %v2019
    %v2021 = vsel %vm1691, %v1222, -inf
    %v2022 = vrot.slane %v2021, 4
    %v2023 = vmax.f32 %v2021, %v2022
    %v2024 = vrot.slane %v2023, 2
    %v2025 = vmax.f32 %v2023, %v2024
    %v2026 = vrot.slane %v2025, 1
    %v2027 = vmax.f32 %v2025, %v2026
    %v2028 = vsel %vm1691, %v1230, -inf
    %v2029 = vrot.slane %v2028, 4
    %v2030 = vmax.f32 %v2028, %v2029
    %v2031 = vrot.slane %v2030, 2
    %v2032 = vmax.f32 %v2030, %v2031
    %v2033 = vrot.slane %v2032, 1
    %v2034 = vmax.f32 %v2032, %v2033
    %v2035 = vsel %vm1691, %v1238, -inf
    %v2036 = vrot.slane %v2035, 4
    %v2037 = vmax.f32 %v2035, %v2036
    %v2038 = vrot.slane %v2037, 2
    %v2039 = vmax.f32 %v2037, %v2038
    %v2040 = vrot.slane %v2039, 1
    %v2041 = vmax.f32 %v2039, %v2040
    %v2042 = vsel %vm1691, %v1237, -inf
    %v2043 = vrot.slane %v2042, 4
    %v2044 = vmax.f32 %v2042, %v2043
    %v2045 = vrot.slane %v2044, 2
    %v2046 = vmax.f32 %v2044, %v2045
    %v2047 = vrot.slane %v2046, 1
    %v2048 = vmax.f32 %v2046, %v2047
    %v2049 = vsel %vm1691, %v1239, -inf
    %v2050 = vrot.slane %v2049, 4
    %v2051 = vmax.f32 %v2049, %v2050
    %v2052 = vrot.slane %v2051, 2
    %v2053 = vmax.f32 %v2051, %v2052
    %v2054 = vrot.slane %v2053, 1
    %v2055 = vmax.f32 %v2053, %v2054
    %v2056 = vsel %vm1691, %v1247, -inf
    %v2057 = vrot.slane %v2056, 4
    %v2058 = vmax.f32 %v2056, %v2057
    %v2059 = vrot.slane %v2058, 2
    %v2060 = vmax.f32 %v2058, %v2059
    %v2061 = vrot.slane %v2060, 1
    %v2062 = vmax.f32 %v2060, %v2061
    %v2063 = vsel %vm1691, %v1255, -inf
    %v2064 = vrot.slane %v2063, 4
    %v2065 = vmax.f32 %v2063, %v2064
    %v2066 = vrot.slane %v2065, 2
    %v2067 = vmax.f32 %v2065, %v2066
    %v2068 = vrot.slane %v2067, 1
    %v2069 = vmax.f32 %v2067, %v2068
    %v2070 = vsel %vm1691, %v1254, -inf
    %v2071 = vrot.slane %v2070, 4
    %v2072 = vmax.f32 %v2070, %v2071
    %v2073 = vrot.slane %v2072, 2
    %v2074 = vmax.f32 %v2072, %v2073
    %v2075 = vrot.slane %v2074, 1
    %v2076 = vmax.f32 %v2074, %v2075
    %v2077 = vsel %vm1691, %v1256, -inf
    %v2078 = vrot.slane %v2077, 4
    %v2079 = vmax.f32 %v2077, %v2078
    %v2080 = vrot.slane %v2079, 2
    %v2081 = vmax.f32 %v2079, %v2080
    %v2082 = vrot.slane %v2081, 1
    %v2083 = vmax.f32 %v2081, %v2082
    %v2084 = vsel %vm1691, %v1264, -inf
    %v2085 = vrot.slane %v2084, 4
    %v2086 = vmax.f32 %v2084, %v2085
    %v2087 = vrot.slane %v2086, 2
    %v2088 = vmax.f32 %v2086, %v2087
    %v2089 = vrot.slane %v2088, 1
    %v2090 = vmax.f32 %v2088, %v2089
    %v2091 = vsel %vm1691, %v1272, -inf
    %v2092 = vrot.slane %v2091, 4
    %v2093 = vmax.f32 %v2091, %v2092
    %v2094 = vrot.slane %v2093, 2
    %v2095 = vmax.f32 %v2093, %v2094
    %v2096 = vrot.slane %v2095, 1
    %v2097 = vmax.f32 %v2095, %v2096
    %v2098 = vsel %vm1691, %v1271, -inf
    %v2099 = vrot.slane %v2098, 4
    %v2100 = vmax.f32 %v2098, %v2099
    %v2101 = vrot.slane %v2100, 2
    %v2102 = vmax.f32 %v2100, %v2101
    %v2103 = vrot.slane %v2102, 1
    %v2104 = vmax.f32 %v2102, %v2103
    %v2105 = vsel %vm1691, %v1273, -inf
    %v2106 = vrot.slane %v2105, 4
    %v2107 = vmax.f32 %v2105, %v2106
    %v2108 = vrot.slane %v2107, 2
    %v2109 = vmax.f32 %v2107, %v2108
    %v2110 = vrot.slane %v2109, 1
    %v2111 = vmax.f32 %v2109, %v2110
    %v2112 = vsel %vm1691, %v1281, -inf
    %v2113 = vrot.slane %v2112, 4
    %v2114 = vmax.f32 %v2112, %v2113
    %v2115 = vrot.slane %v2114, 2
    %v2116 = vmax.f32 %v2114, %v2115
    %v2117 = vrot.slane %v2116, 1
    %v2118 = vmax.f32 %v2116, %v2117
    %v2119 = vsel %vm1691, %v1289, -inf
    %v2120 = vrot.slane %v2119, 4
    %v2121 = vmax.f32 %v2119, %v2120
    %v2122 = vrot.slane %v2121, 2
    %v2123 = vmax.f32 %v2121, %v2122
    %v2124 = vrot.slane %v2123, 1
    %v2125 = vmax.f32 %v2123, %v2124
    %v2126 = vsel %vm1691, %v1288, -inf
    %v2127 = vrot.slane %v2126, 4
    %v2128 = vmax.f32 %v2126, %v2127
    %v2129 = vrot.slane %v2128, 2
    %v2130 = vmax.f32 %v2128, %v2129
    %v2131 = vrot.slane %v2130, 1
    %v2132 = vmax.f32 %v2130, %v2131
    %v2133 = vsel %vm1691, %v1290, -inf
    %v2134 = vrot.slane %v2133, 4
    %v2135 = vmax.f32 %v2133, %v2134
    %v2136 = vrot.slane %v2135, 2
    %v2137 = vmax.f32 %v2135, %v2136
    %v2138 = vrot.slane %v2137, 1
    %v2139 = vmax.f32 %v2137, %v2138
    %v2140 = vsel %vm1691, %v1298, -inf
    %v2141 = vrot.slane %v2140, 4
    %v2142 = vmax.f32 %v2140, %v2141
    %v2143 = vrot.slane %v2142, 2
    %v2144 = vmax.f32 %v2142, %v2143
    %v2145 = vrot.slane %v2144, 1
    %v2146 = vmax.f32 %v2144, %v2145
    %v2147 = vsel %vm1691, %v1306, -inf
    %v2148 = vrot.slane %v2147, 4
    %v2149 = vmax.f32 %v2147, %v2148
    %v2150 = vrot.slane %v2149, 2
    %v2151 = vmax.f32 %v2149, %v2150
    %v2152 = vrot.slane %v2151, 1
    %v2153 = vmax.f32 %v2151, %v2152
    %v2154 = vsel %vm1691, %v1305, -inf
    %v2155 = vrot.slane %v2154, 4
    %v2156 = vmax.f32 %v2154, %v2155
    %v2157 = vrot.slane %v2156, 2
    %v2158 = vmax.f32 %v2156, %v2157
    %v2159 = vrot.slane %v2158, 1
    %v2160 = vmax.f32 %v2158, %v2159
    %v2161 = vsel %vm1691, %v1307, -inf
    %v2162 = vrot.slane %v2161, 4
    %v2163 = vmax.f32 %v2161, %v2162
    %v2164 = vrot.slane %v2163, 2
    %v2165 = vmax.f32 %v2163, %v2164
    %v2166 = vrot.slane %v2165, 1
    %v2167 = vmax.f32 %v2165, %v2166
    %v2168 = vsel %vm1691, %v1315, -inf
    %v2169 = vrot.slane %v2168, 4
    %v2170 = vmax.f32 %v2168, %v2169
    %v2171 = vrot.slane %v2170, 2
    %v2172 = vmax.f32 %v2170, %v2171
    %v2173 = vrot.slane %v2172, 1
    %v2174 = vmax.f32 %v2172, %v2173
    %v2175 = vsel %vm1691, %v1323, -inf
    %v2176 = vrot.slane %v2175, 4
    %v2177 = vmax.f32 %v2175, %v2176
    %v2178 = vrot.slane %v2177, 2
    %v2179 = vmax.f32 %v2177, %v2178
    %v2180 = vrot.slane %v2179, 1
    %v2181 = vmax.f32 %v2179, %v2180
    %v2182 = vsel %vm1691, %v1322, -inf
    %v2183 = vrot.slane %v2182, 4
    %v2184 = vmax.f32 %v2182, %v2183
    %v2185 = vrot.slane %v2184, 2
    %v2186 = vmax.f32 %v2184, %v2185
    %v2187 = vrot.slane %v2186, 1
    %v2188 = vmax.f32 %v2186, %v2187
    %v2189 = vsel %vm1691, %v1324, -inf
    %v2190 = vrot.slane %v2189, 4
    %v2191 = vmax.f32 %v2189, %v2190
    %v2192 = vrot.slane %v2191, 2
    %v2193 = vmax.f32 %v2191, %v2192
    %v2194 = vrot.slane %v2193, 1
    %v2195 = vmax.f32 %v2193, %v2194
    %v2196 = vsel %vm1691, %v1332, -inf
    %v2197 = vrot.slane %v2196, 4
    %v2198 = vmax.f32 %v2196, %v2197
    %v2199 = vrot.slane %v2198, 2
    %v2200 = vmax.f32 %v2198, %v2199
    %v2201 = vrot.slane %v2200, 1
    %v2202 = vmax.f32 %v2200, %v2201
    %v2203 = vsel %vm1691, %v1340, -inf
    %v2204 = vrot.slane %v2203, 4
    %v2205 = vmax.f32 %v2203, %v2204
    %v2206 = vrot.slane %v2205, 2
    %v2207 = vmax.f32 %v2205, %v2206
    %v2208 = vrot.slane %v2207, 1
    %v2209 = vmax.f32 %v2207, %v2208
    %v2210 = vsel %vm1691, %v1339, -inf
    %v2211 = vrot.slane %v2210, 4
    %v2212 = vmax.f32 %v2210, %v2211
    %v2213 = vrot.slane %v2212, 2
    %v2214 = vmax.f32 %v2212, %v2213
    %v2215 = vrot.slane %v2214, 1
    %v2216 = vmax.f32 %v2214, %v2215
    %v2217 = vsel %vm1691, %v1341, -inf
    %v2218 = vrot.slane %v2217, 4
    %v2219 = vmax.f32 %v2217, %v2218
    %v2220 = vrot.slane %v2219, 2
    %v2221 = vmax.f32 %v2219, %v2220
    %v2222 = vrot.slane %v2221, 1
    %v2223 = vmax.f32 %v2221, %v2222
    %v2224 = vsel %vm1691, %v1349, -inf
    %v2225 = vrot.slane %v2224, 4
    %v2226 = vmax.f32 %v2224, %v2225
    %v2227 = vrot.slane %v2226, 2
    %v2228 = vmax.f32 %v2226, %v2227
    %v2229 = vrot.slane %v2228, 1
    %v2230 = vmax.f32 %v2228, %v2229
    %v2231 = vsel %vm1691, %v1357, -inf
    %v2232 = vrot.slane %v2231, 4
    %v2233 = vmax.f32 %v2231, %v2232
    %v2234 = vrot.slane %v2233, 2
    %v2235 = vmax.f32 %v2233, %v2234
    %v2236 = vrot.slane %v2235, 1
    %v2237 = vmax.f32 %v2235, %v2236
    %v2238 = vsel %vm1691, %v1356, -inf
    %v2239 = vrot.slane %v2238, 4
    %v2240 = vmax.f32 %v2238, %v2239
    %v2241 = vrot.slane %v2240, 2
    %v2242 = vmax.f32 %v2240, %v2241
    %v2243 = vrot.slane %v2242, 1
    %v2244 = vmax.f32 %v2242, %v2243
    %v2245 = vsel %vm1691, %v1358, -inf
    %v2246 = vrot.slane %v2245, 4
    %v2247 = vmax.f32 %v2245, %v2246
    %v2248 = vrot.slane %v2247, 2
    %v2249 = vmax.f32 %v2247, %v2248
    %v2250 = vrot.slane %v2249, 1
    %v2251 = vmax.f32 %v2249, %v2250
    %v2252 = vsel %vm1691, %v1366, -inf
    %v2253 = vrot.slane %v2252, 4
    %v2254 = vmax.f32 %v2252, %v2253
    %v2255 = vrot.slane %v2254, 2
    %v2256 = vmax.f32 %v2254, %v2255
    %v2257 = vrot.slane %v2256, 1
    %v2258 = vmax.f32 %v2256, %v2257
    %v2259 = vsel %vm1691, %v1374, -inf
    %v2260 = vrot.slane %v2259, 4
    %v2261 = vmax.f32 %v2259, %v2260
    %v2262 = vrot.slane %v2261, 2
    %v2263 = vmax.f32 %v2261, %v2262
    %v2264 = vrot.slane %v2263, 1
    %v2265 = vmax.f32 %v2263, %v2264
    %v2266 = vsel %vm1691, %v1373, -inf
    %v2267 = vrot.slane %v2266, 4
    %v2268 = vmax.f32 %v2266, %v2267
    %v2269 = vrot.slane %v2268, 2
    %v2270 = vmax.f32 %v2268, %v2269
    %v2271 = vrot.slane %v2270, 1
    %v2272 = vmax.f32 %v2270, %v2271
    %v2273 = vsel %vm1691, %v1375, -inf
    %v2274 = vrot.slane %v2273, 4
    %v2275 = vmax.f32 %v2273, %v2274
    %v2276 = vrot.slane %v2275, 2
    %v2277 = vmax.f32 %v2275, %v2276
    %v2278 = vrot.slane %v2277, 1
    %v2279 = vmax.f32 %v2277, %v2278
    %v2280 = vsel %vm1691, %v1383, -inf
    %v2281 = vrot.slane %v2280, 4
    %v2282 = vmax.f32 %v2280, %v2281
    %v2283 = vrot.slane %v2282, 2
    %v2284 = vmax.f32 %v2282, %v2283
    %v2285 = vrot.slane %v2284, 1
    %v2286 = vmax.f32 %v2284, %v2285
    %v2287 = vsel %vm1691, %v1391, -inf
    %v2288 = vrot.slane %v2287, 4
    %v2289 = vmax.f32 %v2287, %v2288
    %v2290 = vrot.slane %v2289, 2
    %v2291 = vmax.f32 %v2289, %v2290
    %v2292 = vrot.slane %v2291, 1
    %v2293 = vmax.f32 %v2291, %v2292
    %v2294 = vsel %vm1691, %v1390, -inf
    %v2295 = vrot.slane %v2294, 4
    %v2296 = vmax.f32 %v2294, %v2295
    %v2297 = vrot.slane %v2296, 2
    %v2298 = vmax.f32 %v2296, %v2297
    %v2299 = vrot.slane %v2298, 1
    %v2300 = vmax.f32 %v2298, %v2299
    %v2301 = vsel %vm1691, %v1392, -inf
    %v2302 = vrot.slane %v2301, 4
    %v2303 = vmax.f32 %v2301, %v2302
    %v2304 = vrot.slane %v2303, 2
    %v2305 = vmax.f32 %v2303, %v2304
    %v2306 = vrot.slane %v2305, 1
    %v2307 = vmax.f32 %v2305, %v2306
    %v2308 = vsel %vm1691, %v1400, -inf
    %v2309 = vrot.slane %v2308, 4
    %v2310 = vmax.f32 %v2308, %v2309
    %v2311 = vrot.slane %v2310, 2
    %v2312 = vmax.f32 %v2310, %v2311
    %v2313 = vrot.slane %v2312, 1
    %v2314 = vmax.f32 %v2312, %v2313
    %v2315 = vsel %vm1691, %v1408, -inf
    %v2316 = vrot.slane %v2315, 4
    %v2317 = vmax.f32 %v2315, %v2316
    %v2318 = vrot.slane %v2317, 2
    %v2319 = vmax.f32 %v2317, %v2318
    %v2320 = vrot.slane %v2319, 1
    %v2321 = vmax.f32 %v2319, %v2320
    %v2322 = vsel %vm1691, %v1407, -inf
    %v2323 = vrot.slane %v2322, 4
    %v2324 = vmax.f32 %v2322, %v2323
    %v2325 = vrot.slane %v2324, 2
    %v2326 = vmax.f32 %v2324, %v2325
    %v2327 = vrot.slane %v2326, 1
    %v2328 = vmax.f32 %v2326, %v2327
    %v2329 = vsel %vm1691, %v1409, -inf
    %v2330 = vrot.slane %v2329, 4
    %v2331 = vmax.f32 %v2329, %v2330
    %v2332 = vrot.slane %v2331, 2
    %v2333 = vmax.f32 %v2331, %v2332
    %v2334 = vrot.slane %v2333, 1
    %v2335 = vmax.f32 %v2333, %v2334
    %v2336 = vsel %vm1691, %v1417, -inf
    %v2337 = vrot.slane %v2336, 4
    %v2338 = vmax.f32 %v2336, %v2337
    %v2339 = vrot.slane %v2338, 2
    %v2340 = vmax.f32 %v2338, %v2339
    %v2341 = vrot.slane %v2340, 1
    %v2342 = vmax.f32 %v2340, %v2341
    %v2343 = vsel %vm1691, %v1425, -inf
    %v2344 = vrot.slane %v2343, 4
    %v2345 = vmax.f32 %v2343, %v2344
    %v2346 = vrot.slane %v2345, 2
    %v2347 = vmax.f32 %v2345, %v2346
    %v2348 = vrot.slane %v2347, 1
    %v2349 = vmax.f32 %v2347, %v2348
    %v2350 = vsel %vm1691, %v1424, -inf
    %v2351 = vrot.slane %v2350, 4
    %v2352 = vmax.f32 %v2350, %v2351
    %v2353 = vrot.slane %v2352, 2
    %v2354 = vmax.f32 %v2352, %v2353
    %v2355 = vrot.slane %v2354, 1
    %v2356 = vmax.f32 %v2354, %v2355
    %v2357 = vsel %vm1691, %v1426, -inf
    %v2358 = vrot.slane %v2357, 4
    %v2359 = vmax.f32 %v2357, %v2358
    %v2360 = vrot.slane %v2359, 2
    %v2361 = vmax.f32 %v2359, %v2360
    %v2362 = vrot.slane %v2361, 1
    %v2363 = vmax.f32 %v2361, %v2362
    %v2364 = vsel %vm1691, %v1434, -inf
    %v2365 = vrot.slane %v2364, 4
    %v2366 = vmax.f32 %v2364, %v2365
    %v2367 = vrot.slane %v2366, 2
    %v2368 = vmax.f32 %v2366, %v2367
    %v2369 = vrot.slane %v2368, 1
    %v2370 = vmax.f32 %v2368, %v2369
    %v2371 = vsel %vm1691, %v1442, -inf
    %v2372 = vrot.slane %v2371, 4
    %v2373 = vmax.f32 %v2371, %v2372
    %v2374 = vrot.slane %v2373, 2
    %v2375 = vmax.f32 %v2373, %v2374
    %v2376 = vrot.slane %v2375, 1
    %v2377 = vmax.f32 %v2375, %v2376
    %v2378 = vsel %vm1691, %v1441, -inf
    %v2379 = vrot.slane %v2378, 4
    %v2380 = vmax.f32 %v2378, %v2379
    %v2381 = vrot.slane %v2380, 2
    %v2382 = vmax.f32 %v2380, %v2381
    %v2383 = vrot.slane %v2382, 1
    %v2384 = vmax.f32 %v2382, %v2383
    %v2385 = vsel %vm1691, %v1443, -inf
    %v2386 = vrot.slane %v2385, 4
    %v2387 = vmax.f32 %v2385, %v2386
    %v2388 = vrot.slane %v2387, 2
    %v2389 = vmax.f32 %v2387, %v2388
    %v2390 = vrot.slane %v2389, 1
    %v2391 = vmax.f32 %v2389, %v2390
    %v2392 = vsel %vm1691, %v1451, -inf
    %v2393 = vrot.slane %v2392, 4
    %v2394 = vmax.f32 %v2392, %v2393
    %v2395 = vrot.slane %v2394, 2
    %v2396 = vmax.f32 %v2394, %v2395
    %v2397 = vrot.slane %v2396, 1
    %v2398 = vmax.f32 %v2396, %v2397
    %v2399 = vsel %vm1691, %v1459, -inf
    %v2400 = vrot.slane %v2399, 4
    %v2401 = vmax.f32 %v2399, %v2400
    %v2402 = vrot.slane %v2401, 2
    %v2403 = vmax.f32 %v2401, %v2402
    %v2404 = vrot.slane %v2403, 1
    %v2405 = vmax.f32 %v2403, %v2404
    %v2406 = vsel %vm1691, %v1458, -inf
    %v2407 = vrot.slane %v2406, 4
    %v2408 = vmax.f32 %v2406, %v2407
    %v2409 = vrot.slane %v2408, 2
    %v2410 = vmax.f32 %v2408, %v2409
    %v2411 = vrot.slane %v2410, 1
    %v2412 = vmax.f32 %v2410, %v2411
    %v2413 = vsel %vm1691, %v1460, -inf
    %v2414 = vrot.slane %v2413, 4
    %v2415 = vmax.f32 %v2413, %v2414
    %v2416 = vrot.slane %v2415, 2
    %v2417 = vmax.f32 %v2415, %v2416
    %v2418 = vrot.slane %v2417, 1
    %v2419 = vmax.f32 %v2417, %v2418
    %v2420 = vsel %vm1691, %v1468, -inf
    %v2421 = vrot.slane %v2420, 4
    %v2422 = vmax.f32 %v2420, %v2421
    %v2423 = vrot.slane %v2422, 2
    %v2424 = vmax.f32 %v2422, %v2423
    %v2425 = vrot.slane %v2424, 1
    %v2426 = vmax.f32 %v2424, %v2425
    %v2427 = vsel %vm1691, %v1476, -inf
    %v2428 = vrot.slane %v2427, 4
    %v2429 = vmax.f32 %v2427, %v2428
    %v2430 = vrot.slane %v2429, 2
    %v2431 = vmax.f32 %v2429, %v2430
    %v2432 = vrot.slane %v2431, 1
    %v2433 = vmax.f32 %v2431, %v2432
    %v2434 = vsel %vm1691, %v1475, -inf
    %v2435 = vrot.slane %v2434, 4
    %v2436 = vmax.f32 %v2434, %v2435
    %v2437 = vrot.slane %v2436, 2
    %v2438 = vmax.f32 %v2436, %v2437
    %v2439 = vrot.slane %v2438, 1
    %v2440 = vmax.f32 %v2438, %v2439
    %v2441 = vsel %vm1691, %v1477, -inf
    %v2442 = vrot.slane %v2441, 4
    %v2443 = vmax.f32 %v2441, %v2442
    %v2444 = vrot.slane %v2443, 2
    %v2445 = vmax.f32 %v2443, %v2444
    %v2446 = vrot.slane %v2445, 1
    %v2447 = vmax.f32 %v2445, %v2446
    %v2448 = vsel %vm1691, %v1485, -inf
    %v2449 = vrot.slane %v2448, 4
    %v2450 = vmax.f32 %v2448, %v2449
    %v2451 = vrot.slane %v2450, 2
    %v2452 = vmax.f32 %v2450, %v2451
    %v2453 = vrot.slane %v2452, 1
    %v2454 = vmax.f32 %v2452, %v2453
    %v2455 = vsel %vm1691, %v1493, -inf
    %v2456 = vrot.slane %v2455, 4
    %v2457 = vmax.f32 %v2455, %v2456
    %v2458 = vrot.slane %v2457, 2
    %v2459 = vmax.f32 %v2457, %v2458
    %v2460 = vrot.slane %v2459, 1
    %v2461 = vmax.f32 %v2459, %v2460
    %v2462 = vsel %vm1691, %v1492, -inf
    %v2463 = vrot.slane %v2462, 4
    %v2464 = vmax.f32 %v2462, %v2463
    %v2465 = vrot.slane %v2464, 2
    %v2466 = vmax.f32 %v2464, %v2465
    %v2467 = vrot.slane %v2466, 1
    %v2468 = vmax.f32 %v2466, %v2467
    %v2469 = vsel %vm1691, %v1494, -inf
    %v2470 = vrot.slane %v2469, 4
    %v2471 = vmax.f32 %v2469, %v2470
    %v2472 = vrot.slane %v2471, 2
    %v2473 = vmax.f32 %v2471, %v2472
    %v2474 = vrot.slane %v2473, 1
    %v2475 = vmax.f32 %v2473, %v2474
    %v2476 = vsel %vm1691, %v1502, -inf
    %v2477 = vrot.slane %v2476, 4
    %v2478 = vmax.f32 %v2476, %v2477
    %v2479 = vrot.slane %v2478, 2
    %v2480 = vmax.f32 %v2478, %v2479
    %v2481 = vrot.slane %v2480, 1
    %v2482 = vmax.f32 %v2480, %v2481
    %v2483 = vsel %vm1691, %v1510, -inf
    %v2484 = vrot.slane %v2483, 4
    %v2485 = vmax.f32 %v2483, %v2484
    %v2486 = vrot.slane %v2485, 2
    %v2487 = vmax.f32 %v2485, %v2486
    %v2488 = vrot.slane %v2487, 1
    %v2489 = vmax.f32 %v2487, %v2488
    %v2490 = vsel %vm1691, %v1509, -inf
    %v2491 = vrot.slane %v2490, 4
    %v2492 = vmax.f32 %v2490, %v2491
    %v2493 = vrot.slane %v2492, 2
    %v2494 = vmax.f32 %v2492, %v2493
    %v2495 = vrot.slane %v2494, 1
    %v2496 = vmax.f32 %v2494, %v2495
    %v2497 = vsel %vm1691, %v1511, -inf
    %v2498 = vrot.slane %v2497, 4
    %v2499 = vmax.f32 %v2497, %v2498
    %v2500 = vrot.slane %v2499, 2
    %v2501 = vmax.f32 %v2499, %v2500
    %v2502 = vrot.slane %v2501, 1
    %v2503 = vmax.f32 %v2501, %v2502
    %v2504 = vsel %vm1691, %v1519, -inf
    %v2505 = vrot.slane %v2504, 4
    %v2506 = vmax.f32 %v2504, %v2505
    %v2507 = vrot.slane %v2506, 2
    %v2508 = vmax.f32 %v2506, %v2507
    %v2509 = vrot.slane %v2508, 1
    %v2510 = vmax.f32 %v2508, %v2509
    %v2511 = vsel %vm1691, %v1527, -inf
    %v2512 = vrot.slane %v2511, 4
    %v2513 = vmax.f32 %v2511, %v2512
    %v2514 = vrot.slane %v2513, 2
    %v2515 = vmax.f32 %v2513, %v2514
    %v2516 = vrot.slane %v2515, 1
    %v2517 = vmax.f32 %v2515, %v2516
    %v2518 = vsel %vm1691, %v1526, -inf
    %v2519 = vrot.slane %v2518, 4
    %v2520 = vmax.f32 %v2518, %v2519
    %v2521 = vrot.slane %v2520, 2
    %v2522 = vmax.f32 %v2520, %v2521
    %v2523 = vrot.slane %v2522, 1
    %v2524 = vmax.f32 %v2522, %v2523
    %v2525 = vsel %vm1691, %v1528, -inf
    %v2526 = vrot.slane %v2525, 4
    %v2527 = vmax.f32 %v2525, %v2526
    %v2528 = vrot.slane %v2527, 2
    %v2529 = vmax.f32 %v2527, %v2528
    %v2530 = vrot.slane %v2529, 1
    %v2531 = vmax.f32 %v2529, %v2530
    %v2532 = vsel %vm1691, %v1536, -inf
    %v2533 = vrot.slane %v2532, 4
    %v2534 = vmax.f32 %v2532, %v2533
    %v2535 = vrot.slane %v2534, 2
    %v2536 = vmax.f32 %v2534, %v2535
    %v2537 = vrot.slane %v2536, 1
    %v2538 = vmax.f32 %v2536, %v2537
    %v2539 = vsel %vm1691, %v1544, -inf
    %v2540 = vrot.slane %v2539, 4
    %v2541 = vmax.f32 %v2539, %v2540
    %v2542 = vrot.slane %v2541, 2
    %v2543 = vmax.f32 %v2541, %v2542
    %v2544 = vrot.slane %v2543, 1
    %v2545 = vmax.f32 %v2543, %v2544
    %v2546 = vsel %vm1691, %v1543, -inf
    %v2547 = vrot.slane %v2546, 4
    %v2548 = vmax.f32 %v2546, %v2547
    %v2549 = vrot.slane %v2548, 2
    %v2550 = vmax.f32 %v2548, %v2549
    %v2551 = vrot.slane %v2550, 1
    %v2552 = vmax.f32 %v2550, %v2551
    %v2553 = vsel %vm1691, %v1545, -inf
    %v2554 = vrot.slane %v2553, 4
    %v2555 = vmax.f32 %v2553, %v2554
    %v2556 = vrot.slane %v2555, 2
    %v2557 = vmax.f32 %v2555, %v2556
    %v2558 = vrot.slane %v2557, 1
    %v2559 = vmax.f32 %v2557, %v2558
    %v2560 = vsel %vm1691, %v1553, -inf
    %v2561 = vrot.slane %v2560, 4
    %v2562 = vmax.f32 %v2560, %v2561
    %v2563 = vrot.slane %v2562, 2
    %v2564 = vmax.f32 %v2562, %v2563
    %v2565 = vrot.slane %v2564, 1
    %v2566 = vmax.f32 %v2564, %v2565
    %v2567 = vsel %vm1691, %v1561, -inf
    %v2568 = vrot.slane %v2567, 4
    %v2569 = vmax.f32 %v2567, %v2568
    %v2570 = vrot.slane %v2569, 2
    %v2571 = vmax.f32 %v2569, %v2570
    %v2572 = vrot.slane %v2571, 1
    %v2573 = vmax.f32 %v2571, %v2572
    %v2574 = vsel %vm1691, %v1560, -inf
    %v2575 = vrot.slane %v2574, 4
    %v2576 = vmax.f32 %v2574, %v2575
    %v2577 = vrot.slane %v2576, 2
    %v2578 = vmax.f32 %v2576, %v2577
    %v2579 = vrot.slane %v2578, 1
    %v2580 = vmax.f32 %v2578, %v2579
    %v2581 = vsel %vm1691, %v1562, -inf
    %v2582 = vrot.slane %v2581, 4
    %v2583 = vmax.f32 %v2581, %v2582
    %v2584 = vrot.slane %v2583, 2
    %v2585 = vmax.f32 %v2583, %v2584
    %v2586 = vrot.slane %v2585, 1
    %v2587 = vmax.f32 %v2585, %v2586
    %v2588 = vpack.c.bf16 %v1698, %v1698
    %v2589 = vpack.c.bf16 %v1705, %v1705
    %v2590 = vpack.c.bf16 %v1712, %v1712
    %v2591 = vpack.c.bf16 %v1719, %v1719
    %v2592 = vpack.c.bf16 %v1726, %v1726
    %v2593 = vpack.c.bf16 %v1733, %v1733
    %v2594 = vpack.c.bf16 %v1740, %v1740
    %v2595 = vpack.c.bf16 %v1747, %v1747
    %v2596 = vpack.c.bf16 %v1754, %v1754
    %v2597 = vpack.c.bf16 %v1761, %v1761
    %v2598 = vpack.c.bf16 %v1768, %v1768
    %v2599 = vpack.c.bf16 %v1775, %v1775
    %v2600 = vpack.c.bf16 %v1782, %v1782
    %v2601 = vpack.c.bf16 %v1789, %v1789
    %v2602 = vpack.c.bf16 %v1796, %v1796
    %v2603 = vpack.c.bf16 %v1803, %v1803
    %v2604 = vpack.c.bf16 %v1810, %v1810
    %v2605 = vpack.c.bf16 %v1817, %v1817
    %v2606 = vpack.c.bf16 %v1824, %v1824
    %v2607 = vpack.c.bf16 %v1831, %v1831
    %v2608 = vpack.c.bf16 %v1838, %v1838
    %v2609 = vpack.c.bf16 %v1845, %v1845
    %v2610 = vpack.c.bf16 %v1852, %v1852
    %v2611 = vpack.c.bf16 %v1859, %v1859
    %v2612 = vpack.c.bf16 %v1866, %v1866
    %v2613 = vpack.c.bf16 %v1873, %v1873
    %v2614 = vpack.c.bf16 %v1880, %v1880
    %v2615 = vpack.c.bf16 %v1887, %v1887
    %v2616 = vpack.c.bf16 %v1894, %v1894
    %v2617 = vpack.c.bf16 %v1901, %v1901
    %v2618 = vpack.c.bf16 %v1908, %v1908
    %v2619 = vpack.c.bf16 %v1915, %v1915
    %v2620 = vpack.c.bf16 %v1922, %v1922
    %v2621 = vpack.c.bf16 %v1929, %v1929
    %v2622 = vpack.c.bf16 %v1936, %v1936
    %v2623 = vpack.c.bf16 %v1943, %v1943
    %v2624 = vpack.c.bf16 %v1950, %v1950
    %v2625 = vpack.c.bf16 %v1957, %v1957
    %v2626 = vpack.c.bf16 %v1964, %v1964
    %v2627 = vpack.c.bf16 %v1971, %v1971
    %v2628 = vpack.c.bf16 %v1978, %v1978
    %v2629 = vpack.c.bf16 %v1985, %v1985
    %v2630 = vpack.c.bf16 %v1992, %v1992
    %v2631 = vpack.c.bf16 %v1999, %v1999
    %v2632 = vpack.c.bf16 %v2006, %v2006
    %v2633 = vpack.c.bf16 %v2013, %v2013
    %v2634 = vpack.c.bf16 %v2020, %v2020
    %v2635 = vpack.c.bf16 %v2027, %v2027
    %v2636 = vpack.c.bf16 %v2034, %v2034
    %v2637 = vpack.c.bf16 %v2041, %v2041
    %v2638 = vpack.c.bf16 %v2048, %v2048
    %v2639 = vpack.c.bf16 %v2055, %v2055
    %v2640 = vpack.c.bf16 %v2062, %v2062
    %v2641 = vpack.c.bf16 %v2069, %v2069
    %v2642 = vpack.c.bf16 %v2076, %v2076
    %v2643 = vpack.c.bf16 %v2083, %v2083
    %v2644 = vpack.c.bf16 %v2090, %v2090
    %v2645 = vpack.c.bf16 %v2097, %v2097
    %v2646 = vpack.c.bf16 %v2104, %v2104
    %v2647 = vpack.c.bf16 %v2111, %v2111
    %v2648 = vpack.c.bf16 %v2118, %v2118
    %v2649 = vpack.c.bf16 %v2125, %v2125
    %v2650 = vpack.c.bf16 %v2132, %v2132
    %v2651 = vpack.c.bf16 %v2139, %v2139
    %v2652 = vpack.c.bf16 %v2146, %v2146
    %v2653 = vpack.c.bf16 %v2153, %v2153
    %v2654 = vpack.c.bf16 %v2160, %v2160
    %v2655 = vpack.c.bf16 %v2167, %v2167
    %v2656 = vpack.c.bf16 %v2174, %v2174
    %v2657 = vpack.c.bf16 %v2181, %v2181
    %v2658 = vpack.c.bf16 %v2188, %v2188
    %v2659 = vpack.c.bf16 %v2195, %v2195
    %v2660 = vpack.c.bf16 %v2202, %v2202
    %v2661 = vpack.c.bf16 %v2209, %v2209
    %v2662 = vpack.c.bf16 %v2216, %v2216
    %v2663 = vpack.c.bf16 %v2223, %v2223
    %v2664 = vpack.c.bf16 %v2230, %v2230
    %v2665 = vpack.c.bf16 %v2237, %v2237
    %v2666 = vpack.c.bf16 %v2244, %v2244
    %v2667 = vpack.c.bf16 %v2251, %v2251
    %v2668 = vpack.c.bf16 %v2258, %v2258
    %v2669 = vpack.c.bf16 %v2265, %v2265
    %v2670 = vpack.c.bf16 %v2272, %v2272
    %v2671 = vpack.c.bf16 %v2279, %v2279
    %v2672 = vpack.c.bf16 %v2286, %v2286
    %v2673 = vpack.c.bf16 %v2293, %v2293
    %v2674 = vpack.c.bf16 %v2300, %v2300
    %v2675 = vpack.c.bf16 %v2307, %v2307
    %v2676 = vpack.c.bf16 %v2314, %v2314
    %v2677 = vpack.c.bf16 %v2321, %v2321
    %v2678 = vpack.c.bf16 %v2328, %v2328
    %v2679 = vpack.c.bf16 %v2335, %v2335
    %v2680 = vpack.c.bf16 %v2342, %v2342
    %v2681 = vpack.c.bf16 %v2349, %v2349
    %v2682 = vpack.c.bf16 %v2356, %v2356
    %v2683 = vpack.c.bf16 %v2363, %v2363
    %v2684 = vpack.c.bf16 %v2370, %v2370
    %v2685 = vpack.c.bf16 %v2377, %v2377
    %v2686 = vpack.c.bf16 %v2384, %v2384
    %v2687 = vpack.c.bf16 %v2391, %v2391
    %v2688 = vpack.c.bf16 %v2398, %v2398
    %v2689 = vpack.c.bf16 %v2405, %v2405
    %v2690 = vpack.c.bf16 %v2412, %v2412
    %v2691 = vpack.c.bf16 %v2419, %v2419
    %v2692 = vpack.c.bf16 %v2426, %v2426
    %v2693 = vpack.c.bf16 %v2433, %v2433
    %v2694 = vpack.c.bf16 %v2440, %v2440
    %v2695 = vpack.c.bf16 %v2447, %v2447
    %v2696 = vpack.c.bf16 %v2454, %v2454
    %v2697 = vpack.c.bf16 %v2461, %v2461
    %v2698 = vpack.c.bf16 %v2468, %v2468
    %v2699 = vpack.c.bf16 %v2475, %v2475
    %v2700 = vpack.c.bf16 %v2482, %v2482
    %v2701 = vpack.c.bf16 %v2489, %v2489
    %v2702 = vpack.c.bf16 %v2496, %v2496
    %v2703 = vpack.c.bf16 %v2503, %v2503
    %v2704 = vpack.c.bf16 %v2510, %v2510
    %v2705 = vpack.c.bf16 %v2517, %v2517
    %v2706 = vpack.c.bf16 %v2524, %v2524
    %v2707 = vpack.c.bf16 %v2531, %v2531
    %v2708 = vpack.c.bf16 %v2538, %v2538
    %v2709 = vpack.c.bf16 %v2545, %v2545
    %v2710 = vpack.c.bf16 %v2552, %v2552
    %v2711 = vpack.c.bf16 %v2559, %v2559
    %v2712 = vpack.c.bf16 %v2566, %v2566
    %v2713 = vpack.c.bf16 %v2573, %v2573
    %v2714 = vpack.c.bf16 %v2580, %v2580
    %v2715 = vpack.c.bf16 %v2587, %v2587
    %v2844 = vunpack.c.l.b16 %v2588
    %v2845 = vunpack.c.l.b16 %v2589
    %v2846 = vunpack.c.l.b16 %v2590
    %v2847 = vunpack.c.l.b16 %v2591
    %v2848 = vunpack.c.l.b16 %v2592
    %v2849 = vunpack.c.l.b16 %v2593
    %v2850 = vunpack.c.l.b16 %v2594
    %v2851 = vunpack.c.l.b16 %v2595
    %v2852 = vunpack.c.l.b16 %v2596
    %v2853 = vunpack.c.l.b16 %v2597
    %v2854 = vunpack.c.l.b16 %v2598
    %v2855 = vunpack.c.l.b16 %v2599
    %v2856 = vunpack.c.l.b16 %v2600
    %v2857 = vunpack.c.l.b16 %v2601
    %v2858 = vunpack.c.l.b16 %v2602
    %v2859 = vunpack.c.l.b16 %v2603
    %v2860 = vunpack.c.l.b16 %v2604
    %v2861 = vunpack.c.l.b16 %v2605
    %v2862 = vunpack.c.l.b16 %v2606
    %v2863 = vunpack.c.l.b16 %v2607
    %v2864 = vunpack.c.l.b16 %v2608
    %v2865 = vunpack.c.l.b16 %v2609
    %v2866 = vunpack.c.l.b16 %v2610
    %v2867 = vunpack.c.l.b16 %v2611
    %v2868 = vunpack.c.l.b16 %v2612
    %v2869 = vunpack.c.l.b16 %v2613
    %v2870 = vunpack.c.l.b16 %v2614
    %v2871 = vunpack.c.l.b16 %v2615
    %v2872 = vunpack.c.l.b16 %v2616
    %v2873 = vunpack.c.l.b16 %v2617
    %v2874 = vunpack.c.l.b16 %v2618
    %v2875 = vunpack.c.l.b16 %v2619
    %v2876 = vunpack.c.l.b16 %v2620
    %v2877 = vunpack.c.l.b16 %v2621
    %v2878 = vunpack.c.l.b16 %v2622
    %v2879 = vunpack.c.l.b16 %v2623
    %v2880 = vunpack.c.l.b16 %v2624
    %v2881 = vunpack.c.l.b16 %v2625
    %v2882 = vunpack.c.l.b16 %v2626
    %v2883 = vunpack.c.l.b16 %v2627
    %v2884 = vunpack.c.l.b16 %v2628
    %v2885 = vunpack.c.l.b16 %v2629
    %v2886 = vunpack.c.l.b16 %v2630
    %v2887 = vunpack.c.l.b16 %v2631
    %v2888 = vunpack.c.l.b16 %v2632
    %v2889 = vunpack.c.l.b16 %v2633
    %v2890 = vunpack.c.l.b16 %v2634
    %v2891 = vunpack.c.l.b16 %v2635
    %v2892 = vunpack.c.l.b16 %v2636
    %v2893 = vunpack.c.l.b16 %v2637
    %v2894 = vunpack.c.l.b16 %v2638
    %v2895 = vunpack.c.l.b16 %v2639
    %v2896 = vunpack.c.l.b16 %v2640
    %v2897 = vunpack.c.l.b16 %v2641
    %v2898 = vunpack.c.l.b16 %v2642
    %v2899 = vunpack.c.l.b16 %v2643
    %v2900 = vunpack.c.l.b16 %v2644
    %v2901 = vunpack.c.l.b16 %v2645
    %v2902 = vunpack.c.l.b16 %v2646
    %v2903 = vunpack.c.l.b16 %v2647
    %v2904 = vunpack.c.l.b16 %v2648
    %v2905 = vunpack.c.l.b16 %v2649
    %v2906 = vunpack.c.l.b16 %v2650
    %v2907 = vunpack.c.l.b16 %v2651
    %v2908 = vunpack.c.l.b16 %v2652
    %v2909 = vunpack.c.l.b16 %v2653
    %v2910 = vunpack.c.l.b16 %v2654
    %v2911 = vunpack.c.l.b16 %v2655
    %v2912 = vunpack.c.l.b16 %v2656
    %v2913 = vunpack.c.l.b16 %v2657
    %v2914 = vunpack.c.l.b16 %v2658
    %v2915 = vunpack.c.l.b16 %v2659
    %v2916 = vunpack.c.l.b16 %v2660
    %v2917 = vunpack.c.l.b16 %v2661
    %v2918 = vunpack.c.l.b16 %v2662
    %v2919 = vunpack.c.l.b16 %v2663
    %v2920 = vunpack.c.l.b16 %v2664
    %v2921 = vunpack.c.l.b16 %v2665
    %v2922 = vunpack.c.l.b16 %v2666
    %v2923 = vunpack.c.l.b16 %v2667
    %v2924 = vunpack.c.l.b16 %v2668
    %v2925 = vunpack.c.l.b16 %v2669
    %v2926 = vunpack.c.l.b16 %v2670
    %v2927 = vunpack.c.l.b16 %v2671
    %v2928 = vunpack.c.l.b16 %v2672
    %v2929 = vunpack.c.l.b16 %v2673
    %v2930 = vunpack.c.l.b16 %v2674
    %v2931 = vunpack.c.l.b16 %v2675
    %v2932 = vunpack.c.l.b16 %v2676
    %v2933 = vunpack.c.l.b16 %v2677
    %v2934 = vunpack.c.l.b16 %v2678
    %v2935 = vunpack.c.l.b16 %v2679
    %v2936 = vunpack.c.l.b16 %v2680
    %v2937 = vunpack.c.l.b16 %v2681
    %v2938 = vunpack.c.l.b16 %v2682
    %v2939 = vunpack.c.l.b16 %v2683
    %v2940 = vunpack.c.l.b16 %v2684
    %v2941 = vunpack.c.l.b16 %v2685
    %v2942 = vunpack.c.l.b16 %v2686
    %v2943 = vunpack.c.l.b16 %v2687
    %v2944 = vunpack.c.l.b16 %v2688
    %v2945 = vunpack.c.l.b16 %v2689
    %v2946 = vunpack.c.l.b16 %v2690
    %v2947 = vunpack.c.l.b16 %v2691
    %v2948 = vunpack.c.l.b16 %v2692
    %v2949 = vunpack.c.l.b16 %v2693
    %v2950 = vunpack.c.l.b16 %v2694
    %v2951 = vunpack.c.l.b16 %v2695
    %v2952 = vunpack.c.l.b16 %v2696
    %v2953 = vunpack.c.l.b16 %v2697
    %v2954 = vunpack.c.l.b16 %v2698
    %v2955 = vunpack.c.l.b16 %v2699
    %v2956 = vunpack.c.l.b16 %v2700
    %v2957 = vunpack.c.l.b16 %v2701
    %v2958 = vunpack.c.l.b16 %v2702
    %v2959 = vunpack.c.l.b16 %v2703
    %v2960 = vunpack.c.l.b16 %v2704
    %v2961 = vunpack.c.l.b16 %v2705
    %v2962 = vunpack.c.l.b16 %v2706
    %v2963 = vunpack.c.l.b16 %v2707
    %v2964 = vunpack.c.l.b16 %v2708
    %v2965 = vunpack.c.l.b16 %v2709
    %v2966 = vunpack.c.l.b16 %v2710
    %v2967 = vunpack.c.l.b16 %v2711
    %v2968 = vunpack.c.l.b16 %v2712
    %v2969 = vunpack.c.l.b16 %v2713
    %v2970 = vunpack.c.l.b16 %v2714
    %v2971 = vunpack.c.l.b16 %v2715
    %v2972 = vpack.c.b16 %v2844, %v2844
    %v2973 = vpack.c.b16 %v2845, %v2845
    %v2974 = vpack.c.b16 %v2846, %v2846
    %v2975 = vpack.c.b16 %v2847, %v2847
    %v2976 = vpack.c.b16 %v2848, %v2848
    %v2977 = vpack.c.b16 %v2849, %v2849
    %v2978 = vpack.c.b16 %v2850, %v2850
    %v2979 = vpack.c.b16 %v2851, %v2851
    %v2980 = vpack.c.b16 %v2852, %v2852
    %v2981 = vpack.c.b16 %v2853, %v2853
    %v2982 = vpack.c.b16 %v2854, %v2854
    %v2983 = vpack.c.b16 %v2855, %v2855
    %v2984 = vpack.c.b16 %v2856, %v2856
    %v2985 = vpack.c.b16 %v2857, %v2857
    %v2986 = vpack.c.b16 %v2858, %v2858
    %v2987 = vpack.c.b16 %v2859, %v2859
    %v2988 = vpack.c.b16 %v2860, %v2860
    %v2989 = vpack.c.b16 %v2861, %v2861
    %v2990 = vpack.c.b16 %v2862, %v2862
    %v2991 = vpack.c.b16 %v2863, %v2863
    %v2992 = vpack.c.b16 %v2864, %v2864
    %v2993 = vpack.c.b16 %v2865, %v2865
    %v2994 = vpack.c.b16 %v2866, %v2866
    %v2995 = vpack.c.b16 %v2867, %v2867
    %v2996 = vpack.c.b16 %v2868, %v2868
    %v2997 = vpack.c.b16 %v2869, %v2869
    %v2998 = vpack.c.b16 %v2870, %v2870
    %v2999 = vpack.c.b16 %v2871, %v2871
    %v3000 = vpack.c.b16 %v2872, %v2872
    %v3001 = vpack.c.b16 %v2873, %v2873
    %v3002 = vpack.c.b16 %v2874, %v2874
    %v3003 = vpack.c.b16 %v2875, %v2875
    %v3004 = vpack.c.b16 %v2876, %v2876
    %v3005 = vpack.c.b16 %v2877, %v2877
    %v3006 = vpack.c.b16 %v2878, %v2878
    %v3007 = vpack.c.b16 %v2879, %v2879
    %v3008 = vpack.c.b16 %v2880, %v2880
    %v3009 = vpack.c.b16 %v2881, %v2881
    %v3010 = vpack.c.b16 %v2882, %v2882
    %v3011 = vpack.c.b16 %v2883, %v2883
    %v3012 = vpack.c.b16 %v2884, %v2884
    %v3013 = vpack.c.b16 %v2885, %v2885
    %v3014 = vpack.c.b16 %v2886, %v2886
    %v3015 = vpack.c.b16 %v2887, %v2887
    %v3016 = vpack.c.b16 %v2888, %v2888
    %v3017 = vpack.c.b16 %v2889, %v2889
    %v3018 = vpack.c.b16 %v2890, %v2890
    %v3019 = vpack.c.b16 %v2891, %v2891
    %v3020 = vpack.c.b16 %v2892, %v2892
    %v3021 = vpack.c.b16 %v2893, %v2893
    %v3022 = vpack.c.b16 %v2894, %v2894
    %v3023 = vpack.c.b16 %v2895, %v2895
    %v3024 = vpack.c.b16 %v2896, %v2896
    %v3025 = vpack.c.b16 %v2897, %v2897
    %v3026 = vpack.c.b16 %v2898, %v2898
    %v3027 = vpack.c.b16 %v2899, %v2899
    %v3028 = vpack.c.b16 %v2900, %v2900
    %v3029 = vpack.c.b16 %v2901, %v2901
    %v3030 = vpack.c.b16 %v2902, %v2902
    %v3031 = vpack.c.b16 %v2903, %v2903
    %v3032 = vpack.c.b16 %v2904, %v2904
    %v3033 = vpack.c.b16 %v2905, %v2905
    %v3034 = vpack.c.b16 %v2906, %v2906
    %v3035 = vpack.c.b16 %v2907, %v2907
    %v3036 = vpack.c.b16 %v2908, %v2908
    %v3037 = vpack.c.b16 %v2909, %v2909
    %v3038 = vpack.c.b16 %v2910, %v2910
    %v3039 = vpack.c.b16 %v2911, %v2911
    %v3040 = vpack.c.b16 %v2912, %v2912
    %v3041 = vpack.c.b16 %v2913, %v2913
    %v3042 = vpack.c.b16 %v2914, %v2914
    %v3043 = vpack.c.b16 %v2915, %v2915
    %v3044 = vpack.c.b16 %v2916, %v2916
    %v3045 = vpack.c.b16 %v2917, %v2917
    %v3046 = vpack.c.b16 %v2918, %v2918
    %v3047 = vpack.c.b16 %v2919, %v2919
    %v3048 = vpack.c.b16 %v2920, %v2920
    %v3049 = vpack.c.b16 %v2921, %v2921
    %v3050 = vpack.c.b16 %v2922, %v2922
    %v3051 = vpack.c.b16 %v2923, %v2923
    %v3052 = vpack.c.b16 %v2924, %v2924
    %v3053 = vpack.c.b16 %v2925, %v2925
    %v3054 = vpack.c.b16 %v2926, %v2926
    %v3055 = vpack.c.b16 %v2927, %v2927
    %v3056 = vpack.c.b16 %v2928, %v2928
    %v3057 = vpack.c.b16 %v2929, %v2929
    %v3058 = vpack.c.b16 %v2930, %v2930
    %v3059 = vpack.c.b16 %v2931, %v2931
    %v3060 = vpack.c.b16 %v2932, %v2932
    %v3061 = vpack.c.b16 %v2933, %v2933
    %v3062 = vpack.c.b16 %v2934, %v2934
    %v3063 = vpack.c.b16 %v2935, %v2935
    %v3064 = vpack.c.b16 %v2936, %v2936
    %v3065 = vpack.c.b16 %v2937, %v2937
    %v3066 = vpack.c.b16 %v2938, %v2938
    %v3067 = vpack.c.b16 %v2939, %v2939
    %v3068 = vpack.c.b16 %v2940, %v2940
    %v3069 = vpack.c.b16 %v2941, %v2941
    %v3070 = vpack.c.b16 %v2942, %v2942
    %v3071 = vpack.c.b16 %v2943, %v2943
    %v3072 = vpack.c.b16 %v2944, %v2944
    %v3073 = vpack.c.b16 %v2945, %v2945
    %v3074 = vpack.c.b16 %v2946, %v2946
    %v3075 = vpack.c.b16 %v2947, %v2947
    %v3076 = vpack.c.b16 %v2948, %v2948
    %v3077 = vpack.c.b16 %v2949, %v2949
    %v3078 = vpack.c.b16 %v2950, %v2950
    %v3079 = vpack.c.b16 %v2951, %v2951
    %v3080 = vpack.c.b16 %v2952, %v2952
    %v3081 = vpack.c.b16 %v2953, %v2953
    %v3082 = vpack.c.b16 %v2954, %v2954
    %v3083 = vpack.c.b16 %v2955, %v2955
    %v3084 = vpack.c.b16 %v2956, %v2956
    %v3085 = vpack.c.b16 %v2957, %v2957
    %v3086 = vpack.c.b16 %v2958, %v2958
    %v3087 = vpack.c.b16 %v2959, %v2959
    %v3088 = vpack.c.b16 %v2960, %v2960
    %v3089 = vpack.c.b16 %v2961, %v2961
    %v3090 = vpack.c.b16 %v2962, %v2962
    %v3091 = vpack.c.b16 %v2963, %v2963
    %v3092 = vpack.c.b16 %v2964, %v2964
    %v3093 = vpack.c.b16 %v2965, %v2965
    %v3094 = vpack.c.b16 %v2966, %v2966
    %v3095 = vpack.c.b16 %v2967, %v2967
    %v3096 = vpack.c.b16 %v2968, %v2968
    %v3097 = vpack.c.b16 %v2969, %v2969
    %v3098 = vpack.c.b16 %v2970, %v2970
    %v3099 = vpack.c.b16 %v2971, %v2971
    %v3100 = vunpack.c.l.b16 %v2972
    %v3101 = vunpack.c.l.b16 %v2973
    %v3102 = vunpack.c.l.b16 %v2974
    %v3103 = vunpack.c.l.b16 %v2975
    %v3104 = vunpack.c.l.b16 %v2976
    %v3105 = vunpack.c.l.b16 %v2977
    %v3106 = vunpack.c.l.b16 %v2978
    %v3107 = vunpack.c.l.b16 %v2979
    %v3108 = vunpack.c.l.b16 %v2980
    %v3109 = vunpack.c.l.b16 %v2981
    %v3110 = vunpack.c.l.b16 %v2982
    %v3111 = vunpack.c.l.b16 %v2983
    %v3112 = vunpack.c.l.b16 %v2984
    %v3113 = vunpack.c.l.b16 %v2985
    %v3114 = vunpack.c.l.b16 %v2986
    %v3115 = vunpack.c.l.b16 %v2987
    %v3116 = vunpack.c.l.b16 %v2988
    %v3117 = vunpack.c.l.b16 %v2989
    %v3118 = vunpack.c.l.b16 %v2990
    %v3119 = vunpack.c.l.b16 %v2991
    %v3120 = vunpack.c.l.b16 %v2992
    %v3121 = vunpack.c.l.b16 %v2993
    %v3122 = vunpack.c.l.b16 %v2994
    %v3123 = vunpack.c.l.b16 %v2995
    %v3124 = vunpack.c.l.b16 %v2996
    %v3125 = vunpack.c.l.b16 %v2997
    %v3126 = vunpack.c.l.b16 %v2998
    %v3127 = vunpack.c.l.b16 %v2999
    %v3128 = vunpack.c.l.b16 %v3000
    %v3129 = vunpack.c.l.b16 %v3001
    %v3130 = vunpack.c.l.b16 %v3002
    %v3131 = vunpack.c.l.b16 %v3003
    %v3132 = vunpack.c.l.b16 %v3004
    %v3133 = vunpack.c.l.b16 %v3005
    %v3134 = vunpack.c.l.b16 %v3006
    %v3135 = vunpack.c.l.b16 %v3007
    %v3136 = vunpack.c.l.b16 %v3008
    %v3137 = vunpack.c.l.b16 %v3009
    %v3138 = vunpack.c.l.b16 %v3010
    %v3139 = vunpack.c.l.b16 %v3011
    %v3140 = vunpack.c.l.b16 %v3012
    %v3141 = vunpack.c.l.b16 %v3013
    %v3142 = vunpack.c.l.b16 %v3014
    %v3143 = vunpack.c.l.b16 %v3015
    %v3144 = vunpack.c.l.b16 %v3016
    %v3145 = vunpack.c.l.b16 %v3017
    %v3146 = vunpack.c.l.b16 %v3018
    %v3147 = vunpack.c.l.b16 %v3019
    %v3148 = vunpack.c.l.b16 %v3020
    %v3149 = vunpack.c.l.b16 %v3021
    %v3150 = vunpack.c.l.b16 %v3022
    %v3151 = vunpack.c.l.b16 %v3023
    %v3152 = vunpack.c.l.b16 %v3024
    %v3153 = vunpack.c.l.b16 %v3025
    %v3154 = vunpack.c.l.b16 %v3026
    %v3155 = vunpack.c.l.b16 %v3027
    %v3156 = vunpack.c.l.b16 %v3028
    %v3157 = vunpack.c.l.b16 %v3029
    %v3158 = vunpack.c.l.b16 %v3030
    %v3159 = vunpack.c.l.b16 %v3031
    %v3160 = vunpack.c.l.b16 %v3032
    %v3161 = vunpack.c.l.b16 %v3033
    %v3162 = vunpack.c.l.b16 %v3034
    %v3163 = vunpack.c.l.b16 %v3035
    %v3164 = vunpack.c.l.b16 %v3036
    %v3165 = vunpack.c.l.b16 %v3037
    %v3166 = vunpack.c.l.b16 %v3038
    %v3167 = vunpack.c.l.b16 %v3039
    %v3168 = vunpack.c.l.b16 %v3040
    %v3169 = vunpack.c.l.b16 %v3041
    %v3170 = vunpack.c.l.b16 %v3042
    %v3171 = vunpack.c.l.b16 %v3043
    %v3172 = vunpack.c.l.b16 %v3044
    %v3173 = vunpack.c.l.b16 %v3045
    %v3174 = vunpack.c.l.b16 %v3046
    %v3175 = vunpack.c.l.b16 %v3047
    %v3176 = vunpack.c.l.b16 %v3048
    %v3177 = vunpack.c.l.b16 %v3049
    %v3178 = vunpack.c.l.b16 %v3050
    %v3179 = vunpack.c.l.b16 %v3051
    %v3180 = vunpack.c.l.b16 %v3052
    %v3181 = vunpack.c.l.b16 %v3053
    %v3182 = vunpack.c.l.b16 %v3054
    %v3183 = vunpack.c.l.b16 %v3055
    %v3184 = vunpack.c.l.b16 %v3056
    %v3185 = vunpack.c.l.b16 %v3057
    %v3186 = vunpack.c.l.b16 %v3058
    %v3187 = vunpack.c.l.b16 %v3059
    %v3188 = vunpack.c.l.b16 %v3060
    %v3189 = vunpack.c.l.b16 %v3061
    %v3190 = vunpack.c.l.b16 %v3062
    %v3191 = vunpack.c.l.b16 %v3063
    %v3192 = vunpack.c.l.b16 %v3064
    %v3193 = vunpack.c.l.b16 %v3065
    %v3194 = vunpack.c.l.b16 %v3066
    %v3195 = vunpack.c.l.b16 %v3067
    %v3196 = vunpack.c.l.b16 %v3068
    %v3197 = vunpack.c.l.b16 %v3069
    %v3198 = vunpack.c.l.b16 %v3070
    %v3199 = vunpack.c.l.b16 %v3071
    %v3200 = vunpack.c.l.b16 %v3072
    %v3201 = vunpack.c.l.b16 %v3073
    %v3202 = vunpack.c.l.b16 %v3074
    %v3203 = vunpack.c.l.b16 %v3075
    %v3204 = vunpack.c.l.b16 %v3076
    %v3205 = vunpack.c.l.b16 %v3077
    %v3206 = vunpack.c.l.b16 %v3078
    %v3207 = vunpack.c.l.b16 %v3079
    %v3208 = vunpack.c.l.b16 %v3080
    %v3209 = vunpack.c.l.b16 %v3081
    %v3210 = vunpack.c.l.b16 %v3082
    %v3211 = vunpack.c.l.b16 %v3083
    %v3212 = vunpack.c.l.b16 %v3084
    %v3213 = vunpack.c.l.b16 %v3085
    %v3214 = vunpack.c.l.b16 %v3086
    %v3215 = vunpack.c.l.b16 %v3087
    %v3216 = vunpack.c.l.b16 %v3088
    %v3217 = vunpack.c.l.b16 %v3089
    %v3218 = vunpack.c.l.b16 %v3090
    %v3219 = vunpack.c.l.b16 %v3091
    %v3220 = vunpack.c.l.b16 %v3092
    %v3221 = vunpack.c.l.b16 %v3093
    %v3222 = vunpack.c.l.b16 %v3094
    %v3223 = vunpack.c.l.b16 %v3095
    %v3224 = vunpack.c.l.b16 %v3096
    %v3225 = vunpack.c.l.b16 %v3097
    %v3226 = vunpack.c.l.b16 %v3098
    %v3227 = vunpack.c.l.b16 %v3099
    %vm3228 = vcmask 1042434
    %v3229 = vsel %vm3228, %v3101, %v3100
    %vm3230 = vcmask 1043459
    %v3231 = vsel %vm3230, %v3102, %v3229
    %vm3232 = vcmask 1044484
    %v3233 = vsel %vm3232, %v3103, %v3231
    %vm3234 = vcmask 1045509
    %v3235 = vsel %vm3234, %v3104, %v3233
    %vm3236 = vcmask 1046534
    %v3237 = vsel %vm3236, %v3105, %v3235
    %vm3238 = vcmask 1047559
    %v3239 = vsel %vm3238, %v3106, %v3237
    %v3240 = vsel %vm3228, %v3109, %v3108
    %v3241 = vsel %vm3230, %v3110, %v3240
    %v3242 = vsel %vm3232, %v3111, %v3241
    %v3243 = vsel %vm3234, %v3112, %v3242
    %v3244 = vsel %vm3236, %v3113, %v3243
    %v3245 = vsel %vm3238, %v3114, %v3244
    %v3246 = vsel %vm3228, %v3117, %v3116
    %v3247 = vsel %vm3230, %v3118, %v3246
    %v3248 = vsel %vm3232, %v3119, %v3247
    %v3249 = vsel %vm3234, %v3120, %v3248
    %v3250 = vsel %vm3236, %v3121, %v3249
    %v3251 = vsel %vm3238, %v3122, %v3250
    %v3252 = vsel %vm3228, %v3125, %v3124
    %v3253 = vsel %vm3230, %v3126, %v3252
    %v3254 = vsel %vm3232, %v3127, %v3253
    %v3255 = vsel %vm3234, %v3128, %v3254
    %v3256 = vsel %vm3236, %v3129, %v3255
    %v3257 = vsel %vm3238, %v3130, %v3256
    %v3258 = vsel %vm3228, %v3133, %v3132
    %v3259 = vsel %vm3230, %v3134, %v3258
    %v3260 = vsel %vm3232, %v3135, %v3259
    %v3261 = vsel %vm3234, %v3136, %v3260
    %v3262 = vsel %vm3236, %v3137, %v3261
    %v3263 = vsel %vm3238, %v3138, %v3262
    %v3264 = vsel %vm3228, %v3141, %v3140
    %v3265 = vsel %vm3230, %v3142, %v3264
    %v3266 = vsel %vm3232, %v3143, %v3265
    %v3267 = vsel %vm3234, %v3144, %v3266
    %v3268 = vsel %vm3236, %v3145, %v3267
    %v3269 = vsel %vm3238, %v3146, %v3268
    %v3270 = vsel %vm3228, %v3149, %v3148
    %v3271 = vsel %vm3230, %v3150, %v3270
    %v3272 = vsel %vm3232, %v3151, %v3271
    %v3273 = vsel %vm3234, %v3152, %v3272
    %v3274 = vsel %vm3236, %v3153, %v3273
    %v3275 = vsel %vm3238, %v3154, %v3274
    %v3276 = vsel %vm3228, %v3157, %v3156
    %v3277 = vsel %vm3230, %v3158, %v3276
    %v3278 = vsel %vm3232, %v3159, %v3277
    %v3279 = vsel %vm3234, %v3160, %v3278
    %v3280 = vsel %vm3236, %v3161, %v3279
    %v3281 = vsel %vm3238, %v3162, %v3280
    %v3282 = vsel %vm3228, %v3165, %v3164
    %v3283 = vsel %vm3230, %v3166, %v3282
    %v3284 = vsel %vm3232, %v3167, %v3283
    %v3285 = vsel %vm3234, %v3168, %v3284
    %v3286 = vsel %vm3236, %v3169, %v3285
    %v3287 = vsel %vm3238, %v3170, %v3286
    %v3288 = vsel %vm3228, %v3173, %v3172
    %v3289 = vsel %vm3230, %v3174, %v3288
    %v3290 = vsel %vm3232, %v3175, %v3289
    %v3291 = vsel %vm3234, %v3176, %v3290
    %v3292 = vsel %vm3236, %v3177, %v3291
    %v3293 = vsel %vm3238, %v3178, %v3292
    %v3294 = vsel %vm3228, %v3181, %v3180
    %v3295 = vsel %vm3230, %v3182, %v3294
    %v3296 = vsel %vm3232, %v3183, %v3295
    %v3297 = vsel %vm3234, %v3184, %v3296
    %v3298 = vsel %vm3236, %v3185, %v3297
    %v3299 = vsel %vm3238, %v3186, %v3298
    %v3300 = vsel %vm3228, %v3189, %v3188
    %v3301 = vsel %vm3230, %v3190, %v3300
    %v3302 = vsel %vm3232, %v3191, %v3301
    %v3303 = vsel %vm3234, %v3192, %v3302
    %v3304 = vsel %vm3236, %v3193, %v3303
    %v3305 = vsel %vm3238, %v3194, %v3304
    %v3306 = vsel %vm3228, %v3197, %v3196
    %v3307 = vsel %vm3230, %v3198, %v3306
    %v3308 = vsel %vm3232, %v3199, %v3307
    %v3309 = vsel %vm3234, %v3200, %v3308
    %v3310 = vsel %vm3236, %v3201, %v3309
    %v3311 = vsel %vm3238, %v3202, %v3310
    %v3312 = vsel %vm3228, %v3205, %v3204
    %v3313 = vsel %vm3230, %v3206, %v3312
    %v3314 = vsel %vm3232, %v3207, %v3313
    %v3315 = vsel %vm3234, %v3208, %v3314
    %v3316 = vsel %vm3236, %v3209, %v3315
    %v3317 = vsel %vm3238, %v3210, %v3316
    %v3318 = vsel %vm3228, %v3213, %v3212
    %v3319 = vsel %vm3230, %v3214, %v3318
    %v3320 = vsel %vm3232, %v3215, %v3319
    %v3321 = vsel %vm3234, %v3216, %v3320
    %v3322 = vsel %vm3236, %v3217, %v3321
    %v3323 = vsel %vm3238, %v3218, %v3322
    %v3324 = vsel %vm3228, %v3221, %v3220
    %v3325 = vsel %vm3230, %v3222, %v3324
    %v3326 = vsel %vm3232, %v3223, %v3325
    %v3327 = vsel %vm3234, %v3224, %v3326
    %v3328 = vsel %vm3236, %v3225, %v3327
    %v3329 = vsel %vm3238, %v3226, %v3328
    %v3330 = vpack.c.b16 %v3239, %v3239
    %v3331 = vpack.c.b16 %v3107, %v3107
    %v3332 = vpack.c.b16 %v3245, %v3245
    %v3333 = vpack.c.b16 %v3115, %v3115
    %v3334 = vpack.c.b16 %v3251, %v3251
    %v3335 = vpack.c.b16 %v3123, %v3123
    %v3336 = vpack.c.b16 %v3257, %v3257
    %v3337 = vpack.c.b16 %v3131, %v3131
    %v3338 = vpack.c.b16 %v3263, %v3263
    %v3339 = vpack.c.b16 %v3139, %v3139
    %v3340 = vpack.c.b16 %v3269, %v3269
    %v3341 = vpack.c.b16 %v3147, %v3147
    %v3342 = vpack.c.b16 %v3275, %v3275
    %v3343 = vpack.c.b16 %v3155, %v3155
    %v3344 = vpack.c.b16 %v3281, %v3281
    %v3345 = vpack.c.b16 %v3163, %v3163
    %v3346 = vpack.c.b16 %v3287, %v3287
    %v3347 = vpack.c.b16 %v3171, %v3171
    %v3348 = vpack.c.b16 %v3293, %v3293
    %v3349 = vpack.c.b16 %v3179, %v3179
    %v3350 = vpack.c.b16 %v3299, %v3299
    %v3351 = vpack.c.b16 %v3187, %v3187
    %v3352 = vpack.c.b16 %v3305, %v3305
    %v3353 = vpack.c.b16 %v3195, %v3195
    %v3354 = vpack.c.b16 %v3311, %v3311
    %v3355 = vpack.c.b16 %v3203, %v3203
    %v3356 = vpack.c.b16 %v3317, %v3317
    %v3357 = vpack.c.b16 %v3211, %v3211
    %v3358 = vpack.c.b16 %v3323, %v3323
    %v3359 = vpack.c.b16 %v3219, %v3219
    %v3360 = vpack.c.b16 %v3329, %v3329
    %v3361 = vpack.c.b16 %v3227, %v3227
    %s3394 = scalar_lea.vmem [#allocation5], 8
    %vm3395 = vcmask 519168
    %vm3396 = vsmask.f32 7938
    %vm3397 = vmand %vm3395, %vm3396
    %v3398 = vld [vmem:[%s3394] sm:$0xf]
    %v3399 = vsel %vm3397, %v3330, %v3398
    %3400 = vst [vmem:[%s3394] sm:$0xf] %v3399
    %vm3401 = vcmask 516096
    %vm3402 = vsmask.f32 256
    %vm3403 = vmand %vm3401, %vm3402
    %v3404 = vld [vmem:[%s3394 + $0x4] sm:$0x1]
    %v3405 = vsel %vm3403, %v3331, %v3404
    %3406 = vst [vmem:[%s3394 + $0x4] sm:$0x1] %v3405
    %v3407 = vld [vmem:[%s3394 + $0x8] sm:$0xf]
    %v3408 = vsel %vm3397, %v3332, %v3407
    %3409 = vst [vmem:[%s3394 + $0x8] sm:$0xf] %v3408
    %v3410 = vld [vmem:[%s3394 + $0xc] sm:$0x1]
    %v3411 = vsel %vm3403, %v3333, %v3410
    %3412 = vst [vmem:[%s3394 + $0xc] sm:$0x1] %v3411
    %v3413 = vld [vmem:[%s3394 + $0x10] sm:$0xf]
    %v3414 = vsel %vm3397, %v3334, %v3413
    %3415 = vst [vmem:[%s3394 + $0x10] sm:$0xf] %v3414
    %v3416 = vld [vmem:[%s3394 + $0x14] sm:$0x1]
    %v3417 = vsel %vm3403, %v3335, %v3416
    %3418 = vst [vmem:[%s3394 + $0x14] sm:$0x1] %v3417
    %v3419 = vld [vmem:[%s3394 + $0x18] sm:$0xf]
    %v3420 = vsel %vm3397, %v3336, %v3419
    %3421 = vst [vmem:[%s3394 + $0x18] sm:$0xf] %v3420
    %v3422 = vld [vmem:[%s3394 + $0x1c] sm:$0x1]
    %v3423 = vsel %vm3403, %v3337, %v3422
    %3424 = vst [vmem:[%s3394 + $0x1c] sm:$0x1] %v3423
    %v3425 = vld [vmem:[%s3394 + $0x20] sm:$0xf]
    %v3426 = vsel %vm3397, %v3338, %v3425
    %3427 = vst [vmem:[%s3394 + $0x20] sm:$0xf] %v3426
    %v3428 = vld [vmem:[%s3394 + $0x24] sm:$0x1]
    %v3429 = vsel %vm3403, %v3339, %v3428
    %3430 = vst [vmem:[%s3394 + $0x24] sm:$0x1] %v3429
    %v3431 = vld [vmem:[%s3394 + $0x28] sm:$0xf]
    %v3432 = vsel %vm3397, %v3340, %v3431
    %3433 = vst [vmem:[%s3394 + $0x28] sm:$0xf] %v3432
    %v3434 = vld [vmem:[%s3394 + $0x2c] sm:$0x1]
    %v3435 = vsel %vm3403, %v3341, %v3434
    %3436 = vst [vmem:[%s3394 + $0x2c] sm:$0x1] %v3435
    %v3437 = vld [vmem:[%s3394 + $0x30] sm:$0xf]
    %v3438 = vsel %vm3397, %v3342, %v3437
    %3439 = vst [vmem:[%s3394 + $0x30] sm:$0xf] %v3438
    %v3440 = vld [vmem:[%s3394 + $0x34] sm:$0x1]
    %v3441 = vsel %vm3403, %v3343, %v3440
    %3442 = vst [vmem:[%s3394 + $0x34] sm:$0x1] %v3441
    %v3443 = vld [vmem:[%s3394 + $0x38] sm:$0xf]
    %v3444 = vsel %vm3397, %v3344, %v3443
    %3445 = vst [vmem:[%s3394 + $0x38] sm:$0xf] %v3444
    %v3446 = vld [vmem:[%s3394 + $0x3c] sm:$0x1]
    %v3447 = vsel %vm3403, %v3345, %v3446
    %3448 = vst [vmem:[%s3394 + $0x3c] sm:$0x1] %v3447
    %v3449 = vld [vmem:[%s3394 + $0x50] sm:$0xf]
    %v3450 = vsel %vm3397, %v3346, %v3449
    %3451 = vst [vmem:[%s3394 + $0x50] sm:$0xf] %v3450
    %v3452 = vld [vmem:[%s3394 + $0x54] sm:$0x1]
    %v3453 = vsel %vm3403, %v3347, %v3452
    %3454 = vst [vmem:[%s3394 + $0x54] sm:$0x1] %v3453
    %v3455 = vld [vmem:[%s3394 + $0x58] sm:$0xf]
    %v3456 = vsel %vm3397, %v3348, %v3455
    %3457 = vst [vmem:[%s3394 + $0x58] sm:$0xf] %v3456
    %v3458 = vld [vmem:[%s3394 + $0x5c] sm:$0x1]
    %v3459 = vsel %vm3403, %v3349, %v3458
    %3460 = vst [vmem:[%s3394 + $0x5c] sm:$0x1] %v3459
    %v3461 = vld [vmem:[%s3394 + $0x60] sm:$0xf]
    %v3462 = vsel %vm3397, %v3350, %v3461
    %3463 = vst [vmem:[%s3394 + $0x60] sm:$0xf] %v3462
    %v3464 = vld [vmem:[%s3394 + $0x64] sm:$0x1]
    %v3465 = vsel %vm3403, %v3351, %v3464
    %3466 = vst [vmem:[%s3394 + $0x64] sm:$0x1] %v3465
    %v3467 = vld [vmem:[%s3394 + $0x68] sm:$0xf]
    %v3468 = vsel %vm3397, %v3352, %v3467
    %3469 = vst [vmem:[%s3394 + $0x68] sm:$0xf] %v3468
    %v3470 = vld [vmem:[%s3394 + $0x6c] sm:$0x1]
    %v3471 = vsel %vm3403, %v3353, %v3470
    %3472 = vst [vmem:[%s3394 + $0x6c] sm:$0x1] %v3471
    %v3473 = vld [vmem:[%s3394 + $0x70] sm:$0xf]
    %v3474 = vsel %vm3397, %v3354, %v3473
    %3475 = vst [vmem:[%s3394 + $0x70] sm:$0xf] %v3474
    %v3476 = vld [vmem:[%s3394 + $0x74] sm:$0x1]
    %v3477 = vsel %vm3403, %v3355, %v3476
    %3478 = vst [vmem:[%s3394 + $0x74] sm:$0x1] %v3477
    %v3479 = vld [vmem:[%s3394 + $0x78] sm:$0xf]
    %v3480 = vsel %vm3397, %v3356, %v3479
    %3481 = vst [vmem:[%s3394 + $0x78] sm:$0xf] %v3480
    %v3482 = vld [vmem:[%s3394 + $0x7c] sm:$0x1]
    %v3483 = vsel %vm3403, %v3357, %v3482
    %3484 = vst [vmem:[%s3394 + $0x7c] sm:$0x1] %v3483
    %v3485 = vld [vmem:[%s3394 + $0x80] sm:$0xf]
    %v3486 = vsel %vm3397, %v3358, %v3485
    %3487 = vst [vmem:[%s3394 + $0x80] sm:$0xf] %v3486
    %v3488 = vld [vmem:[%s3394 + $0x84] sm:$0x1]
    %v3489 = vsel %vm3403, %v3359, %v3488
    %3490 = vst [vmem:[%s3394 + $0x84] sm:$0x1] %v3489
    %v3491 = vld [vmem:[%s3394 + $0x88] sm:$0xf]
    %v3492 = vsel %vm3397, %v3360, %v3491
    %3493 = vst [vmem:[%s3394 + $0x88] sm:$0xf] %v3492
    %v3494 = vld [vmem:[%s3394 + $0x8c] sm:$0x1]
    %v3495 = vsel %vm3403, %v3361, %v3494
    %3496 = vst [vmem:[%s3394 + $0x8c] sm:$0x1] %v3495
    %v3497 = vld [vmem:[#allocation5] sm:$0xf]
    %v3498 = vld [vmem:[#allocation5 + $0x8] sm:$0xf]
    %v3499 = vld [vmem:[#allocation5 + $0x10] sm:$0xf]
    %v3500 = vld [vmem:[#allocation5 + $0x18] sm:$0xf]
    %v3501 = vld [vmem:[#allocation5 + $0x20] sm:$0xf]
    %v3502 = vld [vmem:[#allocation5 + $0x28] sm:$0xf]
    %v3503 = vld [vmem:[#allocation5 + $0x30] sm:$0xf]
    %v3504 = vld [vmem:[#allocation5 + $0x38] sm:$0xf]
    %v3505 = vld [vmem:[#allocation5 + $0x50] sm:$0xf]
    %v3506 = vld [vmem:[#allocation5 + $0x58] sm:$0xf]
    %v3507 = vld [vmem:[#allocation5 + $0x60] sm:$0xf]
    %v3508 = vld [vmem:[#allocation5 + $0x68] sm:$0xf]
    %v3509 = vld [vmem:[#allocation5 + $0x70] sm:$0xf]
    %v3510 = vld [vmem:[#allocation5 + $0x78] sm:$0xf]
    %v3511 = vld [vmem:[#allocation5 + $0x80] sm:$0xf]
    %v3512 = vld [vmem:[#allocation5 + $0x88] sm:$0xf]
    %v3513 = vld [vmem:[#allocation13] sm:$0xf]
    %v3514 = vld [vmem:[#allocation13 + $0x4] sm:$0xf]
    %v3515 = vld [vmem:[#allocation13 + $0x8] sm:$0xf]
    %v3516 = vld [vmem:[#allocation13 + $0xc] sm:$0xf]
    %v3517 = vld [vmem:[#allocation13 + $0x10] sm:$0xf]
    %v3518 = vld [vmem:[#allocation13 + $0x14] sm:$0xf]
    %v3519 = vld [vmem:[#allocation13 + $0x18] sm:$0xf]
    %v3520 = vld [vmem:[#allocation13 + $0x1c] sm:$0xf]
    %v3521 = vld [vmem:[#allocation5 + $0x4] sm:$0x1]
    %v3522 = vld [vmem:[#allocation5 + $0xc] sm:$0x1]
    %v3523 = vld [vmem:[#allocation5 + $0x14] sm:$0x1]
    %v3524 = vld [vmem:[#allocation5 + $0x1c] sm:$0x1]
    %v3525 = vld [vmem:[#allocation5 + $0x24] sm:$0x1]
    %v3526 = vld [vmem:[#allocation5 + $0x2c] sm:$0x1]
    %v3527 = vld [vmem:[#allocation5 + $0x34] sm:$0x1]
    %v3528 = vld [vmem:[#allocation5 + $0x3c] sm:$0x1]
    %v3529 = vld [vmem:[#allocation5 + $0x54] sm:$0x1]
    %v3530 = vld [vmem:[#allocation5 + $0x5c] sm:$0x1]
    %v3531 = vld [vmem:[#allocation5 + $0x64] sm:$0x1]
    %v3532 = vld [vmem:[#allocation5 + $0x6c] sm:$0x1]
    %v3533 = vld [vmem:[#allocation5 + $0x74] sm:$0x1]
    %v3534 = vld [vmem:[#allocation5 + $0x7c] sm:$0x1]
    %v3535 = vld [vmem:[#allocation5 + $0x84] sm:$0x1]
    %v3536 = vld [vmem:[#allocation5 + $0x8c] sm:$0x1]
    %vm3537 = vsmask.f32 3328
    %vm3538 = vsmask.f32 7440
    %vm3539 = vmor %vm3537, %vm3538
    %v3541 = vshrl.u32 %v3497, 16
    %v3543 = vrot.slane %v3541, 4
    %v3544 = vshll.u32 %v3497, 16
    %v3546 = vrot.slane %v3544, 5
    %v3547 = vor.u32 %v3543, %v3546
    %v3548 = vrot.slane %v3547, 4
    %v3550 = vshll.u32 %v3521, 16
    %v3552 = vrot.slane %v3550, 5
    %v3553 = vsel %vm3539, %v3548, %v3552
    %v3555 = vshrl.u32 %v3498, 16
    %v3557 = vrot.slane %v3555, 4
    %v3558 = vshll.u32 %v3498, 16
    %v3560 = vrot.slane %v3558, 5
    %v3561 = vor.u32 %v3557, %v3560
    %v3562 = vrot.slane %v3561, 4
    %v3564 = vshll.u32 %v3522, 16
    %v3566 = vrot.slane %v3564, 5
    %v3567 = vsel %vm3539, %v3562, %v3566
    %v3569 = vshrl.u32 %v3499, 16
    %v3571 = vrot.slane %v3569, 4
    %v3572 = vshll.u32 %v3499, 16
    %v3574 = vrot.slane %v3572, 5
    %v3575 = vor.u32 %v3571, %v3574
    %v3576 = vrot.slane %v3575, 4
    %v3578 = vshll.u32 %v3523, 16
    %v3580 = vrot.slane %v3578, 5
    %v3581 = vsel %vm3539, %v3576, %v3580
    %v3583 = vshrl.u32 %v3500, 16
    %v3585 = vrot.slane %v3583, 4
    %v3586 = vshll.u32 %v3500, 16
    %v3588 = vrot.slane %v3586, 5
    %v3589 = vor.u32 %v3585, %v3588
    %v3590 = vrot.slane %v3589, 4
    %v3592 = vshll.u32 %v3524, 16
    %v3594 = vrot.slane %v3592, 5
    %v3595 = vsel %vm3539, %v3590, %v3594
    %v3597 = vshrl.u32 %v3501, 16
    %v3599 = vrot.slane %v3597, 4
    %v3600 = vshll.u32 %v3501, 16
    %v3602 = vrot.slane %v3600, 5
    %v3603 = vor.u32 %v3599, %v3602
    %v3604 = vrot.slane %v3603, 4
    %v3606 = vshll.u32 %v3525, 16
    %v3608 = vrot.slane %v3606, 5
    %v3609 = vsel %vm3539, %v3604, %v3608
    %v3611 = vshrl.u32 %v3502, 16
    %v3613 = vrot.slane %v3611, 4
    %v3614 = vshll.u32 %v3502, 16
    %v3616 = vrot.slane %v3614, 5
    %v3617 = vor.u32 %v3613, %v3616
    %v3618 = vrot.slane %v3617, 4
    %v3620 = vshll.u32 %v3526, 16
    %v3622 = vrot.slane %v3620, 5
    %v3623 = vsel %vm3539, %v3618, %v3622
    %v3625 = vshrl.u32 %v3503, 16
    %v3627 = vrot.slane %v3625, 4
    %v3628 = vshll.u32 %v3503, 16
    %v3630 = vrot.slane %v3628, 5
    %v3631 = vor.u32 %v3627, %v3630
    %v3632 = vrot.slane %v3631, 4
    %v3634 = vshll.u32 %v3527, 16
    %v3636 = vrot.slane %v3634, 5
    %v3637 = vsel %vm3539, %v3632, %v3636
    %v3639 = vshrl.u32 %v3504, 16
    %v3641 = vrot.slane %v3639, 4
    %v3642 = vshll.u32 %v3504, 16
    %v3644 = vrot.slane %v3642, 5
    %v3645 = vor.u32 %v3641, %v3644
    %v3646 = vrot.slane %v3645, 4
    %v3648 = vshll.u32 %v3528, 16
    %v3650 = vrot.slane %v3648, 5
    %v3651 = vsel %vm3539, %v3646, %v3650
    %v3653 = vshrl.u32 %v3505, 16
    %v3655 = vrot.slane %v3653, 4
    %v3656 = vshll.u32 %v3505, 16
    %v3658 = vrot.slane %v3656, 5
    %v3659 = vor.u32 %v3655, %v3658
    %v3660 = vrot.slane %v3659, 4
    %v3662 = vshll.u32 %v3529, 16
    %v3664 = vrot.slane %v3662, 5
    %v3665 = vsel %vm3539, %v3660, %v3664
    %v3667 = vshrl.u32 %v3506, 16
    %v3669 = vrot.slane %v3667, 4
    %v3670 = vshll.u32 %v3506, 16
    %v3672 = vrot.slane %v3670, 5
    %v3673 = vor.u32 %v3669, %v3672
    %v3674 = vrot.slane %v3673, 4
    %v3676 = vshll.u32 %v3530, 16
    %v3678 = vrot.slane %v3676, 5
    %v3679 = vsel %vm3539, %v3674, %v3678
    %v3681 = vshrl.u32 %v3507, 16
    %v3683 = vrot.slane %v3681, 4
    %v3684 = vshll.u32 %v3507, 16
    %v3686 = vrot.slane %v3684, 5
    %v3687 = vor.u32 %v3683, %v3686
    %v3688 = vrot.slane %v3687, 4
    %v3690 = vshll.u32 %v3531, 16
    %v3692 = vrot.slane %v3690, 5
    %v3693 = vsel %vm3539, %v3688, %v3692
    %v3695 = vshrl.u32 %v3508, 16
    %v3697 = vrot.slane %v3695, 4
    %v3698 = vshll.u32 %v3508, 16
    %v3700 = vrot.slane %v3698, 5
    %v3701 = vor.u32 %v3697, %v3700
    %v3702 = vrot.slane %v3701, 4
    %v3704 = vshll.u32 %v3532, 16
    %v3706 = vrot.slane %v3704, 5
    %v3707 = vsel %vm3539, %v3702, %v3706
    %v3709 = vshrl.u32 %v3509, 16
    %v3711 = vrot.slane %v3709, 4
    %v3712 = vshll.u32 %v3509, 16
    %v3714 = vrot.slane %v3712, 5
    %v3715 = vor.u32 %v3711, %v3714
    %v3716 = vrot.slane %v3715, 4
    %v3718 = vshll.u32 %v3533, 16
    %v3720 = vrot.slane %v3718, 5
    %v3721 = vsel %vm3539, %v3716, %v3720
    %v3723 = vshrl.u32 %v3510, 16
    %v3725 = vrot.slane %v3723, 4
    %v3726 = vshll.u32 %v3510, 16
    %v3728 = vrot.slane %v3726, 5
    %v3729 = vor.u32 %v3725, %v3728
    %v3730 = vrot.slane %v3729, 4
    %v3732 = vshll.u32 %v3534, 16
    %v3734 = vrot.slane %v3732, 5
    %v3735 = vsel %vm3539, %v3730, %v3734
    %v3737 = vshrl.u32 %v3511, 16
    %v3739 = vrot.slane %v3737, 4
    %v3740 = vshll.u32 %v3511, 16
    %v3742 = vrot.slane %v3740, 5
    %v3743 = vor.u32 %v3739, %v3742
    %v3744 = vrot.slane %v3743, 4
    %v3746 = vshll.u32 %v3535, 16
    %v3748 = vrot.slane %v3746, 5
    %v3749 = vsel %vm3539, %v3744, %v3748
    %v3751 = vshrl.u32 %v3512, 16
    %v3753 = vrot.slane %v3751, 4
    %v3754 = vshll.u32 %v3512, 16
    %v3756 = vrot.slane %v3754, 5
    %v3757 = vor.u32 %v3753, %v3756
    %v3758 = vrot.slane %v3757, 4
    %v3760 = vshll.u32 %v3536, 16
    %v3762 = vrot.slane %v3760, 5
    %v3763 = vsel %vm3539, %v3758, %v3762
    %v3764 = vld [vmem:[#allocation13 + $0x20] sm:$0xf]
    %v3765 = vld [vmem:[#allocation13 + $0x24] sm:$0xf]
    %v3766 = vld [vmem:[#allocation13 + $0x28] sm:$0xf]
    %v3767 = vld [vmem:[#allocation13 + $0x2c] sm:$0xf]
    %v3768 = vld [vmem:[#allocation13 + $0x30] sm:$0xf]
    %v3769 = vld [vmem:[#allocation13 + $0x34] sm:$0xf]
    %v3770 = vld [vmem:[#allocation13 + $0x38] sm:$0xf]
    %v3771 = vld [vmem:[#allocation13 + $0x3c] sm:$0xf]
    %v3772 = vunpack.c.l.b16 %v3553
    %v3773 = vunpack.c.l.b16 %v3567
    %v3774 = vunpack.c.l.b16 %v3581
    %v3775 = vunpack.c.l.b16 %v3595
    %v3776 = vunpack.c.l.b16 %v3609
    %v3777 = vunpack.c.l.b16 %v3623
    %v3778 = vunpack.c.l.b16 %v3637
    %v3779 = vunpack.c.l.b16 %v3651
    %v3780 = vunpack.c.l.b16 %v3665
    %v3781 = vunpack.c.l.b16 %v3679
    %v3782 = vunpack.c.l.b16 %v3693
    %v3783 = vunpack.c.l.b16 %v3707
    %v3784 = vunpack.c.l.b16 %v3721
    %v3785 = vunpack.c.l.b16 %v3735
    %v3786 = vunpack.c.l.b16 %v3749
    %v3787 = vunpack.c.l.b16 %v3763
    %v3788 = vpack.c.b16 %v3773, %v3772
    %v3789 = vpack.c.b16 %v3775, %v3774
    %v3790 = vpack.c.b16 %v3777, %v3776
    %v3791 = vpack.c.b16 %v3779, %v3778
    %v3792 = vpack.c.b16 %v3781, %v3780
    %v3793 = vpack.c.b16 %v3783, %v3782
    %v3794 = vpack.c.b16 %v3785, %v3784
    %v3795 = vpack.c.b16 %v3787, %v3786
    %v3804 = vunpack.c.l.b16 %v3764
    %v3805 = vunpack.c.l.b16 %v3765
    %v3806 = vunpack.c.l.b16 %v3766
    %v3807 = vunpack.c.l.b16 %v3767
    %v3808 = vunpack.c.l.b16 %v3768
    %v3809 = vunpack.c.l.b16 %v3769
    %v3810 = vunpack.c.l.b16 %v3770
    %v3811 = vunpack.c.l.b16 %v3771
    %v3812 = vpack.c.b16 %v3805, %v3804
    %v3813 = vpack.c.b16 %v3807, %v3806
    %v3814 = vpack.c.b16 %v3809, %v3808
    %v3815 = vpack.c.b16 %v3811, %v3810
    %vm3820 = vcmask 523264
    %v3822 = vsel %vm3820, %v3788, 0
    %v3825 = vsel %vm3820, %v3789, 0
    %v3828 = vsel %vm3820, %v3790, 0
    %v3831 = vsel %vm3820, %v3791, 0
    %v3834 = vsel %vm3820, %v3792, 0
    %v3837 = vsel %vm3820, %v3793, 0
    %v3840 = vsel %vm3820, %v3794, 0
    %v3843 = vsel %vm3820, %v3795, 0
    %3845 = vmatprep.subr.bf16.mxu0 0
    %3846 = vmatpush1.bf16.msra.mxu0 %v3812
    %3847 = vmatprep.subr.bf16.mxu0 0
    %3848 = vmatpush1.bf16.msra.mxu0 %v3813
    %3849 = vmatprep.subr.bf16.mxu0 0
    %3850 = vmatpush1.bf16.msra.mxu0 %v3814
    %3851 = vmatprep.subr.bf16.mxu0 0
    %3852 = vmatpush1.bf16.msra.mxu0 %v3815
    %3853 = vmatprep.subr.bf16.mxu0 0
    %3854 = vmatpush1.bf16.msra.mxu0 0
    %3855 = vmatprep.subr.bf16.mxu0 0
    %3856 = vmatpush1.bf16.msra.mxu0 0
    %3857 = vmatprep.subr.bf16.mxu0 0
    %3858 = vmatpush1.bf16.msra.mxu0 0
    %3859 = vmatprep.subr.bf16.mxu0 0
    %3860 = vmatpush1.bf16.msra.mxu0 0
    %3861 = vmatprep.subr.bf16.mxu0 0
    %3862 = vmatpush1.bf16.msra.mxu0 0
    %3863 = vmatprep.subr.bf16.mxu0 0
    %3864 = vmatpush1.bf16.msra.mxu0 0
    %3865 = vmatprep.subr.bf16.mxu0 0
    %3866 = vmatpush1.bf16.msra.mxu0 0
    %3867 = vmatprep.subr.bf16.mxu0 0
    %3868 = vmatpush1.bf16.msra.mxu0 0
    %3869 = vmatprep.subr.bf16.mxu0 0
    %3870 = vmatpush1.bf16.msra.mxu0 0
    %3871 = vmatprep.subr.bf16.mxu0 0
    %3872 = vmatpush1.bf16.msra.mxu0 0
    %3873 = vmatprep.subr.bf16.mxu0 0
    %3874 = vmatpush1.bf16.msra.mxu0 0
    %3875 = vmatprep.subr.bf16.mxu0 0
    %3876 = vmatpush1.bf16.msra.mxu0 0
    %3877 = vmatprep.mubr.bf16.mxu0 0
    %3878 = vmatmul.mubr.bf16.gmra.mrb[0].mxu0 %v3822
    %v3879 = vpop.f32.mrb[0].mxu0
    %v3880 = vadd.f32 0.0, %v3879
    %v3881 = vpop.f32.mrb[0].mxu0
    %v3882 = vpop.f32.mrb[0].mxu0
    %v3883 = vadd.f32 0.0, %v3882
    %v3884 = vpop.f32.mrb[0].mxu0
    %3885 = vmatprep.mubr.bf16.mxu0 0
    %3886 = vmatmul.mubr.bf16.gmra.mrb[0].mxu0 %v3825
    %v3887 = vpop.f32.mrb[0].mxu0
    %v3888 = vadd.f32 0.0, %v3887
    %v3889 = vpop.f32.mrb[0].mxu0
    %v3890 = vpop.f32.mrb[0].mxu0
    %v3891 = vadd.f32 0.0, %v3890
    %v3892 = vpop.f32.mrb[0].mxu0
    %3893 = vmatprep.mubr.bf16.mxu0 0
    %3894 = vmatmul.mubr.bf16.gmra.mrb[0].mxu0 %v3828
    %v3895 = vpop.f32.mrb[0].mxu0
    %v3896 = vadd.f32 0.0, %v3895
    %v3897 = vpop.f32.mrb[0].mxu0
    %v3898 = vpop.f32.mrb[0].mxu0
    %v3899 = vadd.f32 0.0, %v3898
    %v3900 = vpop.f32.mrb[0].mxu0
    %3901 = vmatprep.mubr.bf16.mxu0 0
    %3902 = vmatmul.mubr.bf16.gmra.mrb[0].mxu0 %v3831
    %v3903 = vpop.f32.mrb[0].mxu0
    %v3904 = vadd.f32 0.0, %v3903
    %v3905 = vpop.f32.mrb[0].mxu0
    %v3906 = vpop.f32.mrb[0].mxu0
    %v3907 = vadd.f32 0.0, %v3906
    %v3908 = vpop.f32.mrb[0].mxu0
    %3909 = vmatprep.mubr.bf16.mxu0 0
    %3910 = vmatmul.mubr.bf16.gmra.mrb[0].mxu0 %v3834
    %v3911 = vpop.f32.mrb[0].mxu0
    %v3912 = vadd.f32 0.0, %v3911
    %v3913 = vpop.f32.mrb[0].mxu0
    %v3914 = vpop.f32.mrb[0].mxu0
    %v3915 = vadd.f32 0.0, %v3914
    %v3916 = vpop.f32.mrb[0].mxu0
    %3917 = vmatprep.mubr.bf16.mxu0 0
    %3918 = vmatmul.mubr.bf16.gmra.mrb[0].mxu0 %v3837
    %v3919 = vpop.f32.mrb[0].mxu0
    %v3920 = vadd.f32 0.0, %v3919
    %v3921 = vpop.f32.mrb[0].mxu0
    %v3922 = vpop.f32.mrb[0].mxu0
    %v3923 = vadd.f32 0.0, %v3922
    %v3924 = vpop.f32.mrb[0].mxu0
    %3925 = vmatprep.mubr.bf16.mxu0 0
    %3926 = vmatmul.mubr.bf16.gmra.mrb[0].mxu0 %v3840
    %v3927 = vpop.f32.mrb[0].mxu0
    %v3928 = vadd.f32 0.0, %v3927
    %v3929 = vpop.f32.mrb[0].mxu0
    %v3930 = vpop.f32.mrb[0].mxu0
    %v3931 = vadd.f32 0.0, %v3930
    %v3932 = vpop.f32.mrb[0].mxu0
    %3933 = vmatprep.mubr.bf16.mxu0 0
    %3934 = vmatmul.mubr.bf16.gmra.mrb[0].mxu0 %v3843
    %v3935 = vpop.f32.mrb[0].mxu0
    %v3936 = vadd.f32 0.0, %v3935
    %v3937 = vpop.f32.mrb[0].mxu0
    %v3938 = vpop.f32.mrb[0].mxu0
    %v3939 = vadd.f32 0.0, %v3938
    %v3940 = vpop.f32.mrb[0].mxu0
    %3941 = vdwg.mxu0
    %v3958 = vunpack.c.l.b16 %v3497
    %v3959 = vunpack.c.l.b16 %v3498
    %v3960 = vunpack.c.l.b16 %v3499
    %v3961 = vunpack.c.l.b16 %v3500
    %v3962 = vunpack.c.l.b16 %v3501
    %v3963 = vunpack.c.l.b16 %v3502
    %v3964 = vunpack.c.l.b16 %v3503
    %v3965 = vunpack.c.l.b16 %v3504
    %v3966 = vunpack.c.l.b16 %v3505
    %v3967 = vunpack.c.l.b16 %v3506
    %v3968 = vunpack.c.l.b16 %v3507
    %v3969 = vunpack.c.l.b16 %v3508
    %v3970 = vunpack.c.l.b16 %v3509
    %v3971 = vunpack.c.l.b16 %v3510
    %v3972 = vunpack.c.l.b16 %v3511
    %v3973 = vunpack.c.l.b16 %v3512
    %v3974 = vpack.c.b16 %v3959, %v3958
    %v3975 = vpack.c.b16 %v3961, %v3960
    %v3976 = vpack.c.b16 %v3963, %v3962
    %v3977 = vpack.c.b16 %v3965, %v3964
    %v3978 = vpack.c.b16 %v3967, %v3966
    %v3979 = vpack.c.b16 %v3969, %v3968
    %v3980 = vpack.c.b16 %v3971, %v3970
    %v3981 = vpack.c.b16 %v3973, %v3972
    %v3990 = vunpack.c.l.b16 %v3513
    %v3991 = vunpack.c.l.b16 %v3514
    %v3992 = vunpack.c.l.b16 %v3515
    %v3993 = vunpack.c.l.b16 %v3516
    %v3994 = vunpack.c.l.b16 %v3517
    %v3995 = vunpack.c.l.b16 %v3518
    %v3996 = vunpack.c.l.b16 %v3519
    %v3997 = vunpack.c.l.b16 %v3520
    %v3998 = vpack.c.b16 %v3991, %v3990
    %v3999 = vpack.c.b16 %v3993, %v3992
    %v4000 = vpack.c.b16 %v3995, %v3994
    %v4001 = vpack.c.b16 %v3997, %v3996
    %v4007 = vsel %vm3820, %v3974, 0
    %v4010 = vsel %vm3820, %v3975, 0
    %v4013 = vsel %vm3820, %v3976, 0
    %v4016 = vsel %vm3820, %v3977, 0
    %v4019 = vsel %vm3820, %v3978, 0
    %v4022 = vsel %vm3820, %v3979, 0
    %v4025 = vsel %vm3820, %v3980, 0
    %v4028 = vsel %vm3820, %v3981, 0
    %4030 = vmatprep.subr.bf16.mxu0 0
    %4031 = vmatpush1.bf16.msra.mxu0 %v3998
    %4032 = vmatprep.subr.bf16.mxu0 0
    %4033 = vmatpush1.bf16.msra.mxu0 %v3999
    %4034 = vmatprep.subr.bf16.mxu0 0
    %4035 = vmatpush1.bf16.msra.mxu0 %v4000
    %4036 = vmatprep.subr.bf16.mxu0 0
    %4037 = vmatpush1.bf16.msra.mxu0 %v4001
    %4038 = vmatprep.subr.bf16.mxu0 0
    %4039 = vmatpush1.bf16.msra.mxu0 0
    %4040 = vmatprep.subr.bf16.mxu0 0
    %4041 = vmatpush1.bf16.msra.mxu0 0
    %4042 = vmatprep.subr.bf16.mxu0 0
    %4043 = vmatpush1.bf16.msra.mxu0 0
    %4044 = vmatprep.subr.bf16.mxu0 0
    %4045 = vmatpush1.bf16.msra.mxu0 0
    %4046 = vmatprep.subr.bf16.mxu0 0
    %4047 = vmatpush1.bf16.msra.mxu0 0
    %4048 = vmatprep.subr.bf16.mxu0 0
    %4049 = vmatpush1.bf16.msra.mxu0 0
    %4050 = vmatprep.subr.bf16.mxu0 0
    %4051 = vmatpush1.bf16.msra.mxu0 0
    %4052 = vmatprep.subr.bf16.mxu0 0
    %4053 = vmatpush1.bf16.msra.mxu0 0
    %4054 = vmatprep.subr.bf16.mxu0 0
    %4055 = vmatpush1.bf16.msra.mxu0 0
    %4056 = vmatprep.subr.bf16.mxu0 0
    %4057 = vmatpush1.bf16.msra.mxu0 0
    %4058 = vmatprep.subr.bf16.mxu0 0
    %4059 = vmatpush1.bf16.msra.mxu0 0
    %4060 = vmatprep.subr.bf16.mxu0 0
    %4061 = vmatpush1.bf16.msra.mxu0 0
    %4062 = vmatprep.mubr.bf16.mxu0 0
    %4063 = vmatmul.mubr.bf16.gmra.mrb[0].mxu0 %v4007
    %v4064 = vpop.f32.mrb[0].mxu0
    %v4065 = vadd.f32 %v3880, %v4064
    %v4066 = vpop.f32.mrb[0].mxu0
    %v4067 = vpop.f32.mrb[0].mxu0
    %v4068 = vadd.f32 %v3883, %v4067
    %v4069 = vpop.f32.mrb[0].mxu0
    %4070 = vmatprep.mubr.bf16.mxu0 0
    %4071 = vmatmul.mubr.bf16.gmra.mrb[0].mxu0 %v4010
    %v4072 = vpop.f32.mrb[0].mxu0
    %v4073 = vadd.f32 %v3888, %v4072
    %v4074 = vpop.f32.mrb[0].mxu0
    %v4075 = vpop.f32.mrb[0].mxu0
    %v4076 = vadd.f32 %v3891, %v4075
    %v4077 = vpop.f32.mrb[0].mxu0
    %4078 = vmatprep.mubr.bf16.mxu0 0
    %4079 = vmatmul.mubr.bf16.gmra.mrb[0].mxu0 %v4013
    %v4080 = vpop.f32.mrb[0].mxu0
    %v4081 = vadd.f32 %v3896, %v4080
    %v4082 = vpop.f32.mrb[0].mxu0
    %v4083 = vpop.f32.mrb[0].mxu0
    %v4084 = vadd.f32 %v3899, %v4083
    %v4085 = vpop.f32.mrb[0].mxu0
    %4086 = vmatprep.mubr.bf16.mxu0 0
    %4087 = vmatmul.mubr.bf16.gmra.mrb[0].mxu0 %v4016
    %v4088 = vpop.f32.mrb[0].mxu0
    %v4089 = vadd.f32 %v3904, %v4088
    %v4090 = vpop.f32.mrb[0].mxu0
    %v4091 = vpop.f32.mrb[0].mxu0
    %v4092 = vadd.f32 %v3907, %v4091
    %v4093 = vpop.f32.mrb[0].mxu0
    %4094 = vmatprep.mubr.bf16.mxu0 0
    %4095 = vmatmul.mubr.bf16.gmra.mrb[0].mxu0 %v4019
    %v4096 = vpop.f32.mrb[0].mxu0
    %v4097 = vadd.f32 %v3912, %v4096
    %v4098 = vpop.f32.mrb[0].mxu0
    %v4099 = vpop.f32.mrb[0].mxu0
    %v4100 = vadd.f32 %v3915, %v4099
    %v4101 = vpop.f32.mrb[0].mxu0
    %4102 = vmatprep.mubr.bf16.mxu0 0
    %4103 = vmatmul.mubr.bf16.gmra.mrb[0].mxu0 %v4022
    %v4104 = vpop.f32.mrb[0].mxu0
    %v4105 = vadd.f32 %v3920, %v4104
    %v4106 = vpop.f32.mrb[0].mxu0
    %v4107 = vpop.f32.mrb[0].mxu0
    %v4108 = vadd.f32 %v3923, %v4107
    %v4109 = vpop.f32.mrb[0].mxu0
    %4110 = vmatprep.mubr.bf16.mxu0 0
    %4111 = vmatmul.mubr.bf16.gmra.mrb[0].mxu0 %v4025
    %v4112 = vpop.f32.mrb[0].mxu0
    %v4113 = vadd.f32 %v3928, %v4112
    %v4114 = vpop.f32.mrb[0].mxu0
    %v4115 = vpop.f32.mrb[0].mxu0
    %v4116 = vadd.f32 %v3931, %v4115
    %v4117 = vpop.f32.mrb[0].mxu0
    %4118 = vmatprep.mubr.bf16.mxu0 0
    %4119 = vmatmul.mubr.bf16.gmra.mrb[0].mxu0 %v4028
    %v4120 = vpop.f32.mrb[0].mxu0
    %v4121 = vadd.f32 %v3936, %v4120
    %v4122 = vpop.f32.mrb[0].mxu0
    %v4123 = vpop.f32.mrb[0].mxu0
    %v4124 = vadd.f32 %v3939, %v4123
    %v4125 = vpop.f32.mrb[0].mxu0
    %4126 = vdwg.mxu0
    %v4127 = vld [vmem:[#allocation5] sm:$0xe]
    %v4128 = vld [vmem:[#allocation5 + $0x8] sm:$0xe]
    %v4129 = vld [vmem:[#allocation5 + $0x10] sm:$0xe]
    %v4130 = vld [vmem:[#allocation5 + $0x18] sm:$0xe]
    %v4131 = vld [vmem:[#allocation5 + $0x20] sm:$0xe]
    %v4132 = vld [vmem:[#allocation5 + $0x28] sm:$0xe]
    %v4133 = vld [vmem:[#allocation5 + $0x30] sm:$0xe]
    %v4134 = vld [vmem:[#allocation5 + $0x38] sm:$0xe]
    %v4135 = vld [vmem:[#allocation5 + $0x50] sm:$0xe]
    %v4136 = vld [vmem:[#allocation5 + $0x58] sm:$0xe]
    %v4137 = vld [vmem:[#allocation5 + $0x60] sm:$0xe]
    %v4138 = vld [vmem:[#allocation5 + $0x68] sm:$0xe]
    %v4139 = vld [vmem:[#allocation5 + $0x70] sm:$0xe]
    %v4140 = vld [vmem:[#allocation5 + $0x78] sm:$0xe]
    %v4141 = vld [vmem:[#allocation5 + $0x80] sm:$0xe]
    %v4142 = vld [vmem:[#allocation5 + $0x88] sm:$0xe]
    %vm4175 = vcmask 1042432
    %vm4176 = vcmask 1046532
    %vm4177 = vmor %vm4175, %vm4176
    %v4178 = vrot.slane %v4127, 5
    %v4179 = vrot.slane %v4178, 4
    %v4180 = vrot.slane %v3521, 5
    %v4181 = vsel %vm4177, %v4179, %v4180
    %v4182 = vrot.slane %v4128, 5
    %v4183 = vrot.slane %v4182, 4
    %v4184 = vrot.slane %v3522, 5
    %v4185 = vsel %vm4177, %v4183, %v4184
    %v4186 = vrot.slane %v4129, 5
    %v4187 = vrot.slane %v4186, 4
    %v4188 = vrot.slane %v3523, 5
    %v4189 = vsel %vm4177, %v4187, %v4188
    %v4190 = vrot.slane %v4130, 5
    %v4191 = vrot.slane %v4190, 4
    %v4192 = vrot.slane %v3524, 5
    %v4193 = vsel %vm4177, %v4191, %v4192
    %v4194 = vrot.slane %v4131, 5
    %v4195 = vrot.slane %v4194, 4
    %v4196 = vrot.slane %v3525, 5
    %v4197 = vsel %vm4177, %v4195, %v4196
    %v4198 = vrot.slane %v4132, 5
    %v4199 = vrot.slane %v4198, 4
    %v4200 = vrot.slane %v3526, 5
    %v4201 = vsel %vm4177, %v4199, %v4200
    %v4202 = vrot.slane %v4133, 5
    %v4203 = vrot.slane %v4202, 4
    %v4204 = vrot.slane %v3527, 5
    %v4205 = vsel %vm4177, %v4203, %v4204
    %v4206 = vrot.slane %v4134, 5
    %v4207 = vrot.slane %v4206, 4
    %v4208 = vrot.slane %v3528, 5
    %v4209 = vsel %vm4177, %v4207, %v4208
    %v4210 = vrot.slane %v4135, 5
    %v4211 = vrot.slane %v4210, 4
    %v4212 = vrot.slane %v3529, 5
    %v4213 = vsel %vm4177, %v4211, %v4212
    %v4214 = vrot.slane %v4136, 5
    %v4215 = vrot.slane %v4214, 4
    %v4216 = vrot.slane %v3530, 5
    %v4217 = vsel %vm4177, %v4215, %v4216
    %v4218 = vrot.slane %v4137, 5
    %v4219 = vrot.slane %v4218, 4
    %v4220 = vrot.slane %v3531, 5
    %v4221 = vsel %vm4177, %v4219, %v4220
    %v4222 = vrot.slane %v4138, 5
    %v4223 = vrot.slane %v4222, 4
    %v4224 = vrot.slane %v3532, 5
    %v4225 = vsel %vm4177, %v4223, %v4224
    %v4226 = vrot.slane %v4139, 5
    %v4227 = vrot.slane %v4226, 4
    %v4228 = vrot.slane %v3533, 5
    %v4229 = vsel %vm4177, %v4227, %v4228
    %v4230 = vrot.slane %v4140, 5
    %v4231 = vrot.slane %v4230, 4
    %v4232 = vrot.slane %v3534, 5
    %v4233 = vsel %vm4177, %v4231, %v4232
    %v4234 = vrot.slane %v4141, 5
    %v4235 = vrot.slane %v4234, 4
    %v4236 = vrot.slane %v3535, 5
    %v4237 = vsel %vm4177, %v4235, %v4236
    %v4238 = vrot.slane %v4142, 5
    %v4239 = vrot.slane %v4238, 4
    %v4240 = vrot.slane %v3536, 5
    %v4241 = vsel %vm4177, %v4239, %v4240
    %v4242 = vld [vmem:[#allocation13 + $0x40] sm:$0xf]
    %v4243 = vld [vmem:[#allocation13 + $0x44] sm:$0xf]
    %v4244 = vld [vmem:[#allocation13 + $0x48] sm:$0xf]
    %v4245 = vld [vmem:[#allocation13 + $0x4c] sm:$0xf]
    %v4246 = vld [vmem:[#allocation13 + $0x50] sm:$0xf]
    %v4247 = vld [vmem:[#allocation13 + $0x54] sm:$0xf]
    %v4248 = vld [vmem:[#allocation13 + $0x58] sm:$0xf]
    %v4249 = vld [vmem:[#allocation13 + $0x5c] sm:$0xf]
    %v4250 = vunpack.c.l.b16 %v4181
    %v4251 = vunpack.c.l.b16 %v4185
    %v4252 = vunpack.c.l.b16 %v4189
    %v4253 = vunpack.c.l.b16 %v4193
    %v4254 = vunpack.c.l.b16 %v4197
    %v4255 = vunpack.c.l.b16 %v4201
    %v4256 = vunpack.c.l.b16 %v4205
    %v4257 = vunpack.c.l.b16 %v4209
    %v4258 = vunpack.c.l.b16 %v4213
    %v4259 = vunpack.c.l.b16 %v4217
    %v4260 = vunpack.c.l.b16 %v4221
    %v4261 = vunpack.c.l.b16 %v4225
    %v4262 = vunpack.c.l.b16 %v4229
    %v4263 = vunpack.c.l.b16 %v4233
    %v4264 = vunpack.c.l.b16 %v4237
    %v4265 = vunpack.c.l.b16 %v4241
    %v4266 = vpack.c.b16 %v4251, %v4250
    %v4267 = vpack.c.b16 %v4253, %v4252
    %v4268 = vpack.c.b16 %v4255, %v4254
    %v4269 = vpack.c.b16 %v4257, %v4256
    %v4270 = vpack.c.b16 %v4259, %v4258
    %v4271 = vpack.c.b16 %v4261, %v4260
    %v4272 = vpack.c.b16 %v4263, %v4262
    %v4273 = vpack.c.b16 %v4265, %v4264
    %v4282 = vunpack.c.l.b16 %v4242
    %v4283 = vunpack.c.l.b16 %v4243
    %v4284 = vunpack.c.l.b16 %v4244
    %v4285 = vunpack.c.l.b16 %v4245
    %v4286 = vunpack.c.l.b16 %v4246
    %v4287 = vunpack.c.l.b16 %v4247
    %v4288 = vunpack.c.l.b16 %v4248
    %v4289 = vunpack.c.l.b16 %v4249
    %v4290 = vpack.c.b16 %v4283, %v4282
    %v4291 = vpack.c.b16 %v4285, %v4284
    %v4292 = vpack.c.b16 %v4287, %v4286
    %v4293 = vpack.c.b16 %v4289, %v4288
    %v4299 = vsel %vm3820, %v4266, 0
    %v4302 = vsel %vm3820, %v4267, 0
    %v4305 = vsel %vm3820, %v4268, 0
    %v4308 = vsel %vm3820, %v4269, 0
    %v4311 = vsel %vm3820, %v4270, 0
    %v4314 = vsel %vm3820, %v4271, 0
    %v4317 = vsel %vm3820, %v4272, 0
    %v4320 = vsel %vm3820, %v4273, 0
    %4322 = vmatprep.subr.bf16.mxu0 0
    %4323 = vmatpush1.bf16.msra.mxu0 %v4290
    %4324 = vmatprep.subr.bf16.mxu0 0
    %4325 = vmatpush1.bf16.msra.mxu0 %v4291
    %4326 = vmatprep.subr.bf16.mxu0 0
    %4327 = vmatpush1.bf16.msra.mxu0 %v4292
    %4328 = vmatprep.subr.bf16.mxu0 0
    %4329 = vmatpush1.bf16.msra.mxu0 %v4293
    %4330 = vmatprep.subr.bf16.mxu0 0
    %4331 = vmatpush1.bf16.msra.mxu0 0
    %4332 = vmatprep.subr.bf16.mxu0 0
    %4333 = vmatpush1.bf16.msra.mxu0 0
    %4334 = vmatprep.subr.bf16.mxu0 0
    %4335 = vmatpush1.bf16.msra.mxu0 0
    %4336 = vmatprep.subr.bf16.mxu0 0
    %4337 = vmatpush1.bf16.msra.mxu0 0
    %4338 = vmatprep.subr.bf16.mxu0 0
    %4339 = vmatpush1.bf16.msra.mxu0 0
    %4340 = vmatprep.subr.bf16.mxu0 0
    %4341 = vmatpush1.bf16.msra.mxu0 0
    %4342 = vmatprep.subr.bf16.mxu0 0
    %4343 = vmatpush1.bf16.msra.mxu0 0
    %4344 = vmatprep.subr.bf16.mxu0 0
    %4345 = vmatpush1.bf16.msra.mxu0 0
    %4346 = vmatprep.subr.bf16.mxu0 0
    %4347 = vmatpush1.bf16.msra.mxu0 0
    %4348 = vmatprep.subr.bf16.mxu0 0
    %4349 = vmatpush1.bf16.msra.mxu0 0
    %4350 = vmatprep.subr.bf16.mxu0 0
    %4351 = vmatpush1.bf16.msra.mxu0 0
    %4352 = vmatprep.subr.bf16.mxu0 0
    %4353 = vmatpush1.bf16.msra.mxu0 0
    %4354 = vmatprep.mubr.bf16.mxu0 0
    %4355 = vmatmul.mubr.bf16.gmra.mrb[0].mxu0 %v4299
    %v4356 = vpop.f32.mrb[0].mxu0
    %v4357 = vadd.f32 0.0, %v4356
    %v4358 = vpop.f32.mrb[0].mxu0
    %v4359 = vpop.f32.mrb[0].mxu0
    %v4360 = vadd.f32 0.0, %v4359
    %v4361 = vpop.f32.mrb[0].mxu0
    %4362 = vmatprep.mubr.bf16.mxu0 0
    %4363 = vmatmul.mubr.bf16.gmra.mrb[0].mxu0 %v4302
    %v4364 = vpop.f32.mrb[0].mxu0
    %v4365 = vadd.f32 0.0, %v4364
    %v4366 = vpop.f32.mrb[0].mxu0
    %v4367 = vpop.f32.mrb[0].mxu0
    %v4368 = vadd.f32 0.0, %v4367
    %v4369 = vpop.f32.mrb[0].mxu0
    %4370 = vmatprep.mubr.bf16.mxu0 0
    %4371 = vmatmul.mubr.bf16.gmra.mrb[0].mxu0 %v4305
    %v4372 = vpop.f32.mrb[0].mxu0
    %v4373 = vadd.f32 0.0, %v4372
    %v4374 = vpop.f32.mrb[0].mxu0
    %v4375 = vpop.f32.mrb[0].mxu0
    %v4376 = vadd.f32 0.0, %v4375
    %v4377 = vpop.f32.mrb[0].mxu0
    %4378 = vmatprep.mubr.bf16.mxu0 0
    %4379 = vmatmul.mubr.bf16.gmra.mrb[0].mxu0 %v4308
    %v4380 = vpop.f32.mrb[0].mxu0
    %v4381 = vadd.f32 0.0, %v4380
    %v4382 = vpop.f32.mrb[0].mxu0
    %v4383 = vpop.f32.mrb[0].mxu0
    %v4384 = vadd.f32 0.0, %v4383
    %v4385 = vpop.f32.mrb[0].mxu0
    %4386 = vmatprep.mubr.bf16.mxu0 0
    %4387 = vmatmul.mubr.bf16.gmra.mrb[0].mxu0 %v4311
    %v4388 = vpop.f32.mrb[0].mxu0
    %v4389 = vadd.f32 0.0, %v4388
    %v4390 = vpop.f32.mrb[0].mxu0
    %v4391 = vpop.f32.mrb[0].mxu0
    %v4392 = vadd.f32 0.0, %v4391
    %v4393 = vpop.f32.mrb[0].mxu0
    %4394 = vmatprep.mubr.bf16.mxu0 0
    %4395 = vmatmul.mubr.bf16.gmra.mrb[0].mxu0 %v4314
    %v4396 = vpop.f32.mrb[0].mxu0
    %v4397 = vadd.f32 0.0, %v4396
    %v4398 = vpop.f32.mrb[0].mxu0
    %v4399 = vpop.f32.mrb[0].mxu0
    %v4400 = vadd.f32 0.0, %v4399
    %v4401 = vpop.f32.mrb[0].mxu0
    %4402 = vmatprep.mubr.bf16.mxu0 0
    %4403 = vmatmul.mubr.bf16.gmra.mrb[0].mxu0 %v4317
    %v4404 = vpop.f32.mrb[0].mxu0
    %v4405 = vadd.f32 0.0, %v4404
    %v4406 = vpop.f32.mrb[0].mxu0
    %v4407 = vpop.f32.mrb[0].mxu0
    %v4408 = vadd.f32 0.0, %v4407
    %v4409 = vpop.f32.mrb[0].mxu0
    %4410 = vmatprep.mubr.bf16.mxu0 0
    %4411 = vmatmul.mubr.bf16.gmra.mrb[0].mxu0 %v4320
    %v4412 = vpop.f32.mrb[0].mxu0
    %v4413 = vadd.f32 0.0, %v4412
    %v4414 = vpop.f32.mrb[0].mxu0
    %v4415 = vpop.f32.mrb[0].mxu0
    %v4416 = vadd.f32 0.0, %v4415
    %v4417 = vpop.f32.mrb[0].mxu0
    %4418 = vdwg.mxu0
    %v4419 = vadd.f32 %v4065, %v4357
    %v4420 = vadd.f32 %v4068, %v4360
    %v4421 = vadd.f32 %v4073, %v4365
    %v4422 = vadd.f32 %v4076, %v4368
    %v4423 = vadd.f32 %v4081, %v4373
    %v4424 = vadd.f32 %v4084, %v4376
    %v4425 = vadd.f32 %v4089, %v4381
    %v4426 = vadd.f32 %v4092, %v4384
    %v4427 = vadd.f32 %v4097, %v4389
    %v4428 = vadd.f32 %v4100, %v4392
    %v4429 = vadd.f32 %v4105, %v4397
    %v4430 = vadd.f32 %v4108, %v4400
    %v4431 = vadd.f32 %v4113, %v4405
    %v4432 = vadd.f32 %v4116, %v4408
    %v4433 = vadd.f32 %v4121, %v4413
    %v4434 = vadd.f32 %v4124, %v4416
    %v4435 = vld [vmem:[%s3394] sm:$0xf]
    %v4436 = vld [vmem:[%s3394 + $0x8] sm:$0xf]
    %v4437 = vld [vmem:[%s3394 + $0x10] sm:$0xf]
    %v4438 = vld [vmem:[%s3394 + $0x18] sm:$0xf]
    %v4439 = vld [vmem:[%s3394 + $0x20] sm:$0xf]
    %v4440 = vld [vmem:[%s3394 + $0x28] sm:$0xf]
    %v4441 = vld [vmem:[%s3394 + $0x30] sm:$0xf]
    %v4442 = vld [vmem:[%s3394 + $0x38] sm:$0xf]
    %v4443 = vld [vmem:[%s3394 + $0x50] sm:$0xf]
    %v4444 = vld [vmem:[%s3394 + $0x58] sm:$0xf]
    %v4445 = vld [vmem:[%s3394 + $0x60] sm:$0xf]
    %v4446 = vld [vmem:[%s3394 + $0x68] sm:$0xf]
    %v4447 = vld [vmem:[%s3394 + $0x70] sm:$0xf]
    %v4448 = vld [vmem:[%s3394 + $0x78] sm:$0xf]
    %v4449 = vld [vmem:[%s3394 + $0x80] sm:$0xf]
    %v4450 = vld [vmem:[%s3394 + $0x88] sm:$0xf]
    %v4451 = vld [vmem:[#allocation13 + $0x60] sm:$0xf]
    %v4452 = vld [vmem:[#allocation13 + $0x64] sm:$0xf]
    %v4453 = vld [vmem:[#allocation13 + $0x68] sm:$0xf]
    %v4454 = vld [vmem:[#allocation13 + $0x6c] sm:$0xf]
    %v4455 = vld [vmem:[#allocation13 + $0x70] sm:$0xf]
    %v4456 = vld [vmem:[#allocation13 + $0x74] sm:$0xf]
    %v4457 = vld [vmem:[#allocation13 + $0x78] sm:$0xf]
    %v4458 = vld [vmem:[#allocation13 + $0x7c] sm:$0xf]
    %v4475 = vunpack.c.l.b16 %v4435
    %v4476 = vunpack.c.l.b16 %v4436
    %v4477 = vunpack.c.l.b16 %v4437
    %v4478 = vunpack.c.l.b16 %v4438
    %v4479 = vunpack.c.l.b16 %v4439
    %v4480 = vunpack.c.l.b16 %v4440
    %v4481 = vunpack.c.l.b16 %v4441
    %v4482 = vunpack.c.l.b16 %v4442
    %v4483 = vunpack.c.l.b16 %v4443
    %v4484 = vunpack.c.l.b16 %v4444
    %v4485 = vunpack.c.l.b16 %v4445
    %v4486 = vunpack.c.l.b16 %v4446
    %v4487 = vunpack.c.l.b16 %v4447
    %v4488 = vunpack.c.l.b16 %v4448
    %v4489 = vunpack.c.l.b16 %v4449
    %v4490 = vunpack.c.l.b16 %v4450
    %v4491 = vpack.c.b16 %v4476, %v4475
    %v4492 = vpack.c.b16 %v4478, %v4477
    %v4493 = vpack.c.b16 %v4480, %v4479
    %v4494 = vpack.c.b16 %v4482, %v4481
    %v4495 = vpack.c.b16 %v4484, %v4483
    %v4496 = vpack.c.b16 %v4486, %v4485
    %v4497 = vpack.c.b16 %v4488, %v4487
    %v4498 = vpack.c.b16 %v4490, %v4489
    %v4507 = vunpack.c.l.b16 %v4451
    %v4508 = vunpack.c.l.b16 %v4452
    %v4509 = vunpack.c.l.b16 %v4453
    %v4510 = vunpack.c.l.b16 %v4454
    %v4511 = vunpack.c.l.b16 %v4455
    %v4512 = vunpack.c.l.b16 %v4456
    %v4513 = vunpack.c.l.b16 %v4457
    %v4514 = vunpack.c.l.b16 %v4458
    %v4515 = vpack.c.b16 %v4508, %v4507
    %v4516 = vpack.c.b16 %v4510, %v4509
    %v4517 = vpack.c.b16 %v4512, %v4511
    %v4518 = vpack.c.b16 %v4514, %v4513
    %v4524 = vsel %vm3820, %v4491, 0
    %v4527 = vsel %vm3820, %v4492, 0
    %v4530 = vsel %vm3820, %v4493, 0
    %v4533 = vsel %vm3820, %v4494, 0
    %v4536 = vsel %vm3820, %v4495, 0
    %v4539 = vsel %vm3820, %v4496, 0
    %v4542 = vsel %vm3820, %v4497, 0
    %v4545 = vsel %vm3820, %v4498, 0
    %4547 = vmatprep.subr.bf16.mxu0 0
    %4548 = vmatpush1.bf16.msra.mxu0 %v4515
    %4549 = vmatprep.subr.bf16.mxu0 0
    %4550 = vmatpush1.bf16.msra.mxu0 %v4516
    %4551 = vmatprep.subr.bf16.mxu0 0
    %4552 = vmatpush1.bf16.msra.mxu0 %v4517
    %4553 = vmatprep.subr.bf16.mxu0 0
    %4554 = vmatpush1.bf16.msra.mxu0 %v4518
    %4555 = vmatprep.subr.bf16.mxu0 0
    %4556 = vmatpush1.bf16.msra.mxu0 0
    %4557 = vmatprep.subr.bf16.mxu0 0
    %4558 = vmatpush1.bf16.msra.mxu0 0
    %4559 = vmatprep.subr.bf16.mxu0 0
    %4560 = vmatpush1.bf16.msra.mxu0 0
    %4561 = vmatprep.subr.bf16.mxu0 0
    %4562 = vmatpush1.bf16.msra.mxu0 0
    %4563 = vmatprep.subr.bf16.mxu0 0
    %4564 = vmatpush1.bf16.msra.mxu0 0
    %4565 = vmatprep.subr.bf16.mxu0 0
    %4566 = vmatpush1.bf16.msra.mxu0 0
    %4567 = vmatprep.subr.bf16.mxu0 0
    %4568 = vmatpush1.bf16.msra.mxu0 0
    %4569 = vmatprep.subr.bf16.mxu0 0
    %4570 = vmatpush1.bf16.msra.mxu0 0
    %4571 = vmatprep.subr.bf16.mxu0 0
    %4572 = vmatpush1.bf16.msra.mxu0 0
    %4573 = vmatprep.subr.bf16.mxu0 0
    %4574 = vmatpush1.bf16.msra.mxu0 0
    %4575 = vmatprep.subr.bf16.mxu0 0
    %4576 = vmatpush1.bf16.msra.mxu0 0
    %4577 = vmatprep.subr.bf16.mxu0 0
    %4578 = vmatpush1.bf16.msra.mxu0 0
    %4579 = vmatprep.mubr.bf16.mxu0 0
    %4580 = vmatmul.mubr.bf16.gmra.mrb[0].mxu0 %v4524
    %v4581 = vpop.f32.mrb[0].mxu0
    %v4582 = vadd.f32 0.0, %v4581
    %v4583 = vpop.f32.mrb[0].mxu0
    %v4584 = vpop.f32.mrb[0].mxu0
    %v4585 = vadd.f32 0.0, %v4584
    %v4586 = vpop.f32.mrb[0].mxu0
    %4587 = vmatprep.mubr.bf16.mxu0 0
    %4588 = vmatmul.mubr.bf16.gmra.mrb[0].mxu0 %v4527
    %v4589 = vpop.f32.mrb[0].mxu0
    %v4590 = vadd.f32 0.0, %v4589
    %v4591 = vpop.f32.mrb[0].mxu0
    %v4592 = vpop.f32.mrb[0].mxu0
    %v4593 = vadd.f32 0.0, %v4592
    %v4594 = vpop.f32.mrb[0].mxu0
    %4595 = vmatprep.mubr.bf16.mxu0 0
    %4596 = vmatmul.mubr.bf16.gmra.mrb[0].mxu0 %v4530
    %v4597 = vpop.f32.mrb[0].mxu0
    %v4598 = vadd.f32 0.0, %v4597
    %v4599 = vpop.f32.mrb[0].mxu0
    %v4600 = vpop.f32.mrb[0].mxu0
    %v4601 = vadd.f32 0.0, %v4600
    %v4602 = vpop.f32.mrb[0].mxu0
    %4603 = vmatprep.mubr.bf16.mxu0 0
    %4604 = vmatmul.mubr.bf16.gmra.mrb[0].mxu0 %v4533
    %v4605 = vpop.f32.mrb[0].mxu0
    %v4606 = vadd.f32 0.0, %v4605
    %v4607 = vpop.f32.mrb[0].mxu0
    %v4608 = vpop.f32.mrb[0].mxu0
    %v4609 = vadd.f32 0.0, %v4608
    %v4610 = vpop.f32.mrb[0].mxu0
    %4611 = vmatprep.mubr.bf16.mxu0 0
    %4612 = vmatmul.mubr.bf16.gmra.mrb[0].mxu0 %v4536
    %v4613 = vpop.f32.mrb[0].mxu0
    %v4614 = vadd.f32 0.0, %v4613
    %v4615 = vpop.f32.mrb[0].mxu0
    %v4616 = vpop.f32.mrb[0].mxu0
    %v4617 = vadd.f32 0.0, %v4616
    %v4618 = vpop.f32.mrb[0].mxu0
    %4619 = vmatprep.mubr.bf16.mxu0 0
    %4620 = vmatmul.mubr.bf16.gmra.mrb[0].mxu0 %v4539
    %v4621 = vpop.f32.mrb[0].mxu0
    %v4622 = vadd.f32 0.0, %v4621
    %v4623 = vpop.f32.mrb[0].mxu0
    %v4624 = vpop.f32.mrb[0].mxu0
    %v4625 = vadd.f32 0.0, %v4624
    %v4626 = vpop.f32.mrb[0].mxu0
    %4627 = vmatprep.mubr.bf16.mxu0 0
    %4628 = vmatmul.mubr.bf16.gmra.mrb[0].mxu0 %v4542
    %v4629 = vpop.f32.mrb[0].mxu0
    %v4630 = vadd.f32 0.0, %v4629
    %v4631 = vpop.f32.mrb[0].mxu0
    %v4632 = vpop.f32.mrb[0].mxu0
    %v4633 = vadd.f32 0.0, %v4632
    %v4634 = vpop.f32.mrb[0].mxu0
    %4635 = vmatprep.mubr.bf16.mxu0 0
    %4636 = vmatmul.mubr.bf16.gmra.mrb[0].mxu0 %v4545
    %v4637 = vpop.f32.mrb[0].mxu0
    %v4638 = vadd.f32 0.0, %v4637
    %v4639 = vpop.f32.mrb[0].mxu0
    %v4640 = vpop.f32.mrb[0].mxu0
    %v4641 = vadd.f32 0.0, %v4640
    %v4642 = vpop.f32.mrb[0].mxu0
    %4643 = vdwg.mxu0
    %v4644 = vadd.f32 %v4419, %v4582
    %v4645 = vadd.f32 %v4420, %v4585
    %v4646 = vadd.f32 %v4421, %v4590
    %v4647 = vadd.f32 %v4422, %v4593
    %v4648 = vadd.f32 %v4423, %v4598
    %v4649 = vadd.f32 %v4424, %v4601
    %v4650 = vadd.f32 %v4425, %v4606
    %v4651 = vadd.f32 %v4426, %v4609
    %v4652 = vadd.f32 %v4427, %v4614
    %v4653 = vadd.f32 %v4428, %v4617
    %v4654 = vadd.f32 %v4429, %v4622
    %v4655 = vadd.f32 %v4430, %v4625
    %v4656 = vadd.f32 %v4431, %v4630
    %v4657 = vadd.f32 %v4432, %v4633
    %v4658 = vadd.f32 %v4433, %v4638
    %v4659 = vadd.f32 %v4434, %v4641
    %v4660 = vld [vmem:[%s3394] sm:$0xf]
    %v4661 = vld [vmem:[%s3394 + $0x4] sm:$0x1]
    %v4662 = vld [vmem:[%s3394 + $0x8] sm:$0xf]
    %v4663 = vld [vmem:[%s3394 + $0xc] sm:$0x1]
    %v4664 = vld [vmem:[%s3394 + $0x10] sm:$0xf]
    %v4665 = vld [vmem:[%s3394 + $0x14] sm:$0x1]
    %v4666 = vld [vmem:[%s3394 + $0x18] sm:$0xf]
    %v4667 = vld [vmem:[%s3394 + $0x1c] sm:$0x1]
    %v4668 = vld [vmem:[%s3394 + $0x20] sm:$0xf]
    %v4669 = vld [vmem:[%s3394 + $0x24] sm:$0x1]
    %v4670 = vld [vmem:[%s3394 + $0x28] sm:$0xf]
    %v4671 = vld [vmem:[%s3394 + $0x2c] sm:$0x1]
    %v4672 = vld [vmem:[%s3394 + $0x30] sm:$0xf]
    %v4673 = vld [vmem:[%s3394 + $0x34] sm:$0x1]
    %v4674 = vld [vmem:[%s3394 + $0x38] sm:$0xf]
    %v4675 = vld [vmem:[%s3394 + $0x3c] sm:$0x1]
    %v4676 = vld [vmem:[%s3394 + $0x50] sm:$0xf]
    %v4677 = vld [vmem:[%s3394 + $0x54] sm:$0x1]
    %v4678 = vld [vmem:[%s3394 + $0x58] sm:$0xf]
    %v4679 = vld [vmem:[%s3394 + $0x5c] sm:$0x1]
    %v4680 = vld [vmem:[%s3394 + $0x60] sm:$0xf]
    %v4681 = vld [vmem:[%s3394 + $0x64] sm:$0x1]
    %v4682 = vld [vmem:[%s3394 + $0x68] sm:$0xf]
    %v4683 = vld [vmem:[%s3394 + $0x6c] sm:$0x1]
    %v4684 = vld [vmem:[%s3394 + $0x70] sm:$0xf]
    %v4685 = vld [vmem:[%s3394 + $0x74] sm:$0x1]
    %v4686 = vld [vmem:[%s3394 + $0x78] sm:$0xf]
    %v4687 = vld [vmem:[%s3394 + $0x7c] sm:$0x1]
    %v4688 = vld [vmem:[%s3394 + $0x80] sm:$0xf]
    %v4689 = vld [vmem:[%s3394 + $0x84] sm:$0x1]
    %v4690 = vld [vmem:[%s3394 + $0x88] sm:$0xf]
    %v4691 = vld [vmem:[%s3394 + $0x8c] sm:$0x1]
    %v4693 = vshrl.u32 %v4660, 16
    %v4695 = vrot.slane %v4693, 4
    %v4696 = vshll.u32 %v4660, 16
    %v4698 = vrot.slane %v4696, 5
    %v4699 = vor.u32 %v4695, %v4698
    %v4700 = vrot.slane %v4699, 4
    %v4702 = vshll.u32 %v4661, 16
    %v4704 = vrot.slane %v4702, 5
    %v4705 = vsel %vm3539, %v4700, %v4704
    %v4707 = vshrl.u32 %v4662, 16
    %v4709 = vrot.slane %v4707, 4
    %v4710 = vshll.u32 %v4662, 16
    %v4712 = vrot.slane %v4710, 5
    %v4713 = vor.u32 %v4709, %v4712
    %v4714 = vrot.slane %v4713, 4
    %v4716 = vshll.u32 %v4663, 16
    %v4718 = vrot.slane %v4716, 5
    %v4719 = vsel %vm3539, %v4714, %v4718
    %v4721 = vshrl.u32 %v4664, 16
    %v4723 = vrot.slane %v4721, 4
    %v4724 = vshll.u32 %v4664, 16
    %v4726 = vrot.slane %v4724, 5
    %v4727 = vor.u32 %v4723, %v4726
    %v4728 = vrot.slane %v4727, 4
    %v4730 = vshll.u32 %v4665, 16
    %v4732 = vrot.slane %v4730, 5
    %v4733 = vsel %vm3539, %v4728, %v4732
    %v4735 = vshrl.u32 %v4666, 16
    %v4737 = vrot.slane %v4735, 4
    %v4738 = vshll.u32 %v4666, 16
    %v4740 = vrot.slane %v4738, 5
    %v4741 = vor.u32 %v4737, %v4740
    %v4742 = vrot.slane %v4741, 4
    %v4744 = vshll.u32 %v4667, 16
    %v4746 = vrot.slane %v4744, 5
    %v4747 = vsel %vm3539, %v4742, %v4746
    %v4749 = vshrl.u32 %v4668, 16
    %v4751 = vrot.slane %v4749, 4
    %v4752 = vshll.u32 %v4668, 16
    %v4754 = vrot.slane %v4752, 5
    %v4755 = vor.u32 %v4751, %v4754
    %v4756 = vrot.slane %v4755, 4
    %v4758 = vshll.u32 %v4669, 16
    %v4760 = vrot.slane %v4758, 5
    %v4761 = vsel %vm3539, %v4756, %v4760
    %v4763 = vshrl.u32 %v4670, 16
    %v4765 = vrot.slane %v4763, 4
    %v4766 = vshll.u32 %v4670, 16
    %v4768 = vrot.slane %v4766, 5
    %v4769 = vor.u32 %v4765, %v4768
    %v4770 = vrot.slane %v4769, 4
    %v4772 = vshll.u32 %v4671, 16
    %v4774 = vrot.slane %v4772, 5
    %v4775 = vsel %vm3539, %v4770, %v4774
    %v4777 = vshrl.u32 %v4672, 16
    %v4779 = vrot.slane %v4777, 4
    %v4780 = vshll.u32 %v4672, 16
    %v4782 = vrot.slane %v4780, 5
    %v4783 = vor.u32 %v4779, %v4782
    %v4784 = vrot.slane %v4783, 4
    %v4786 = vshll.u32 %v4673, 16
    %v4788 = vrot.slane %v4786, 5
    %v4789 = vsel %vm3539, %v4784, %v4788
    %v4791 = vshrl.u32 %v4674, 16
    %v4793 = vrot.slane %v4791, 4
    %v4794 = vshll.u32 %v4674, 16
    %v4796 = vrot.slane %v4794, 5
    %v4797 = vor.u32 %v4793, %v4796
    %v4798 = vrot.slane %v4797, 4
    %v4800 = vshll.u32 %v4675, 16
    %v4802 = vrot.slane %v4800, 5
    %v4803 = vsel %vm3539, %v4798, %v4802
    %v4805 = vshrl.u32 %v4676, 16
    %v4807 = vrot.slane %v4805, 4
    %v4808 = vshll.u32 %v4676, 16
    %v4810 = vrot.slane %v4808, 5
    %v4811 = vor.u32 %v4807, %v4810
    %v4812 = vrot.slane %v4811, 4
    %v4814 = vshll.u32 %v4677, 16
    %v4816 = vrot.slane %v4814, 5
    %v4817 = vsel %vm3539, %v4812, %v4816
    %v4819 = vshrl.u32 %v4678, 16
    %v4821 = vrot.slane %v4819, 4
    %v4822 = vshll.u32 %v4678, 16
    %v4824 = vrot.slane %v4822, 5
    %v4825 = vor.u32 %v4821, %v4824
    %v4826 = vrot.slane %v4825, 4
    %v4828 = vshll.u32 %v4679, 16
    %v4830 = vrot.slane %v4828, 5
    %v4831 = vsel %vm3539, %v4826, %v4830
    %v4833 = vshrl.u32 %v4680, 16
    %v4835 = vrot.slane %v4833, 4
    %v4836 = vshll.u32 %v4680, 16
    %v4838 = vrot.slane %v4836, 5
    %v4839 = vor.u32 %v4835, %v4838
    %v4840 = vrot.slane %v4839, 4
    %v4842 = vshll.u32 %v4681, 16
    %v4844 = vrot.slane %v4842, 5
    %v4845 = vsel %vm3539, %v4840, %v4844
    %v4847 = vshrl.u32 %v4682, 16
    %v4849 = vrot.slane %v4847, 4
    %v4850 = vshll.u32 %v4682, 16
    %v4852 = vrot.slane %v4850, 5
    %v4853 = vor.u32 %v4849, %v4852
    %v4854 = vrot.slane %v4853, 4
    %v4856 = vshll.u32 %v4683, 16
    %v4858 = vrot.slane %v4856, 5
    %v4859 = vsel %vm3539, %v4854, %v4858
    %v4861 = vshrl.u32 %v4684, 16
    %v4863 = vrot.slane %v4861, 4
    %v4864 = vshll.u32 %v4684, 16
    %v4866 = vrot.slane %v4864, 5
    %v4867 = vor.u32 %v4863, %v4866
    %v4868 = vrot.slane %v4867, 4
    %v4870 = vshll.u32 %v4685, 16
    %v4872 = vrot.slane %v4870, 5
    %v4873 = vsel %vm3539, %v4868, %v4872
    %v4875 = vshrl.u32 %v4686, 16
    %v4877 = vrot.slane %v4875, 4
    %v4878 = vshll.u32 %v4686, 16
    %v4880 = vrot.slane %v4878, 5
    %v4881 = vor.u32 %v4877, %v4880
    %v4882 = vrot.slane %v4881, 4
    %v4884 = vshll.u32 %v4687, 16
    %v4886 = vrot.slane %v4884, 5
    %v4887 = vsel %vm3539, %v4882, %v4886
    %v4889 = vshrl.u32 %v4688, 16
    %v4891 = vrot.slane %v4889, 4
    %v4892 = vshll.u32 %v4688, 16
    %v4894 = vrot.slane %v4892, 5
    %v4895 = vor.u32 %v4891, %v4894
    %v4896 = vrot.slane %v4895, 4
    %v4898 = vshll.u32 %v4689, 16
    %v4900 = vrot.slane %v4898, 5
    %v4901 = vsel %vm3539, %v4896, %v4900
    %v4903 = vshrl.u32 %v4690, 16
    %v4905 = vrot.slane %v4903, 4
    %v4906 = vshll.u32 %v4690, 16
    %v4908 = vrot.slane %v4906, 5
    %v4909 = vor.u32 %v4905, %v4908
    %v4910 = vrot.slane %v4909, 4
    %v4912 = vshll.u32 %v4691, 16
    %v4914 = vrot.slane %v4912, 5
    %v4915 = vsel %vm3539, %v4910, %v4914
    %v4916 = vld [vmem:[#allocation13 + $0x80] sm:$0xf]
    %v4917 = vld [vmem:[#allocation13 + $0x84] sm:$0xf]
    %v4918 = vld [vmem:[#allocation13 + $0x88] sm:$0xf]
    %v4919 = vld [vmem:[#allocation13 + $0x8c] sm:$0xf]
    %v4920 = vld [vmem:[#allocation13 + $0x90] sm:$0xf]
    %v4921 = vld [vmem:[#allocation13 + $0x94] sm:$0xf]
    %v4922 = vld [vmem:[#allocation13 + $0x98] sm:$0xf]
    %v4923 = vld [vmem:[#allocation13 + $0x9c] sm:$0xf]
    %v4924 = vunpack.c.l.b16 %v4705
    %v4925 = vunpack.c.l.b16 %v4719
    %v4926 = vunpack.c.l.b16 %v4733
    %v4927 = vunpack.c.l.b16 %v4747
    %v4928 = vunpack.c.l.b16 %v4761
    %v4929 = vunpack.c.l.b16 %v4775
    %v4930 = vunpack.c.l.b16 %v4789
    %v4931 = vunpack.c.l.b16 %v4803
    %v4932 = vunpack.c.l.b16 %v4817
    %v4933 = vunpack.c.l.b16 %v4831
    %v4934 = vunpack.c.l.b16 %v4845
    %v4935 = vunpack.c.l.b16 %v4859
    %v4936 = vunpack.c.l.b16 %v4873
    %v4937 = vunpack.c.l.b16 %v4887
    %v4938 = vunpack.c.l.b16 %v4901
    %v4939 = vunpack.c.l.b16 %v4915
    %v4940 = vpack.c.b16 %v4925, %v4924
    %v4941 = vpack.c.b16 %v4927, %v4926
    %v4942 = vpack.c.b16 %v4929, %v4928
    %v4943 = vpack.c.b16 %v4931, %v4930
    %v4944 = vpack.c.b16 %v4933, %v4932
    %v4945 = vpack.c.b16 %v4935, %v4934
    %v4946 = vpack.c.b16 %v4937, %v4936
    %v4947 = vpack.c.b16 %v4939, %v4938
    %v4956 = vunpack.c.l.b16 %v4916
    %v4957 = vunpack.c.l.b16 %v4917
    %v4958 = vunpack.c.l.b16 %v4918
    %v4959 = vunpack.c.l.b16 %v4919
    %v4960 = vunpack.c.l.b16 %v4920
    %v4961 = vunpack.c.l.b16 %v4921
    %v4962 = vunpack.c.l.b16 %v4922
    %v4963 = vunpack.c.l.b16 %v4923
    %v4964 = vpack.c.b16 %v4957, %v4956
    %v4965 = vpack.c.b16 %v4959, %v4958
    %v4966 = vpack.c.b16 %v4961, %v4960
    %v4967 = vpack.c.b16 %v4963, %v4962
    %v4973 = vsel %vm3820, %v4940, 0
    %v4976 = vsel %vm3820, %v4941, 0
    %v4979 = vsel %vm3820, %v4942, 0
    %v4982 = vsel %vm3820, %v4943, 0
    %v4985 = vsel %vm3820, %v4944, 0
    %v4988 = vsel %vm3820, %v4945, 0
    %v4991 = vsel %vm3820, %v4946, 0
    %v4994 = vsel %vm3820, %v4947, 0
    %4996 = vmatprep.subr.bf16.mxu0 0
    %4997 = vmatpush1.bf16.msra.mxu0 %v4964
    %4998 = vmatprep.subr.bf16.mxu0 0
    %4999 = vmatpush1.bf16.msra.mxu0 %v4965
    %5000 = vmatprep.subr.bf16.mxu0 0
    %5001 = vmatpush1.bf16.msra.mxu0 %v4966
    %5002 = vmatprep.subr.bf16.mxu0 0
    %5003 = vmatpush1.bf16.msra.mxu0 %v4967
    %5004 = vmatprep.subr.bf16.mxu0 0
    %5005 = vmatpush1.bf16.msra.mxu0 0
    %5006 = vmatprep.subr.bf16.mxu0 0
    %5007 = vmatpush1.bf16.msra.mxu0 0
    %5008 = vmatprep.subr.bf16.mxu0 0
    %5009 = vmatpush1.bf16.msra.mxu0 0
    %5010 = vmatprep.subr.bf16.mxu0 0
    %5011 = vmatpush1.bf16.msra.mxu0 0
    %5012 = vmatprep.subr.bf16.mxu0 0
    %5013 = vmatpush1.bf16.msra.mxu0 0
    %5014 = vmatprep.subr.bf16.mxu0 0
    %5015 = vmatpush1.bf16.msra.mxu0 0
    %5016 = vmatprep.subr.bf16.mxu0 0
    %5017 = vmatpush1.bf16.msra.mxu0 0
    %5018 = vmatprep.subr.bf16.mxu0 0
    %5019 = vmatpush1.bf16.msra.mxu0 0
    %5020 = vmatprep.subr.bf16.mxu0 0
    %5021 = vmatpush1.bf16.msra.mxu0 0
    %5022 = vmatprep.subr.bf16.mxu0 0
    %5023 = vmatpush1.bf16.msra.mxu0 0
    %5024 = vmatprep.subr.bf16.mxu0 0
    %5025 = vmatpush1.bf16.msra.mxu0 0
    %5026 = vmatprep.subr.bf16.mxu0 0
    %5027 = vmatpush1.bf16.msra.mxu0 0
    %5028 = vmatprep.mubr.bf16.mxu0 0
    %5029 = vmatmul.mubr.bf16.gmra.mrb[0].mxu0 %v4973
    %v5030 = vpop.f32.mrb[0].mxu0
    %v5031 = vadd.f32 0.0, %v5030
    %v5032 = vpop.f32.mrb[0].mxu0
    %v5033 = vpop.f32.mrb[0].mxu0
    %v5034 = vadd.f32 0.0, %v5033
    %v5035 = vpop.f32.mrb[0].mxu0
    %5036 = vmatprep.mubr.bf16.mxu0 0
    %5037 = vmatmul.mubr.bf16.gmra.mrb[0].mxu0 %v4976
    %v5038 = vpop.f32.mrb[0].mxu0
    %v5039 = vadd.f32 0.0, %v5038
    %v5040 = vpop.f32.mrb[0].mxu0
    %v5041 = vpop.f32.mrb[0].mxu0
    %v5042 = vadd.f32 0.0, %v5041
    %v5043 = vpop.f32.mrb[0].mxu0
    %5044 = vmatprep.mubr.bf16.mxu0 0
    %5045 = vmatmul.mubr.bf16.gmra.mrb[0].mxu0 %v4979
    %v5046 = vpop.f32.mrb[0].mxu0
    %v5047 = vadd.f32 0.0, %v5046
    %v5048 = vpop.f32.mrb[0].mxu0
    %v5049 = vpop.f32.mrb[0].mxu0
    %v5050 = vadd.f32 0.0, %v5049
    %v5051 = vpop.f32.mrb[0].mxu0
    %5052 = vmatprep.mubr.bf16.mxu0 0
    %5053 = vmatmul.mubr.bf16.gmra.mrb[0].mxu0 %v4982
    %v5054 = vpop.f32.mrb[0].mxu0
    %v5055 = vadd.f32 0.0, %v5054
    %v5056 = vpop.f32.mrb[0].mxu0
    %v5057 = vpop.f32.mrb[0].mxu0
    %v5058 = vadd.f32 0.0, %v5057
    %v5059 = vpop.f32.mrb[0].mxu0
    %5060 = vmatprep.mubr.bf16.mxu0 0
    %5061 = vmatmul.mubr.bf16.gmra.mrb[0].mxu0 %v4985
    %v5062 = vpop.f32.mrb[0].mxu0
    %v5063 = vadd.f32 0.0, %v5062
    %v5064 = vpop.f32.mrb[0].mxu0
    %v5065 = vpop.f32.mrb[0].mxu0
    %v5066 = vadd.f32 0.0, %v5065
    %v5067 = vpop.f32.mrb[0].mxu0
    %5068 = vmatprep.mubr.bf16.mxu0 0
    %5069 = vmatmul.mubr.bf16.gmra.mrb[0].mxu0 %v4988
    %v5070 = vpop.f32.mrb[0].mxu0
    %v5071 = vadd.f32 0.0, %v5070
    %v5072 = vpop.f32.mrb[0].mxu0
    %v5073 = vpop.f32.mrb[0].mxu0
    %v5074 = vadd.f32 0.0, %v5073
    %v5075 = vpop.f32.mrb[0].mxu0
    %5076 = vmatprep.mubr.bf16.mxu0 0
    %5077 = vmatmul.mubr.bf16.gmra.mrb[0].mxu0 %v4991
    %v5078 = vpop.f32.mrb[0].mxu0
    %v5079 = vadd.f32 0.0, %v5078
    %v5080 = vpop.f32.mrb[0].mxu0
    %v5081 = vpop.f32.mrb[0].mxu0
    %v5082 = vadd.f32 0.0, %v5081
    %v5083 = vpop.f32.mrb[0].mxu0
    %5084 = vmatprep.mubr.bf16.mxu0 0
    %5085 = vmatmul.mubr.bf16.gmra.mrb[0].mxu0 %v4994
    %v5086 = vpop.f32.mrb[0].mxu0
    %v5087 = vadd.f32 0.0, %v5086
    %v5088 = vpop.f32.mrb[0].mxu0
    %v5089 = vpop.f32.mrb[0].mxu0
    %v5090 = vadd.f32 0.0, %v5089
    %v5091 = vpop.f32.mrb[0].mxu0
    %5092 = vdwg.mxu0
    %v5093 = vadd.f32 %v4644, %v5031
    %v5094 = vadd.f32 %v4645, %v5034
    %v5095 = vadd.f32 %v4646, %v5039
    %v5096 = vadd.f32 %v4647, %v5042
    %v5097 = vadd.f32 %v4648, %v5047
    %v5098 = vadd.f32 %v4649, %v5050
    %v5099 = vadd.f32 %v4650, %v5055
    %v5100 = vadd.f32 %v4651, %v5058
    %v5101 = vadd.f32 %v4652, %v5063
    %v5102 = vadd.f32 %v4653, %v5066
    %v5103 = vadd.f32 %v4654, %v5071
    %v5104 = vadd.f32 %v4655, %v5074
    %v5105 = vadd.f32 %v4656, %v5079
    %v5106 = vadd.f32 %v4657, %v5082
    %v5107 = vadd.f32 %v4658, %v5087
    %v5108 = vadd.f32 %v4659, %v5090
    %v5109 = vld [vmem:[%s3394] sm:$0xe]
    %v5110 = vld [vmem:[%s3394 + $0x8] sm:$0xe]
    %v5111 = vld [vmem:[%s3394 + $0x10] sm:$0xe]
    %v5112 = vld [vmem:[%s3394 + $0x18] sm:$0xe]
    %v5113 = vld [vmem:[%s3394 + $0x20] sm:$0xe]
    %v5114 = vld [vmem:[%s3394 + $0x28] sm:$0xe]
    %v5115 = vld [vmem:[%s3394 + $0x30] sm:$0xe]
    %v5116 = vld [vmem:[%s3394 + $0x38] sm:$0xe]
    %v5117 = vld [vmem:[%s3394 + $0x50] sm:$0xe]
    %v5118 = vld [vmem:[%s3394 + $0x58] sm:$0xe]
    %v5119 = vld [vmem:[%s3394 + $0x60] sm:$0xe]
    %v5120 = vld [vmem:[%s3394 + $0x68] sm:$0xe]
    %v5121 = vld [vmem:[%s3394 + $0x70] sm:$0xe]
    %v5122 = vld [vmem:[%s3394 + $0x78] sm:$0xe]
    %v5123 = vld [vmem:[%s3394 + $0x80] sm:$0xe]
    %v5124 = vld [vmem:[%s3394 + $0x88] sm:$0xe]
    %v5157 = vrot.slane %v5109, 5
    %v5158 = vrot.slane %v5157, 4
    %v5159 = vrot.slane %v4661, 5
    %v5160 = vsel %vm4177, %v5158, %v5159
    %v5161 = vrot.slane %v5110, 5
    %v5162 = vrot.slane %v5161, 4
    %v5163 = vrot.slane %v4663, 5
    %v5164 = vsel %vm4177, %v5162, %v5163
    %v5165 = vrot.slane %v5111, 5
    %v5166 = vrot.slane %v5165, 4
    %v5167 = vrot.slane %v4665, 5
    %v5168 = vsel %vm4177, %v5166, %v5167
    %v5169 = vrot.slane %v5112, 5
    %v5170 = vrot.slane %v5169, 4
    %v5171 = vrot.slane %v4667, 5
    %v5172 = vsel %vm4177, %v5170, %v5171
    %v5173 = vrot.slane %v5113, 5
    %v5174 = vrot.slane %v5173, 4
    %v5175 = vrot.slane %v4669, 5
    %v5176 = vsel %vm4177, %v5174, %v5175
    %v5177 = vrot.slane %v5114, 5
    %v5178 = vrot.slane %v5177, 4
    %v5179 = vrot.slane %v4671, 5
    %v5180 = vsel %vm4177, %v5178, %v5179
    %v5181 = vrot.slane %v5115, 5
    %v5182 = vrot.slane %v5181, 4
    %v5183 = vrot.slane %v4673, 5
    %v5184 = vsel %vm4177, %v5182, %v5183
    %v5185 = vrot.slane %v5116, 5
    %v5186 = vrot.slane %v5185, 4
    %v5187 = vrot.slane %v4675, 5
    %v5188 = vsel %vm4177, %v5186, %v5187
    %v5189 = vrot.slane %v5117, 5
    %v5190 = vrot.slane %v5189, 4
    %v5191 = vrot.slane %v4677, 5
    %v5192 = vsel %vm4177, %v5190, %v5191
    %v5193 = vrot.slane %v5118, 5
    %v5194 = vrot.slane %v5193, 4
    %v5195 = vrot.slane %v4679, 5
    %v5196 = vsel %vm4177, %v5194, %v5195
    %v5197 = vrot.slane %v5119, 5
    %v5198 = vrot.slane %v5197, 4
    %v5199 = vrot.slane %v4681, 5
    %v5200 = vsel %vm4177, %v5198, %v5199
    %v5201 = vrot.slane %v5120, 5
    %v5202 = vrot.slane %v5201, 4
    %v5203 = vrot.slane %v4683, 5
    %v5204 = vsel %vm4177, %v5202, %v5203
    %v5205 = vrot.slane %v5121, 5
    %v5206 = vrot.slane %v5205, 4
    %v5207 = vrot.slane %v4685, 5
    %v5208 = vsel %vm4177, %v5206, %v5207
    %v5209 = vrot.slane %v5122, 5
    %v5210 = vrot.slane %v5209, 4
    %v5211 = vrot.slane %v4687, 5
    %v5212 = vsel %vm4177, %v5210, %v5211
    %v5213 = vrot.slane %v5123, 5
    %v5214 = vrot.slane %v5213, 4
    %v5215 = vrot.slane %v4689, 5
    %v5216 = vsel %vm4177, %v5214, %v5215
    %v5217 = vrot.slane %v5124, 5
    %v5218 = vrot.slane %v5217, 4
    %v5219 = vrot.slane %v4691, 5
    %v5220 = vsel %vm4177, %v5218, %v5219
    %v5221 = vld [vmem:[#allocation13 + $0xa0] sm:$0xf]
    %v5222 = vld [vmem:[#allocation13 + $0xa4] sm:$0xf]
    %v5223 = vld [vmem:[#allocation13 + $0xa8] sm:$0xf]
    %v5224 = vld [vmem:[#allocation13 + $0xac] sm:$0xf]
    %v5225 = vld [vmem:[#allocation13 + $0xb0] sm:$0xf]
    %v5226 = vld [vmem:[#allocation13 + $0xb4] sm:$0xf]
    %v5227 = vld [vmem:[#allocation13 + $0xb8] sm:$0xf]
    %v5228 = vld [vmem:[#allocation13 + $0xbc] sm:$0xf]
    %v5229 = vunpack.c.l.b16 %v5160
    %v5230 = vunpack.c.l.b16 %v5164
    %v5231 = vunpack.c.l.b16 %v5168
    %v5232 = vunpack.c.l.b16 %v5172
    %v5233 = vunpack.c.l.b16 %v5176
    %v5234 = vunpack.c.l.b16 %v5180
    %v5235 = vunpack.c.l.b16 %v5184
    %v5236 = vunpack.c.l.b16 %v5188
    %v5237 = vunpack.c.l.b16 %v5192
    %v5238 = vunpack.c.l.b16 %v5196
    %v5239 = vunpack.c.l.b16 %v5200
    %v5240 = vunpack.c.l.b16 %v5204
    %v5241 = vunpack.c.l.b16 %v5208
    %v5242 = vunpack.c.l.b16 %v5212
    %v5243 = vunpack.c.l.b16 %v5216
    %v5244 = vunpack.c.l.b16 %v5220
    %v5245 = vpack.c.b16 %v5230, %v5229
    %v5246 = vpack.c.b16 %v5232, %v5231
    %v5247 = vpack.c.b16 %v5234, %v5233
    %v5248 = vpack.c.b16 %v5236, %v5235
    %v5249 = vpack.c.b16 %v5238, %v5237
    %v5250 = vpack.c.b16 %v5240, %v5239
    %v5251 = vpack.c.b16 %v5242, %v5241
    %v5252 = vpack.c.b16 %v5244, %v5243
    %v5261 = vunpack.c.l.b16 %v5221
    %v5262 = vunpack.c.l.b16 %v5222
    %v5263 = vunpack.c.l.b16 %v5223
    %v5264 = vunpack.c.l.b16 %v5224
    %v5265 = vunpack.c.l.b16 %v5225
    %v5266 = vunpack.c.l.b16 %v5226
    %v5267 = vunpack.c.l.b16 %v5227
    %v5268 = vunpack.c.l.b16 %v5228
    %v5269 = vpack.c.b16 %v5262, %v5261
    %v5270 = vpack.c.b16 %v5264, %v5263
    %v5271 = vpack.c.b16 %v5266, %v5265
    %v5272 = vpack.c.b16 %v5268, %v5267
    %v5278 = vsel %vm3820, %v5245, 0
    %v5281 = vsel %vm3820, %v5246, 0
    %v5284 = vsel %vm3820, %v5247, 0
    %v5287 = vsel %vm3820, %v5248, 0
    %v5290 = vsel %vm3820, %v5249, 0
    %v5293 = vsel %vm3820, %v5250, 0
    %v5296 = vsel %vm3820, %v5251, 0
    %v5299 = vsel %vm3820, %v5252, 0
    %5301 = vmatprep.subr.bf16.mxu0 0
    %5302 = vmatpush1.bf16.msra.mxu0 %v5269
    %5303 = vmatprep.subr.bf16.mxu0 0
    %5304 = vmatpush1.bf16.msra.mxu0 %v5270
    %5305 = vmatprep.subr.bf16.mxu0 0
    %5306 = vmatpush1.bf16.msra.mxu0 %v5271
    %5307 = vmatprep.subr.bf16.mxu0 0
    %5308 = vmatpush1.bf16.msra.mxu0 %v5272
    %5309 = vmatprep.subr.bf16.mxu0 0
    %5310 = vmatpush1.bf16.msra.mxu0 0
    %5311 = vmatprep.subr.bf16.mxu0 0
    %5312 = vmatpush1.bf16.msra.mxu0 0
    %5313 = vmatprep.subr.bf16.mxu0 0
    %5314 = vmatpush1.bf16.msra.mxu0 0
    %5315 = vmatprep.subr.bf16.mxu0 0
    %5316 = vmatpush1.bf16.msra.mxu0 0
    %5317 = vmatprep.subr.bf16.mxu0 0
    %5318 = vmatpush1.bf16.msra.mxu0 0
    %5319 = vmatprep.subr.bf16.mxu0 0
    %5320 = vmatpush1.bf16.msra.mxu0 0
    %5321 = vmatprep.subr.bf16.mxu0 0
    %5322 = vmatpush1.bf16.msra.mxu0 0
    %5323 = vmatprep.subr.bf16.mxu0 0
    %5324 = vmatpush1.bf16.msra.mxu0 0
    %5325 = vmatprep.subr.bf16.mxu0 0
    %5326 = vmatpush1.bf16.msra.mxu0 0
    %5327 = vmatprep.subr.bf16.mxu0 0
    %5328 = vmatpush1.bf16.msra.mxu0 0
    %5329 = vmatprep.subr.bf16.mxu0 0
    %5330 = vmatpush1.bf16.msra.mxu0 0
    %5331 = vmatprep.subr.bf16.mxu0 0
    %5332 = vmatpush1.bf16.msra.mxu0 0
    %5333 = vmatprep.mubr.bf16.mxu0 0
    %5334 = vmatmul.mubr.bf16.gmra.mrb[0].mxu0 %v5278
    %v5335 = vpop.f32.mrb[0].mxu0
    %v5336 = vadd.f32 0.0, %v5335
    %v5337 = vpop.f32.mrb[0].mxu0
    %v5338 = vpop.f32.mrb[0].mxu0
    %v5339 = vadd.f32 0.0, %v5338
    %v5340 = vpop.f32.mrb[0].mxu0
    %5341 = vmatprep.mubr.bf16.mxu0 0
    %5342 = vmatmul.mubr.bf16.gmra.mrb[0].mxu0 %v5281
    %v5343 = vpop.f32.mrb[0].mxu0
    %v5344 = vadd.f32 0.0, %v5343
    %v5345 = vpop.f32.mrb[0].mxu0
    %v5346 = vpop.f32.mrb[0].mxu0
    %v5347 = vadd.f32 0.0, %v5346
    %v5348 = vpop.f32.mrb[0].mxu0
    %5349 = vmatprep.mubr.bf16.mxu0 0
    %5350 = vmatmul.mubr.bf16.gmra.mrb[0].mxu0 %v5284
    %v5351 = vpop.f32.mrb[0].mxu0
    %v5352 = vadd.f32 0.0, %v5351
    %v5353 = vpop.f32.mrb[0].mxu0
    %v5354 = vpop.f32.mrb[0].mxu0
    %v5355 = vadd.f32 0.0, %v5354
    %v5356 = vpop.f32.mrb[0].mxu0
    %5357 = vmatprep.mubr.bf16.mxu0 0
    %5358 = vmatmul.mubr.bf16.gmra.mrb[0].mxu0 %v5287
    %v5359 = vpop.f32.mrb[0].mxu0
    %v5360 = vadd.f32 0.0, %v5359
    %v5361 = vpop.f32.mrb[0].mxu0
    %v5362 = vpop.f32.mrb[0].mxu0
    %v5363 = vadd.f32 0.0, %v5362
    %v5364 = vpop.f32.mrb[0].mxu0
    %5365 = vmatprep.mubr.bf16.mxu0 0
    %5366 = vmatmul.mubr.bf16.gmra.mrb[0].mxu0 %v5290
    %v5367 = vpop.f32.mrb[0].mxu0
    %v5368 = vadd.f32 0.0, %v5367
    %v5369 = vpop.f32.mrb[0].mxu0
    %v5370 = vpop.f32.mrb[0].mxu0
    %v5371 = vadd.f32 0.0, %v5370
    %v5372 = vpop.f32.mrb[0].mxu0
    %5373 = vmatprep.mubr.bf16.mxu0 0
    %5374 = vmatmul.mubr.bf16.gmra.mrb[0].mxu0 %v5293
    %v5375 = vpop.f32.mrb[0].mxu0
    %v5376 = vadd.f32 0.0, %v5375
    %v5377 = vpop.f32.mrb[0].mxu0
    %v5378 = vpop.f32.mrb[0].mxu0
    %v5379 = vadd.f32 0.0, %v5378
    %v5380 = vpop.f32.mrb[0].mxu0
    %5381 = vmatprep.mubr.bf16.mxu0 0
    %5382 = vmatmul.mubr.bf16.gmra.mrb[0].mxu0 %v5296
    %v5383 = vpop.f32.mrb[0].mxu0
    %v5384 = vadd.f32 0.0, %v5383
    %v5385 = vpop.f32.mrb[0].mxu0
    %v5386 = vpop.f32.mrb[0].mxu0
    %v5387 = vadd.f32 0.0, %v5386
    %v5388 = vpop.f32.mrb[0].mxu0
    %5389 = vmatprep.mubr.bf16.mxu0 0
    %5390 = vmatmul.mubr.bf16.gmra.mrb[0].mxu0 %v5299
    %v5391 = vpop.f32.mrb[0].mxu0
    %v5392 = vadd.f32 0.0, %v5391
    %v5393 = vpop.f32.mrb[0].mxu0
    %v5394 = vpop.f32.mrb[0].mxu0
    %v5395 = vadd.f32 0.0, %v5394
    %v5396 = vpop.f32.mrb[0].mxu0
    %5397 = vdwg.mxu0
    %v5398 = vadd.f32 %v5093, %v5336
    %v5399 = vadd.f32 %v5094, %v5339
    %v5400 = vadd.f32 %v5095, %v5344
    %v5401 = vadd.f32 %v5096, %v5347
    %v5402 = vadd.f32 %v5097, %v5352
    %v5403 = vadd.f32 %v5098, %v5355
    %v5404 = vadd.f32 %v5099, %v5360
    %v5405 = vadd.f32 %v5100, %v5363
    %v5406 = vadd.f32 %v5101, %v5368
    %v5407 = vadd.f32 %v5102, %v5371
    %v5408 = vadd.f32 %v5103, %v5376
    %v5409 = vadd.f32 %v5104, %v5379
    %v5410 = vadd.f32 %v5105, %v5384
    %v5411 = vadd.f32 %v5106, %v5387
    %v5412 = vadd.f32 %v5107, %v5392
    %v5413 = vadd.f32 %v5108, %v5395
    %s5414 = scalar_lea.vmem [#allocation5], 16
    %v5415 = vld [vmem:[%s5414] sm:$0xf]
    %v5416 = vld [vmem:[%s5414 + $0x8] sm:$0xf]
    %v5417 = vld [vmem:[%s5414 + $0x10] sm:$0xf]
    %v5418 = vld [vmem:[%s5414 + $0x18] sm:$0xf]
    %v5419 = vld [vmem:[%s5414 + $0x20] sm:$0xf]
    %v5420 = vld [vmem:[%s5414 + $0x28] sm:$0xf]
    %v5421 = vld [vmem:[%s5414 + $0x30] sm:$0xf]
    %v5422 = vld [vmem:[%s5414 + $0x38] sm:$0xf]
    %v5423 = vld [vmem:[%s5414 + $0x50] sm:$0xf]
    %v5424 = vld [vmem:[%s5414 + $0x58] sm:$0xf]
    %v5425 = vld [vmem:[%s5414 + $0x60] sm:$0xf]
    %v5426 = vld [vmem:[%s5414 + $0x68] sm:$0xf]
    %v5427 = vld [vmem:[%s5414 + $0x70] sm:$0xf]
    %v5428 = vld [vmem:[%s5414 + $0x78] sm:$0xf]
    %v5429 = vld [vmem:[%s5414 + $0x80] sm:$0xf]
    %v5430 = vld [vmem:[%s5414 + $0x88] sm:$0xf]
    %v5431 = vld [vmem:[#allocation13 + $0xc0] sm:$0xf]
    %v5432 = vld [vmem:[#allocation13 + $0xc4] sm:$0xf]
    %v5433 = vld [vmem:[#allocation13 + $0xc8] sm:$0xf]
    %v5434 = vld [vmem:[#allocation13 + $0xcc] sm:$0xf]
    %v5435 = vld [vmem:[#allocation13 + $0xd0] sm:$0xf]
    %v5436 = vld [vmem:[#allocation13 + $0xd4] sm:$0xf]
    %v5437 = vld [vmem:[#allocation13 + $0xd8] sm:$0xf]
    %v5438 = vld [vmem:[#allocation13 + $0xdc] sm:$0xf]
    %v5455 = vunpack.c.l.b16 %v5415
    %v5456 = vunpack.c.l.b16 %v5416
    %v5457 = vunpack.c.l.b16 %v5417
    %v5458 = vunpack.c.l.b16 %v5418
    %v5459 = vunpack.c.l.b16 %v5419
    %v5460 = vunpack.c.l.b16 %v5420
    %v5461 = vunpack.c.l.b16 %v5421
    %v5462 = vunpack.c.l.b16 %v5422
    %v5463 = vunpack.c.l.b16 %v5423
    %v5464 = vunpack.c.l.b16 %v5424
    %v5465 = vunpack.c.l.b16 %v5425
    %v5466 = vunpack.c.l.b16 %v5426
    %v5467 = vunpack.c.l.b16 %v5427
    %v5468 = vunpack.c.l.b16 %v5428
    %v5469 = vunpack.c.l.b16 %v5429
    %v5470 = vunpack.c.l.b16 %v5430
    %v5471 = vpack.c.b16 %v5456, %v5455
    %v5472 = vpack.c.b16 %v5458, %v5457
    %v5473 = vpack.c.b16 %v5460, %v5459
    %v5474 = vpack.c.b16 %v5462, %v5461
    %v5475 = vpack.c.b16 %v5464, %v5463
    %v5476 = vpack.c.b16 %v5466, %v5465
    %v5477 = vpack.c.b16 %v5468, %v5467
    %v5478 = vpack.c.b16 %v5470, %v5469
    %v5487 = vunpack.c.l.b16 %v5431
    %v5488 = vunpack.c.l.b16 %v5432
    %v5489 = vunpack.c.l.b16 %v5433
    %v5490 = vunpack.c.l.b16 %v5434
    %v5491 = vunpack.c.l.b16 %v5435
    %v5492 = vunpack.c.l.b16 %v5436
    %v5493 = vunpack.c.l.b16 %v5437
    %v5494 = vunpack.c.l.b16 %v5438
    %v5495 = vpack.c.b16 %v5488, %v5487
    %v5496 = vpack.c.b16 %v5490, %v5489
    %v5497 = vpack.c.b16 %v5492, %v5491
    %v5498 = vpack.c.b16 %v5494, %v5493
    %v5504 = vsel %vm3820, %v5471, 0
    %v5507 = vsel %vm3820, %v5472, 0
    %v5510 = vsel %vm3820, %v5473, 0
    %v5513 = vsel %vm3820, %v5474, 0
    %v5516 = vsel %vm3820, %v5475, 0
    %v5519 = vsel %vm3820, %v5476, 0
    %v5522 = vsel %vm3820, %v5477, 0
    %v5525 = vsel %vm3820, %v5478, 0
    %5527 = vmatprep.subr.bf16.mxu0 0
    %5528 = vmatpush1.bf16.msra.mxu0 %v5495
    %5529 = vmatprep.subr.bf16.mxu0 0
    %5530 = vmatpush1.bf16.msra.mxu0 %v5496
    %5531 = vmatprep.subr.bf16.mxu0 0
    %5532 = vmatpush1.bf16.msra.mxu0 %v5497
    %5533 = vmatprep.subr.bf16.mxu0 0
    %5534 = vmatpush1.bf16.msra.mxu0 %v5498
    %5535 = vmatprep.subr.bf16.mxu0 0
    %5536 = vmatpush1.bf16.msra.mxu0 0
    %5537 = vmatprep.subr.bf16.mxu0 0
    %5538 = vmatpush1.bf16.msra.mxu0 0
    %5539 = vmatprep.subr.bf16.mxu0 0
    %5540 = vmatpush1.bf16.msra.mxu0 0
    %5541 = vmatprep.subr.bf16.mxu0 0
    %5542 = vmatpush1.bf16.msra.mxu0 0
    %5543 = vmatprep.subr.bf16.mxu0 0
    %5544 = vmatpush1.bf16.msra.mxu0 0
    %5545 = vmatprep.subr.bf16.mxu0 0
    %5546 = vmatpush1.bf16.msra.mxu0 0
    %5547 = vmatprep.subr.bf16.mxu0 0
    %5548 = vmatpush1.bf16.msra.mxu0 0
    %5549 = vmatprep.subr.bf16.mxu0 0
    %5550 = vmatpush1.bf16.msra.mxu0 0
    %5551 = vmatprep.subr.bf16.mxu0 0
    %5552 = vmatpush1.bf16.msra.mxu0 0
    %5553 = vmatprep.subr.bf16.mxu0 0
    %5554 = vmatpush1.bf16.msra.mxu0 0
    %5555 = vmatprep.subr.bf16.mxu0 0
    %5556 = vmatpush1.bf16.msra.mxu0 0
    %5557 = vmatprep.subr.bf16.mxu0 0
    %5558 = vmatpush1.bf16.msra.mxu0 0
    %5559 = vmatprep.mubr.bf16.mxu0 0
    %5560 = vmatmul.mubr.bf16.gmra.mrb[0].mxu0 %v5504
    %v5561 = vpop.f32.mrb[0].mxu0
    %v5562 = vadd.f32 0.0, %v5561
    %v5563 = vpop.f32.mrb[0].mxu0
    %v5564 = vpop.f32.mrb[0].mxu0
    %v5565 = vadd.f32 0.0, %v5564
    %v5566 = vpop.f32.mrb[0].mxu0
    %5567 = vmatprep.mubr.bf16.mxu0 0
    %5568 = vmatmul.mubr.bf16.gmra.mrb[0].mxu0 %v5507
    %v5569 = vpop.f32.mrb[0].mxu0
    %v5570 = vadd.f32 0.0, %v5569
    %v5571 = vpop.f32.mrb[0].mxu0
    %v5572 = vpop.f32.mrb[0].mxu0
    %v5573 = vadd.f32 0.0, %v5572
    %v5574 = vpop.f32.mrb[0].mxu0
    %5575 = vmatprep.mubr.bf16.mxu0 0
    %5576 = vmatmul.mubr.bf16.gmra.mrb[0].mxu0 %v5510
    %v5577 = vpop.f32.mrb[0].mxu0
    %v5578 = vadd.f32 0.0, %v5577
    %v5579 = vpop.f32.mrb[0].mxu0
    %v5580 = vpop.f32.mrb[0].mxu0
    %v5581 = vadd.f32 0.0, %v5580
    %v5582 = vpop.f32.mrb[0].mxu0
    %5583 = vmatprep.mubr.bf16.mxu0 0
    %5584 = vmatmul.mubr.bf16.gmra.mrb[0].mxu0 %v5513
    %v5585 = vpop.f32.mrb[0].mxu0
    %v5586 = vadd.f32 0.0, %v5585
    %v5587 = vpop.f32.mrb[0].mxu0
    %v5588 = vpop.f32.mrb[0].mxu0
    %v5589 = vadd.f32 0.0, %v5588
    %v5590 = vpop.f32.mrb[0].mxu0
    %5591 = vmatprep.mubr.bf16.mxu0 0
    %5592 = vmatmul.mubr.bf16.gmra.mrb[0].mxu0 %v5516
    %v5593 = vpop.f32.mrb[0].mxu0
    %v5594 = vadd.f32 0.0, %v5593
    %v5595 = vpop.f32.mrb[0].mxu0
    %v5596 = vpop.f32.mrb[0].mxu0
    %v5597 = vadd.f32 0.0, %v5596
    %v5598 = vpop.f32.mrb[0].mxu0
    %5599 = vmatprep.mubr.bf16.mxu0 0
    %5600 = vmatmul.mubr.bf16.gmra.mrb[0].mxu0 %v5519
    %v5601 = vpop.f32.mrb[0].mxu0
    %v5602 = vadd.f32 0.0, %v5601
    %v5603 = vpop.f32.mrb[0].mxu0
    %v5604 = vpop.f32.mrb[0].mxu0
    %v5605 = vadd.f32 0.0, %v5604
    %v5606 = vpop.f32.mrb[0].mxu0
    %5607 = vmatprep.mubr.bf16.mxu0 0
    %5608 = vmatmul.mubr.bf16.gmra.mrb[0].mxu0 %v5522
    %v5609 = vpop.f32.mrb[0].mxu0
    %v5610 = vadd.f32 0.0, %v5609
    %v5611 = vpop.f32.mrb[0].mxu0
    %v5612 = vpop.f32.mrb[0].mxu0
    %v5613 = vadd.f32 0.0, %v5612
    %v5614 = vpop.f32.mrb[0].mxu0
    %5615 = vmatprep.mubr.bf16.mxu0 0
    %5616 = vmatmul.mubr.bf16.gmra.mrb[0].mxu0 %v5525
    %v5617 = vpop.f32.mrb[0].mxu0
    %v5618 = vadd.f32 0.0, %v5617
    %v5619 = vpop.f32.mrb[0].mxu0
    %v5620 = vpop.f32.mrb[0].mxu0
    %v5621 = vadd.f32 0.0, %v5620
    %v5622 = vpop.f32.mrb[0].mxu0
    %5623 = vdwg.mxu0
    %v5624 = vadd.f32 %v5398, %v5562
    %v5625 = vadd.f32 %v5399, %v5565
    %v5626 = vadd.f32 %v5400, %v5570
    %v5627 = vadd.f32 %v5401, %v5573
    %v5628 = vadd.f32 %v5402, %v5578
    %v5629 = vadd.f32 %v5403, %v5581
    %v5630 = vadd.f32 %v5404, %v5586
    %v5631 = vadd.f32 %v5405, %v5589
    %v5632 = vadd.f32 %v5406, %v5594
    %v5633 = vadd.f32 %v5407, %v5597
    %v5634 = vadd.f32 %v5408, %v5602
    %v5635 = vadd.f32 %v5409, %v5605
    %v5636 = vadd.f32 %v5410, %v5610
    %v5637 = vadd.f32 %v5411, %v5613
    %v5638 = vadd.f32 %v5412, %v5618
    %v5639 = vadd.f32 %v5413, %v5621
    %v5640 = vld [vmem:[%s5414] sm:$0xf]
    %v5641 = vld [vmem:[%s5414 + $0x4] sm:$0x1]
    %v5642 = vld [vmem:[%s5414 + $0x8] sm:$0xf]
    %v5643 = vld [vmem:[%s5414 + $0xc] sm:$0x1]
    %v5644 = vld [vmem:[%s5414 + $0x10] sm:$0xf]
    %v5645 = vld [vmem:[%s5414 + $0x14] sm:$0x1]
    %v5646 = vld [vmem:[%s5414 + $0x18] sm:$0xf]
    %v5647 = vld [vmem:[%s5414 + $0x1c] sm:$0x1]
    %v5648 = vld [vmem:[%s5414 + $0x20] sm:$0xf]
    %v5649 = vld [vmem:[%s5414 + $0x24] sm:$0x1]
    %v5650 = vld [vmem:[%s5414 + $0x28] sm:$0xf]
    %v5651 = vld [vmem:[%s5414 + $0x2c] sm:$0x1]
    %v5652 = vld [vmem:[%s5414 + $0x30] sm:$0xf]
    %v5653 = vld [vmem:[%s5414 + $0x34] sm:$0x1]
    %v5654 = vld [vmem:[%s5414 + $0x38] sm:$0xf]
    %v5655 = vld [vmem:[%s5414 + $0x3c] sm:$0x1]
    %v5656 = vld [vmem:[%s5414 + $0x50] sm:$0xf]
    %v5657 = vld [vmem:[%s5414 + $0x54] sm:$0x1]
    %v5658 = vld [vmem:[%s5414 + $0x58] sm:$0xf]
    %v5659 = vld [vmem:[%s5414 + $0x5c] sm:$0x1]
    %v5660 = vld [vmem:[%s5414 + $0x60] sm:$0xf]
    %v5661 = vld [vmem:[%s5414 + $0x64] sm:$0x1]
    %v5662 = vld [vmem:[%s5414 + $0x68] sm:$0xf]
    %v5663 = vld [vmem:[%s5414 + $0x6c] sm:$0x1]
    %v5664 = vld [vmem:[%s5414 + $0x70] sm:$0xf]
    %v5665 = vld [vmem:[%s5414 + $0x74] sm:$0x1]
    %v5666 = vld [vmem:[%s5414 + $0x78] sm:$0xf]
    %v5667 = vld [vmem:[%s5414 + $0x7c] sm:$0x1]
    %v5668 = vld [vmem:[%s5414 + $0x80] sm:$0xf]
    %v5669 = vld [vmem:[%s5414 + $0x84] sm:$0x1]
    %v5670 = vld [vmem:[%s5414 + $0x88] sm:$0xf]
    %v5671 = vld [vmem:[%s5414 + $0x8c] sm:$0x1]
    %v5673 = vshrl.u32 %v5640, 16
    %v5675 = vrot.slane %v5673, 4
    %v5676 = vshll.u32 %v5640, 16
    %v5678 = vrot.slane %v5676, 5
    %v5679 = vor.u32 %v5675, %v5678
    %v5680 = vrot.slane %v5679, 4
    %v5682 = vshll.u32 %v5641, 16
    %v5684 = vrot.slane %v5682, 5
    %v5685 = vsel %vm3539, %v5680, %v5684
    %v5687 = vshrl.u32 %v5642, 16
    %v5689 = vrot.slane %v5687, 4
    %v5690 = vshll.u32 %v5642, 16
    %v5692 = vrot.slane %v5690, 5
    %v5693 = vor.u32 %v5689, %v5692
    %v5694 = vrot.slane %v5693, 4
    %v5696 = vshll.u32 %v5643, 16
    %v5698 = vrot.slane %v5696, 5
    %v5699 = vsel %vm3539, %v5694, %v5698
    %v5701 = vshrl.u32 %v5644, 16
    %v5703 = vrot.slane %v5701, 4
    %v5704 = vshll.u32 %v5644, 16
    %v5706 = vrot.slane %v5704, 5
    %v5707 = vor.u32 %v5703, %v5706
    %v5708 = vrot.slane %v5707, 4
    %v5710 = vshll.u32 %v5645, 16
    %v5712 = vrot.slane %v5710, 5
    %v5713 = vsel %vm3539, %v5708, %v5712
    %v5715 = vshrl.u32 %v5646, 16
    %v5717 = vrot.slane %v5715, 4
    %v5718 = vshll.u32 %v5646, 16
    %v5720 = vrot.slane %v5718, 5
    %v5721 = vor.u32 %v5717, %v5720
    %v5722 = vrot.slane %v5721, 4
    %v5724 = vshll.u32 %v5647, 16
    %v5726 = vrot.slane %v5724, 5
    %v5727 = vsel %vm3539, %v5722, %v5726
    %v5729 = vshrl.u32 %v5648, 16
    %v5731 = vrot.slane %v5729, 4
    %v5732 = vshll.u32 %v5648, 16
    %v5734 = vrot.slane %v5732, 5
    %v5735 = vor.u32 %v5731, %v5734
    %v5736 = vrot.slane %v5735, 4
    %v5738 = vshll.u32 %v5649, 16
    %v5740 = vrot.slane %v5738, 5
    %v5741 = vsel %vm3539, %v5736, %v5740
    %v5743 = vshrl.u32 %v5650, 16
    %v5745 = vrot.slane %v5743, 4
    %v5746 = vshll.u32 %v5650, 16
    %v5748 = vrot.slane %v5746, 5
    %v5749 = vor.u32 %v5745, %v5748
    %v5750 = vrot.slane %v5749, 4
    %v5752 = vshll.u32 %v5651, 16
    %v5754 = vrot.slane %v5752, 5
    %v5755 = vsel %vm3539, %v5750, %v5754
    %v5757 = vshrl.u32 %v5652, 16
    %v5759 = vrot.slane %v5757, 4
    %v5760 = vshll.u32 %v5652, 16
    %v5762 = vrot.slane %v5760, 5
    %v5763 = vor.u32 %v5759, %v5762
    %v5764 = vrot.slane %v5763, 4
    %v5766 = vshll.u32 %v5653, 16
    %v5768 = vrot.slane %v5766, 5
    %v5769 = vsel %vm3539, %v5764, %v5768
    %v5771 = vshrl.u32 %v5654, 16
    %v5773 = vrot.slane %v5771, 4
    %v5774 = vshll.u32 %v5654, 16
    %v5776 = vrot.slane %v5774, 5
    %v5777 = vor.u32 %v5773, %v5776
    %v5778 = vrot.slane %v5777, 4
    %v5780 = vshll.u32 %v5655, 16
    %v5782 = vrot.slane %v5780, 5
    %v5783 = vsel %vm3539, %v5778, %v5782
    %v5785 = vshrl.u32 %v5656, 16
    %v5787 = vrot.slane %v5785, 4
    %v5788 = vshll.u32 %v5656, 16
    %v5790 = vrot.slane %v5788, 5
    %v5791 = vor.u32 %v5787, %v5790
    %v5792 = vrot.slane %v5791, 4
    %v5794 = vshll.u32 %v5657, 16
    %v5796 = vrot.slane %v5794, 5
    %v5797 = vsel %vm3539, %v5792, %v5796
    %v5799 = vshrl.u32 %v5658, 16
    %v5801 = vrot.slane %v5799, 4
    %v5802 = vshll.u32 %v5658, 16
    %v5804 = vrot.slane %v5802, 5
    %v5805 = vor.u32 %v5801, %v5804
    %v5806 = vrot.slane %v5805, 4
    %v5808 = vshll.u32 %v5659, 16
    %v5810 = vrot.slane %v5808, 5
    %v5811 = vsel %vm3539, %v5806, %v5810
    %v5813 = vshrl.u32 %v5660, 16
    %v5815 = vrot.slane %v5813, 4
    %v5816 = vshll.u32 %v5660, 16
    %v5818 = vrot.slane %v5816, 5
    %v5819 = vor.u32 %v5815, %v5818
    %v5820 = vrot.slane %v5819, 4
    %v5822 = vshll.u32 %v5661, 16
    %v5824 = vrot.slane %v5822, 5
    %v5825 = vsel %vm3539, %v5820, %v5824
    %v5827 = vshrl.u32 %v5662, 16
    %v5829 = vrot.slane %v5827, 4
    %v5830 = vshll.u32 %v5662, 16
    %v5832 = vrot.slane %v5830, 5
    %v5833 = vor.u32 %v5829, %v5832
    %v5834 = vrot.slane %v5833, 4
    %v5836 = vshll.u32 %v5663, 16
    %v5838 = vrot.slane %v5836, 5
    %v5839 = vsel %vm3539, %v5834, %v5838
    %v5841 = vshrl.u32 %v5664, 16
    %v5843 = vrot.slane %v5841, 4
    %v5844 = vshll.u32 %v5664, 16
    %v5846 = vrot.slane %v5844, 5
    %v5847 = vor.u32 %v5843, %v5846
    %v5848 = vrot.slane %v5847, 4
    %v5850 = vshll.u32 %v5665, 16
    %v5852 = vrot.slane %v5850, 5
    %v5853 = vsel %vm3539, %v5848, %v5852
    %v5855 = vshrl.u32 %v5666, 16
    %v5857 = vrot.slane %v5855, 4
    %v5858 = vshll.u32 %v5666, 16
    %v5860 = vrot.slane %v5858, 5
    %v5861 = vor.u32 %v5857, %v5860
    %v5862 = vrot.slane %v5861, 4
    %v5864 = vshll.u32 %v5667, 16
    %v5866 = vrot.slane %v5864, 5
    %v5867 = vsel %vm3539, %v5862, %v5866
    %v5869 = vshrl.u32 %v5668, 16
    %v5871 = vrot.slane %v5869, 4
    %v5872 = vshll.u32 %v5668, 16
    %v5874 = vrot.slane %v5872, 5
    %v5875 = vor.u32 %v5871, %v5874
    %v5876 = vrot.slane %v5875, 4
    %v5878 = vshll.u32 %v5669, 16
    %v5880 = vrot.slane %v5878, 5
    %v5881 = vsel %vm3539, %v5876, %v5880
    %v5883 = vshrl.u32 %v5670, 16
    %v5885 = vrot.slane %v5883, 4
    %v5886 = vshll.u32 %v5670, 16
    %v5888 = vrot.slane %v5886, 5
    %v5889 = vor.u32 %v5885, %v5888
    %v5890 = vrot.slane %v5889, 4
    %v5892 = vshll.u32 %v5671, 16
    %v5894 = vrot.slane %v5892, 5
    %v5895 = vsel %vm3539, %v5890, %v5894
    %v5896 = vld [vmem:[#allocation13 + $0xe0] sm:$0xf]
    %v5897 = vld [vmem:[#allocation13 + $0xe4] sm:$0xf]
    %v5898 = vld [vmem:[#allocation13 + $0xe8] sm:$0xf]
    %v5899 = vld [vmem:[#allocation13 + $0xec] sm:$0xf]
    %v5900 = vld [vmem:[#allocation13 + $0xf0] sm:$0xf]
    %v5901 = vld [vmem:[#allocation13 + $0xf4] sm:$0xf]
    %v5902 = vld [vmem:[#allocation13 + $0xf8] sm:$0xf]
    %v5903 = vld [vmem:[#allocation13 + $0xfc] sm:$0xf]
    %v5904 = vunpack.c.l.b16 %v5685
    %v5905 = vunpack.c.l.b16 %v5699
    %v5906 = vunpack.c.l.b16 %v5713
    %v5907 = vunpack.c.l.b16 %v5727
    %v5908 = vunpack.c.l.b16 %v5741
    %v5909 = vunpack.c.l.b16 %v5755
    %v5910 = vunpack.c.l.b16 %v5769
    %v5911 = vunpack.c.l.b16 %v5783
    %v5912 = vunpack.c.l.b16 %v5797
    %v5913 = vunpack.c.l.b16 %v5811
    %v5914 = vunpack.c.l.b16 %v5825
    %v5915 = vunpack.c.l.b16 %v5839
    %v5916 = vunpack.c.l.b16 %v5853
    %v5917 = vunpack.c.l.b16 %v5867
    %v5918 = vunpack.c.l.b16 %v5881
    %v5919 = vunpack.c.l.b16 %v5895
    %v5920 = vpack.c.b16 %v5905, %v5904
    %v5921 = vpack.c.b16 %v5907, %v5906
    %v5922 = vpack.c.b16 %v5909, %v5908
    %v5923 = vpack.c.b16 %v5911, %v5910
    %v5924 = vpack.c.b16 %v5913, %v5912
    %v5925 = vpack.c.b16 %v5915, %v5914
    %v5926 = vpack.c.b16 %v5917, %v5916
    %v5927 = vpack.c.b16 %v5919, %v5918
    %v5936 = vunpack.c.l.b16 %v5896
    %v5937 = vunpack.c.l.b16 %v5897
    %v5938 = vunpack.c.l.b16 %v5898
    %v5939 = vunpack.c.l.b16 %v5899
    %v5940 = vunpack.c.l.b16 %v5900
    %v5941 = vunpack.c.l.b16 %v5901
    %v5942 = vunpack.c.l.b16 %v5902
    %v5943 = vunpack.c.l.b16 %v5903
    %v5944 = vpack.c.b16 %v5937, %v5936
    %v5945 = vpack.c.b16 %v5939, %v5938
    %v5946 = vpack.c.b16 %v5941, %v5940
    %v5947 = vpack.c.b16 %v5943, %v5942
    %v5953 = vsel %vm3820, %v5920, 0
    %v5956 = vsel %vm3820, %v5921, 0
    %v5959 = vsel %vm3820, %v5922, 0
    %v5962 = vsel %vm3820, %v5923, 0
    %v5965 = vsel %vm3820, %v5924, 0
    %v5968 = vsel %vm3820, %v5925, 0
    %v5971 = vsel %vm3820, %v5926, 0
    %v5974 = vsel %vm3820, %v5927, 0
    %5976 = vmatprep.subr.bf16.mxu0 0
    %5977 = vmatpush1.bf16.msra.mxu0 %v5944
    %5978 = vmatprep.subr.bf16.mxu0 0
    %5979 = vmatpush1.bf16.msra.mxu0 %v5945
    %5980 = vmatprep.subr.bf16.mxu0 0
    %5981 = vmatpush1.bf16.msra.mxu0 %v5946
    %5982 = vmatprep.subr.bf16.mxu0 0
    %5983 = vmatpush1.bf16.msra.mxu0 %v5947
    %5984 = vmatprep.subr.bf16.mxu0 0
    %5985 = vmatpush1.bf16.msra.mxu0 0
    %5986 = vmatprep.subr.bf16.mxu0 0
    %5987 = vmatpush1.bf16.msra.mxu0 0
    %5988 = vmatprep.subr.bf16.mxu0 0
    %5989 = vmatpush1.bf16.msra.mxu0 0
    %5990 = vmatprep.subr.bf16.mxu0 0
    %5991 = vmatpush1.bf16.msra.mxu0 0
    %5992 = vmatprep.subr.bf16.mxu0 0
    %5993 = vmatpush1.bf16.msra.mxu0 0
    %5994 = vmatprep.subr.bf16.mxu0 0
    %5995 = vmatpush1.bf16.msra.mxu0 0
    %5996 = vmatprep.subr.bf16.mxu0 0
    %5997 = vmatpush1.bf16.msra.mxu0 0
    %5998 = vmatprep.subr.bf16.mxu0 0
    %5999 = vmatpush1.bf16.msra.mxu0 0
    %6000 = vmatprep.subr.bf16.mxu0 0
    %6001 = vmatpush1.bf16.msra.mxu0 0
    %6002 = vmatprep.subr.bf16.mxu0 0
    %6003 = vmatpush1.bf16.msra.mxu0 0
    %6004 = vmatprep.subr.bf16.mxu0 0
    %6005 = vmatpush1.bf16.msra.mxu0 0
    %6006 = vmatprep.subr.bf16.mxu0 0
    %6007 = vmatpush1.bf16.msra.mxu0 0
    %6008 = vmatprep.mubr.bf16.mxu0 0
    %6009 = vmatmul.mubr.bf16.gmra.mrb[0].mxu0 %v5953
    %v6010 = vpop.f32.mrb[0].mxu0
    %v6011 = vadd.f32 0.0, %v6010
    %v6012 = vpop.f32.mrb[0].mxu0
    %v6013 = vpop.f32.mrb[0].mxu0
    %v6014 = vadd.f32 0.0, %v6013
    %v6015 = vpop.f32.mrb[0].mxu0
    %6016 = vmatprep.mubr.bf16.mxu0 0
    %6017 = vmatmul.mubr.bf16.gmra.mrb[0].mxu0 %v5956
    %v6018 = vpop.f32.mrb[0].mxu0
    %v6019 = vadd.f32 0.0, %v6018
    %v6020 = vpop.f32.mrb[0].mxu0
    %v6021 = vpop.f32.mrb[0].mxu0
    %v6022 = vadd.f32 0.0, %v6021
    %v6023 = vpop.f32.mrb[0].mxu0
    %6024 = vmatprep.mubr.bf16.mxu0 0
    %6025 = vmatmul.mubr.bf16.gmra.mrb[0].mxu0 %v5959
    %v6026 = vpop.f32.mrb[0].mxu0
    %v6027 = vadd.f32 0.0, %v6026
    %v6028 = vpop.f32.mrb[0].mxu0
    %v6029 = vpop.f32.mrb[0].mxu0
    %v6030 = vadd.f32 0.0, %v6029
    %v6031 = vpop.f32.mrb[0].mxu0
    %6032 = vmatprep.mubr.bf16.mxu0 0
    %6033 = vmatmul.mubr.bf16.gmra.mrb[0].mxu0 %v5962
    %v6034 = vpop.f32.mrb[0].mxu0
    %v6035 = vadd.f32 0.0, %v6034
    %v6036 = vpop.f32.mrb[0].mxu0
    %v6037 = vpop.f32.mrb[0].mxu0
    %v6038 = vadd.f32 0.0, %v6037
    %v6039 = vpop.f32.mrb[0].mxu0
    %6040 = vmatprep.mubr.bf16.mxu0 0
    %6041 = vmatmul.mubr.bf16.gmra.mrb[0].mxu0 %v5965
    %v6042 = vpop.f32.mrb[0].mxu0
    %v6043 = vadd.f32 0.0, %v6042
    %v6044 = vpop.f32.mrb[0].mxu0
    %v6045 = vpop.f32.mrb[0].mxu0
    %v6046 = vadd.f32 0.0, %v6045
    %v6047 = vpop.f32.mrb[0].mxu0
    %6048 = vmatprep.mubr.bf16.mxu0 0
    %6049 = vmatmul.mubr.bf16.gmra.mrb[0].mxu0 %v5968
    %v6050 = vpop.f32.mrb[0].mxu0
    %v6051 = vadd.f32 0.0, %v6050
    %v6052 = vpop.f32.mrb[0].mxu0
    %v6053 = vpop.f32.mrb[0].mxu0
    %v6054 = vadd.f32 0.0, %v6053
    %v6055 = vpop.f32.mrb[0].mxu0
    %6056 = vmatprep.mubr.bf16.mxu0 0
    %6057 = vmatmul.mubr.bf16.gmra.mrb[0].mxu0 %v5971
    %v6058 = vpop.f32.mrb[0].mxu0
    %v6059 = vadd.f32 0.0, %v6058
    %v6060 = vpop.f32.mrb[0].mxu0
    %v6061 = vpop.f32.mrb[0].mxu0
    %v6062 = vadd.f32 0.0, %v6061
    %v6063 = vpop.f32.mrb[0].mxu0
    %6064 = vmatprep.mubr.bf16.mxu0 0
    %6065 = vmatmul.mubr.bf16.gmra.mrb[0].mxu0 %v5974
    %v6066 = vpop.f32.mrb[0].mxu0
    %v6067 = vadd.f32 0.0, %v6066
    %v6068 = vpop.f32.mrb[0].mxu0
    %v6069 = vpop.f32.mrb[0].mxu0
    %v6070 = vadd.f32 0.0, %v6069
    %v6071 = vpop.f32.mrb[0].mxu0
    %6072 = vdwg.mxu0
    %v6073 = vadd.f32 %v5624, %v6011
    %v6074 = vadd.f32 %v5625, %v6014
    %v6075 = vadd.f32 %v5626, %v6019
    %v6076 = vadd.f32 %v5627, %v6022
    %v6077 = vadd.f32 %v5628, %v6027
    %v6078 = vadd.f32 %v5629, %v6030
    %v6079 = vadd.f32 %v5630, %v6035
    %v6080 = vadd.f32 %v5631, %v6038
    %v6081 = vadd.f32 %v5632, %v6043
    %v6082 = vadd.f32 %v5633, %v6046
    %v6083 = vadd.f32 %v5634, %v6051
    %v6084 = vadd.f32 %v5635, %v6054
    %v6085 = vadd.f32 %v5636, %v6059
    %v6086 = vadd.f32 %v5637, %v6062
    %v6087 = vadd.f32 %v5638, %v6067
    %v6088 = vadd.f32 %v5639, %v6070
    %v6089 = vld [vmem:[%s5414] sm:$0xe]
    %v6090 = vld [vmem:[%s5414 + $0x8] sm:$0xe]
    %v6091 = vld [vmem:[%s5414 + $0x10] sm:$0xe]
    %v6092 = vld [vmem:[%s5414 + $0x18] sm:$0xe]
    %v6093 = vld [vmem:[%s5414 + $0x20] sm:$0xe]
    %v6094 = vld [vmem:[%s5414 + $0x28] sm:$0xe]
    %v6095 = vld [vmem:[%s5414 + $0x30] sm:$0xe]
    %v6096 = vld [vmem:[%s5414 + $0x38] sm:$0xe]
    %v6097 = vld [vmem:[%s5414 + $0x50] sm:$0xe]
    %v6098 = vld [vmem:[%s5414 + $0x58] sm:$0xe]
    %v6099 = vld [vmem:[%s5414 + $0x60] sm:$0xe]
    %v6100 = vld [vmem:[%s5414 + $0x68] sm:$0xe]
    %v6101 = vld [vmem:[%s5414 + $0x70] sm:$0xe]
    %v6102 = vld [vmem:[%s5414 + $0x78] sm:$0xe]
    %v6103 = vld [vmem:[%s5414 + $0x80] sm:$0xe]
    %v6104 = vld [vmem:[%s5414 + $0x88] sm:$0xe]
    %v6137 = vrot.slane %v6089, 5
    %v6138 = vrot.slane %v6137, 4
    %v6139 = vrot.slane %v5641, 5
    %v6140 = vsel %vm4177, %v6138, %v6139
    %v6141 = vrot.slane %v6090, 5
    %v6142 = vrot.slane %v6141, 4
    %v6143 = vrot.slane %v5643, 5
    %v6144 = vsel %vm4177, %v6142, %v6143
    %v6145 = vrot.slane %v6091, 5
    %v6146 = vrot.slane %v6145, 4
    %v6147 = vrot.slane %v5645, 5
    %v6148 = vsel %vm4177, %v6146, %v6147
    %v6149 = vrot.slane %v6092, 5
    %v6150 = vrot.slane %v6149, 4
    %v6151 = vrot.slane %v5647, 5
    %v6152 = vsel %vm4177, %v6150, %v6151
    %v6153 = vrot.slane %v6093, 5
    %v6154 = vrot.slane %v6153, 4
    %v6155 = vrot.slane %v5649, 5
    %v6156 = vsel %vm4177, %v6154, %v6155
    %v6157 = vrot.slane %v6094, 5
    %v6158 = vrot.slane %v6157, 4
    %v6159 = vrot.slane %v5651, 5
    %v6160 = vsel %vm4177, %v6158, %v6159
    %v6161 = vrot.slane %v6095, 5
    %v6162 = vrot.slane %v6161, 4
    %v6163 = vrot.slane %v5653, 5
    %v6164 = vsel %vm4177, %v6162, %v6163
    %v6165 = vrot.slane %v6096, 5
    %v6166 = vrot.slane %v6165, 4
    %v6167 = vrot.slane %v5655, 5
    %v6168 = vsel %vm4177, %v6166, %v6167
    %v6169 = vrot.slane %v6097, 5
    %v6170 = vrot.slane %v6169, 4
    %v6171 = vrot.slane %v5657, 5
    %v6172 = vsel %vm4177, %v6170, %v6171
    %v6173 = vrot.slane %v6098, 5
    %v6174 = vrot.slane %v6173, 4
    %v6175 = vrot.slane %v5659, 5
    %v6176 = vsel %vm4177, %v6174, %v6175
    %v6177 = vrot.slane %v6099, 5
    %v6178 = vrot.slane %v6177, 4
    %v6179 = vrot.slane %v5661, 5
    %v6180 = vsel %vm4177, %v6178, %v6179
    %v6181 = vrot.slane %v6100, 5
    %v6182 = vrot.slane %v6181, 4
    %v6183 = vrot.slane %v5663, 5
    %v6184 = vsel %vm4177, %v6182, %v6183
    %v6185 = vrot.slane %v6101, 5
    %v6186 = vrot.slane %v6185, 4
    %v6187 = vrot.slane %v5665, 5
    %v6188 = vsel %vm4177, %v6186, %v6187
    %v6189 = vrot.slane %v6102, 5
    %v6190 = vrot.slane %v6189, 4
    %v6191 = vrot.slane %v5667, 5
    %v6192 = vsel %vm4177, %v6190, %v6191
    %v6193 = vrot.slane %v6103, 5
    %v6194 = vrot.slane %v6193, 4
    %v6195 = vrot.slane %v5669, 5
    %v6196 = vsel %vm4177, %v6194, %v6195
    %v6197 = vrot.slane %v6104, 5
    %v6198 = vrot.slane %v6197, 4
    %v6199 = vrot.slane %v5671, 5
    %v6200 = vsel %vm4177, %v6198, %v6199
    %v6201 = vld [vmem:[#allocation13 + $0x100] sm:$0xf]
    %v6202 = vld [vmem:[#allocation13 + $0x104] sm:$0xf]
    %v6203 = vld [vmem:[#allocation13 + $0x108] sm:$0xf]
    %v6204 = vld [vmem:[#allocation13 + $0x10c] sm:$0xf]
    %v6205 = vld [vmem:[#allocation13 + $0x110] sm:$0xf]
    %v6206 = vld [vmem:[#allocation13 + $0x114] sm:$0xf]
    %v6207 = vld [vmem:[#allocation13 + $0x118] sm:$0xf]
    %v6208 = vld [vmem:[#allocation13 + $0x11c] sm:$0xf]
    %v6209 = vunpack.c.l.b16 %v6140
    %v6210 = vunpack.c.l.b16 %v6144
    %v6211 = vunpack.c.l.b16 %v6148
    %v6212 = vunpack.c.l.b16 %v6152
    %v6213 = vunpack.c.l.b16 %v6156
    %v6214 = vunpack.c.l.b16 %v6160
    %v6215 = vunpack.c.l.b16 %v6164
    %v6216 = vunpack.c.l.b16 %v6168
    %v6217 = vunpack.c.l.b16 %v6172
    %v6218 = vunpack.c.l.b16 %v6176
    %v6219 = vunpack.c.l.b16 %v6180
    %v6220 = vunpack.c.l.b16 %v6184
    %v6221 = vunpack.c.l.b16 %v6188
    %v6222 = vunpack.c.l.b16 %v6192
    %v6223 = vunpack.c.l.b16 %v6196
    %v6224 = vunpack.c.l.b16 %v6200
    %v6225 = vpack.c.b16 %v6210, %v6209
    %v6226 = vpack.c.b16 %v6212, %v6211
    %v6227 = vpack.c.b16 %v6214, %v6213
    %v6228 = vpack.c.b16 %v6216, %v6215
    %v6229 = vpack.c.b16 %v6218, %v6217
    %v6230 = vpack.c.b16 %v6220, %v6219
    %v6231 = vpack.c.b16 %v6222, %v6221
    %v6232 = vpack.c.b16 %v6224, %v6223
    %v6241 = vunpack.c.l.b16 %v6201
    %v6242 = vunpack.c.l.b16 %v6202
    %v6243 = vunpack.c.l.b16 %v6203
    %v6244 = vunpack.c.l.b16 %v6204
    %v6245 = vunpack.c.l.b16 %v6205
    %v6246 = vunpack.c.l.b16 %v6206
    %v6247 = vunpack.c.l.b16 %v6207
    %v6248 = vunpack.c.l.b16 %v6208
    %v6249 = vpack.c.b16 %v6242, %v6241
    %v6250 = vpack.c.b16 %v6244, %v6243
    %v6251 = vpack.c.b16 %v6246, %v6245
    %v6252 = vpack.c.b16 %v6248, %v6247
    %v6258 = vsel %vm3820, %v6225, 0
    %v6261 = vsel %vm3820, %v6226, 0
    %v6264 = vsel %vm3820, %v6227, 0
    %v6267 = vsel %vm3820, %v6228, 0
    %v6270 = vsel %vm3820, %v6229, 0
    %v6273 = vsel %vm3820, %v6230, 0
    %v6276 = vsel %vm3820, %v6231, 0
    %v6279 = vsel %vm3820, %v6232, 0
    %6281 = vmatprep.subr.bf16.mxu0 0
    %6282 = vmatpush1.bf16.msra.mxu0 %v6249
    %6283 = vmatprep.subr.bf16.mxu0 0
    %6284 = vmatpush1.bf16.msra.mxu0 %v6250
    %6285 = vmatprep.subr.bf16.mxu0 0
    %6286 = vmatpush1.bf16.msra.mxu0 %v6251
    %6287 = vmatprep.subr.bf16.mxu0 0
    %6288 = vmatpush1.bf16.msra.mxu0 %v6252
    %6289 = vmatprep.subr.bf16.mxu0 0
    %6290 = vmatpush1.bf16.msra.mxu0 0
    %6291 = vmatprep.subr.bf16.mxu0 0
    %6292 = vmatpush1.bf16.msra.mxu0 0
    %6293 = vmatprep.subr.bf16.mxu0 0
    %6294 = vmatpush1.bf16.msra.mxu0 0
    %6295 = vmatprep.subr.bf16.mxu0 0
    %6296 = vmatpush1.bf16.msra.mxu0 0
    %6297 = vmatprep.subr.bf16.mxu0 0
    %6298 = vmatpush1.bf16.msra.mxu0 0
    %6299 = vmatprep.subr.bf16.mxu0 0
    %6300 = vmatpush1.bf16.msra.mxu0 0
    %6301 = vmatprep.subr.bf16.mxu0 0
    %6302 = vmatpush1.bf16.msra.mxu0 0
    %6303 = vmatprep.subr.bf16.mxu0 0
    %6304 = vmatpush1.bf16.msra.mxu0 0
    %6305 = vmatprep.subr.bf16.mxu0 0
    %6306 = vmatpush1.bf16.msra.mxu0 0
    %6307 = vmatprep.subr.bf16.mxu0 0
    %6308 = vmatpush1.bf16.msra.mxu0 0
    %6309 = vmatprep.subr.bf16.mxu0 0
    %6310 = vmatpush1.bf16.msra.mxu0 0
    %6311 = vmatprep.subr.bf16.mxu0 0
    %6312 = vmatpush1.bf16.msra.mxu0 0
    %6313 = vmatprep.mubr.bf16.mxu0 0
    %6314 = vmatmul.mubr.bf16.gmra.mrb[0].mxu0 %v6258
    %v6315 = vpop.f32.mrb[0].mxu0
    %v6316 = vadd.f32 0.0, %v6315
    %v6317 = vpop.f32.mrb[0].mxu0
    %v6318 = vpop.f32.mrb[0].mxu0
    %v6319 = vadd.f32 0.0, %v6318
    %v6320 = vpop.f32.mrb[0].mxu0
    %6321 = vmatprep.mubr.bf16.mxu0 0
    %6322 = vmatmul.mubr.bf16.gmra.mrb[0].mxu0 %v6261
    %v6323 = vpop.f32.mrb[0].mxu0
    %v6324 = vadd.f32 0.0, %v6323
    %v6325 = vpop.f32.mrb[0].mxu0
    %v6326 = vpop.f32.mrb[0].mxu0
    %v6327 = vadd.f32 0.0, %v6326
    %v6328 = vpop.f32.mrb[0].mxu0
    %6329 = vmatprep.mubr.bf16.mxu0 0
    %6330 = vmatmul.mubr.bf16.gmra.mrb[0].mxu0 %v6264
    %v6331 = vpop.f32.mrb[0].mxu0
    %v6332 = vadd.f32 0.0, %v6331
    %v6333 = vpop.f32.mrb[0].mxu0
    %v6334 = vpop.f32.mrb[0].mxu0
    %v6335 = vadd.f32 0.0, %v6334
    %v6336 = vpop.f32.mrb[0].mxu0
    %6337 = vmatprep.mubr.bf16.mxu0 0
    %6338 = vmatmul.mubr.bf16.gmra.mrb[0].mxu0 %v6267
    %v6339 = vpop.f32.mrb[0].mxu0
    %v6340 = vadd.f32 0.0, %v6339
    %v6341 = vpop.f32.mrb[0].mxu0
    %v6342 = vpop.f32.mrb[0].mxu0
    %v6343 = vadd.f32 0.0, %v6342
    %v6344 = vpop.f32.mrb[0].mxu0
    %6345 = vmatprep.mubr.bf16.mxu0 0
    %6346 = vmatmul.mubr.bf16.gmra.mrb[0].mxu0 %v6270
    %v6347 = vpop.f32.mrb[0].mxu0
    %v6348 = vadd.f32 0.0, %v6347
    %v6349 = vpop.f32.mrb[0].mxu0
    %v6350 = vpop.f32.mrb[0].mxu0
    %v6351 = vadd.f32 0.0, %v6350
    %v6352 = vpop.f32.mrb[0].mxu0
    %6353 = vmatprep.mubr.bf16.mxu0 0
    %6354 = vmatmul.mubr.bf16.gmra.mrb[0].mxu0 %v6273
    %v6355 = vpop.f32.mrb[0].mxu0
    %v6356 = vadd.f32 0.0, %v6355
    %v6357 = vpop.f32.mrb[0].mxu0
    %v6358 = vpop.f32.mrb[0].mxu0
    %v6359 = vadd.f32 0.0, %v6358
    %v6360 = vpop.f32.mrb[0].mxu0
    %6361 = vmatprep.mubr.bf16.mxu0 0
    %6362 = vmatmul.mubr.bf16.gmra.mrb[0].mxu0 %v6276
    %v6363 = vpop.f32.mrb[0].mxu0
    %v6364 = vadd.f32 0.0, %v6363
    %v6365 = vpop.f32.mrb[0].mxu0
    %v6366 = vpop.f32.mrb[0].mxu0
    %v6367 = vadd.f32 0.0, %v6366
    %v6368 = vpop.f32.mrb[0].mxu0
    %6369 = vmatprep.mubr.bf16.mxu0 0
    %6370 = vmatmul.mubr.bf16.gmra.mrb[0].mxu0 %v6279
    %v6371 = vpop.f32.mrb[0].mxu0
    %v6372 = vadd.f32 0.0, %v6371
    %v6373 = vpop.f32.mrb[0].mxu0
    %v6374 = vpop.f32.mrb[0].mxu0
    %v6375 = vadd.f32 0.0, %v6374
    %v6376 = vpop.f32.mrb[0].mxu0
    %6377 = vdwg.mxu0
    %v6378 = vadd.f32 %v6073, %v6316
    %v6379 = vadd.f32 %v6074, %v6319
    %v6380 = vadd.f32 %v6075, %v6324
    %v6381 = vadd.f32 %v6076, %v6327
    %v6382 = vadd.f32 %v6077, %v6332
    %v6383 = vadd.f32 %v6078, %v6335
    %v6384 = vadd.f32 %v6079, %v6340
    %v6385 = vadd.f32 %v6080, %v6343
    %v6386 = vadd.f32 %v6081, %v6348
    %v6387 = vadd.f32 %v6082, %v6351
    %v6388 = vadd.f32 %v6083, %v6356
    %v6389 = vadd.f32 %v6084, %v6359
    %v6390 = vadd.f32 %v6085, %v6364
    %v6391 = vadd.f32 %v6086, %v6367
    %v6392 = vadd.f32 %v6087, %v6372
    %v6393 = vadd.f32 %v6088, %v6375
    %v6394 = vld [vmem:[#allocation14] sm:$0x1]
    %v6396 = vlaneseq
    %v6397 = vshrl.u32 %v6396, 7
    %v6398 = vsub.s32 0, %v6397
    %v6399 = vrot.slane %v6394, %v6398
    %v6401 = vadd.f32 %v6378, %v6399
    %v6402 = vadd.f32 %v6379, %v6399
    %v6403 = vadd.f32 %v6380, %v6399
    %v6404 = vadd.f32 %v6381, %v6399
    %v6405 = vadd.f32 %v6382, %v6399
    %v6406 = vadd.f32 %v6383, %v6399
    %v6407 = vadd.f32 %v6384, %v6399
    %v6408 = vadd.f32 %v6385, %v6399
    %v6409 = vadd.f32 %v6386, %v6399
    %v6410 = vadd.f32 %v6387, %v6399
    %v6411 = vadd.f32 %v6388, %v6399
    %v6412 = vadd.f32 %v6389, %v6399
    %v6413 = vadd.f32 %v6390, %v6399
    %v6414 = vadd.f32 %v6391, %v6399
    %v6415 = vadd.f32 %v6392, %v6399
    %v6416 = vadd.f32 %v6393, %v6399
    %v6417 = vmax.f32 %v6401, 0.0
    %v6418 = vmax.f32 %v6402, 0.0
    %v6419 = vmax.f32 %v6403, 0.0
    %v6420 = vmax.f32 %v6404, 0.0
    %v6421 = vmax.f32 %v6405, 0.0
    %v6422 = vmax.f32 %v6406, 0.0
    %v6423 = vmax.f32 %v6407, 0.0
    %v6424 = vmax.f32 %v6408, 0.0
    %v6425 = vmax.f32 %v6409, 0.0
    %v6426 = vmax.f32 %v6410, 0.0
    %v6427 = vmax.f32 %v6411, 0.0
    %v6428 = vmax.f32 %v6412, 0.0
    %v6429 = vmax.f32 %v6413, 0.0
    %v6430 = vmax.f32 %v6414, 0.0
    %v6431 = vmax.f32 %v6415, 0.0
    %v6432 = vmax.f32 %v6416, 0.0
    %v6433 = vmax.f32 %v6417, %v6418
    %v6434 = vmax.f32 %v6419, %v6420
    %v6435 = vmax.f32 %v6421, %v6422
    %v6436 = vmax.f32 %v6423, %v6424
    %v6437 = vmax.f32 %v6425, %v6426
    %v6438 = vmax.f32 %v6427, %v6428
    %v6439 = vmax.f32 %v6429, %v6430
    %v6440 = vmax.f32 %v6431, %v6432
    %v6449 = vcombine.high %v6433, %v6433
    %v6451 = vunpack.c.l.s4 1983009808
    %v6452 = vunpack.c.0.s8 %v6451
    %v6453 = vlaneseq
    %v6454 = vshrl.u32 %v6453, 7
    %v6455 = vsub.s32 %v6452, %v6454
    %v6456 = vrot.slane %v6433, %v6455
    %v6458 = vunpack.c.l.s4 1983009808
    %v6459 = vunpack.c.0.s8 %v6458
    %v6460 = vlaneseq
    %v6461 = vshrl.u32 %v6460, 7
    %v6462 = vsub.s32 %v6459, %v6461
    %v6463 = vrot.slane %v6449, %v6462
    %v6464 = vcombine.high %v6456, %v6456
    %v6465 = vcombine.high %v6463, %v6463
    %v6466 = vcombine.high %v6434, %v6434
    %v6468 = vunpack.c.l.s4 1983009808
    %v6469 = vunpack.c.0.s8 %v6468
    %v6470 = vlaneseq
    %v6471 = vshrl.u32 %v6470, 7
    %v6472 = vsub.s32 %v6469, %v6471
    %v6473 = vrot.slane %v6434, %v6472
    %v6475 = vunpack.c.l.s4 1983009808
    %v6476 = vunpack.c.0.s8 %v6475
    %v6477 = vlaneseq
    %v6478 = vshrl.u32 %v6477, 7
    %v6479 = vsub.s32 %v6476, %v6478
    %v6480 = vrot.slane %v6466, %v6479
    %v6481 = vcombine.high %v6473, %v6473
    %v6482 = vcombine.high %v6480, %v6480
    %v6483 = vcombine.high %v6435, %v6435
    %v6485 = vunpack.c.l.s4 1983009808
    %v6486 = vunpack.c.0.s8 %v6485
    %v6487 = vlaneseq
    %v6488 = vshrl.u32 %v6487, 7
    %v6489 = vsub.s32 %v6486, %v6488
    %v6490 = vrot.slane %v6435, %v6489
    %v6492 = vunpack.c.l.s4 1983009808
    %v6493 = vunpack.c.0.s8 %v6492
    %v6494 = vlaneseq
    %v6495 = vshrl.u32 %v6494, 7
    %v6496 = vsub.s32 %v6493, %v6495
    %v6497 = vrot.slane %v6483, %v6496
    %v6498 = vcombine.high %v6490, %v6490
    %v6499 = vcombine.high %v6497, %v6497
    %v6500 = vcombine.high %v6436, %v6436
    %v6502 = vunpack.c.l.s4 1983009808
    %v6503 = vunpack.c.0.s8 %v6502
    %v6504 = vlaneseq
    %v6505 = vshrl.u32 %v6504, 7
    %v6506 = vsub.s32 %v6503, %v6505
    %v6507 = vrot.slane %v6436, %v6506
    %v6509 = vunpack.c.l.s4 1983009808
    %v6510 = vunpack.c.0.s8 %v6509
    %v6511 = vlaneseq
    %v6512 = vshrl.u32 %v6511, 7
    %v6513 = vsub.s32 %v6510, %v6512
    %v6514 = vrot.slane %v6500, %v6513
    %v6515 = vcombine.high %v6507, %v6507
    %v6516 = vcombine.high %v6514, %v6514
    %v6517 = vcombine.high %v6437, %v6437
    %v6519 = vunpack.c.l.s4 1983009808
    %v6520 = vunpack.c.0.s8 %v6519
    %v6521 = vlaneseq
    %v6522 = vshrl.u32 %v6521, 7
    %v6523 = vsub.s32 %v6520, %v6522
    %v6524 = vrot.slane %v6437, %v6523
    %v6526 = vunpack.c.l.s4 1983009808
    %v6527 = vunpack.c.0.s8 %v6526
    %v6528 = vlaneseq
    %v6529 = vshrl.u32 %v6528, 7
    %v6530 = vsub.s32 %v6527, %v6529
    %v6531 = vrot.slane %v6517, %v6530
    %v6532 = vcombine.high %v6524, %v6524
    %v6533 = vcombine.high %v6531, %v6531
    %v6534 = vcombine.high %v6438, %v6438
    %v6536 = vunpack.c.l.s4 1983009808
    %v6537 = vunpack.c.0.s8 %v6536
    %v6538 = vlaneseq
    %v6539 = vshrl.u32 %v6538, 7
    %v6540 = vsub.s32 %v6537, %v6539
    %v6541 = vrot.slane %v6438, %v6540
    %v6543 = vunpack.c.l.s4 1983009808
    %v6544 = vunpack.c.0.s8 %v6543
    %v6545 = vlaneseq
    %v6546 = vshrl.u32 %v6545, 7
    %v6547 = vsub.s32 %v6544, %v6546
    %v6548 = vrot.slane %v6534, %v6547
    %v6549 = vcombine.high %v6541, %v6541
    %v6550 = vcombine.high %v6548, %v6548
    %v6551 = vcombine.high %v6439, %v6439
    %v6553 = vunpack.c.l.s4 1983009808
    %v6554 = vunpack.c.0.s8 %v6553
    %v6555 = vlaneseq
    %v6556 = vshrl.u32 %v6555, 7
    %v6557 = vsub.s32 %v6554, %v6556
    %v6558 = vrot.slane %v6439, %v6557
    %v6560 = vunpack.c.l.s4 1983009808
    %v6561 = vunpack.c.0.s8 %v6560
    %v6562 = vlaneseq
    %v6563 = vshrl.u32 %v6562, 7
    %v6564 = vsub.s32 %v6561, %v6563
    %v6565 = vrot.slane %v6551, %v6564
    %v6566 = vcombine.high %v6558, %v6558
    %v6567 = vcombine.high %v6565, %v6565
    %v6568 = vcombine.high %v6440, %v6440
    %v6570 = vunpack.c.l.s4 1983009808
    %v6571 = vunpack.c.0.s8 %v6570
    %v6572 = vlaneseq
    %v6573 = vshrl.u32 %v6572, 7
    %v6574 = vsub.s32 %v6571, %v6573
    %v6575 = vrot.slane %v6440, %v6574
    %v6577 = vunpack.c.l.s4 1983009808
    %v6578 = vunpack.c.0.s8 %v6577
    %v6579 = vlaneseq
    %v6580 = vshrl.u32 %v6579, 7
    %v6581 = vsub.s32 %v6578, %v6580
    %v6582 = vrot.slane %v6568, %v6581
    %v6583 = vcombine.high %v6575, %v6575
    %v6584 = vcombine.high %v6582, %v6582
    %vm6617 = vcmask 1041408
    %v6618 = vsel %vm6617, %v6456, -inf
    %v6619 = vrot.slane %v6618, 4
    %v6620 = vmax.f32 %v6618, %v6619
    %v6621 = vrot.slane %v6620, 2
    %v6622 = vmax.f32 %v6620, %v6621
    %v6623 = vrot.slane %v6622, 1
    %v6624 = vmax.f32 %v6622, %v6623
    %v6625 = vsel %vm6617, %v6464, -inf
    %v6626 = vrot.slane %v6625, 4
    %v6627 = vmax.f32 %v6625, %v6626
    %v6628 = vrot.slane %v6627, 2
    %v6629 = vmax.f32 %v6627, %v6628
    %v6630 = vrot.slane %v6629, 1
    %v6631 = vmax.f32 %v6629, %v6630
    %v6632 = vsel %vm6617, %v6463, -inf
    %v6633 = vrot.slane %v6632, 4
    %v6634 = vmax.f32 %v6632, %v6633
    %v6635 = vrot.slane %v6634, 2
    %v6636 = vmax.f32 %v6634, %v6635
    %v6637 = vrot.slane %v6636, 1
    %v6638 = vmax.f32 %v6636, %v6637
    %v6639 = vsel %vm6617, %v6465, -inf
    %v6640 = vrot.slane %v6639, 4
    %v6641 = vmax.f32 %v6639, %v6640
    %v6642 = vrot.slane %v6641, 2
    %v6643 = vmax.f32 %v6641, %v6642
    %v6644 = vrot.slane %v6643, 1
    %v6645 = vmax.f32 %v6643, %v6644
    %v6646 = vsel %vm6617, %v6473, -inf
    %v6647 = vrot.slane %v6646, 4
    %v6648 = vmax.f32 %v6646, %v6647
    %v6649 = vrot.slane %v6648, 2
    %v6650 = vmax.f32 %v6648, %v6649
    %v6651 = vrot.slane %v6650, 1
    %v6652 = vmax.f32 %v6650, %v6651
    %v6653 = vsel %vm6617, %v6481, -inf
    %v6654 = vrot.slane %v6653, 4
    %v6655 = vmax.f32 %v6653, %v6654
    %v6656 = vrot.slane %v6655, 2
    %v6657 = vmax.f32 %v6655, %v6656
    %v6658 = vrot.slane %v6657, 1
    %v6659 = vmax.f32 %v6657, %v6658
    %v6660 = vsel %vm6617, %v6480, -inf
    %v6661 = vrot.slane %v6660, 4
    %v6662 = vmax.f32 %v6660, %v6661
    %v6663 = vrot.slane %v6662, 2
    %v6664 = vmax.f32 %v6662, %v6663
    %v6665 = vrot.slane %v6664, 1
    %v6666 = vmax.f32 %v6664, %v6665
    %v6667 = vsel %vm6617, %v6482, -inf
    %v6668 = vrot.slane %v6667, 4
    %v6669 = vmax.f32 %v6667, %v6668
    %v6670 = vrot.slane %v6669, 2
    %v6671 = vmax.f32 %v6669, %v6670
    %v6672 = vrot.slane %v6671, 1
    %v6673 = vmax.f32 %v6671, %v6672
    %v6674 = vsel %vm6617, %v6490, -inf
    %v6675 = vrot.slane %v6674, 4
    %v6676 = vmax.f32 %v6674, %v6675
    %v6677 = vrot.slane %v6676, 2
    %v6678 = vmax.f32 %v6676, %v6677
    %v6679 = vrot.slane %v6678, 1
    %v6680 = vmax.f32 %v6678, %v6679
    %v6681 = vsel %vm6617, %v6498, -inf
    %v6682 = vrot.slane %v6681, 4
    %v6683 = vmax.f32 %v6681, %v6682
    %v6684 = vrot.slane %v6683, 2
    %v6685 = vmax.f32 %v6683, %v6684
    %v6686 = vrot.slane %v6685, 1
    %v6687 = vmax.f32 %v6685, %v6686
    %v6688 = vsel %vm6617, %v6497, -inf
    %v6689 = vrot.slane %v6688, 4
    %v6690 = vmax.f32 %v6688, %v6689
    %v6691 = vrot.slane %v6690, 2
    %v6692 = vmax.f32 %v6690, %v6691
    %v6693 = vrot.slane %v6692, 1
    %v6694 = vmax.f32 %v6692, %v6693
    %v6695 = vsel %vm6617, %v6499, -inf
    %v6696 = vrot.slane %v6695, 4
    %v6697 = vmax.f32 %v6695, %v6696
    %v6698 = vrot.slane %v6697, 2
    %v6699 = vmax.f32 %v6697, %v6698
    %v6700 = vrot.slane %v6699, 1
    %v6701 = vmax.f32 %v6699, %v6700
    %v6702 = vsel %vm6617, %v6507, -inf
    %v6703 = vrot.slane %v6702, 4
    %v6704 = vmax.f32 %v6702, %v6703
    %v6705 = vrot.slane %v6704, 2
    %v6706 = vmax.f32 %v6704, %v6705
    %v6707 = vrot.slane %v6706, 1
    %v6708 = vmax.f32 %v6706, %v6707
    %v6709 = vsel %vm6617, %v6515, -inf
    %v6710 = vrot.slane %v6709, 4
    %v6711 = vmax.f32 %v6709, %v6710
    %v6712 = vrot.slane %v6711, 2
    %v6713 = vmax.f32 %v6711, %v6712
    %v6714 = vrot.slane %v6713, 1
    %v6715 = vmax.f32 %v6713, %v6714
    %v6716 = vsel %vm6617, %v6514, -inf
    %v6717 = vrot.slane %v6716, 4
    %v6718 = vmax.f32 %v6716, %v6717
    %v6719 = vrot.slane %v6718, 2
    %v6720 = vmax.f32 %v6718, %v6719
    %v6721 = vrot.slane %v6720, 1
    %v6722 = vmax.f32 %v6720, %v6721
    %v6723 = vsel %vm6617, %v6516, -inf
    %v6724 = vrot.slane %v6723, 4
    %v6725 = vmax.f32 %v6723, %v6724
    %v6726 = vrot.slane %v6725, 2
    %v6727 = vmax.f32 %v6725, %v6726
    %v6728 = vrot.slane %v6727, 1
    %v6729 = vmax.f32 %v6727, %v6728
    %v6730 = vsel %vm6617, %v6524, -inf
    %v6731 = vrot.slane %v6730, 4
    %v6732 = vmax.f32 %v6730, %v6731
    %v6733 = vrot.slane %v6732, 2
    %v6734 = vmax.f32 %v6732, %v6733
    %v6735 = vrot.slane %v6734, 1
    %v6736 = vmax.f32 %v6734, %v6735
    %v6737 = vsel %vm6617, %v6532, -inf
    %v6738 = vrot.slane %v6737, 4
    %v6739 = vmax.f32 %v6737, %v6738
    %v6740 = vrot.slane %v6739, 2
    %v6741 = vmax.f32 %v6739, %v6740
    %v6742 = vrot.slane %v6741, 1
    %v6743 = vmax.f32 %v6741, %v6742
    %v6744 = vsel %vm6617, %v6531, -inf
    %v6745 = vrot.slane %v6744, 4
    %v6746 = vmax.f32 %v6744, %v6745
    %v6747 = vrot.slane %v6746, 2
    %v6748 = vmax.f32 %v6746, %v6747
    %v6749 = vrot.slane %v6748, 1
    %v6750 = vmax.f32 %v6748, %v6749
    %v6751 = vsel %vm6617, %v6533, -inf
    %v6752 = vrot.slane %v6751, 4
    %v6753 = vmax.f32 %v6751, %v6752
    %v6754 = vrot.slane %v6753, 2
    %v6755 = vmax.f32 %v6753, %v6754
    %v6756 = vrot.slane %v6755, 1
    %v6757 = vmax.f32 %v6755, %v6756
    %v6758 = vsel %vm6617, %v6541, -inf
    %v6759 = vrot.slane %v6758, 4
    %v6760 = vmax.f32 %v6758, %v6759
    %v6761 = vrot.slane %v6760, 2
    %v6762 = vmax.f32 %v6760, %v6761
    %v6763 = vrot.slane %v6762, 1
    %v6764 = vmax.f32 %v6762, %v6763
    %v6765 = vsel %vm6617, %v6549, -inf
    %v6766 = vrot.slane %v6765, 4
    %v6767 = vmax.f32 %v6765, %v6766
    %v6768 = vrot.slane %v6767, 2
    %v6769 = vmax.f32 %v6767, %v6768
    %v6770 = vrot.slane %v6769, 1
    %v6771 = vmax.f32 %v6769, %v6770
    %v6772 = vsel %vm6617, %v6548, -inf
    %v6773 = vrot.slane %v6772, 4
    %v6774 = vmax.f32 %v6772, %v6773
    %v6775 = vrot.slane %v6774, 2
    %v6776 = vmax.f32 %v6774, %v6775
    %v6777 = vrot.slane %v6776, 1
    %v6778 = vmax.f32 %v6776, %v6777
    %v6779 = vsel %vm6617, %v6550, -inf
    %v6780 = vrot.slane %v6779, 4
    %v6781 = vmax.f32 %v6779, %v6780
    %v6782 = vrot.slane %v6781, 2
    %v6783 = vmax.f32 %v6781, %v6782
    %v6784 = vrot.slane %v6783, 1
    %v6785 = vmax.f32 %v6783, %v6784
    %v6786 = vsel %vm6617, %v6558, -inf
    %v6787 = vrot.slane %v6786, 4
    %v6788 = vmax.f32 %v6786, %v6787
    %v6789 = vrot.slane %v6788, 2
    %v6790 = vmax.f32 %v6788, %v6789
    %v6791 = vrot.slane %v6790, 1
    %v6792 = vmax.f32 %v6790, %v6791
    %v6793 = vsel %vm6617, %v6566, -inf
    %v6794 = vrot.slane %v6793, 4
    %v6795 = vmax.f32 %v6793, %v6794
    %v6796 = vrot.slane %v6795, 2
    %v6797 = vmax.f32 %v6795, %v6796
    %v6798 = vrot.slane %v6797, 1
    %v6799 = vmax.f32 %v6797, %v6798
    %v6800 = vsel %vm6617, %v6565, -inf
    %v6801 = vrot.slane %v6800, 4
    %v6802 = vmax.f32 %v6800, %v6801
    %v6803 = vrot.slane %v6802, 2
    %v6804 = vmax.f32 %v6802, %v6803
    %v6805 = vrot.slane %v6804, 1
    %v6806 = vmax.f32 %v6804, %v6805
    %v6807 = vsel %vm6617, %v6567, -inf
    %v6808 = vrot.slane %v6807, 4
    %v6809 = vmax.f32 %v6807, %v6808
    %v6810 = vrot.slane %v6809, 2
    %v6811 = vmax.f32 %v6809, %v6810
    %v6812 = vrot.slane %v6811, 1
    %v6813 = vmax.f32 %v6811, %v6812
    %v6814 = vsel %vm6617, %v6575, -inf
    %v6815 = vrot.slane %v6814, 4
    %v6816 = vmax.f32 %v6814, %v6815
    %v6817 = vrot.slane %v6816, 2
    %v6818 = vmax.f32 %v6816, %v6817
    %v6819 = vrot.slane %v6818, 1
    %v6820 = vmax.f32 %v6818, %v6819
    %v6821 = vsel %vm6617, %v6583, -inf
    %v6822 = vrot.slane %v6821, 4
    %v6823 = vmax.f32 %v6821, %v6822
    %v6824 = vrot.slane %v6823, 2
    %v6825 = vmax.f32 %v6823, %v6824
    %v6826 = vrot.slane %v6825, 1
    %v6827 = vmax.f32 %v6825, %v6826
    %v6828 = vsel %vm6617, %v6582, -inf
    %v6829 = vrot.slane %v6828, 4
    %v6830 = vmax.f32 %v6828, %v6829
    %v6831 = vrot.slane %v6830, 2
    %v6832 = vmax.f32 %v6830, %v6831
    %v6833 = vrot.slane %v6832, 1
    %v6834 = vmax.f32 %v6832, %v6833
    %v6835 = vsel %vm6617, %v6584, -inf
    %v6836 = vrot.slane %v6835, 4
    %v6837 = vmax.f32 %v6835, %v6836
    %v6838 = vrot.slane %v6837, 2
    %v6839 = vmax.f32 %v6837, %v6838
    %v6840 = vrot.slane %v6839, 1
    %v6841 = vmax.f32 %v6839, %v6840
    %v6842 = vpack.c.bf16 %v6624, %v6624
    %v6843 = vpack.c.bf16 %v6631, %v6631
    %v6844 = vpack.c.bf16 %v6638, %v6638
    %v6845 = vpack.c.bf16 %v6645, %v6645
    %v6846 = vpack.c.bf16 %v6652, %v6652
    %v6847 = vpack.c.bf16 %v6659, %v6659
    %v6848 = vpack.c.bf16 %v6666, %v6666
    %v6849 = vpack.c.bf16 %v6673, %v6673
    %v6850 = vpack.c.bf16 %v6680, %v6680
    %v6851 = vpack.c.bf16 %v6687, %v6687
    %v6852 = vpack.c.bf16 %v6694, %v6694
    %v6853 = vpack.c.bf16 %v6701, %v6701
    %v6854 = vpack.c.bf16 %v6708, %v6708
    %v6855 = vpack.c.bf16 %v6715, %v6715
    %v6856 = vpack.c.bf16 %v6722, %v6722
    %v6857 = vpack.c.bf16 %v6729, %v6729
    %v6858 = vpack.c.bf16 %v6736, %v6736
    %v6859 = vpack.c.bf16 %v6743, %v6743
    %v6860 = vpack.c.bf16 %v6750, %v6750
    %v6861 = vpack.c.bf16 %v6757, %v6757
    %v6862 = vpack.c.bf16 %v6764, %v6764
    %v6863 = vpack.c.bf16 %v6771, %v6771
    %v6864 = vpack.c.bf16 %v6778, %v6778
    %v6865 = vpack.c.bf16 %v6785, %v6785
    %v6866 = vpack.c.bf16 %v6792, %v6792
    %v6867 = vpack.c.bf16 %v6799, %v6799
    %v6868 = vpack.c.bf16 %v6806, %v6806
    %v6869 = vpack.c.bf16 %v6813, %v6813
    %v6870 = vpack.c.bf16 %v6820, %v6820
    %v6871 = vpack.c.bf16 %v6827, %v6827
    %v6872 = vpack.c.bf16 %v6834, %v6834
    %v6873 = vpack.c.bf16 %v6841, %v6841
    %v6906 = vunpack.c.l.b16 %v6842
    %v6907 = vunpack.c.l.b16 %v6843
    %v6908 = vunpack.c.l.b16 %v6844
    %v6909 = vunpack.c.l.b16 %v6845
    %v6910 = vunpack.c.l.b16 %v6846
    %v6911 = vunpack.c.l.b16 %v6847
    %v6912 = vunpack.c.l.b16 %v6848
    %v6913 = vunpack.c.l.b16 %v6849
    %v6914 = vunpack.c.l.b16 %v6850
    %v6915 = vunpack.c.l.b16 %v6851
    %v6916 = vunpack.c.l.b16 %v6852
    %v6917 = vunpack.c.l.b16 %v6853
    %v6918 = vunpack.c.l.b16 %v6854
    %v6919 = vunpack.c.l.b16 %v6855
    %v6920 = vunpack.c.l.b16 %v6856
    %v6921 = vunpack.c.l.b16 %v6857
    %v6922 = vunpack.c.l.b16 %v6858
    %v6923 = vunpack.c.l.b16 %v6859
    %v6924 = vunpack.c.l.b16 %v6860
    %v6925 = vunpack.c.l.b16 %v6861
    %v6926 = vunpack.c.l.b16 %v6862
    %v6927 = vunpack.c.l.b16 %v6863
    %v6928 = vunpack.c.l.b16 %v6864
    %v6929 = vunpack.c.l.b16 %v6865
    %v6930 = vunpack.c.l.b16 %v6866
    %v6931 = vunpack.c.l.b16 %v6867
    %v6932 = vunpack.c.l.b16 %v6868
    %v6933 = vunpack.c.l.b16 %v6869
    %v6934 = vunpack.c.l.b16 %v6870
    %v6935 = vunpack.c.l.b16 %v6871
    %v6936 = vunpack.c.l.b16 %v6872
    %v6937 = vunpack.c.l.b16 %v6873
    %v6938 = vpack.c.b16 %v6906, %v6906
    %v6939 = vpack.c.b16 %v6907, %v6907
    %v6940 = vpack.c.b16 %v6908, %v6908
    %v6941 = vpack.c.b16 %v6909, %v6909
    %v6942 = vpack.c.b16 %v6910, %v6910
    %v6943 = vpack.c.b16 %v6911, %v6911
    %v6944 = vpack.c.b16 %v6912, %v6912
    %v6945 = vpack.c.b16 %v6913, %v6913
    %v6946 = vpack.c.b16 %v6914, %v6914
    %v6947 = vpack.c.b16 %v6915, %v6915
    %v6948 = vpack.c.b16 %v6916, %v6916
    %v6949 = vpack.c.b16 %v6917, %v6917
    %v6950 = vpack.c.b16 %v6918, %v6918
    %v6951 = vpack.c.b16 %v6919, %v6919
    %v6952 = vpack.c.b16 %v6920, %v6920
    %v6953 = vpack.c.b16 %v6921, %v6921
    %v6954 = vpack.c.b16 %v6922, %v6922
    %v6955 = vpack.c.b16 %v6923, %v6923
    %v6956 = vpack.c.b16 %v6924, %v6924
    %v6957 = vpack.c.b16 %v6925, %v6925
    %v6958 = vpack.c.b16 %v6926, %v6926
    %v6959 = vpack.c.b16 %v6927, %v6927
    %v6960 = vpack.c.b16 %v6928, %v6928
    %v6961 = vpack.c.b16 %v6929, %v6929
    %v6962 = vpack.c.b16 %v6930, %v6930
    %v6963 = vpack.c.b16 %v6931, %v6931
    %v6964 = vpack.c.b16 %v6932, %v6932
    %v6965 = vpack.c.b16 %v6933, %v6933
    %v6966 = vpack.c.b16 %v6934, %v6934
    %v6967 = vpack.c.b16 %v6935, %v6935
    %v6968 = vpack.c.b16 %v6936, %v6936
    %v6969 = vpack.c.b16 %v6937, %v6937
    %v6970 = vunpack.c.l.b16 %v6938
    %v6971 = vunpack.c.l.b16 %v6939
    %v6972 = vunpack.c.l.b16 %v6940
    %v6973 = vunpack.c.l.b16 %v6941
    %v6974 = vunpack.c.l.b16 %v6942
    %v6975 = vunpack.c.l.b16 %v6943
    %v6976 = vunpack.c.l.b16 %v6944
    %v6977 = vunpack.c.l.b16 %v6945
    %v6978 = vunpack.c.l.b16 %v6946
    %v6979 = vunpack.c.l.b16 %v6947
    %v6980 = vunpack.c.l.b16 %v6948
    %v6981 = vunpack.c.l.b16 %v6949
    %v6982 = vunpack.c.l.b16 %v6950
    %v6983 = vunpack.c.l.b16 %v6951
    %v6984 = vunpack.c.l.b16 %v6952
    %v6985 = vunpack.c.l.b16 %v6953
    %v6986 = vunpack.c.l.b16 %v6954
    %v6987 = vunpack.c.l.b16 %v6955
    %v6988 = vunpack.c.l.b16 %v6956
    %v6989 = vunpack.c.l.b16 %v6957
    %v6990 = vunpack.c.l.b16 %v6958
    %v6991 = vunpack.c.l.b16 %v6959
    %v6992 = vunpack.c.l.b16 %v6960
    %v6993 = vunpack.c.l.b16 %v6961
    %v6994 = vunpack.c.l.b16 %v6962
    %v6995 = vunpack.c.l.b16 %v6963
    %v6996 = vunpack.c.l.b16 %v6964
    %v6997 = vunpack.c.l.b16 %v6965
    %v6998 = vunpack.c.l.b16 %v6966
    %v6999 = vunpack.c.l.b16 %v6967
    %v7000 = vunpack.c.l.b16 %v6968
    %v7001 = vunpack.c.l.b16 %v6969
    %v7002 = vsel %vm3228, %v6971, %v6970
    %v7003 = vsel %vm3230, %v6972, %v7002
    %v7004 = vsel %vm3232, %v6973, %v7003
    %v7005 = vsel %vm3228, %v6975, %v6974
    %v7006 = vsel %vm3230, %v6976, %v7005
    %v7007 = vsel %vm3232, %v6977, %v7006
    %v7008 = vsel %vm3228, %v6979, %v6978
    %v7009 = vsel %vm3230, %v6980, %v7008
    %v7010 = vsel %vm3232, %v6981, %v7009
    %v7011 = vsel %vm3228, %v6983, %v6982
    %v7012 = vsel %vm3230, %v6984, %v7011
    %v7013 = vsel %vm3232, %v6985, %v7012
    %v7014 = vsel %vm3228, %v6987, %v6986
    %v7015 = vsel %vm3230, %v6988, %v7014
    %v7016 = vsel %vm3232, %v6989, %v7015
    %v7017 = vsel %vm3228, %v6991, %v6990
    %v7018 = vsel %vm3230, %v6992, %v7017
    %v7019 = vsel %vm3232, %v6993, %v7018
    %v7020 = vsel %vm3228, %v6995, %v6994
    %v7021 = vsel %vm3230, %v6996, %v7020
    %v7022 = vsel %vm3232, %v6997, %v7021
    %v7023 = vsel %vm3228, %v6999, %v6998
    %v7024 = vsel %vm3230, %v7000, %v7023
    %v7025 = vsel %vm3232, %v7001, %v7024
    %v7026 = vpack.c.b16 %v7004, %v7004
    %v7027 = vpack.c.b16 %v7007, %v7007
    %v7028 = vpack.c.b16 %v7010, %v7010
    %v7029 = vpack.c.b16 %v7013, %v7013
    %v7030 = vpack.c.b16 %v7016, %v7016
    %v7031 = vpack.c.b16 %v7019, %v7019
    %v7032 = vpack.c.b16 %v7022, %v7022
    %v7033 = vpack.c.b16 %v7025, %v7025
    %s7042 = scalar_lea.vmem [#allocation6], 4
    %vm7043 = vsmask.f32 2306
    %vm7044 = vmand %vm4175, %vm7043
    %v7045 = vld [vmem:[%s7042] sm:$0x7]
    %v7046 = vsel %vm7044, %v7026, %v7045
    %7047 = vst [vmem:[%s7042] sm:$0x7] %v7046
    %v7048 = vld [vmem:[%s7042 + $0x4] sm:$0x7]
    %v7049 = vsel %vm7044, %v7027, %v7048
    %7050 = vst [vmem:[%s7042 + $0x4] sm:$0x7] %v7049
    %v7051 = vld [vmem:[%s7042 + $0x8] sm:$0x7]
    %v7052 = vsel %vm7044, %v7028, %v7051
    %7053 = vst [vmem:[%s7042 + $0x8] sm:$0x7] %v7052
    %v7054 = vld [vmem:[%s7042 + $0xc] sm:$0x7]
    %v7055 = vsel %vm7044, %v7029, %v7054
    %7056 = vst [vmem:[%s7042 + $0xc] sm:$0x7] %v7055
    %v7057 = vld [vmem:[%s7042 + $0x18] sm:$0x7]
    %v7058 = vsel %vm7044, %v7030, %v7057
    %7059 = vst [vmem:[%s7042 + $0x18] sm:$0x7] %v7058
    %v7060 = vld [vmem:[%s7042 + $0x1c] sm:$0x7]
    %v7061 = vsel %vm7044, %v7031, %v7060
    %7062 = vst [vmem:[%s7042 + $0x1c] sm:$0x7] %v7061
    %v7063 = vld [vmem:[%s7042 + $0x20] sm:$0x7]
    %v7064 = vsel %vm7044, %v7032, %v7063
    %7065 = vst [vmem:[%s7042 + $0x20] sm:$0x7] %v7064
    %v7066 = vld [vmem:[%s7042 + $0x24] sm:$0x7]
    %v7067 = vsel %vm7044, %v7033, %v7066
    %7068 = vst [vmem:[%s7042 + $0x24] sm:$0x7] %v7067
    %s7069 = smul.u32 4, 144
    %s7070 = smul.u32 %s7069, 2
    %s7071 = sshll.u32 %s7070, 4
    %7072 = dma.done [#allocation4], %s7071
    %v7073 = vld [vmem:[#allocation6] sm:$0x3]
    %v7074 = vld [vmem:[#allocation6 + $0x4] sm:$0x3]
    %v7075 = vld [vmem:[#allocation6 + $0x8] sm:$0x3]
    %v7076 = vld [vmem:[#allocation6 + $0xc] sm:$0x3]
    %v7077 = vld [vmem:[#allocation6 + $0x18] sm:$0x3]
    %v7078 = vld [vmem:[#allocation6 + $0x1c] sm:$0x3]
    %v7079 = vld [vmem:[#allocation6 + $0x20] sm:$0x3]
    %v7080 = vld [vmem:[#allocation6 + $0x24] sm:$0x3]
    %v7081 = vld [vmem:[#allocation2] sm:$0xff]
    %v7082 = vld [vmem:[#allocation2 + $0x8] sm:$0xff]
    %v7083 = vld [vmem:[#allocation2 + $0x10] sm:$0xff]
    %v7084 = vld [vmem:[#allocation2 + $0x18] sm:$0xff]
    %v7085 = vld [vmem:[#allocation2 + $0x20] sm:$0xff]
    %v7086 = vld [vmem:[#allocation2 + $0x28] sm:$0xff]
    %v7087 = vld [vmem:[#allocation2 + $0x30] sm:$0xff]
    %v7088 = vld [vmem:[#allocation2 + $0x38] sm:$0xff]
    %v7089 = vld [vmem:[#allocation2 + $0x40] sm:$0xff]
    %v7090 = vld [vmem:[#allocation2 + $0x48] sm:$0xff]
    %v7091 = vld [vmem:[#allocation2 + $0x50] sm:$0xff]
    %v7092 = vld [vmem:[#allocation2 + $0x58] sm:$0xff]
    %v7093 = vld [vmem:[#allocation2 + $0x60] sm:$0xff]
    %v7094 = vld [vmem:[#allocation2 + $0x68] sm:$0xff]
    %v7095 = vld [vmem:[#allocation2 + $0x70] sm:$0xff]
    %v7096 = vld [vmem:[#allocation2 + $0x78] sm:$0xff]
    %v7097 = vld [vmem:[#allocation6] sm:$0x7]
    %v7098 = vld [vmem:[#allocation6 + $0x4] sm:$0x7]
    %v7099 = vld [vmem:[#allocation6 + $0x8] sm:$0x7]
    %v7100 = vld [vmem:[#allocation6 + $0xc] sm:$0x7]
    %v7101 = vld [vmem:[#allocation6 + $0x18] sm:$0x7]
    %v7102 = vld [vmem:[#allocation6 + $0x1c] sm:$0x7]
    %v7103 = vld [vmem:[#allocation6 + $0x20] sm:$0x7]
    %v7104 = vld [vmem:[#allocation6 + $0x24] sm:$0x7]
    %v7114 = vunpack.c.l.s4 1983009808
    %v7115 = vunpack.c.0.s8 %v7114
    %v7116 = vlaneseq
    %v7117 = vshrl.u32 %v7116, 7
    %v7118 = vsub.s32 %v7115, %v7117
    %v7119 = vrot.slane %v7097, %v7118
    %v7120 = vcombine.high %v7119, %v7119
    %v7122 = vunpack.c.l.s4 1983009808
    %v7123 = vunpack.c.0.s8 %v7122
    %v7124 = vlaneseq
    %v7125 = vshrl.u32 %v7124, 7
    %v7126 = vsub.s32 %v7123, %v7125
    %v7127 = vrot.slane %v7098, %v7126
    %v7128 = vcombine.high %v7127, %v7127
    %v7130 = vunpack.c.l.s4 1983009808
    %v7131 = vunpack.c.0.s8 %v7130
    %v7132 = vlaneseq
    %v7133 = vshrl.u32 %v7132, 7
    %v7134 = vsub.s32 %v7131, %v7133
    %v7135 = vrot.slane %v7099, %v7134
    %v7136 = vcombine.high %v7135, %v7135
    %v7138 = vunpack.c.l.s4 1983009808
    %v7139 = vunpack.c.0.s8 %v7138
    %v7140 = vlaneseq
    %v7141 = vshrl.u32 %v7140, 7
    %v7142 = vsub.s32 %v7139, %v7141
    %v7143 = vrot.slane %v7100, %v7142
    %v7144 = vcombine.high %v7143, %v7143
    %v7146 = vunpack.c.l.s4 1983009808
    %v7147 = vunpack.c.0.s8 %v7146
    %v7148 = vlaneseq
    %v7149 = vshrl.u32 %v7148, 7
    %v7150 = vsub.s32 %v7147, %v7149
    %v7151 = vrot.slane %v7101, %v7150
    %v7152 = vcombine.high %v7151, %v7151
    %v7154 = vunpack.c.l.s4 1983009808
    %v7155 = vunpack.c.0.s8 %v7154
    %v7156 = vlaneseq
    %v7157 = vshrl.u32 %v7156, 7
    %v7158 = vsub.s32 %v7155, %v7157
    %v7159 = vrot.slane %v7102, %v7158
    %v7160 = vcombine.high %v7159, %v7159
    %v7162 = vunpack.c.l.s4 1983009808
    %v7163 = vunpack.c.0.s8 %v7162
    %v7164 = vlaneseq
    %v7165 = vshrl.u32 %v7164, 7
    %v7166 = vsub.s32 %v7163, %v7165
    %v7167 = vrot.slane %v7103, %v7166
    %v7168 = vcombine.high %v7167, %v7167
    %v7170 = vunpack.c.l.s4 1983009808
    %v7171 = vunpack.c.0.s8 %v7170
    %v7172 = vlaneseq
    %v7173 = vshrl.u32 %v7172, 7
    %v7174 = vsub.s32 %v7171, %v7173
    %v7175 = vrot.slane %v7104, %v7174
    %v7176 = vcombine.high %v7175, %v7175
    %vm7177 = vsmask.f32 1280
    %vm7178 = vsmask.f32 3336
    %vm7179 = vmor %vm7177, %vm7178
    %vm7180 = vsmask.f32 5392
    %vm7181 = vmor %vm7179, %vm7180
    %vm7182 = vsmask.f32 7448
    %vm7183 = vmor %vm7181, %vm7182
    %v7185 = vshrl.u32 %v7119, 16
    %v7187 = vrot.slane %v7185, 6
    %v7188 = vshll.u32 %v7119, 16
    %v7190 = vrot.slane %v7188, 7
    %v7191 = vor.u32 %v7187, %v7190
    %v7192 = vrot.slane %v7191, 2
    %v7194 = vshll.u32 %v7120, 16
    %v7196 = vrot.slane %v7194, 7
    %v7197 = vsel %vm7183, %v7192, %v7196
    %v7199 = vshrl.u32 %v7127, 16
    %v7201 = vrot.slane %v7199, 6
    %v7202 = vshll.u32 %v7127, 16
    %v7204 = vrot.slane %v7202, 7
    %v7205 = vor.u32 %v7201, %v7204
    %v7206 = vrot.slane %v7205, 2
    %v7208 = vshll.u32 %v7128, 16
    %v7210 = vrot.slane %v7208, 7
    %v7211 = vsel %vm7183, %v7206, %v7210
    %v7213 = vshrl.u32 %v7135, 16
    %v7215 = vrot.slane %v7213, 6
    %v7216 = vshll.u32 %v7135, 16
    %v7218 = vrot.slane %v7216, 7
    %v7219 = vor.u32 %v7215, %v7218
    %v7220 = vrot.slane %v7219, 2
    %v7222 = vshll.u32 %v7136, 16
    %v7224 = vrot.slane %v7222, 7
    %v7225 = vsel %vm7183, %v7220, %v7224
    %v7227 = vshrl.u32 %v7143, 16
    %v7229 = vrot.slane %v7227, 6
    %v7230 = vshll.u32 %v7143, 16
    %v7232 = vrot.slane %v7230, 7
    %v7233 = vor.u32 %v7229, %v7232
    %v7234 = vrot.slane %v7233, 2
    %v7236 = vshll.u32 %v7144, 16
    %v7238 = vrot.slane %v7236, 7
    %v7239 = vsel %vm7183, %v7234, %v7238
    %v7241 = vshrl.u32 %v7151, 16
    %v7243 = vrot.slane %v7241, 6
    %v7244 = vshll.u32 %v7151, 16
    %v7246 = vrot.slane %v7244, 7
    %v7247 = vor.u32 %v7243, %v7246
    %v7248 = vrot.slane %v7247, 2
    %v7250 = vshll.u32 %v7152, 16
    %v7252 = vrot.slane %v7250, 7
    %v7253 = vsel %vm7183, %v7248, %v7252
    %v7255 = vshrl.u32 %v7159, 16
    %v7257 = vrot.slane %v7255, 6
    %v7258 = vshll.u32 %v7159, 16
    %v7260 = vrot.slane %v7258, 7
    %v7261 = vor.u32 %v7257, %v7260
    %v7262 = vrot.slane %v7261, 2
    %v7264 = vshll.u32 %v7160, 16
    %v7266 = vrot.slane %v7264, 7
    %v7267 = vsel %vm7183, %v7262, %v7266
    %v7269 = vshrl.u32 %v7167, 16
    %v7271 = vrot.slane %v7269, 6
    %v7272 = vshll.u32 %v7167, 16
    %v7274 = vrot.slane %v7272, 7
    %v7275 = vor.u32 %v7271, %v7274
    %v7276 = vrot.slane %v7275, 2
    %v7278 = vshll.u32 %v7168, 16
    %v7280 = vrot.slane %v7278, 7
    %v7281 = vsel %vm7183, %v7276, %v7280
    %v7283 = vshrl.u32 %v7175, 16
    %v7285 = vrot.slane %v7283, 6
    %v7286 = vshll.u32 %v7175, 16
    %v7288 = vrot.slane %v7286, 7
    %v7289 = vor.u32 %v7285, %v7288
    %v7290 = vrot.slane %v7289, 2
    %v7292 = vshll.u32 %v7176, 16
    %v7294 = vrot.slane %v7292, 7
    %v7295 = vsel %vm7183, %v7290, %v7294
    %v7296 = vld [vmem:[#allocation2 + $0x80] sm:$0xff]
    %v7297 = vld [vmem:[#allocation2 + $0x88] sm:$0xff]
    %v7298 = vld [vmem:[#allocation2 + $0x90] sm:$0xff]
    %v7299 = vld [vmem:[#allocation2 + $0x98] sm:$0xff]
    %v7300 = vld [vmem:[#allocation2 + $0xa0] sm:$0xff]
    %v7301 = vld [vmem:[#allocation2 + $0xa8] sm:$0xff]
    %v7302 = vld [vmem:[#allocation2 + $0xb0] sm:$0xff]
    %v7303 = vld [vmem:[#allocation2 + $0xb8] sm:$0xff]
    %v7304 = vld [vmem:[#allocation2 + $0xc0] sm:$0xff]
    %v7305 = vld [vmem:[#allocation2 + $0xc8] sm:$0xff]
    %v7306 = vld [vmem:[#allocation2 + $0xd0] sm:$0xff]
    %v7307 = vld [vmem:[#allocation2 + $0xd8] sm:$0xff]
    %v7308 = vld [vmem:[#allocation2 + $0xe0] sm:$0xff]
    %v7309 = vld [vmem:[#allocation2 + $0xe8] sm:$0xff]
    %v7310 = vld [vmem:[#allocation2 + $0xf0] sm:$0xff]
    %v7311 = vld [vmem:[#allocation2 + $0xf8] sm:$0xff]
    %v7312 = vcombine.low %v7197, %v7211
    %v7313 = vcombine.low %v7225, %v7239
    %v7315 = vunpack.c.l.s4 1983009808
    %v7316 = vunpack.c.0.s8 %v7315
    %v7317 = vlaneseq
    %v7318 = vshrl.u32 %v7317, 7
    %v7319 = vsub.s32 %v7316, %v7318
    %v7320 = vrot.slane %v7312, %v7319
    %v7322 = vunpack.c.l.s4 1983009808
    %v7323 = vunpack.c.0.s8 %v7322
    %v7324 = vlaneseq
    %v7325 = vshrl.u32 %v7324, 7
    %v7326 = vsub.s32 %v7323, %v7325
    %v7327 = vrot.slane %v7313, %v7326
    %v7328 = vcombine.low %v7320, %v7327
    %v7329 = vcombine.low %v7253, %v7267
    %v7330 = vcombine.low %v7281, %v7295
    %v7332 = vunpack.c.l.s4 1983009808
    %v7333 = vunpack.c.0.s8 %v7332
    %v7334 = vlaneseq
    %v7335 = vshrl.u32 %v7334, 7
    %v7336 = vsub.s32 %v7333, %v7335
    %v7337 = vrot.slane %v7329, %v7336
    %v7339 = vunpack.c.l.s4 1983009808
    %v7340 = vunpack.c.0.s8 %v7339
    %v7341 = vlaneseq
    %v7342 = vshrl.u32 %v7341, 7
    %v7343 = vsub.s32 %v7340, %v7342
    %v7344 = vrot.slane %v7330, %v7343
    %v7345 = vcombine.low %v7337, %v7344
    %7348 = vmatprep.subr.bf16.mxu0 %v7297
    %7349 = vmatpush1.bf16.msra.mxu0 %v7296
    %7350 = vmatprep.subr.bf16.mxu0 %v7299
    %7351 = vmatpush1.bf16.msra.mxu0 %v7298
    %7352 = vmatprep.subr.bf16.mxu0 %v7301
    %7353 = vmatpush1.bf16.msra.mxu0 %v7300
    %7354 = vmatprep.subr.bf16.mxu0 %v7303
    %7355 = vmatpush1.bf16.msra.mxu0 %v7302
    %7356 = vmatprep.subr.bf16.mxu0 %v7305
    %7357 = vmatpush1.bf16.msra.mxu0 %v7304
    %7358 = vmatprep.subr.bf16.mxu0 %v7307
    %7359 = vmatpush1.bf16.msra.mxu0 %v7306
    %7360 = vmatprep.subr.bf16.mxu0 %v7309
    %7361 = vmatpush1.bf16.msra.mxu0 %v7308
    %7362 = vmatprep.subr.bf16.mxu0 %v7311
    %7363 = vmatpush1.bf16.msra.mxu0 %v7310
    %7364 = vmatprep.subr.bf16.mxu0 0
    %7365 = vmatpush1.bf16.msra.mxu0 0
    %7366 = vmatprep.subr.bf16.mxu0 0
    %7367 = vmatpush1.bf16.msra.mxu0 0
    %7368 = vmatprep.subr.bf16.mxu0 0
    %7369 = vmatpush1.bf16.msra.mxu0 0
    %7370 = vmatprep.subr.bf16.mxu0 0
    %7371 = vmatpush1.bf16.msra.mxu0 0
    %7372 = vmatprep.subr.bf16.mxu0 0
    %7373 = vmatpush1.bf16.msra.mxu0 0
    %7374 = vmatprep.subr.bf16.mxu0 0
    %7375 = vmatpush1.bf16.msra.mxu0 0
    %7376 = vmatprep.subr.bf16.mxu0 0
    %7377 = vmatpush1.bf16.msra.mxu0 0
    %7378 = vmatprep.subr.bf16.mxu0 0
    %7379 = vmatpush1.bf16.msra.mxu0 0
    %7380 = vmatprep.mubr.bf16.mxu0 0
    %7381 = vmatmul.mubr.bf16.gmra.mrb[0].mxu0 %v7328
    %v7382 = vpop.f32.mrb[0].mxu0
    %v7383 = vadd.f32 0.0, %v7382
    %v7384 = vpop.f32.mrb[0].mxu0
    %v7385 = vadd.f32 0.0, %v7384
    %v7386 = vpop.f32.mrb[0].mxu0
    %v7387 = vadd.f32 0.0, %v7386
    %v7388 = vpop.f32.mrb[0].mxu0
    %v7389 = vadd.f32 0.0, %v7388
    %7390 = vmatprep.mubr.bf16.mxu0 0
    %7391 = vmatmul.mubr.bf16.gmra.mrb[0].mxu0 %v7345
    %v7392 = vpop.f32.mrb[0].mxu0
    %v7393 = vadd.f32 0.0, %v7392
    %v7394 = vpop.f32.mrb[0].mxu0
    %v7395 = vadd.f32 0.0, %v7394
    %v7396 = vpop.f32.mrb[0].mxu0
    %v7397 = vadd.f32 0.0, %v7396
    %v7398 = vpop.f32.mrb[0].mxu0
    %v7399 = vadd.f32 0.0, %v7398
    %7400 = vdwg.mxu0
    %v7409 = vcombine.low %v7073, %v7074
    %v7410 = vcombine.low %v7075, %v7076
    %v7412 = vunpack.c.l.s4 1983009808
    %v7413 = vunpack.c.0.s8 %v7412
    %v7414 = vlaneseq
    %v7415 = vshrl.u32 %v7414, 7
    %v7416 = vsub.s32 %v7413, %v7415
    %v7417 = vrot.slane %v7409, %v7416
    %v7419 = vunpack.c.l.s4 1983009808
    %v7420 = vunpack.c.0.s8 %v7419
    %v7421 = vlaneseq
    %v7422 = vshrl.u32 %v7421, 7
    %v7423 = vsub.s32 %v7420, %v7422
    %v7424 = vrot.slane %v7410, %v7423
    %v7425 = vcombine.low %v7417, %v7424
    %v7426 = vcombine.low %v7077, %v7078
    %v7427 = vcombine.low %v7079, %v7080
    %v7429 = vunpack.c.l.s4 1983009808
    %v7430 = vunpack.c.0.s8 %v7429
    %v7431 = vlaneseq
    %v7432 = vshrl.u32 %v7431, 7
    %v7433 = vsub.s32 %v7430, %v7432
    %v7434 = vrot.slane %v7426, %v7433
    %v7436 = vunpack.c.l.s4 1983009808
    %v7437 = vunpack.c.0.s8 %v7436
    %v7438 = vlaneseq
    %v7439 = vshrl.u32 %v7438, 7
    %v7440 = vsub.s32 %v7437, %v7439
    %v7441 = vrot.slane %v7427, %v7440
    %v7442 = vcombine.low %v7434, %v7441
    %7445 = vmatprep.subr.bf16.mxu0 %v7082
    %7446 = vmatpush1.bf16.msra.mxu0 %v7081
    %7447 = vmatprep.subr.bf16.mxu0 %v7084
    %7448 = vmatpush1.bf16.msra.mxu0 %v7083
    %7449 = vmatprep.subr.bf16.mxu0 %v7086
    %7450 = vmatpush1.bf16.msra.mxu0 %v7085
    %7451 = vmatprep.subr.bf16.mxu0 %v7088
    %7452 = vmatpush1.bf16.msra.mxu0 %v7087
    %7453 = vmatprep.subr.bf16.mxu0 %v7090
    %7454 = vmatpush1.bf16.msra.mxu0 %v7089
    %7455 = vmatprep.subr.bf16.mxu0 %v7092
    %7456 = vmatpush1.bf16.msra.mxu0 %v7091
    %7457 = vmatprep.subr.bf16.mxu0 %v7094
    %7458 = vmatpush1.bf16.msra.mxu0 %v7093
    %7459 = vmatprep.subr.bf16.mxu0 %v7096
    %7460 = vmatpush1.bf16.msra.mxu0 %v7095
    %7461 = vmatprep.subr.bf16.mxu0 0
    %7462 = vmatpush1.bf16.msra.mxu0 0
    %7463 = vmatprep.subr.bf16.mxu0 0
    %7464 = vmatpush1.bf16.msra.mxu0 0
    %7465 = vmatprep.subr.bf16.mxu0 0
    %7466 = vmatpush1.bf16.msra.mxu0 0
    %7467 = vmatprep.subr.bf16.mxu0 0
    %7468 = vmatpush1.bf16.msra.mxu0 0
    %7469 = vmatprep.subr.bf16.mxu0 0
    %7470 = vmatpush1.bf16.msra.mxu0 0
    %7471 = vmatprep.subr.bf16.mxu0 0
    %7472 = vmatpush1.bf16.msra.mxu0 0
    %7473 = vmatprep.subr.bf16.mxu0 0
    %7474 = vmatpush1.bf16.msra.mxu0 0
    %7475 = vmatprep.subr.bf16.mxu0 0
    %7476 = vmatpush1.bf16.msra.mxu0 0
    %7477 = vmatprep.mubr.bf16.mxu0 0
    %7478 = vmatmul.mubr.bf16.gmra.mrb[0].mxu0 %v7425
    %v7479 = vpop.f32.mrb[0].mxu0
    %v7480 = vadd.f32 %v7383, %v7479
    %v7481 = vpop.f32.mrb[0].mxu0
    %v7482 = vadd.f32 %v7385, %v7481
    %v7483 = vpop.f32.mrb[0].mxu0
    %v7484 = vadd.f32 %v7387, %v7483
    %v7485 = vpop.f32.mrb[0].mxu0
    %v7486 = vadd.f32 %v7389, %v7485
    %7487 = vmatprep.mubr.bf16.mxu0 0
    %7488 = vmatmul.mubr.bf16.gmra.mrb[0].mxu0 %v7442
    %v7489 = vpop.f32.mrb[0].mxu0
    %v7490 = vadd.f32 %v7393, %v7489
    %v7491 = vpop.f32.mrb[0].mxu0
    %v7492 = vadd.f32 %v7395, %v7491
    %v7493 = vpop.f32.mrb[0].mxu0
    %v7494 = vadd.f32 %v7397, %v7493
    %v7495 = vpop.f32.mrb[0].mxu0
    %v7496 = vadd.f32 %v7399, %v7495
    %7497 = vdwg.mxu0
    %v7498 = vld [vmem:[#allocation6] sm:$0x6]
    %v7499 = vld [vmem:[#allocation6 + $0x4] sm:$0x6]
    %v7500 = vld [vmem:[#allocation6 + $0x8] sm:$0x6]
    %v7501 = vld [vmem:[#allocation6 + $0xc] sm:$0x6]
    %v7502 = vld [vmem:[#allocation6 + $0x18] sm:$0x6]
    %v7503 = vld [vmem:[#allocation6 + $0x1c] sm:$0x6]
    %v7504 = vld [vmem:[#allocation6 + $0x20] sm:$0x6]
    %v7505 = vld [vmem:[#allocation6 + $0x24] sm:$0x6]
    %v7515 = vunpack.c.l.s4 1983009808
    %v7516 = vunpack.c.0.s8 %v7515
    %v7517 = vlaneseq
    %v7518 = vshrl.u32 %v7517, 7
    %v7519 = vsub.s32 %v7516, %v7518
    %v7520 = vrot.slane %v7498, %v7519
    %v7521 = vcombine.high %v7520, %v7520
    %v7523 = vunpack.c.l.s4 1983009808
    %v7524 = vunpack.c.0.s8 %v7523
    %v7525 = vlaneseq
    %v7526 = vshrl.u32 %v7525, 7
    %v7527 = vsub.s32 %v7524, %v7526
    %v7528 = vrot.slane %v7499, %v7527
    %v7529 = vcombine.high %v7528, %v7528
    %v7531 = vunpack.c.l.s4 1983009808
    %v7532 = vunpack.c.0.s8 %v7531
    %v7533 = vlaneseq
    %v7534 = vshrl.u32 %v7533, 7
    %v7535 = vsub.s32 %v7532, %v7534
    %v7536 = vrot.slane %v7500, %v7535
    %v7537 = vcombine.high %v7536, %v7536
    %v7539 = vunpack.c.l.s4 1983009808
    %v7540 = vunpack.c.0.s8 %v7539
    %v7541 = vlaneseq
    %v7542 = vshrl.u32 %v7541, 7
    %v7543 = vsub.s32 %v7540, %v7542
    %v7544 = vrot.slane %v7501, %v7543
    %v7545 = vcombine.high %v7544, %v7544
    %v7547 = vunpack.c.l.s4 1983009808
    %v7548 = vunpack.c.0.s8 %v7547
    %v7549 = vlaneseq
    %v7550 = vshrl.u32 %v7549, 7
    %v7551 = vsub.s32 %v7548, %v7550
    %v7552 = vrot.slane %v7502, %v7551
    %v7553 = vcombine.high %v7552, %v7552
    %v7555 = vunpack.c.l.s4 1983009808
    %v7556 = vunpack.c.0.s8 %v7555
    %v7557 = vlaneseq
    %v7558 = vshrl.u32 %v7557, 7
    %v7559 = vsub.s32 %v7556, %v7558
    %v7560 = vrot.slane %v7503, %v7559
    %v7561 = vcombine.high %v7560, %v7560
    %v7563 = vunpack.c.l.s4 1983009808
    %v7564 = vunpack.c.0.s8 %v7563
    %v7565 = vlaneseq
    %v7566 = vshrl.u32 %v7565, 7
    %v7567 = vsub.s32 %v7564, %v7566
    %v7568 = vrot.slane %v7504, %v7567
    %v7569 = vcombine.high %v7568, %v7568
    %v7571 = vunpack.c.l.s4 1983009808
    %v7572 = vunpack.c.0.s8 %v7571
    %v7573 = vlaneseq
    %v7574 = vshrl.u32 %v7573, 7
    %v7575 = vsub.s32 %v7572, %v7574
    %v7576 = vrot.slane %v7505, %v7575
    %v7577 = vcombine.high %v7576, %v7576
    %vm7578 = vcmask 1040384
    %vm7579 = vcmask 1042434
    %vm7580 = vmor %vm7578, %vm7579
    %vm7581 = vcmask 1044484
    %vm7582 = vmor %vm7580, %vm7581
    %vm7583 = vcmask 1046534
    %vm7584 = vmor %vm7582, %vm7583
    %v7585 = vrot.slane %v7520, 7
    %v7586 = vrot.slane %v7585, 2
    %v7587 = vrot.slane %v7521, 7
    %v7588 = vsel %vm7584, %v7586, %v7587
    %v7589 = vrot.slane %v7528, 7
    %v7590 = vrot.slane %v7589, 2
    %v7591 = vrot.slane %v7529, 7
    %v7592 = vsel %vm7584, %v7590, %v7591
    %v7593 = vrot.slane %v7536, 7
    %v7594 = vrot.slane %v7593, 2
    %v7595 = vrot.slane %v7537, 7
    %v7596 = vsel %vm7584, %v7594, %v7595
    %v7597 = vrot.slane %v7544, 7
    %v7598 = vrot.slane %v7597, 2
    %v7599 = vrot.slane %v7545, 7
    %v7600 = vsel %vm7584, %v7598, %v7599
    %v7601 = vrot.slane %v7552, 7
    %v7602 = vrot.slane %v7601, 2
    %v7603 = vrot.slane %v7553, 7
    %v7604 = vsel %vm7584, %v7602, %v7603
    %v7605 = vrot.slane %v7560, 7
    %v7606 = vrot.slane %v7605, 2
    %v7607 = vrot.slane %v7561, 7
    %v7608 = vsel %vm7584, %v7606, %v7607
    %v7609 = vrot.slane %v7568, 7
    %v7610 = vrot.slane %v7609, 2
    %v7611 = vrot.slane %v7569, 7
    %v7612 = vsel %vm7584, %v7610, %v7611
    %v7613 = vrot.slane %v7576, 7
    %v7614 = vrot.slane %v7613, 2
    %v7615 = vrot.slane %v7577, 7
    %v7616 = vsel %vm7584, %v7614, %v7615
    %v7617 = vld [vmem:[#allocation2 + $0x100] sm:$0xff]
    %v7618 = vld [vmem:[#allocation2 + $0x108] sm:$0xff]
    %v7619 = vld [vmem:[#allocation2 + $0x110] sm:$0xff]
    %v7620 = vld [vmem:[#allocation2 + $0x118] sm:$0xff]
    %v7621 = vld [vmem:[#allocation2 + $0x120] sm:$0xff]
    %v7622 = vld [vmem:[#allocation2 + $0x128] sm:$0xff]
    %v7623 = vld [vmem:[#allocation2 + $0x130] sm:$0xff]
    %v7624 = vld [vmem:[#allocation2 + $0x138] sm:$0xff]
    %v7625 = vld [vmem:[#allocation2 + $0x140] sm:$0xff]
    %v7626 = vld [vmem:[#allocation2 + $0x148] sm:$0xff]
    %v7627 = vld [vmem:[#allocation2 + $0x150] sm:$0xff]
    %v7628 = vld [vmem:[#allocation2 + $0x158] sm:$0xff]
    %v7629 = vld [vmem:[#allocation2 + $0x160] sm:$0xff]
    %v7630 = vld [vmem:[#allocation2 + $0x168] sm:$0xff]
    %v7631 = vld [vmem:[#allocation2 + $0x170] sm:$0xff]
    %v7632 = vld [vmem:[#allocation2 + $0x178] sm:$0xff]
    %v7633 = vcombine.low %v7588, %v7592
    %v7634 = vcombine.low %v7596, %v7600
    %v7636 = vunpack.c.l.s4 1983009808
    %v7637 = vunpack.c.0.s8 %v7636
    %v7638 = vlaneseq
    %v7639 = vshrl.u32 %v7638, 7
    %v7640 = vsub.s32 %v7637, %v7639
    %v7641 = vrot.slane %v7633, %v7640
    %v7643 = vunpack.c.l.s4 1983009808
    %v7644 = vunpack.c.0.s8 %v7643
    %v7645 = vlaneseq
    %v7646 = vshrl.u32 %v7645, 7
    %v7647 = vsub.s32 %v7644, %v7646
    %v7648 = vrot.slane %v7634, %v7647
    %v7649 = vcombine.low %v7641, %v7648
    %v7650 = vcombine.low %v7604, %v7608
    %v7651 = vcombine.low %v7612, %v7616
    %v7653 = vunpack.c.l.s4 1983009808
    %v7654 = vunpack.c.0.s8 %v7653
    %v7655 = vlaneseq
    %v7656 = vshrl.u32 %v7655, 7
    %v7657 = vsub.s32 %v7654, %v7656
    %v7658 = vrot.slane %v7650, %v7657
    %v7660 = vunpack.c.l.s4 1983009808
    %v7661 = vunpack.c.0.s8 %v7660
    %v7662 = vlaneseq
    %v7663 = vshrl.u32 %v7662, 7
    %v7664 = vsub.s32 %v7661, %v7663
    %v7665 = vrot.slane %v7651, %v7664
    %v7666 = vcombine.low %v7658, %v7665
    %7669 = vmatprep.subr.bf16.mxu0 %v7618
    %7670 = vmatpush1.bf16.msra.mxu0 %v7617
    %7671 = vmatprep.subr.bf16.mxu0 %v7620
    %7672 = vmatpush1.bf16.msra.mxu0 %v7619
    %7673 = vmatprep.subr.bf16.mxu0 %v7622
    %7674 = vmatpush1.bf16.msra.mxu0 %v7621
    %7675 = vmatprep.subr.bf16.mxu0 %v7624
    %7676 = vmatpush1.bf16.msra.mxu0 %v7623
    %7677 = vmatprep.subr.bf16.mxu0 %v7626
    %7678 = vmatpush1.bf16.msra.mxu0 %v7625
    %7679 = vmatprep.subr.bf16.mxu0 %v7628
    %7680 = vmatpush1.bf16.msra.mxu0 %v7627
    %7681 = vmatprep.subr.bf16.mxu0 %v7630
    %7682 = vmatpush1.bf16.msra.mxu0 %v7629
    %7683 = vmatprep.subr.bf16.mxu0 %v7632
    %7684 = vmatpush1.bf16.msra.mxu0 %v7631
    %7685 = vmatprep.subr.bf16.mxu0 0
    %7686 = vmatpush1.bf16.msra.mxu0 0
    %7687 = vmatprep.subr.bf16.mxu0 0
    %7688 = vmatpush1.bf16.msra.mxu0 0
    %7689 = vmatprep.subr.bf16.mxu0 0
    %7690 = vmatpush1.bf16.msra.mxu0 0
    %7691 = vmatprep.subr.bf16.mxu0 0
    %7692 = vmatpush1.bf16.msra.mxu0 0
    %7693 = vmatprep.subr.bf16.mxu0 0
    %7694 = vmatpush1.bf16.msra.mxu0 0
    %7695 = vmatprep.subr.bf16.mxu0 0
    %7696 = vmatpush1.bf16.msra.mxu0 0
    %7697 = vmatprep.subr.bf16.mxu0 0
    %7698 = vmatpush1.bf16.msra.mxu0 0
    %7699 = vmatprep.subr.bf16.mxu0 0
    %7700 = vmatpush1.bf16.msra.mxu0 0
    %7701 = vmatprep.mubr.bf16.mxu0 0
    %7702 = vmatmul.mubr.bf16.gmra.mrb[0].mxu0 %v7649
    %v7703 = vpop.f32.mrb[0].mxu0
    %v7704 = vadd.f32 0.0, %v7703
    %v7705 = vpop.f32.mrb[0].mxu0
    %v7706 = vadd.f32 0.0, %v7705
    %v7707 = vpop.f32.mrb[0].mxu0
    %v7708 = vadd.f32 0.0, %v7707
    %v7709 = vpop.f32.mrb[0].mxu0
    %v7710 = vadd.f32 0.0, %v7709
    %7711 = vmatprep.mubr.bf16.mxu0 0
    %7712 = vmatmul.mubr.bf16.gmra.mrb[0].mxu0 %v7666
    %v7713 = vpop.f32.mrb[0].mxu0
    %v7714 = vadd.f32 0.0, %v7713
    %v7715 = vpop.f32.mrb[0].mxu0
    %v7716 = vadd.f32 0.0, %v7715
    %v7717 = vpop.f32.mrb[0].mxu0
    %v7718 = vadd.f32 0.0, %v7717
    %v7719 = vpop.f32.mrb[0].mxu0
    %v7720 = vadd.f32 0.0, %v7719
    %7721 = vdwg.mxu0
    %v7722 = vadd.f32 %v7480, %v7704
    %v7723 = vadd.f32 %v7482, %v7706
    %v7724 = vadd.f32 %v7484, %v7708
    %v7725 = vadd.f32 %v7486, %v7710
    %v7726 = vadd.f32 %v7490, %v7714
    %v7727 = vadd.f32 %v7492, %v7716
    %v7728 = vadd.f32 %v7494, %v7718
    %v7729 = vadd.f32 %v7496, %v7720
    %v7730 = vld [vmem:[%s7042] sm:$0x3]
    %v7731 = vld [vmem:[%s7042 + $0x4] sm:$0x3]
    %v7732 = vld [vmem:[%s7042 + $0x8] sm:$0x3]
    %v7733 = vld [vmem:[%s7042 + $0xc] sm:$0x3]
    %v7734 = vld [vmem:[%s7042 + $0x18] sm:$0x3]
    %v7735 = vld [vmem:[%s7042 + $0x1c] sm:$0x3]
    %v7736 = vld [vmem:[%s7042 + $0x20] sm:$0x3]
    %v7737 = vld [vmem:[%s7042 + $0x24] sm:$0x3]
    %v7738 = vld [vmem:[#allocation2 + $0x180] sm:$0xff]
    %v7739 = vld [vmem:[#allocation2 + $0x188] sm:$0xff]
    %v7740 = vld [vmem:[#allocation2 + $0x190] sm:$0xff]
    %v7741 = vld [vmem:[#allocation2 + $0x198] sm:$0xff]
    %v7742 = vld [vmem:[#allocation2 + $0x1a0] sm:$0xff]
    %v7743 = vld [vmem:[#allocation2 + $0x1a8] sm:$0xff]
    %v7744 = vld [vmem:[#allocation2 + $0x1b0] sm:$0xff]
    %v7745 = vld [vmem:[#allocation2 + $0x1b8] sm:$0xff]
    %v7746 = vld [vmem:[#allocation2 + $0x1c0] sm:$0xff]
    %v7747 = vld [vmem:[#allocation2 + $0x1c8] sm:$0xff]
    %v7748 = vld [vmem:[#allocation2 + $0x1d0] sm:$0xff]
    %v7749 = vld [vmem:[#allocation2 + $0x1d8] sm:$0xff]
    %v7750 = vld [vmem:[#allocation2 + $0x1e0] sm:$0xff]
    %v7751 = vld [vmem:[#allocation2 + $0x1e8] sm:$0xff]
    %v7752 = vld [vmem:[#allocation2 + $0x1f0] sm:$0xff]
    %v7753 = vld [vmem:[#allocation2 + $0x1f8] sm:$0xff]
    %v7762 = vcombine.low %v7730, %v7731
    %v7763 = vcombine.low %v7732, %v7733
    %v7765 = vunpack.c.l.s4 1983009808
    %v7766 = vunpack.c.0.s8 %v7765
    %v7767 = vlaneseq
    %v7768 = vshrl.u32 %v7767, 7
    %v7769 = vsub.s32 %v7766, %v7768
    %v7770 = vrot.slane %v7762, %v7769
    %v7772 = vunpack.c.l.s4 1983009808
    %v7773 = vunpack.c.0.s8 %v7772
    %v7774 = vlaneseq
    %v7775 = vshrl.u32 %v7774, 7
    %v7776 = vsub.s32 %v7773, %v7775
    %v7777 = vrot.slane %v7763, %v7776
    %v7778 = vcombine.low %v7770, %v7777
    %v7779 = vcombine.low %v7734, %v7735
    %v7780 = vcombine.low %v7736, %v7737
    %v7782 = vunpack.c.l.s4 1983009808
    %v7783 = vunpack.c.0.s8 %v7782
    %v7784 = vlaneseq
    %v7785 = vshrl.u32 %v7784, 7
    %v7786 = vsub.s32 %v7783, %v7785
    %v7787 = vrot.slane %v7779, %v7786
    %v7789 = vunpack.c.l.s4 1983009808
    %v7790 = vunpack.c.0.s8 %v7789
    %v7791 = vlaneseq
    %v7792 = vshrl.u32 %v7791, 7
    %v7793 = vsub.s32 %v7790, %v7792
    %v7794 = vrot.slane %v7780, %v7793
    %v7795 = vcombine.low %v7787, %v7794
    %7798 = vmatprep.subr.bf16.mxu0 %v7739
    %7799 = vmatpush1.bf16.msra.mxu0 %v7738
    %7800 = vmatprep.subr.bf16.mxu0 %v7741
    %7801 = vmatpush1.bf16.msra.mxu0 %v7740
    %7802 = vmatprep.subr.bf16.mxu0 %v7743
    %7803 = vmatpush1.bf16.msra.mxu0 %v7742
    %7804 = vmatprep.subr.bf16.mxu0 %v7745
    %7805 = vmatpush1.bf16.msra.mxu0 %v7744
    %7806 = vmatprep.subr.bf16.mxu0 %v7747
    %7807 = vmatpush1.bf16.msra.mxu0 %v7746
    %7808 = vmatprep.subr.bf16.mxu0 %v7749
    %7809 = vmatpush1.bf16.msra.mxu0 %v7748
    %7810 = vmatprep.subr.bf16.mxu0 %v7751
    %7811 = vmatpush1.bf16.msra.mxu0 %v7750
    %7812 = vmatprep.subr.bf16.mxu0 %v7753
    %7813 = vmatpush1.bf16.msra.mxu0 %v7752
    %7814 = vmatprep.subr.bf16.mxu0 0
    %7815 = vmatpush1.bf16.msra.mxu0 0
    %7816 = vmatprep.subr.bf16.mxu0 0
    %7817 = vmatpush1.bf16.msra.mxu0 0
    %7818 = vmatprep.subr.bf16.mxu0 0
    %7819 = vmatpush1.bf16.msra.mxu0 0
    %7820 = vmatprep.subr.bf16.mxu0 0
    %7821 = vmatpush1.bf16.msra.mxu0 0
    %7822 = vmatprep.subr.bf16.mxu0 0
    %7823 = vmatpush1.bf16.msra.mxu0 0
    %7824 = vmatprep.subr.bf16.mxu0 0
    %7825 = vmatpush1.bf16.msra.mxu0 0
    %7826 = vmatprep.subr.bf16.mxu0 0
    %7827 = vmatpush1.bf16.msra.mxu0 0
    %7828 = vmatprep.subr.bf16.mxu0 0
    %7829 = vmatpush1.bf16.msra.mxu0 0
    %7830 = vmatprep.mubr.bf16.mxu0 0
    %7831 = vmatmul.mubr.bf16.gmra.mrb[0].mxu0 %v7778
    %v7832 = vpop.f32.mrb[0].mxu0
    %v7833 = vadd.f32 0.0, %v7832
    %v7834 = vpop.f32.mrb[0].mxu0
    %v7835 = vadd.f32 0.0, %v7834
    %v7836 = vpop.f32.mrb[0].mxu0
    %v7837 = vadd.f32 0.0, %v7836
    %v7838 = vpop.f32.mrb[0].mxu0
    %v7839 = vadd.f32 0.0, %v7838
    %7840 = vmatprep.mubr.bf16.mxu0 0
    %7841 = vmatmul.mubr.bf16.gmra.mrb[0].mxu0 %v7795
    %v7842 = vpop.f32.mrb[0].mxu0
    %v7843 = vadd.f32 0.0, %v7842
    %v7844 = vpop.f32.mrb[0].mxu0
    %v7845 = vadd.f32 0.0, %v7844
    %v7846 = vpop.f32.mrb[0].mxu0
    %v7847 = vadd.f32 0.0, %v7846
    %v7848 = vpop.f32.mrb[0].mxu0
    %v7849 = vadd.f32 0.0, %v7848
    %7850 = vdwg.mxu0
    %v7851 = vadd.f32 %v7722, %v7833
    %v7852 = vadd.f32 %v7723, %v7835
    %v7853 = vadd.f32 %v7724, %v7837
    %v7854 = vadd.f32 %v7725, %v7839
    %v7855 = vadd.f32 %v7726, %v7843
    %v7856 = vadd.f32 %v7727, %v7845
    %v7857 = vadd.f32 %v7728, %v7847
    %v7858 = vadd.f32 %v7729, %v7849
    %v7859 = vld [vmem:[%s7042] sm:$0x7]
    %v7860 = vld [vmem:[%s7042 + $0x4] sm:$0x7]
    %v7861 = vld [vmem:[%s7042 + $0x8] sm:$0x7]
    %v7862 = vld [vmem:[%s7042 + $0xc] sm:$0x7]
    %v7863 = vld [vmem:[%s7042 + $0x18] sm:$0x7]
    %v7864 = vld [vmem:[%s7042 + $0x1c] sm:$0x7]
    %v7865 = vld [vmem:[%s7042 + $0x20] sm:$0x7]
    %v7866 = vld [vmem:[%s7042 + $0x24] sm:$0x7]
    %v7876 = vunpack.c.l.s4 1983009808
    %v7877 = vunpack.c.0.s8 %v7876
    %v7878 = vlaneseq
    %v7879 = vshrl.u32 %v7878, 7
    %v7880 = vsub.s32 %v7877, %v7879
    %v7881 = vrot.slane %v7859, %v7880
    %v7882 = vcombine.high %v7881, %v7881
    %v7884 = vunpack.c.l.s4 1983009808
    %v7885 = vunpack.c.0.s8 %v7884
    %v7886 = vlaneseq
    %v7887 = vshrl.u32 %v7886, 7
    %v7888 = vsub.s32 %v7885, %v7887
    %v7889 = vrot.slane %v7860, %v7888
    %v7890 = vcombine.high %v7889, %v7889
    %v7892 = vunpack.c.l.s4 1983009808
    %v7893 = vunpack.c.0.s8 %v7892
    %v7894 = vlaneseq
    %v7895 = vshrl.u32 %v7894, 7
    %v7896 = vsub.s32 %v7893, %v7895
    %v7897 = vrot.slane %v7861, %v7896
    %v7898 = vcombine.high %v7897, %v7897
    %v7900 = vunpack.c.l.s4 1983009808
    %v7901 = vunpack.c.0.s8 %v7900
    %v7902 = vlaneseq
    %v7903 = vshrl.u32 %v7902, 7
    %v7904 = vsub.s32 %v7901, %v7903
    %v7905 = vrot.slane %v7862, %v7904
    %v7906 = vcombine.high %v7905, %v7905
    %v7908 = vunpack.c.l.s4 1983009808
    %v7909 = vunpack.c.0.s8 %v7908
    %v7910 = vlaneseq
    %v7911 = vshrl.u32 %v7910, 7
    %v7912 = vsub.s32 %v7909, %v7911
    %v7913 = vrot.slane %v7863, %v7912
    %v7914 = vcombine.high %v7913, %v7913
    %v7916 = vunpack.c.l.s4 1983009808
    %v7917 = vunpack.c.0.s8 %v7916
    %v7918 = vlaneseq
    %v7919 = vshrl.u32 %v7918, 7
    %v7920 = vsub.s32 %v7917, %v7919
    %v7921 = vrot.slane %v7864, %v7920
    %v7922 = vcombine.high %v7921, %v7921
    %v7924 = vunpack.c.l.s4 1983009808
    %v7925 = vunpack.c.0.s8 %v7924
    %v7926 = vlaneseq
    %v7927 = vshrl.u32 %v7926, 7
    %v7928 = vsub.s32 %v7925, %v7927
    %v7929 = vrot.slane %v7865, %v7928
    %v7930 = vcombine.high %v7929, %v7929
    %v7932 = vunpack.c.l.s4 1983009808
    %v7933 = vunpack.c.0.s8 %v7932
    %v7934 = vlaneseq
    %v7935 = vshrl.u32 %v7934, 7
    %v7936 = vsub.s32 %v7933, %v7935
    %v7937 = vrot.slane %v7866, %v7936
    %v7938 = vcombine.high %v7937, %v7937
    %v7940 = vshrl.u32 %v7881, 16
    %v7942 = vrot.slane %v7940, 6
    %v7943 = vshll.u32 %v7881, 16
    %v7945 = vrot.slane %v7943, 7
    %v7946 = vor.u32 %v7942, %v7945
    %v7947 = vrot.slane %v7946, 2
    %v7949 = vshll.u32 %v7882, 16
    %v7951 = vrot.slane %v7949, 7
    %v7952 = vsel %vm7183, %v7947, %v7951
    %v7954 = vshrl.u32 %v7889, 16
    %v7956 = vrot.slane %v7954, 6
    %v7957 = vshll.u32 %v7889, 16
    %v7959 = vrot.slane %v7957, 7
    %v7960 = vor.u32 %v7956, %v7959
    %v7961 = vrot.slane %v7960, 2
    %v7963 = vshll.u32 %v7890, 16
    %v7965 = vrot.slane %v7963, 7
    %v7966 = vsel %vm7183, %v7961, %v7965
    %v7968 = vshrl.u32 %v7897, 16
    %v7970 = vrot.slane %v7968, 6
    %v7971 = vshll.u32 %v7897, 16
    %v7973 = vrot.slane %v7971, 7
    %v7974 = vor.u32 %v7970, %v7973
    %v7975 = vrot.slane %v7974, 2
    %v7977 = vshll.u32 %v7898, 16
    %v7979 = vrot.slane %v7977, 7
    %v7980 = vsel %vm7183, %v7975, %v7979
    %v7982 = vshrl.u32 %v7905, 16
    %v7984 = vrot.slane %v7982, 6
    %v7985 = vshll.u32 %v7905, 16
    %v7987 = vrot.slane %v7985, 7
    %v7988 = vor.u32 %v7984, %v7987
    %v7989 = vrot.slane %v7988, 2
    %v7991 = vshll.u32 %v7906, 16
    %v7993 = vrot.slane %v7991, 7
    %v7994 = vsel %vm7183, %v7989, %v7993
    %v7996 = vshrl.u32 %v7913, 16
    %v7998 = vrot.slane %v7996, 6
    %v7999 = vshll.u32 %v7913, 16
    %v8001 = vrot.slane %v7999, 7
    %v8002 = vor.u32 %v7998, %v8001
    %v8003 = vrot.slane %v8002, 2
    %v8005 = vshll.u32 %v7914, 16
    %v8007 = vrot.slane %v8005, 7
    %v8008 = vsel %vm7183, %v8003, %v8007
    %v8010 = vshrl.u32 %v7921, 16
    %v8012 = vrot.slane %v8010, 6
    %v8013 = vshll.u32 %v7921, 16
    %v8015 = vrot.slane %v8013, 7
    %v8016 = vor.u32 %v8012, %v8015
    %v8017 = vrot.slane %v8016, 2
    %v8019 = vshll.u32 %v7922, 16
    %v8021 = vrot.slane %v8019, 7
    %v8022 = vsel %vm7183, %v8017, %v8021
    %v8024 = vshrl.u32 %v7929, 16
    %v8026 = vrot.slane %v8024, 6
    %v8027 = vshll.u32 %v7929, 16
    %v8029 = vrot.slane %v8027, 7
    %v8030 = vor.u32 %v8026, %v8029
    %v8031 = vrot.slane %v8030, 2
    %v8033 = vshll.u32 %v7930, 16
    %v8035 = vrot.slane %v8033, 7
    %v8036 = vsel %vm7183, %v8031, %v8035
    %v8038 = vshrl.u32 %v7937, 16
    %v8040 = vrot.slane %v8038, 6
    %v8041 = vshll.u32 %v7937, 16
    %v8043 = vrot.slane %v8041, 7
    %v8044 = vor.u32 %v8040, %v8043
    %v8045 = vrot.slane %v8044, 2
    %v8047 = vshll.u32 %v7938, 16
    %v8049 = vrot.slane %v8047, 7
    %v8050 = vsel %vm7183, %v8045, %v8049
    %v8051 = vld [vmem:[#allocation2 + $0x200] sm:$0xff]
    %v8052 = vld [vmem:[#allocation2 + $0x208] sm:$0xff]
    %v8053 = vld [vmem:[#allocation2 + $0x210] sm:$0xff]
    %v8054 = vld [vmem:[#allocation2 + $0x218] sm:$0xff]
    %v8055 = vld [vmem:[#allocation2 + $0x220] sm:$0xff]
    %v8056 = vld [vmem:[#allocation2 + $0x228] sm:$0xff]
    %v8057 = vld [vmem:[#allocation2 + $0x230] sm:$0xff]
    %v8058 = vld [vmem:[#allocation2 + $0x238] sm:$0xff]
    %v8059 = vld [vmem:[#allocation2 + $0x240] sm:$0xff]
    %v8060 = vld [vmem:[#allocation2 + $0x248] sm:$0xff]
    %v8061 = vld [vmem:[#allocation2 + $0x250] sm:$0xff]
    %v8062 = vld [vmem:[#allocation2 + $0x258] sm:$0xff]
    %v8063 = vld [vmem:[#allocation2 + $0x260] sm:$0xff]
    %v8064 = vld [vmem:[#allocation2 + $0x268] sm:$0xff]
    %v8065 = vld [vmem:[#allocation2 + $0x270] sm:$0xff]
    %v8066 = vld [vmem:[#allocation2 + $0x278] sm:$0xff]
    %v8067 = vcombine.low %v7952, %v7966
    %v8068 = vcombine.low %v7980, %v7994
    %v8070 = vunpack.c.l.s4 1983009808
    %v8071 = vunpack.c.0.s8 %v8070
    %v8072 = vlaneseq
    %v8073 = vshrl.u32 %v8072, 7
    %v8074 = vsub.s32 %v8071, %v8073
    %v8075 = vrot.slane %v8067, %v8074
    %v8077 = vunpack.c.l.s4 1983009808
    %v8078 = vunpack.c.0.s8 %v8077
    %v8079 = vlaneseq
    %v8080 = vshrl.u32 %v8079, 7
    %v8081 = vsub.s32 %v8078, %v8080
    %v8082 = vrot.slane %v8068, %v8081
    %v8083 = vcombine.low %v8075, %v8082
    %v8084 = vcombine.low %v8008, %v8022
    %v8085 = vcombine.low %v8036, %v8050
    %v8087 = vunpack.c.l.s4 1983009808
    %v8088 = vunpack.c.0.s8 %v8087
    %v8089 = vlaneseq
    %v8090 = vshrl.u32 %v8089, 7
    %v8091 = vsub.s32 %v8088, %v8090
    %v8092 = vrot.slane %v8084, %v8091
    %v8094 = vunpack.c.l.s4 1983009808
    %v8095 = vunpack.c.0.s8 %v8094
    %v8096 = vlaneseq
    %v8097 = vshrl.u32 %v8096, 7
    %v8098 = vsub.s32 %v8095, %v8097
    %v8099 = vrot.slane %v8085, %v8098
    %v8100 = vcombine.low %v8092, %v8099
    %8103 = vmatprep.subr.bf16.mxu0 %v8052
    %8104 = vmatpush1.bf16.msra.mxu0 %v8051
    %8105 = vmatprep.subr.bf16.mxu0 %v8054
    %8106 = vmatpush1.bf16.msra.mxu0 %v8053
    %8107 = vmatprep.subr.bf16.mxu0 %v8056
    %8108 = vmatpush1.bf16.msra.mxu0 %v8055
    %8109 = vmatprep.subr.bf16.mxu0 %v8058
    %8110 = vmatpush1.bf16.msra.mxu0 %v8057
    %8111 = vmatprep.subr.bf16.mxu0 %v8060
    %8112 = vmatpush1.bf16.msra.mxu0 %v8059
    %8113 = vmatprep.subr.bf16.mxu0 %v8062
    %8114 = vmatpush1.bf16.msra.mxu0 %v8061
    %8115 = vmatprep.subr.bf16.mxu0 %v8064
    %8116 = vmatpush1.bf16.msra.mxu0 %v8063
    %8117 = vmatprep.subr.bf16.mxu0 %v8066
    %8118 = vmatpush1.bf16.msra.mxu0 %v8065
    %8119 = vmatprep.subr.bf16.mxu0 0
    %8120 = vmatpush1.bf16.msra.mxu0 0
    %8121 = vmatprep.subr.bf16.mxu0 0
    %8122 = vmatpush1.bf16.msra.mxu0 0
    %8123 = vmatprep.subr.bf16.mxu0 0
    %8124 = vmatpush1.bf16.msra.mxu0 0
    %8125 = vmatprep.subr.bf16.mxu0 0
    %8126 = vmatpush1.bf16.msra.mxu0 0
    %8127 = vmatprep.subr.bf16.mxu0 0
    %8128 = vmatpush1.bf16.msra.mxu0 0
    %8129 = vmatprep.subr.bf16.mxu0 0
    %8130 = vmatpush1.bf16.msra.mxu0 0
    %8131 = vmatprep.subr.bf16.mxu0 0
    %8132 = vmatpush1.bf16.msra.mxu0 0
    %8133 = vmatprep.subr.bf16.mxu0 0
    %8134 = vmatpush1.bf16.msra.mxu0 0
    %8135 = vmatprep.mubr.bf16.mxu0 0
    %8136 = vmatmul.mubr.bf16.gmra.mrb[0].mxu0 %v8083
    %v8137 = vpop.f32.mrb[0].mxu0
    %v8138 = vadd.f32 0.0, %v8137
    %v8139 = vpop.f32.mrb[0].mxu0
    %v8140 = vadd.f32 0.0, %v8139
    %v8141 = vpop.f32.mrb[0].mxu0
    %v8142 = vadd.f32 0.0, %v8141
    %v8143 = vpop.f32.mrb[0].mxu0
    %v8144 = vadd.f32 0.0, %v8143
    %8145 = vmatprep.mubr.bf16.mxu0 0
    %8146 = vmatmul.mubr.bf16.gmra.mrb[0].mxu0 %v8100
    %v8147 = vpop.f32.mrb[0].mxu0
    %v8148 = vadd.f32 0.0, %v8147
    %v8149 = vpop.f32.mrb[0].mxu0
    %v8150 = vadd.f32 0.0, %v8149
    %v8151 = vpop.f32.mrb[0].mxu0
    %v8152 = vadd.f32 0.0, %v8151
    %v8153 = vpop.f32.mrb[0].mxu0
    %v8154 = vadd.f32 0.0, %v8153
    %8155 = vdwg.mxu0
    %v8156 = vadd.f32 %v7851, %v8138
    %v8157 = vadd.f32 %v7852, %v8140
    %v8158 = vadd.f32 %v7853, %v8142
    %v8159 = vadd.f32 %v7854, %v8144
    %v8160 = vadd.f32 %v7855, %v8148
    %v8161 = vadd.f32 %v7856, %v8150
    %v8162 = vadd.f32 %v7857, %v8152
    %v8163 = vadd.f32 %v7858, %v8154
    %v8164 = vld [vmem:[%s7042] sm:$0x6]
    %v8165 = vld [vmem:[%s7042 + $0x4] sm:$0x6]
    %v8166 = vld [vmem:[%s7042 + $0x8] sm:$0x6]
    %v8167 = vld [vmem:[%s7042 + $0xc] sm:$0x6]
    %v8168 = vld [vmem:[%s7042 + $0x18] sm:$0x6]
    %v8169 = vld [vmem:[%s7042 + $0x1c] sm:$0x6]
    %v8170 = vld [vmem:[%s7042 + $0x20] sm:$0x6]
    %v8171 = vld [vmem:[%s7042 + $0x24] sm:$0x6]
    %v8181 = vunpack.c.l.s4 1983009808
    %v8182 = vunpack.c.0.s8 %v8181
    %v8183 = vlaneseq
    %v8184 = vshrl.u32 %v8183, 7
    %v8185 = vsub.s32 %v8182, %v8184
    %v8186 = vrot.slane %v8164, %v8185
    %v8187 = vcombine.high %v8186, %v8186
    %v8189 = vunpack.c.l.s4 1983009808
    %v8190 = vunpack.c.0.s8 %v8189
    %v8191 = vlaneseq
    %v8192 = vshrl.u32 %v8191, 7
    %v8193 = vsub.s32 %v8190, %v8192
    %v8194 = vrot.slane %v8165, %v8193
    %v8195 = vcombine.high %v8194, %v8194
    %v8197 = vunpack.c.l.s4 1983009808
    %v8198 = vunpack.c.0.s8 %v8197
    %v8199 = vlaneseq
    %v8200 = vshrl.u32 %v8199, 7
    %v8201 = vsub.s32 %v8198, %v8200
    %v8202 = vrot.slane %v8166, %v8201
    %v8203 = vcombine.high %v8202, %v8202
    %v8205 = vunpack.c.l.s4 1983009808
    %v8206 = vunpack.c.0.s8 %v8205
    %v8207 = vlaneseq
    %v8208 = vshrl.u32 %v8207, 7
    %v8209 = vsub.s32 %v8206, %v8208
    %v8210 = vrot.slane %v8167, %v8209
    %v8211 = vcombine.high %v8210, %v8210
    %v8213 = vunpack.c.l.s4 1983009808
    %v8214 = vunpack.c.0.s8 %v8213
    %v8215 = vlaneseq
    %v8216 = vshrl.u32 %v8215, 7
    %v8217 = vsub.s32 %v8214, %v8216
    %v8218 = vrot.slane %v8168, %v8217
    %v8219 = vcombine.high %v8218, %v8218
    %v8221 = vunpack.c.l.s4 1983009808
    %v8222 = vunpack.c.0.s8 %v8221
    %v8223 = vlaneseq
    %v8224 = vshrl.u32 %v8223, 7
    %v8225 = vsub.s32 %v8222, %v8224
    %v8226 = vrot.slane %v8169, %v8225
    %v8227 = vcombine.high %v8226, %v8226
    %v8229 = vunpack.c.l.s4 1983009808
    %v8230 = vunpack.c.0.s8 %v8229
    %v8231 = vlaneseq
    %v8232 = vshrl.u32 %v8231, 7
    %v8233 = vsub.s32 %v8230, %v8232
    %v8234 = vrot.slane %v8170, %v8233
    %v8235 = vcombine.high %v8234, %v8234
    %v8237 = vunpack.c.l.s4 1983009808
    %v8238 = vunpack.c.0.s8 %v8237
    %v8239 = vlaneseq
    %v8240 = vshrl.u32 %v8239, 7
    %v8241 = vsub.s32 %v8238, %v8240
    %v8242 = vrot.slane %v8171, %v8241
    %v8243 = vcombine.high %v8242, %v8242
    %v8244 = vrot.slane %v8186, 7
    %v8245 = vrot.slane %v8244, 2
    %v8246 = vrot.slane %v8187, 7
    %v8247 = vsel %vm7584, %v8245, %v8246
    %v8248 = vrot.slane %v8194, 7
    %v8249 = vrot.slane %v8248, 2
    %v8250 = vrot.slane %v8195, 7
    %v8251 = vsel %vm7584, %v8249, %v8250
    %v8252 = vrot.slane %v8202, 7
    %v8253 = vrot.slane %v8252, 2
    %v8254 = vrot.slane %v8203, 7
    %v8255 = vsel %vm7584, %v8253, %v8254
    %v8256 = vrot.slane %v8210, 7
    %v8257 = vrot.slane %v8256, 2
    %v8258 = vrot.slane %v8211, 7
    %v8259 = vsel %vm7584, %v8257, %v8258
    %v8260 = vrot.slane %v8218, 7
    %v8261 = vrot.slane %v8260, 2
    %v8262 = vrot.slane %v8219, 7
    %v8263 = vsel %vm7584, %v8261, %v8262
    %v8264 = vrot.slane %v8226, 7
    %v8265 = vrot.slane %v8264, 2
    %v8266 = vrot.slane %v8227, 7
    %v8267 = vsel %vm7584, %v8265, %v8266
    %v8268 = vrot.slane %v8234, 7
    %v8269 = vrot.slane %v8268, 2
    %v8270 = vrot.slane %v8235, 7
    %v8271 = vsel %vm7584, %v8269, %v8270
    %v8272 = vrot.slane %v8242, 7
    %v8273 = vrot.slane %v8272, 2
    %v8274 = vrot.slane %v8243, 7
    %v8275 = vsel %vm7584, %v8273, %v8274
    %v8276 = vld [vmem:[#allocation2 + $0x280] sm:$0xff]
    %v8277 = vld [vmem:[#allocation2 + $0x288] sm:$0xff]
    %v8278 = vld [vmem:[#allocation2 + $0x290] sm:$0xff]
    %v8279 = vld [vmem:[#allocation2 + $0x298] sm:$0xff]
    %v8280 = vld [vmem:[#allocation2 + $0x2a0] sm:$0xff]
    %v8281 = vld [vmem:[#allocation2 + $0x2a8] sm:$0xff]
    %v8282 = vld [vmem:[#allocation2 + $0x2b0] sm:$0xff]
    %v8283 = vld [vmem:[#allocation2 + $0x2b8] sm:$0xff]
    %v8284 = vld [vmem:[#allocation2 + $0x2c0] sm:$0xff]
    %v8285 = vld [vmem:[#allocation2 + $0x2c8] sm:$0xff]
    %v8286 = vld [vmem:[#allocation2 + $0x2d0] sm:$0xff]
    %v8287 = vld [vmem:[#allocation2 + $0x2d8] sm:$0xff]
    %v8288 = vld [vmem:[#allocation2 + $0x2e0] sm:$0xff]
    %v8289 = vld [vmem:[#allocation2 + $0x2e8] sm:$0xff]
    %v8290 = vld [vmem:[#allocation2 + $0x2f0] sm:$0xff]
    %v8291 = vld [vmem:[#allocation2 + $0x2f8] sm:$0xff]
    %v8292 = vcombine.low %v8247, %v8251
    %v8293 = vcombine.low %v8255, %v8259
    %v8295 = vunpack.c.l.s4 1983009808
    %v8296 = vunpack.c.0.s8 %v8295
    %v8297 = vlaneseq
    %v8298 = vshrl.u32 %v8297, 7
    %v8299 = vsub.s32 %v8296, %v8298
    %v8300 = vrot.slane %v8292, %v8299
    %v8302 = vunpack.c.l.s4 1983009808
    %v8303 = vunpack.c.0.s8 %v8302
    %v8304 = vlaneseq
    %v8305 = vshrl.u32 %v8304, 7
    %v8306 = vsub.s32 %v8303, %v8305
    %v8307 = vrot.slane %v8293, %v8306
    %v8308 = vcombine.low %v8300, %v8307
    %v8309 = vcombine.low %v8263, %v8267
    %v8310 = vcombine.low %v8271, %v8275
    %v8312 = vunpack.c.l.s4 1983009808
    %v8313 = vunpack.c.0.s8 %v8312
    %v8314 = vlaneseq
    %v8315 = vshrl.u32 %v8314, 7
    %v8316 = vsub.s32 %v8313, %v8315
    %v8317 = vrot.slane %v8309, %v8316
    %v8319 = vunpack.c.l.s4 1983009808
    %v8320 = vunpack.c.0.s8 %v8319
    %v8321 = vlaneseq
    %v8322 = vshrl.u32 %v8321, 7
    %v8323 = vsub.s32 %v8320, %v8322
    %v8324 = vrot.slane %v8310, %v8323
    %v8325 = vcombine.low %v8317, %v8324
    %8328 = vmatprep.subr.bf16.mxu0 %v8277
    %8329 = vmatpush1.bf16.msra.mxu0 %v8276
    %8330 = vmatprep.subr.bf16.mxu0 %v8279
    %8331 = vmatpush1.bf16.msra.mxu0 %v8278
    %8332 = vmatprep.subr.bf16.mxu0 %v8281
    %8333 = vmatpush1.bf16.msra.mxu0 %v8280
    %8334 = vmatprep.subr.bf16.mxu0 %v8283
    %8335 = vmatpush1.bf16.msra.mxu0 %v8282
    %8336 = vmatprep.subr.bf16.mxu0 %v8285
    %8337 = vmatpush1.bf16.msra.mxu0 %v8284
    %8338 = vmatprep.subr.bf16.mxu0 %v8287
    %8339 = vmatpush1.bf16.msra.mxu0 %v8286
    %8340 = vmatprep.subr.bf16.mxu0 %v8289
    %8341 = vmatpush1.bf16.msra.mxu0 %v8288
    %8342 = vmatprep.subr.bf16.mxu0 %v8291
    %8343 = vmatpush1.bf16.msra.mxu0 %v8290
    %8344 = vmatprep.subr.bf16.mxu0 0
    %8345 = vmatpush1.bf16.msra.mxu0 0
    %8346 = vmatprep.subr.bf16.mxu0 0
    %8347 = vmatpush1.bf16.msra.mxu0 0
    %8348 = vmatprep.subr.bf16.mxu0 0
    %8349 = vmatpush1.bf16.msra.mxu0 0
    %8350 = vmatprep.subr.bf16.mxu0 0
    %8351 = vmatpush1.bf16.msra.mxu0 0
    %8352 = vmatprep.subr.bf16.mxu0 0
    %8353 = vmatpush1.bf16.msra.mxu0 0
    %8354 = vmatprep.subr.bf16.mxu0 0
    %8355 = vmatpush1.bf16.msra.mxu0 0
    %8356 = vmatprep.subr.bf16.mxu0 0
    %8357 = vmatpush1.bf16.msra.mxu0 0
    %8358 = vmatprep.subr.bf16.mxu0 0
    %8359 = vmatpush1.bf16.msra.mxu0 0
    %8360 = vmatprep.mubr.bf16.mxu0 0
    %8361 = vmatmul.mubr.bf16.gmra.mrb[0].mxu0 %v8308
    %v8362 = vpop.f32.mrb[0].mxu0
    %v8363 = vadd.f32 0.0, %v8362
    %v8364 = vpop.f32.mrb[0].mxu0
    %v8365 = vadd.f32 0.0, %v8364
    %v8366 = vpop.f32.mrb[0].mxu0
    %v8367 = vadd.f32 0.0, %v8366
    %v8368 = vpop.f32.mrb[0].mxu0
    %v8369 = vadd.f32 0.0, %v8368
    %8370 = vmatprep.mubr.bf16.mxu0 0
    %8371 = vmatmul.mubr.bf16.gmra.mrb[0].mxu0 %v8325
    %v8372 = vpop.f32.mrb[0].mxu0
    %v8373 = vadd.f32 0.0, %v8372
    %v8374 = vpop.f32.mrb[0].mxu0
    %v8375 = vadd.f32 0.0, %v8374
    %v8376 = vpop.f32.mrb[0].mxu0
    %v8377 = vadd.f32 0.0, %v8376
    %v8378 = vpop.f32.mrb[0].mxu0
    %v8379 = vadd.f32 0.0, %v8378
    %8380 = vdwg.mxu0
    %v8381 = vadd.f32 %v8156, %v8363
    %v8382 = vadd.f32 %v8157, %v8365
    %v8383 = vadd.f32 %v8158, %v8367
    %v8384 = vadd.f32 %v8159, %v8369
    %v8385 = vadd.f32 %v8160, %v8373
    %v8386 = vadd.f32 %v8161, %v8375
    %v8387 = vadd.f32 %v8162, %v8377
    %v8388 = vadd.f32 %v8163, %v8379
    %s8389 = scalar_lea.vmem [#allocation6], 8
    %v8390 = vld [vmem:[%s8389] sm:$0x3]
    %v8391 = vld [vmem:[%s8389 + $0x4] sm:$0x3]
    %v8392 = vld [vmem:[%s8389 + $0x8] sm:$0x3]
    %v8393 = vld [vmem:[%s8389 + $0xc] sm:$0x3]
    %v8394 = vld [vmem:[%s8389 + $0x18] sm:$0x3]
    %v8395 = vld [vmem:[%s8389 + $0x1c] sm:$0x3]
    %v8396 = vld [vmem:[%s8389 + $0x20] sm:$0x3]
    %v8397 = vld [vmem:[%s8389 + $0x24] sm:$0x3]
    %v8398 = vld [vmem:[#allocation2 + $0x300] sm:$0xff]
    %v8399 = vld [vmem:[#allocation2 + $0x308] sm:$0xff]
    %v8400 = vld [vmem:[#allocation2 + $0x310] sm:$0xff]
    %v8401 = vld [vmem:[#allocation2 + $0x318] sm:$0xff]
    %v8402 = vld [vmem:[#allocation2 + $0x320] sm:$0xff]
    %v8403 = vld [vmem:[#allocation2 + $0x328] sm:$0xff]
    %v8404 = vld [vmem:[#allocation2 + $0x330] sm:$0xff]
    %v8405 = vld [vmem:[#allocation2 + $0x338] sm:$0xff]
    %v8406 = vld [vmem:[#allocation2 + $0x340] sm:$0xff]
    %v8407 = vld [vmem:[#allocation2 + $0x348] sm:$0xff]
    %v8408 = vld [vmem:[#allocation2 + $0x350] sm:$0xff]
    %v8409 = vld [vmem:[#allocation2 + $0x358] sm:$0xff]
    %v8410 = vld [vmem:[#allocation2 + $0x360] sm:$0xff]
    %v8411 = vld [vmem:[#allocation2 + $0x368] sm:$0xff]
    %v8412 = vld [vmem:[#allocation2 + $0x370] sm:$0xff]
    %v8413 = vld [vmem:[#allocation2 + $0x378] sm:$0xff]
    %v8422 = vcombine.low %v8390, %v8391
    %v8423 = vcombine.low %v8392, %v8393
    %v8425 = vunpack.c.l.s4 1983009808
    %v8426 = vunpack.c.0.s8 %v8425
    %v8427 = vlaneseq
    %v8428 = vshrl.u32 %v8427, 7
    %v8429 = vsub.s32 %v8426, %v8428
    %v8430 = vrot.slane %v8422, %v8429
    %v8432 = vunpack.c.l.s4 1983009808
    %v8433 = vunpack.c.0.s8 %v8432
    %v8434 = vlaneseq
    %v8435 = vshrl.u32 %v8434, 7
    %v8436 = vsub.s32 %v8433, %v8435
    %v8437 = vrot.slane %v8423, %v8436
    %v8438 = vcombine.low %v8430, %v8437
    %v8439 = vcombine.low %v8394, %v8395
    %v8440 = vcombine.low %v8396, %v8397
    %v8442 = vunpack.c.l.s4 1983009808
    %v8443 = vunpack.c.0.s8 %v8442
    %v8444 = vlaneseq
    %v8445 = vshrl.u32 %v8444, 7
    %v8446 = vsub.s32 %v8443, %v8445
    %v8447 = vrot.slane %v8439, %v8446
    %v8449 = vunpack.c.l.s4 1983009808
    %v8450 = vunpack.c.0.s8 %v8449
    %v8451 = vlaneseq
    %v8452 = vshrl.u32 %v8451, 7
    %v8453 = vsub.s32 %v8450, %v8452
    %v8454 = vrot.slane %v8440, %v8453
    %v8455 = vcombine.low %v8447, %v8454
    %8458 = vmatprep.subr.bf16.mxu0 %v8399
    %8459 = vmatpush1.bf16.msra.mxu0 %v8398
    %8460 = vmatprep.subr.bf16.mxu0 %v8401
    %8461 = vmatpush1.bf16.msra.mxu0 %v8400
    %8462 = vmatprep.subr.bf16.mxu0 %v8403
    %8463 = vmatpush1.bf16.msra.mxu0 %v8402
    %8464 = vmatprep.subr.bf16.mxu0 %v8405
    %8465 = vmatpush1.bf16.msra.mxu0 %v8404
    %8466 = vmatprep.subr.bf16.mxu0 %v8407
    %8467 = vmatpush1.bf16.msra.mxu0 %v8406
    %8468 = vmatprep.subr.bf16.mxu0 %v8409
    %8469 = vmatpush1.bf16.msra.mxu0 %v8408
    %8470 = vmatprep.subr.bf16.mxu0 %v8411
    %8471 = vmatpush1.bf16.msra.mxu0 %v8410
    %8472 = vmatprep.subr.bf16.mxu0 %v8413
    %8473 = vmatpush1.bf16.msra.mxu0 %v8412
    %8474 = vmatprep.subr.bf16.mxu0 0
    %8475 = vmatpush1.bf16.msra.mxu0 0
    %8476 = vmatprep.subr.bf16.mxu0 0
    %8477 = vmatpush1.bf16.msra.mxu0 0
    %8478 = vmatprep.subr.bf16.mxu0 0
    %8479 = vmatpush1.bf16.msra.mxu0 0
    %8480 = vmatprep.subr.bf16.mxu0 0
    %8481 = vmatpush1.bf16.msra.mxu0 0
    %8482 = vmatprep.subr.bf16.mxu0 0
    %8483 = vmatpush1.bf16.msra.mxu0 0
    %8484 = vmatprep.subr.bf16.mxu0 0
    %8485 = vmatpush1.bf16.msra.mxu0 0
    %8486 = vmatprep.subr.bf16.mxu0 0
    %8487 = vmatpush1.bf16.msra.mxu0 0
    %8488 = vmatprep.subr.bf16.mxu0 0
    %8489 = vmatpush1.bf16.msra.mxu0 0
    %8490 = vmatprep.mubr.bf16.mxu0 0
    %8491 = vmatmul.mubr.bf16.gmra.mrb[0].mxu0 %v8438
    %v8492 = vpop.f32.mrb[0].mxu0
    %v8493 = vadd.f32 0.0, %v8492
    %v8494 = vpop.f32.mrb[0].mxu0
    %v8495 = vadd.f32 0.0, %v8494
    %v8496 = vpop.f32.mrb[0].mxu0
    %v8497 = vadd.f32 0.0, %v8496
    %v8498 = vpop.f32.mrb[0].mxu0
    %v8499 = vadd.f32 0.0, %v8498
    %8500 = vmatprep.mubr.bf16.mxu0 0
    %8501 = vmatmul.mubr.bf16.gmra.mrb[0].mxu0 %v8455
    %v8502 = vpop.f32.mrb[0].mxu0
    %v8503 = vadd.f32 0.0, %v8502
    %v8504 = vpop.f32.mrb[0].mxu0
    %v8505 = vadd.f32 0.0, %v8504
    %v8506 = vpop.f32.mrb[0].mxu0
    %v8507 = vadd.f32 0.0, %v8506
    %v8508 = vpop.f32.mrb[0].mxu0
    %v8509 = vadd.f32 0.0, %v8508
    %8510 = vdwg.mxu0
    %v8511 = vadd.f32 %v8381, %v8493
    %v8512 = vadd.f32 %v8382, %v8495
    %v8513 = vadd.f32 %v8383, %v8497
    %v8514 = vadd.f32 %v8384, %v8499
    %v8515 = vadd.f32 %v8385, %v8503
    %v8516 = vadd.f32 %v8386, %v8505
    %v8517 = vadd.f32 %v8387, %v8507
    %v8518 = vadd.f32 %v8388, %v8509
    %v8519 = vld [vmem:[%s8389] sm:$0x7]
    %v8520 = vld [vmem:[%s8389 + $0x4] sm:$0x7]
    %v8521 = vld [vmem:[%s8389 + $0x8] sm:$0x7]
    %v8522 = vld [vmem:[%s8389 + $0xc] sm:$0x7]
    %v8523 = vld [vmem:[%s8389 + $0x18] sm:$0x7]
    %v8524 = vld [vmem:[%s8389 + $0x1c] sm:$0x7]
    %v8525 = vld [vmem:[%s8389 + $0x20] sm:$0x7]
    %v8526 = vld [vmem:[%s8389 + $0x24] sm:$0x7]
    %v8536 = vunpack.c.l.s4 1983009808
    %v8537 = vunpack.c.0.s8 %v8536
    %v8538 = vlaneseq
    %v8539 = vshrl.u32 %v8538, 7
    %v8540 = vsub.s32 %v8537, %v8539
    %v8541 = vrot.slane %v8519, %v8540
    %v8542 = vcombine.high %v8541, %v8541
    %v8544 = vunpack.c.l.s4 1983009808
    %v8545 = vunpack.c.0.s8 %v8544
    %v8546 = vlaneseq
    %v8547 = vshrl.u32 %v8546, 7
    %v8548 = vsub.s32 %v8545, %v8547
    %v8549 = vrot.slane %v8520, %v8548
    %v8550 = vcombine.high %v8549, %v8549
    %v8552 = vunpack.c.l.s4 1983009808
    %v8553 = vunpack.c.0.s8 %v8552
    %v8554 = vlaneseq
    %v8555 = vshrl.u32 %v8554, 7
    %v8556 = vsub.s32 %v8553, %v8555
    %v8557 = vrot.slane %v8521, %v8556
    %v8558 = vcombine.high %v8557, %v8557
    %v8560 = vunpack.c.l.s4 1983009808
    %v8561 = vunpack.c.0.s8 %v8560
    %v8562 = vlaneseq
    %v8563 = vshrl.u32 %v8562, 7
    %v8564 = vsub.s32 %v8561, %v8563
    %v8565 = vrot.slane %v8522, %v8564
    %v8566 = vcombine.high %v8565, %v8565
    %v8568 = vunpack.c.l.s4 1983009808
    %v8569 = vunpack.c.0.s8 %v8568
    %v8570 = vlaneseq
    %v8571 = vshrl.u32 %v8570, 7
    %v8572 = vsub.s32 %v8569, %v8571
    %v8573 = vrot.slane %v8523, %v8572
    %v8574 = vcombine.high %v8573, %v8573
    %v8576 = vunpack.c.l.s4 1983009808
    %v8577 = vunpack.c.0.s8 %v8576
    %v8578 = vlaneseq
    %v8579 = vshrl.u32 %v8578, 7
    %v8580 = vsub.s32 %v8577, %v8579
    %v8581 = vrot.slane %v8524, %v8580
    %v8582 = vcombine.high %v8581, %v8581
    %v8584 = vunpack.c.l.s4 1983009808
    %v8585 = vunpack.c.0.s8 %v8584
    %v8586 = vlaneseq
    %v8587 = vshrl.u32 %v8586, 7
    %v8588 = vsub.s32 %v8585, %v8587
    %v8589 = vrot.slane %v8525, %v8588
    %v8590 = vcombine.high %v8589, %v8589
    %v8592 = vunpack.c.l.s4 1983009808
    %v8593 = vunpack.c.0.s8 %v8592
    %v8594 = vlaneseq
    %v8595 = vshrl.u32 %v8594, 7
    %v8596 = vsub.s32 %v8593, %v8595
    %v8597 = vrot.slane %v8526, %v8596
    %v8598 = vcombine.high %v8597, %v8597
    %v8600 = vshrl.u32 %v8541, 16
    %v8602 = vrot.slane %v8600, 6
    %v8603 = vshll.u32 %v8541, 16
    %v8605 = vrot.slane %v8603, 7
    %v8606 = vor.u32 %v8602, %v8605
    %v8607 = vrot.slane %v8606, 2
    %v8609 = vshll.u32 %v8542, 16
    %v8611 = vrot.slane %v8609, 7
    %v8612 = vsel %vm7183, %v8607, %v8611
    %v8614 = vshrl.u32 %v8549, 16
    %v8616 = vrot.slane %v8614, 6
    %v8617 = vshll.u32 %v8549, 16
    %v8619 = vrot.slane %v8617, 7
    %v8620 = vor.u32 %v8616, %v8619
    %v8621 = vrot.slane %v8620, 2
    %v8623 = vshll.u32 %v8550, 16
    %v8625 = vrot.slane %v8623, 7
    %v8626 = vsel %vm7183, %v8621, %v8625
    %v8628 = vshrl.u32 %v8557, 16
    %v8630 = vrot.slane %v8628, 6
    %v8631 = vshll.u32 %v8557, 16
    %v8633 = vrot.slane %v8631, 7
    %v8634 = vor.u32 %v8630, %v8633
    %v8635 = vrot.slane %v8634, 2
    %v8637 = vshll.u32 %v8558, 16
    %v8639 = vrot.slane %v8637, 7
    %v8640 = vsel %vm7183, %v8635, %v8639
    %v8642 = vshrl.u32 %v8565, 16
    %v8644 = vrot.slane %v8642, 6
    %v8645 = vshll.u32 %v8565, 16
    %v8647 = vrot.slane %v8645, 7
    %v8648 = vor.u32 %v8644, %v8647
    %v8649 = vrot.slane %v8648, 2
    %v8651 = vshll.u32 %v8566, 16
    %v8653 = vrot.slane %v8651, 7
    %v8654 = vsel %vm7183, %v8649, %v8653
    %v8656 = vshrl.u32 %v8573, 16
    %v8658 = vrot.slane %v8656, 6
    %v8659 = vshll.u32 %v8573, 16
    %v8661 = vrot.slane %v8659, 7
    %v8662 = vor.u32 %v8658, %v8661
    %v8663 = vrot.slane %v8662, 2
    %v8665 = vshll.u32 %v8574, 16
    %v8667 = vrot.slane %v8665, 7
    %v8668 = vsel %vm7183, %v8663, %v8667
    %v8670 = vshrl.u32 %v8581, 16
    %v8672 = vrot.slane %v8670, 6
    %v8673 = vshll.u32 %v8581, 16
    %v8675 = vrot.slane %v8673, 7
    %v8676 = vor.u32 %v8672, %v8675
    %v8677 = vrot.slane %v8676, 2
    %v8679 = vshll.u32 %v8582, 16
    %v8681 = vrot.slane %v8679, 7
    %v8682 = vsel %vm7183, %v8677, %v8681
    %v8684 = vshrl.u32 %v8589, 16
    %v8686 = vrot.slane %v8684, 6
    %v8687 = vshll.u32 %v8589, 16
    %v8689 = vrot.slane %v8687, 7
    %v8690 = vor.u32 %v8686, %v8689
    %v8691 = vrot.slane %v8690, 2
    %v8693 = vshll.u32 %v8590, 16
    %v8695 = vrot.slane %v8693, 7
    %v8696 = vsel %vm7183, %v8691, %v8695
    %v8698 = vshrl.u32 %v8597, 16
    %v8700 = vrot.slane %v8698, 6
    %v8701 = vshll.u32 %v8597, 16
    %v8703 = vrot.slane %v8701, 7
    %v8704 = vor.u32 %v8700, %v8703
    %v8705 = vrot.slane %v8704, 2
    %v8707 = vshll.u32 %v8598, 16
    %v8709 = vrot.slane %v8707, 7
    %v8710 = vsel %vm7183, %v8705, %v8709
    %v8711 = vld [vmem:[#allocation2 + $0x380] sm:$0xff]
    %v8712 = vld [vmem:[#allocation2 + $0x388] sm:$0xff]
    %v8713 = vld [vmem:[#allocation2 + $0x390] sm:$0xff]
    %v8714 = vld [vmem:[#allocation2 + $0x398] sm:$0xff]
    %v8715 = vld [vmem:[#allocation2 + $0x3a0] sm:$0xff]
    %v8716 = vld [vmem:[#allocation2 + $0x3a8] sm:$0xff]
    %v8717 = vld [vmem:[#allocation2 + $0x3b0] sm:$0xff]
    %v8718 = vld [vmem:[#allocation2 + $0x3b8] sm:$0xff]
    %v8719 = vld [vmem:[#allocation2 + $0x3c0] sm:$0xff]
    %v8720 = vld [vmem:[#allocation2 + $0x3c8] sm:$0xff]
    %v8721 = vld [vmem:[#allocation2 + $0x3d0] sm:$0xff]
    %v8722 = vld [vmem:[#allocation2 + $0x3d8] sm:$0xff]
    %v8723 = vld [vmem:[#allocation2 + $0x3e0] sm:$0xff]
    %v8724 = vld [vmem:[#allocation2 + $0x3e8] sm:$0xff]
    %v8725 = vld [vmem:[#allocation2 + $0x3f0] sm:$0xff]
    %v8726 = vld [vmem:[#allocation2 + $0x3f8] sm:$0xff]
    %v8727 = vcombine.low %v8612, %v8626
    %v8728 = vcombine.low %v8640, %v8654
    %v8730 = vunpack.c.l.s4 1983009808
    %v8731 = vunpack.c.0.s8 %v8730
    %v8732 = vlaneseq
    %v8733 = vshrl.u32 %v8732, 7
    %v8734 = vsub.s32 %v8731, %v8733
    %v8735 = vrot.slane %v8727, %v8734
    %v8737 = vunpack.c.l.s4 1983009808
    %v8738 = vunpack.c.0.s8 %v8737
    %v8739 = vlaneseq
    %v8740 = vshrl.u32 %v8739, 7
    %v8741 = vsub.s32 %v8738, %v8740
    %v8742 = vrot.slane %v8728, %v8741
    %v8743 = vcombine.low %v8735, %v8742
    %v8744 = vcombine.low %v8668, %v8682
    %v8745 = vcombine.low %v8696, %v8710
    %v8747 = vunpack.c.l.s4 1983009808
    %v8748 = vunpack.c.0.s8 %v8747
    %v8749 = vlaneseq
    %v8750 = vshrl.u32 %v8749, 7
    %v8751 = vsub.s32 %v8748, %v8750
    %v8752 = vrot.slane %v8744, %v8751
    %v8754 = vunpack.c.l.s4 1983009808
    %v8755 = vunpack.c.0.s8 %v8754
    %v8756 = vlaneseq
    %v8757 = vshrl.u32 %v8756, 7
    %v8758 = vsub.s32 %v8755, %v8757
    %v8759 = vrot.slane %v8745, %v8758
    %v8760 = vcombine.low %v8752, %v8759
    %8763 = vmatprep.subr.bf16.mxu0 %v8712
    %8764 = vmatpush1.bf16.msra.mxu0 %v8711
    %8765 = vmatprep.subr.bf16.mxu0 %v8714
    %8766 = vmatpush1.bf16.msra.mxu0 %v8713
    %8767 = vmatprep.subr.bf16.mxu0 %v8716
    %8768 = vmatpush1.bf16.msra.mxu0 %v8715
    %8769 = vmatprep.subr.bf16.mxu0 %v8718
    %8770 = vmatpush1.bf16.msra.mxu0 %v8717
    %8771 = vmatprep.subr.bf16.mxu0 %v8720
    %8772 = vmatpush1.bf16.msra.mxu0 %v8719
    %8773 = vmatprep.subr.bf16.mxu0 %v8722
    %8774 = vmatpush1.bf16.msra.mxu0 %v8721
    %8775 = vmatprep.subr.bf16.mxu0 %v8724
    %8776 = vmatpush1.bf16.msra.mxu0 %v8723
    %8777 = vmatprep.subr.bf16.mxu0 %v8726
    %8778 = vmatpush1.bf16.msra.mxu0 %v8725
    %8779 = vmatprep.subr.bf16.mxu0 0
    %8780 = vmatpush1.bf16.msra.mxu0 0
    %8781 = vmatprep.subr.bf16.mxu0 0
    %8782 = vmatpush1.bf16.msra.mxu0 0
    %8783 = vmatprep.subr.bf16.mxu0 0
    %8784 = vmatpush1.bf16.msra.mxu0 0
    %8785 = vmatprep.subr.bf16.mxu0 0
    %8786 = vmatpush1.bf16.msra.mxu0 0
    %8787 = vmatprep.subr.bf16.mxu0 0
    %8788 = vmatpush1.bf16.msra.mxu0 0
    %8789 = vmatprep.subr.bf16.mxu0 0
    %8790 = vmatpush1.bf16.msra.mxu0 0
    %8791 = vmatprep.subr.bf16.mxu0 0
    %8792 = vmatpush1.bf16.msra.mxu0 0
    %8793 = vmatprep.subr.bf16.mxu0 0
    %8794 = vmatpush1.bf16.msra.mxu0 0
    %8795 = vmatprep.mubr.bf16.mxu0 0
    %8796 = vmatmul.mubr.bf16.gmra.mrb[0].mxu0 %v8743
    %v8797 = vpop.f32.mrb[0].mxu0
    %v8798 = vadd.f32 0.0, %v8797
    %v8799 = vpop.f32.mrb[0].mxu0
    %v8800 = vadd.f32 0.0, %v8799
    %v8801 = vpop.f32.mrb[0].mxu0
    %v8802 = vadd.f32 0.0, %v8801
    %v8803 = vpop.f32.mrb[0].mxu0
    %v8804 = vadd.f32 0.0, %v8803
    %8805 = vmatprep.mubr.bf16.mxu0 0
    %8806 = vmatmul.mubr.bf16.gmra.mrb[0].mxu0 %v8760
    %v8807 = vpop.f32.mrb[0].mxu0
    %v8808 = vadd.f32 0.0, %v8807
    %v8809 = vpop.f32.mrb[0].mxu0
    %v8810 = vadd.f32 0.0, %v8809
    %v8811 = vpop.f32.mrb[0].mxu0
    %v8812 = vadd.f32 0.0, %v8811
    %v8813 = vpop.f32.mrb[0].mxu0
    %v8814 = vadd.f32 0.0, %v8813
    %8815 = vdwg.mxu0
    %v8816 = vadd.f32 %v8511, %v8798
    %v8817 = vadd.f32 %v8512, %v8800
    %v8818 = vadd.f32 %v8513, %v8802
    %v8819 = vadd.f32 %v8514, %v8804
    %v8820 = vadd.f32 %v8515, %v8808
    %v8821 = vadd.f32 %v8516, %v8810
    %v8822 = vadd.f32 %v8517, %v8812
    %v8823 = vadd.f32 %v8518, %v8814
    %v8824 = vld [vmem:[%s8389] sm:$0x6]
    %v8825 = vld [vmem:[%s8389 + $0x4] sm:$0x6]
    %v8826 = vld [vmem:[%s8389 + $0x8] sm:$0x6]
    %v8827 = vld [vmem:[%s8389 + $0xc] sm:$0x6]
    %v8828 = vld [vmem:[%s8389 + $0x18] sm:$0x6]
    %v8829 = vld [vmem:[%s8389 + $0x1c] sm:$0x6]
    %v8830 = vld [vmem:[%s8389 + $0x20] sm:$0x6]
    %v8831 = vld [vmem:[%s8389 + $0x24] sm:$0x6]
    %v8841 = vunpack.c.l.s4 1983009808
    %v8842 = vunpack.c.0.s8 %v8841
    %v8843 = vlaneseq
    %v8844 = vshrl.u32 %v8843, 7
    %v8845 = vsub.s32 %v8842, %v8844
    %v8846 = vrot.slane %v8824, %v8845
    %v8847 = vcombine.high %v8846, %v8846
    %v8849 = vunpack.c.l.s4 1983009808
    %v8850 = vunpack.c.0.s8 %v8849
    %v8851 = vlaneseq
    %v8852 = vshrl.u32 %v8851, 7
    %v8853 = vsub.s32 %v8850, %v8852
    %v8854 = vrot.slane %v8825, %v8853
    %v8855 = vcombine.high %v8854, %v8854
    %v8857 = vunpack.c.l.s4 1983009808
    %v8858 = vunpack.c.0.s8 %v8857
    %v8859 = vlaneseq
    %v8860 = vshrl.u32 %v8859, 7
    %v8861 = vsub.s32 %v8858, %v8860
    %v8862 = vrot.slane %v8826, %v8861
    %v8863 = vcombine.high %v8862, %v8862
    %v8865 = vunpack.c.l.s4 1983009808
    %v8866 = vunpack.c.0.s8 %v8865
    %v8867 = vlaneseq
    %v8868 = vshrl.u32 %v8867, 7
    %v8869 = vsub.s32 %v8866, %v8868
    %v8870 = vrot.slane %v8827, %v8869
    %v8871 = vcombine.high %v8870, %v8870
    %v8873 = vunpack.c.l.s4 1983009808
    %v8874 = vunpack.c.0.s8 %v8873
    %v8875 = vlaneseq
    %v8876 = vshrl.u32 %v8875, 7
    %v8877 = vsub.s32 %v8874, %v8876
    %v8878 = vrot.slane %v8828, %v8877
    %v8879 = vcombine.high %v8878, %v8878
    %v8881 = vunpack.c.l.s4 1983009808
    %v8882 = vunpack.c.0.s8 %v8881
    %v8883 = vlaneseq
    %v8884 = vshrl.u32 %v8883, 7
    %v8885 = vsub.s32 %v8882, %v8884
    %v8886 = vrot.slane %v8829, %v8885
    %v8887 = vcombine.high %v8886, %v8886
    %v8889 = vunpack.c.l.s4 1983009808
    %v8890 = vunpack.c.0.s8 %v8889
    %v8891 = vlaneseq
    %v8892 = vshrl.u32 %v8891, 7
    %v8893 = vsub.s32 %v8890, %v8892
    %v8894 = vrot.slane %v8830, %v8893
    %v8895 = vcombine.high %v8894, %v8894
    %v8897 = vunpack.c.l.s4 1983009808
    %v8898 = vunpack.c.0.s8 %v8897
    %v8899 = vlaneseq
    %v8900 = vshrl.u32 %v8899, 7
    %v8901 = vsub.s32 %v8898, %v8900
    %v8902 = vrot.slane %v8831, %v8901
    %v8903 = vcombine.high %v8902, %v8902
    %v8904 = vrot.slane %v8846, 7
    %v8905 = vrot.slane %v8904, 2
    %v8906 = vrot.slane %v8847, 7
    %v8907 = vsel %vm7584, %v8905, %v8906
    %v8908 = vrot.slane %v8854, 7
    %v8909 = vrot.slane %v8908, 2
    %v8910 = vrot.slane %v8855, 7
    %v8911 = vsel %vm7584, %v8909, %v8910
    %v8912 = vrot.slane %v8862, 7
    %v8913 = vrot.slane %v8912, 2
    %v8914 = vrot.slane %v8863, 7
    %v8915 = vsel %vm7584, %v8913, %v8914
    %v8916 = vrot.slane %v8870, 7
    %v8917 = vrot.slane %v8916, 2
    %v8918 = vrot.slane %v8871, 7
    %v8919 = vsel %vm7584, %v8917, %v8918
    %v8920 = vrot.slane %v8878, 7
    %v8921 = vrot.slane %v8920, 2
    %v8922 = vrot.slane %v8879, 7
    %v8923 = vsel %vm7584, %v8921, %v8922
    %v8924 = vrot.slane %v8886, 7
    %v8925 = vrot.slane %v8924, 2
    %v8926 = vrot.slane %v8887, 7
    %v8927 = vsel %vm7584, %v8925, %v8926
    %v8928 = vrot.slane %v8894, 7
    %v8929 = vrot.slane %v8928, 2
    %v8930 = vrot.slane %v8895, 7
    %v8931 = vsel %vm7584, %v8929, %v8930
    %v8932 = vrot.slane %v8902, 7
    %v8933 = vrot.slane %v8932, 2
    %v8934 = vrot.slane %v8903, 7
    %v8935 = vsel %vm7584, %v8933, %v8934
    %v8936 = vld [vmem:[#allocation2 + $0x400] sm:$0xff]
    %v8937 = vld [vmem:[#allocation2 + $0x408] sm:$0xff]
    %v8938 = vld [vmem:[#allocation2 + $0x410] sm:$0xff]
    %v8939 = vld [vmem:[#allocation2 + $0x418] sm:$0xff]
    %v8940 = vld [vmem:[#allocation2 + $0x420] sm:$0xff]
    %v8941 = vld [vmem:[#allocation2 + $0x428] sm:$0xff]
    %v8942 = vld [vmem:[#allocation2 + $0x430] sm:$0xff]
    %v8943 = vld [vmem:[#allocation2 + $0x438] sm:$0xff]
    %v8944 = vld [vmem:[#allocation2 + $0x440] sm:$0xff]
    %v8945 = vld [vmem:[#allocation2 + $0x448] sm:$0xff]
    %v8946 = vld [vmem:[#allocation2 + $0x450] sm:$0xff]
    %v8947 = vld [vmem:[#allocation2 + $0x458] sm:$0xff]
    %v8948 = vld [vmem:[#allocation2 + $0x460] sm:$0xff]
    %v8949 = vld [vmem:[#allocation2 + $0x468] sm:$0xff]
    %v8950 = vld [vmem:[#allocation2 + $0x470] sm:$0xff]
    %v8951 = vld [vmem:[#allocation2 + $0x478] sm:$0xff]
    %v8952 = vcombine.low %v8907, %v8911
    %v8953 = vcombine.low %v8915, %v8919
    %v8955 = vunpack.c.l.s4 1983009808
    %v8956 = vunpack.c.0.s8 %v8955
    %v8957 = vlaneseq
    %v8958 = vshrl.u32 %v8957, 7
    %v8959 = vsub.s32 %v8956, %v8958
    %v8960 = vrot.slane %v8952, %v8959
    %v8962 = vunpack.c.l.s4 1983009808
    %v8963 = vunpack.c.0.s8 %v8962
    %v8964 = vlaneseq
    %v8965 = vshrl.u32 %v8964, 7
    %v8966 = vsub.s32 %v8963, %v8965
    %v8967 = vrot.slane %v8953, %v8966
    %v8968 = vcombine.low %v8960, %v8967
    %v8969 = vcombine.low %v8923, %v8927
    %v8970 = vcombine.low %v8931, %v8935
    %v8972 = vunpack.c.l.s4 1983009808
    %v8973 = vunpack.c.0.s8 %v8972
    %v8974 = vlaneseq
    %v8975 = vshrl.u32 %v8974, 7
    %v8976 = vsub.s32 %v8973, %v8975
    %v8977 = vrot.slane %v8969, %v8976
    %v8979 = vunpack.c.l.s4 1983009808
    %v8980 = vunpack.c.0.s8 %v8979
    %v8981 = vlaneseq
    %v8982 = vshrl.u32 %v8981, 7
    %v8983 = vsub.s32 %v8980, %v8982
    %v8984 = vrot.slane %v8970, %v8983
    %v8985 = vcombine.low %v8977, %v8984
    %8988 = vmatprep.subr.bf16.mxu0 %v8937
    %8989 = vmatpush1.bf16.msra.mxu0 %v8936
    %8990 = vmatprep.subr.bf16.mxu0 %v8939
    %8991 = vmatpush1.bf16.msra.mxu0 %v8938
    %8992 = vmatprep.subr.bf16.mxu0 %v8941
    %8993 = vmatpush1.bf16.msra.mxu0 %v8940
    %8994 = vmatprep.subr.bf16.mxu0 %v8943
    %8995 = vmatpush1.bf16.msra.mxu0 %v8942
    %8996 = vmatprep.subr.bf16.mxu0 %v8945
    %8997 = vmatpush1.bf16.msra.mxu0 %v8944
    %8998 = vmatprep.subr.bf16.mxu0 %v8947
    %8999 = vmatpush1.bf16.msra.mxu0 %v8946
    %9000 = vmatprep.subr.bf16.mxu0 %v8949
    %9001 = vmatpush1.bf16.msra.mxu0 %v8948
    %9002 = vmatprep.subr.bf16.mxu0 %v8951
    %9003 = vmatpush1.bf16.msra.mxu0 %v8950
    %9004 = vmatprep.subr.bf16.mxu0 0
    %9005 = vmatpush1.bf16.msra.mxu0 0
    %9006 = vmatprep.subr.bf16.mxu0 0
    %9007 = vmatpush1.bf16.msra.mxu0 0
    %9008 = vmatprep.subr.bf16.mxu0 0
    %9009 = vmatpush1.bf16.msra.mxu0 0
    %9010 = vmatprep.subr.bf16.mxu0 0
    %9011 = vmatpush1.bf16.msra.mxu0 0
    %9012 = vmatprep.subr.bf16.mxu0 0
    %9013 = vmatpush1.bf16.msra.mxu0 0
    %9014 = vmatprep.subr.bf16.mxu0 0
    %9015 = vmatpush1.bf16.msra.mxu0 0
    %9016 = vmatprep.subr.bf16.mxu0 0
    %9017 = vmatpush1.bf16.msra.mxu0 0
    %9018 = vmatprep.subr.bf16.mxu0 0
    %9019 = vmatpush1.bf16.msra.mxu0 0
    %9020 = vmatprep.mubr.bf16.mxu0 0
    %9021 = vmatmul.mubr.bf16.gmra.mrb[0].mxu0 %v8968
    %v9022 = vpop.f32.mrb[0].mxu0
    %v9023 = vadd.f32 0.0, %v9022
    %v9024 = vpop.f32.mrb[0].mxu0
    %v9025 = vadd.f32 0.0, %v9024
    %v9026 = vpop.f32.mrb[0].mxu0
    %v9027 = vadd.f32 0.0, %v9026
    %v9028 = vpop.f32.mrb[0].mxu0
    %v9029 = vadd.f32 0.0, %v9028
    %9030 = vmatprep.mubr.bf16.mxu0 0
    %9031 = vmatmul.mubr.bf16.gmra.mrb[0].mxu0 %v8985
    %v9032 = vpop.f32.mrb[0].mxu0
    %v9033 = vadd.f32 0.0, %v9032
    %v9034 = vpop.f32.mrb[0].mxu0
    %v9035 = vadd.f32 0.0, %v9034
    %v9036 = vpop.f32.mrb[0].mxu0
    %v9037 = vadd.f32 0.0, %v9036
    %v9038 = vpop.f32.mrb[0].mxu0
    %v9039 = vadd.f32 0.0, %v9038
    %9040 = vdwg.mxu0
    %v9041 = vadd.f32 %v8816, %v9023
    %v9042 = vadd.f32 %v8817, %v9025
    %v9043 = vadd.f32 %v8818, %v9027
    %v9044 = vadd.f32 %v8819, %v9029
    %v9045 = vadd.f32 %v8820, %v9033
    %v9046 = vadd.f32 %v8821, %v9035
    %v9047 = vadd.f32 %v8822, %v9037
    %v9048 = vadd.f32 %v8823, %v9039
    %v9049 = vld [vmem:[#allocation16] sm:$0x3]
    %v9051 = vlaneseq
    %v9052 = vshrl.u32 %v9051, 7
    %v9053 = vsub.s32 0, %v9052
    %v9054 = vrot.slane %v9049, %v9053
    %v9055 = vlaneseq
    %v9056 = vshrl.u32 %v9055, 7
    %v9057 = vsub.s32 1, %v9056
    %v9058 = vrot.slane %v9049, %v9057
    %v9061 = vadd.f32 %v9041, %v9054
    %v9062 = vadd.f32 %v9042, %v9058
    %v9063 = vadd.f32 %v9043, %v9054
    %v9064 = vadd.f32 %v9044, %v9058
    %v9065 = vadd.f32 %v9045, %v9054
    %v9066 = vadd.f32 %v9046, %v9058
    %v9067 = vadd.f32 %v9047, %v9054
    %v9068 = vadd.f32 %v9048, %v9058
    %v9069 = vmax.f32 %v9061, 0.0
    %v9070 = vmax.f32 %v9062, 0.0
    %v9071 = vmax.f32 %v9063, 0.0
    %v9072 = vmax.f32 %v9064, 0.0
    %v9073 = vmax.f32 %v9065, 0.0
    %v9074 = vmax.f32 %v9066, 0.0
    %v9075 = vmax.f32 %v9067, 0.0
    %v9076 = vmax.f32 %v9068, 0.0
    %v9085 = vrot.slane %v9069, 4
    %v9086 = vrot.slane %v9070, 4
    %v9087 = vrot.slane %v9071, 4
    %v9088 = vrot.slane %v9072, 4
    %v9089 = vrot.slane %v9073, 4
    %v9090 = vrot.slane %v9074, 4
    %v9091 = vrot.slane %v9075, 4
    %v9092 = vrot.slane %v9076, 4
    %v9101 = vmax.f32 %v9069, %v9085
    %v9102 = vmax.f32 %v9070, %v9086
    %v9103 = vmax.f32 %v9071, %v9087
    %v9104 = vmax.f32 %v9072, %v9088
    %v9105 = vmax.f32 %v9073, %v9089
    %v9106 = vmax.f32 %v9074, %v9090
    %v9107 = vmax.f32 %v9075, %v9091
    %v9108 = vmax.f32 %v9076, %v9092
    %v9117 = vcombine.low %v9101, %v9102
    %v9119 = vunpack.c.l.s4 1983009808
    %v9120 = vunpack.c.0.s8 %v9119
    %v9121 = vlaneseq
    %v9122 = vshrl.u32 %v9121, 7
    %v9123 = vsub.s32 %v9120, %v9122
    %v9124 = vrot.slane %v9117, %v9123
    %v9125 = vcombine.high %v9124, %v9124
    %v9126 = vcombine.low %v9103, %v9104
    %v9128 = vunpack.c.l.s4 1983009808
    %v9129 = vunpack.c.0.s8 %v9128
    %v9130 = vlaneseq
    %v9131 = vshrl.u32 %v9130, 7
    %v9132 = vsub.s32 %v9129, %v9131
    %v9133 = vrot.slane %v9126, %v9132
    %v9134 = vcombine.high %v9133, %v9133
    %v9135 = vcombine.low %v9105, %v9106
    %v9137 = vunpack.c.l.s4 1983009808
    %v9138 = vunpack.c.0.s8 %v9137
    %v9139 = vlaneseq
    %v9140 = vshrl.u32 %v9139, 7
    %v9141 = vsub.s32 %v9138, %v9140
    %v9142 = vrot.slane %v9135, %v9141
    %v9143 = vcombine.high %v9142, %v9142
    %v9144 = vcombine.low %v9107, %v9108
    %v9146 = vunpack.c.l.s4 1983009808
    %v9147 = vunpack.c.0.s8 %v9146
    %v9148 = vlaneseq
    %v9149 = vshrl.u32 %v9148, 7
    %v9150 = vsub.s32 %v9147, %v9149
    %v9151 = vrot.slane %v9144, %v9150
    %v9152 = vcombine.high %v9151, %v9151
    %v9154 = vunpack.c.l.s4 1983009808
    %v9155 = vunpack.c.0.s8 %v9154
    %v9156 = vlaneseq
    %v9157 = vshrl.u32 %v9156, 7
    %v9158 = vsub.s32 %v9155, %v9157
    %v9159 = vrot.slane %v9124, %v9158
    %v9160 = vcombine.high %v9159, %v9159
    %v9162 = vunpack.c.l.s4 1983009808
    %v9163 = vunpack.c.0.s8 %v9162
    %v9164 = vlaneseq
    %v9165 = vshrl.u32 %v9164, 7
    %v9166 = vsub.s32 %v9163, %v9165
    %v9167 = vrot.slane %v9125, %v9166
    %v9168 = vcombine.high %v9167, %v9167
    %v9170 = vunpack.c.l.s4 1983009808
    %v9171 = vunpack.c.0.s8 %v9170
    %v9172 = vlaneseq
    %v9173 = vshrl.u32 %v9172, 7
    %v9174 = vsub.s32 %v9171, %v9173
    %v9175 = vrot.slane %v9133, %v9174
    %v9176 = vcombine.high %v9175, %v9175
    %v9178 = vunpack.c.l.s4 1983009808
    %v9179 = vunpack.c.0.s8 %v9178
    %v9180 = vlaneseq
    %v9181 = vshrl.u32 %v9180, 7
    %v9182 = vsub.s32 %v9179, %v9181
    %v9183 = vrot.slane %v9134, %v9182
    %v9184 = vcombine.high %v9183, %v9183
    %v9186 = vunpack.c.l.s4 1983009808
    %v9187 = vunpack.c.0.s8 %v9186
    %v9188 = vlaneseq
    %v9189 = vshrl.u32 %v9188, 7
    %v9190 = vsub.s32 %v9187, %v9189
    %v9191 = vrot.slane %v9142, %v9190
    %v9192 = vcombine.high %v9191, %v9191
    %v9194 = vunpack.c.l.s4 1983009808
    %v9195 = vunpack.c.0.s8 %v9194
    %v9196 = vlaneseq
    %v9197 = vshrl.u32 %v9196, 7
    %v9198 = vsub.s32 %v9195, %v9197
    %v9199 = vrot.slane %v9143, %v9198
    %v9200 = vcombine.high %v9199, %v9199
    %v9202 = vunpack.c.l.s4 1983009808
    %v9203 = vunpack.c.0.s8 %v9202
    %v9204 = vlaneseq
    %v9205 = vshrl.u32 %v9204, 7
    %v9206 = vsub.s32 %v9203, %v9205
    %v9207 = vrot.slane %v9151, %v9206
    %v9208 = vcombine.high %v9207, %v9207
    %v9210 = vunpack.c.l.s4 1983009808
    %v9211 = vunpack.c.0.s8 %v9210
    %v9212 = vlaneseq
    %v9213 = vshrl.u32 %v9212, 7
    %v9214 = vsub.s32 %v9211, %v9213
    %v9215 = vrot.slane %v9152, %v9214
    %v9216 = vcombine.high %v9215, %v9215
    %v9233 = vsel %vm6617, %v9159, -inf
    %v9234 = vrot.slane %v9233, 4
    %v9235 = vmax.f32 %v9233, %v9234
    %v9236 = vrot.slane %v9235, 2
    %v9237 = vmax.f32 %v9235, %v9236
    %v9238 = vrot.slane %v9237, 1
    %v9239 = vmax.f32 %v9237, %v9238
    %v9240 = vsel %vm6617, %v9160, -inf
    %v9241 = vrot.slane %v9240, 4
    %v9242 = vmax.f32 %v9240, %v9241
    %v9243 = vrot.slane %v9242, 2
    %v9244 = vmax.f32 %v9242, %v9243
    %v9245 = vrot.slane %v9244, 1
    %v9246 = vmax.f32 %v9244, %v9245
    %v9247 = vsel %vm6617, %v9167, -inf
    %v9248 = vrot.slane %v9247, 4
    %v9249 = vmax.f32 %v9247, %v9248
    %v9250 = vrot.slane %v9249, 2
    %v9251 = vmax.f32 %v9249, %v9250
    %v9252 = vrot.slane %v9251, 1
    %v9253 = vmax.f32 %v9251, %v9252
    %v9254 = vsel %vm6617, %v9168, -inf
    %v9255 = vrot.slane %v9254, 4
    %v9256 = vmax.f32 %v9254, %v9255
    %v9257 = vrot.slane %v9256, 2
    %v9258 = vmax.f32 %v9256, %v9257
    %v9259 = vrot.slane %v9258, 1
    %v9260 = vmax.f32 %v9258, %v9259
    %v9261 = vsel %vm6617, %v9175, -inf
    %v9262 = vrot.slane %v9261, 4
    %v9263 = vmax.f32 %v9261, %v9262
    %v9264 = vrot.slane %v9263, 2
    %v9265 = vmax.f32 %v9263, %v9264
    %v9266 = vrot.slane %v9265, 1
    %v9267 = vmax.f32 %v9265, %v9266
    %v9268 = vsel %vm6617, %v9176, -inf
    %v9269 = vrot.slane %v9268, 4
    %v9270 = vmax.f32 %v9268, %v9269
    %v9271 = vrot.slane %v9270, 2
    %v9272 = vmax.f32 %v9270, %v9271
    %v9273 = vrot.slane %v9272, 1
    %v9274 = vmax.f32 %v9272, %v9273
    %v9275 = vsel %vm6617, %v9183, -inf
    %v9276 = vrot.slane %v9275, 4
    %v9277 = vmax.f32 %v9275, %v9276
    %v9278 = vrot.slane %v9277, 2
    %v9279 = vmax.f32 %v9277, %v9278
    %v9280 = vrot.slane %v9279, 1
    %v9281 = vmax.f32 %v9279, %v9280
    %v9282 = vsel %vm6617, %v9184, -inf
    %v9283 = vrot.slane %v9282, 4
    %v9284 = vmax.f32 %v9282, %v9283
    %v9285 = vrot.slane %v9284, 2
    %v9286 = vmax.f32 %v9284, %v9285
    %v9287 = vrot.slane %v9286, 1
    %v9288 = vmax.f32 %v9286, %v9287
    %v9289 = vsel %vm6617, %v9191, -inf
    %v9290 = vrot.slane %v9289, 4
    %v9291 = vmax.f32 %v9289, %v9290
    %v9292 = vrot.slane %v9291, 2
    %v9293 = vmax.f32 %v9291, %v9292
    %v9294 = vrot.slane %v9293, 1
    %v9295 = vmax.f32 %v9293, %v9294
    %v9296 = vsel %vm6617, %v9192, -inf
    %v9297 = vrot.slane %v9296, 4
    %v9298 = vmax.f32 %v9296, %v9297
    %v9299 = vrot.slane %v9298, 2
    %v9300 = vmax.f32 %v9298, %v9299
    %v9301 = vrot.slane %v9300, 1
    %v9302 = vmax.f32 %v9300, %v9301
    %v9303 = vsel %vm6617, %v9199, -inf
    %v9304 = vrot.slane %v9303, 4
    %v9305 = vmax.f32 %v9303, %v9304
    %v9306 = vrot.slane %v9305, 2
    %v9307 = vmax.f32 %v9305, %v9306
    %v9308 = vrot.slane %v9307, 1
    %v9309 = vmax.f32 %v9307, %v9308
    %v9310 = vsel %vm6617, %v9200, -inf
    %v9311 = vrot.slane %v9310, 4
    %v9312 = vmax.f32 %v9310, %v9311
    %v9313 = vrot.slane %v9312, 2
    %v9314 = vmax.f32 %v9312, %v9313
    %v9315 = vrot.slane %v9314, 1
    %v9316 = vmax.f32 %v9314, %v9315
    %v9317 = vsel %vm6617, %v9207, -inf
    %v9318 = vrot.slane %v9317, 4
    %v9319 = vmax.f32 %v9317, %v9318
    %v9320 = vrot.slane %v9319, 2
    %v9321 = vmax.f32 %v9319, %v9320
    %v9322 = vrot.slane %v9321, 1
    %v9323 = vmax.f32 %v9321, %v9322
    %v9324 = vsel %vm6617, %v9208, -inf
    %v9325 = vrot.slane %v9324, 4
    %v9326 = vmax.f32 %v9324, %v9325
    %v9327 = vrot.slane %v9326, 2
    %v9328 = vmax.f32 %v9326, %v9327
    %v9329 = vrot.slane %v9328, 1
    %v9330 = vmax.f32 %v9328, %v9329
    %v9331 = vsel %vm6617, %v9215, -inf
    %v9332 = vrot.slane %v9331, 4
    %v9333 = vmax.f32 %v9331, %v9332
    %v9334 = vrot.slane %v9333, 2
    %v9335 = vmax.f32 %v9333, %v9334
    %v9336 = vrot.slane %v9335, 1
    %v9337 = vmax.f32 %v9335, %v9336
    %v9338 = vsel %vm6617, %v9216, -inf
    %v9339 = vrot.slane %v9338, 4
    %v9340 = vmax.f32 %v9338, %v9339
    %v9341 = vrot.slane %v9340, 2
    %v9342 = vmax.f32 %v9340, %v9341
    %v9343 = vrot.slane %v9342, 1
    %v9344 = vmax.f32 %v9342, %v9343
    %v9345 = vpack.c.bf16 %v9239, %v9239
    %v9346 = vpack.c.bf16 %v9246, %v9246
    %v9347 = vpack.c.bf16 %v9253, %v9253
    %v9348 = vpack.c.bf16 %v9260, %v9260
    %v9349 = vpack.c.bf16 %v9267, %v9267
    %v9350 = vpack.c.bf16 %v9274, %v9274
    %v9351 = vpack.c.bf16 %v9281, %v9281
    %v9352 = vpack.c.bf16 %v9288, %v9288
    %v9353 = vpack.c.bf16 %v9295, %v9295
    %v9354 = vpack.c.bf16 %v9302, %v9302
    %v9355 = vpack.c.bf16 %v9309, %v9309
    %v9356 = vpack.c.bf16 %v9316, %v9316
    %v9357 = vpack.c.bf16 %v9323, %v9323
    %v9358 = vpack.c.bf16 %v9330, %v9330
    %v9359 = vpack.c.bf16 %v9337, %v9337
    %v9360 = vpack.c.bf16 %v9344, %v9344
    %v9377 = vcombine.low %v9345, %v9346
    %v9379 = vunpack.c.l.s4 1983009808
    %v9380 = vunpack.c.0.s8 %v9379
    %v9381 = vlaneseq
    %v9382 = vshrl.u32 %v9381, 7
    %v9383 = vsub.s32 %v9380, %v9382
    %v9384 = vrot.slane %v9377, %v9383
    %v9385 = vcombine.low %v9347, %v9348
    %v9387 = vunpack.c.l.s4 1983009808
    %v9388 = vunpack.c.0.s8 %v9387
    %v9389 = vlaneseq
    %v9390 = vshrl.u32 %v9389, 7
    %v9391 = vsub.s32 %v9388, %v9390
    %v9392 = vrot.slane %v9385, %v9391
    %v9393 = vcombine.low %v9349, %v9350
    %v9395 = vunpack.c.l.s4 1983009808
    %v9396 = vunpack.c.0.s8 %v9395
    %v9397 = vlaneseq
    %v9398 = vshrl.u32 %v9397, 7
    %v9399 = vsub.s32 %v9396, %v9398
    %v9400 = vrot.slane %v9393, %v9399
    %v9401 = vcombine.low %v9351, %v9352
    %v9403 = vunpack.c.l.s4 1983009808
    %v9404 = vunpack.c.0.s8 %v9403
    %v9405 = vlaneseq
    %v9406 = vshrl.u32 %v9405, 7
    %v9407 = vsub.s32 %v9404, %v9406
    %v9408 = vrot.slane %v9401, %v9407
    %v9409 = vcombine.low %v9353, %v9354
    %v9411 = vunpack.c.l.s4 1983009808
    %v9412 = vunpack.c.0.s8 %v9411
    %v9413 = vlaneseq
    %v9414 = vshrl.u32 %v9413, 7
    %v9415 = vsub.s32 %v9412, %v9414
    %v9416 = vrot.slane %v9409, %v9415
    %v9417 = vcombine.low %v9355, %v9356
    %v9419 = vunpack.c.l.s4 1983009808
    %v9420 = vunpack.c.0.s8 %v9419
    %v9421 = vlaneseq
    %v9422 = vshrl.u32 %v9421, 7
    %v9423 = vsub.s32 %v9420, %v9422
    %v9424 = vrot.slane %v9417, %v9423
    %v9425 = vcombine.low %v9357, %v9358
    %v9427 = vunpack.c.l.s4 1983009808
    %v9428 = vunpack.c.0.s8 %v9427
    %v9429 = vlaneseq
    %v9430 = vshrl.u32 %v9429, 7
    %v9431 = vsub.s32 %v9428, %v9430
    %v9432 = vrot.slane %v9425, %v9431
    %v9433 = vcombine.low %v9359, %v9360
    %v9435 = vunpack.c.l.s4 1983009808
    %v9436 = vunpack.c.0.s8 %v9435
    %v9437 = vlaneseq
    %v9438 = vshrl.u32 %v9437, 7
    %v9439 = vsub.s32 %v9436, %v9438
    %v9440 = vrot.slane %v9433, %v9439
    %v9442 = vunpack.c.l.s4 1983009808
    %v9443 = vunpack.c.0.s8 %v9442
    %v9444 = vlaneseq
    %v9445 = vshrl.u32 %v9444, 7
    %v9446 = vsub.s32 %v9443, %v9445
    %v9447 = vrot.slane %v9384, %v9446
    %v9449 = vunpack.c.l.s4 1983009808
    %v9450 = vunpack.c.0.s8 %v9449
    %v9451 = vlaneseq
    %v9452 = vshrl.u32 %v9451, 7
    %v9453 = vsub.s32 %v9450, %v9452
    %v9454 = vrot.slane %v9392, %v9453
    %v9456 = vunpack.c.l.s4 1983009808
    %v9457 = vunpack.c.0.s8 %v9456
    %v9458 = vlaneseq
    %v9459 = vshrl.u32 %v9458, 7
    %v9460 = vsub.s32 %v9457, %v9459
    %v9461 = vrot.slane %v9400, %v9460
    %v9463 = vunpack.c.l.s4 1983009808
    %v9464 = vunpack.c.0.s8 %v9463
    %v9465 = vlaneseq
    %v9466 = vshrl.u32 %v9465, 7
    %v9467 = vsub.s32 %v9464, %v9466
    %v9468 = vrot.slane %v9408, %v9467
    %v9470 = vunpack.c.l.s4 1983009808
    %v9471 = vunpack.c.0.s8 %v9470
    %v9472 = vlaneseq
    %v9473 = vshrl.u32 %v9472, 7
    %v9474 = vsub.s32 %v9471, %v9473
    %v9475 = vrot.slane %v9416, %v9474
    %v9477 = vunpack.c.l.s4 1983009808
    %v9478 = vunpack.c.0.s8 %v9477
    %v9479 = vlaneseq
    %v9480 = vshrl.u32 %v9479, 7
    %v9481 = vsub.s32 %v9478, %v9480
    %v9482 = vrot.slane %v9424, %v9481
    %v9484 = vunpack.c.l.s4 1983009808
    %v9485 = vunpack.c.0.s8 %v9484
    %v9486 = vlaneseq
    %v9487 = vshrl.u32 %v9486, 7
    %v9488 = vsub.s32 %v9485, %v9487
    %v9489 = vrot.slane %v9432, %v9488
    %v9491 = vunpack.c.l.s4 1983009808
    %v9492 = vunpack.c.0.s8 %v9491
    %v9493 = vlaneseq
    %v9494 = vshrl.u32 %v9493, 7
    %v9495 = vsub.s32 %v9492, %v9494
    %v9496 = vrot.slane %v9440, %v9495
    %v9497 = vunpack.c.l.b16 %v9447
    %v9498 = vunpack.c.h.b16 %v9447
    %v9499 = vunpack.c.l.b16 %v9454
    %v9500 = vunpack.c.h.b16 %v9454
    %v9501 = vunpack.c.l.b16 %v9461
    %v9502 = vunpack.c.h.b16 %v9461
    %v9503 = vunpack.c.l.b16 %v9468
    %v9504 = vunpack.c.h.b16 %v9468
    %v9505 = vunpack.c.l.b16 %v9475
    %v9506 = vunpack.c.h.b16 %v9475
    %v9507 = vunpack.c.l.b16 %v9482
    %v9508 = vunpack.c.h.b16 %v9482
    %v9509 = vunpack.c.l.b16 %v9489
    %v9510 = vunpack.c.h.b16 %v9489
    %v9511 = vunpack.c.l.b16 %v9496
    %v9512 = vunpack.c.h.b16 %v9496
    %v9513 = vrot.slane %v9497, 7
    %v9514 = vrot.slane %v9499, 6
    %v9515 = vsel %vm3228, %v9514, %v9513
    %v9516 = vrot.slane %v9498, 7
    %v9517 = vrot.slane %v9500, 6
    %v9518 = vsel %vm3228, %v9517, %v9516
    %v9519 = vrot.slane %v9501, 7
    %v9520 = vrot.slane %v9503, 6
    %v9521 = vsel %vm3228, %v9520, %v9519
    %v9522 = vrot.slane %v9502, 7
    %v9523 = vrot.slane %v9504, 6
    %v9524 = vsel %vm3228, %v9523, %v9522
    %v9525 = vrot.slane %v9505, 7
    %v9526 = vrot.slane %v9507, 6
    %v9527 = vsel %vm3228, %v9526, %v9525
    %v9528 = vrot.slane %v9506, 7
    %v9529 = vrot.slane %v9508, 6
    %v9530 = vsel %vm3228, %v9529, %v9528
    %v9531 = vrot.slane %v9509, 7
    %v9532 = vrot.slane %v9511, 6
    %v9533 = vsel %vm3228, %v9532, %v9531
    %v9534 = vrot.slane %v9510, 7
    %v9535 = vrot.slane %v9512, 6
    %v9536 = vsel %vm3228, %v9535, %v9534
    %v9537 = vpack.c.b16 %v9518, %v9515
    %v9538 = vpack.c.b16 %v9524, %v9521
    %v9539 = vpack.c.b16 %v9530, %v9527
    %v9540 = vpack.c.b16 %v9536, %v9533
    %v9542 = vunpack.c.l.s4 1983009808
    %v9543 = vunpack.c.0.s8 %v9542
    %v9544 = vlaneseq
    %v9545 = vshrl.u32 %v9544, 7
    %v9546 = vsub.s32 %v9543, %v9545
    %v9547 = vrot.slane %v9537, %v9546
    %v9549 = vunpack.c.l.s4 1983009808
    %v9550 = vunpack.c.0.s8 %v9549
    %v9551 = vlaneseq
    %v9552 = vshrl.u32 %v9551, 7
    %v9553 = vsub.s32 %v9550, %v9552
    %v9554 = vrot.slane %v9538, %v9553
    %v9556 = vunpack.c.l.s4 1983009808
    %v9557 = vunpack.c.0.s8 %v9556
    %v9558 = vlaneseq
    %v9559 = vshrl.u32 %v9558, 7
    %v9560 = vsub.s32 %v9557, %v9559
    %v9561 = vrot.slane %v9539, %v9560
    %v9563 = vunpack.c.l.s4 1983009808
    %v9564 = vunpack.c.0.s8 %v9563
    %v9565 = vlaneseq
    %v9566 = vshrl.u32 %v9565, 7
    %v9567 = vsub.s32 %v9564, %v9566
    %v9568 = vrot.slane %v9540, %v9567
    %s9573 = scalar_lea.vmem [#allocation7], 4
    %vm9574 = vcmask 1041408
    %vm9575 = vsmask.f32 1282
    %vm9576 = vmand %vm9574, %vm9575
    %vm9577 = vcmask 1043458
    %vm9578 = vsmask.f32 3338
    %vm9579 = vmand %vm9577, %vm9578
    %vm9580 = vmor %vm9579, %vm9576
    %v9581 = vld [vmem:[%s9573] sm:$0xf]
    %v9582 = vsel %vm9580, %v9547, %v9581
    %9583 = vst [vmem:[%s9573] sm:$0xf] %v9582
    %v9584 = vld [vmem:[%s9573 + $0x4] sm:$0xf]
    %v9585 = vsel %vm9580, %v9554, %v9584
    %9586 = vst [vmem:[%s9573 + $0x4] sm:$0xf] %v9585
    %v9587 = vld [vmem:[%s9573 + $0x10] sm:$0xf]
    %v9588 = vsel %vm9580, %v9561, %v9587
    %9589 = vst [vmem:[%s9573 + $0x10] sm:$0xf] %v9588
    %v9590 = vld [vmem:[%s9573 + $0x14] sm:$0xf]
    %v9591 = vsel %vm9580, %v9568, %v9590
    %9592 = vst [vmem:[%s9573 + $0x14] sm:$0xf] %v9591
    %s9593 = smul.u32 4, 288
    %s9594 = smul.u32 %s9593, 4
    %s9595 = sshll.u32 %s9594, 4
    %9596 = dma.done %s139, %s9595
    %v9597 = vld [vmem:[#allocation7] sm:$0x5]
    %v9598 = vld [vmem:[#allocation7 + $0x4] sm:$0x5]
    %v9599 = vld [vmem:[#allocation7 + $0x10] sm:$0x5]
    %v9600 = vld [vmem:[#allocation7 + $0x14] sm:$0x5]
    %v9606 = vunpack.c.l.s4 1966171168
    %v9607 = vunpack.c.0.s8 %v9606
    %v9608 = vlaneseq
    %v9609 = vshrl.u32 %v9608, 7
    %v9610 = vsub.s32 %v9607, %v9609
    %v9611 = vrot.slane %v9597, %v9610
    %v9613 = vunpack.c.l.s4 1966171168
    %v9614 = vunpack.c.0.s8 %v9613
    %v9615 = vlaneseq
    %v9616 = vshrl.u32 %v9615, 7
    %v9617 = vsub.s32 %v9614, %v9616
    %v9618 = vrot.slane %v9598, %v9617
    %v9620 = vunpack.c.l.s4 1966171168
    %v9621 = vunpack.c.0.s8 %v9620
    %v9622 = vlaneseq
    %v9623 = vshrl.u32 %v9622, 7
    %v9624 = vsub.s32 %v9621, %v9623
    %v9625 = vrot.slane %v9599, %v9624
    %v9627 = vunpack.c.l.s4 1966171168
    %v9628 = vunpack.c.0.s8 %v9627
    %v9629 = vlaneseq
    %v9630 = vshrl.u32 %v9629, 7
    %v9631 = vsub.s32 %v9628, %v9630
    %v9632 = vrot.slane %v9600, %v9631
    %v9633 = vld [vmem:[#allocation3] sm:$0xff]
    %v9634 = vld [vmem:[#allocation3 + $0x8] sm:$0xff]
    %v9635 = vld [vmem:[#allocation3 + $0x10] sm:$0xff]
    %v9636 = vld [vmem:[#allocation3 + $0x18] sm:$0xff]
    %v9637 = vld [vmem:[#allocation3 + $0x20] sm:$0xff]
    %v9638 = vld [vmem:[#allocation3 + $0x28] sm:$0xff]
    %v9639 = vld [vmem:[#allocation3 + $0x30] sm:$0xff]
    %v9640 = vld [vmem:[#allocation3 + $0x38] sm:$0xff]
    %v9641 = vld [vmem:[#allocation3 + $0x40] sm:$0xff]
    %v9642 = vld [vmem:[#allocation3 + $0x48] sm:$0xff]
    %v9643 = vld [vmem:[#allocation3 + $0x50] sm:$0xff]
    %v9644 = vld [vmem:[#allocation3 + $0x58] sm:$0xff]
    %v9645 = vld [vmem:[#allocation3 + $0x60] sm:$0xff]
    %v9646 = vld [vmem:[#allocation3 + $0x68] sm:$0xff]
    %v9647 = vld [vmem:[#allocation3 + $0x70] sm:$0xff]
    %v9648 = vld [vmem:[#allocation3 + $0x78] sm:$0xff]
    %v9649 = vld [vmem:[#allocation3 + $0x80] sm:$0xff]
    %v9650 = vld [vmem:[#allocation3 + $0x88] sm:$0xff]
    %v9651 = vld [vmem:[#allocation3 + $0x90] sm:$0xff]
    %v9652 = vld [vmem:[#allocation3 + $0x98] sm:$0xff]
    %v9653 = vld [vmem:[#allocation3 + $0xa0] sm:$0xff]
    %v9654 = vld [vmem:[#allocation3 + $0xa8] sm:$0xff]
    %v9655 = vld [vmem:[#allocation3 + $0xb0] sm:$0xff]
    %v9656 = vld [vmem:[#allocation3 + $0xb8] sm:$0xff]
    %v9657 = vld [vmem:[#allocation3 + $0xc0] sm:$0xff]
    %v9658 = vld [vmem:[#allocation3 + $0xc8] sm:$0xff]
    %v9659 = vld [vmem:[#allocation3 + $0xd0] sm:$0xff]
    %v9660 = vld [vmem:[#allocation3 + $0xd8] sm:$0xff]
    %v9661 = vld [vmem:[#allocation3 + $0xe0] sm:$0xff]
    %v9662 = vld [vmem:[#allocation3 + $0xe8] sm:$0xff]
    %v9663 = vld [vmem:[#allocation3 + $0xf0] sm:$0xff]
    %v9664 = vld [vmem:[#allocation3 + $0xf8] sm:$0xff]
    %v9665 = vld [vmem:[#allocation3 + $0x100] sm:$0xff]
    %v9666 = vld [vmem:[#allocation3 + $0x108] sm:$0xff]
    %v9667 = vld [vmem:[#allocation3 + $0x110] sm:$0xff]
    %v9668 = vld [vmem:[#allocation3 + $0x118] sm:$0xff]
    %v9669 = vld [vmem:[#allocation3 + $0x120] sm:$0xff]
    %v9670 = vld [vmem:[#allocation3 + $0x128] sm:$0xff]
    %v9671 = vld [vmem:[#allocation3 + $0x130] sm:$0xff]
    %v9672 = vld [vmem:[#allocation3 + $0x138] sm:$0xff]
    %v9673 = vld [vmem:[#allocation3 + $0x140] sm:$0xff]
    %v9674 = vld [vmem:[#allocation3 + $0x148] sm:$0xff]
    %v9675 = vld [vmem:[#allocation3 + $0x150] sm:$0xff]
    %v9676 = vld [vmem:[#allocation3 + $0x158] sm:$0xff]
    %v9677 = vld [vmem:[#allocation3 + $0x160] sm:$0xff]
    %v9678 = vld [vmem:[#allocation3 + $0x168] sm:$0xff]
    %v9679 = vld [vmem:[#allocation3 + $0x170] sm:$0xff]
    %v9680 = vld [vmem:[#allocation3 + $0x178] sm:$0xff]
    %v9681 = vld [vmem:[#allocation3 + $0x180] sm:$0xff]
    %v9682 = vld [vmem:[#allocation3 + $0x188] sm:$0xff]
    %v9683 = vld [vmem:[#allocation3 + $0x190] sm:$0xff]
    %v9684 = vld [vmem:[#allocation3 + $0x198] sm:$0xff]
    %v9685 = vld [vmem:[#allocation3 + $0x1a0] sm:$0xff]
    %v9686 = vld [vmem:[#allocation3 + $0x1a8] sm:$0xff]
    %v9687 = vld [vmem:[#allocation3 + $0x1b0] sm:$0xff]
    %v9688 = vld [vmem:[#allocation3 + $0x1b8] sm:$0xff]
    %v9689 = vld [vmem:[#allocation3 + $0x1c0] sm:$0xff]
    %v9690 = vld [vmem:[#allocation3 + $0x1c8] sm:$0xff]
    %v9691 = vld [vmem:[#allocation3 + $0x1d0] sm:$0xff]
    %v9692 = vld [vmem:[#allocation3 + $0x1d8] sm:$0xff]
    %v9693 = vld [vmem:[#allocation3 + $0x1e0] sm:$0xff]
    %v9694 = vld [vmem:[#allocation3 + $0x1e8] sm:$0xff]
    %v9695 = vld [vmem:[#allocation3 + $0x1f0] sm:$0xff]
    %v9696 = vld [vmem:[#allocation3 + $0x1f8] sm:$0xff]
    %v9697 = vld [vmem:[#allocation7] sm:$0xf]
    %v9698 = vld [vmem:[#allocation7 + $0x4] sm:$0xf]
    %v9699 = vld [vmem:[#allocation7 + $0x10] sm:$0xf]
    %v9700 = vld [vmem:[#allocation7 + $0x14] sm:$0xf]
    %v9706 = vunpack.c.l.s4 1966171168
    %v9707 = vunpack.c.0.s8 %v9706
    %v9708 = vlaneseq
    %v9709 = vshrl.u32 %v9708, 7
    %v9710 = vsub.s32 %v9707, %v9709
    %v9711 = vrot.slane %v9697, %v9710
    %v9712 = vcombine.high %v9711, %v9711
    %v9714 = vunpack.c.l.s4 1966171168
    %v9715 = vunpack.c.0.s8 %v9714
    %v9716 = vlaneseq
    %v9717 = vshrl.u32 %v9716, 7
    %v9718 = vsub.s32 %v9715, %v9717
    %v9719 = vrot.slane %v9698, %v9718
    %v9720 = vcombine.high %v9719, %v9719
    %v9722 = vunpack.c.l.s4 1966171168
    %v9723 = vunpack.c.0.s8 %v9722
    %v9724 = vlaneseq
    %v9725 = vshrl.u32 %v9724, 7
    %v9726 = vsub.s32 %v9723, %v9725
    %v9727 = vrot.slane %v9699, %v9726
    %v9728 = vcombine.high %v9727, %v9727
    %v9730 = vunpack.c.l.s4 1966171168
    %v9731 = vunpack.c.0.s8 %v9730
    %v9732 = vlaneseq
    %v9733 = vshrl.u32 %v9732, 7
    %v9734 = vsub.s32 %v9731, %v9733
    %v9735 = vrot.slane %v9700, %v9734
    %v9736 = vcombine.high %v9735, %v9735
    %vm9737 = vsmask.f32 1284
    %vm9738 = vmor %vm3402, %vm9737
    %vm9739 = vsmask.f32 2312
    %vm9740 = vmor %vm9738, %vm9739
    %vm9741 = vsmask.f32 3340
    %vm9742 = vmor %vm9740, %vm9741
    %vm9743 = vsmask.f32 4368
    %vm9744 = vmor %vm9742, %vm9743
    %vm9745 = vsmask.f32 5396
    %vm9746 = vmor %vm9744, %vm9745
    %vm9747 = vsmask.f32 6424
    %vm9748 = vmor %vm9746, %vm9747
    %vm9749 = vsmask.f32 7452
    %vm9750 = vmor %vm9748, %vm9749
    %v9752 = vshrl.u32 %v9711, 16
    %v9754 = vrot.slane %v9752, 7
    %v9755 = vrot.slane %v9754, 1
    %v9757 = vshll.u32 %v9712, 16
    %v9759 = vsel %vm9750, %v9755, %v9757
    %v9761 = vshrl.u32 %v9719, 16
    %v9763 = vrot.slane %v9761, 7
    %v9764 = vrot.slane %v9763, 1
    %v9766 = vshll.u32 %v9720, 16
    %v9768 = vsel %vm9750, %v9764, %v9766
    %v9770 = vshrl.u32 %v9727, 16
    %v9772 = vrot.slane %v9770, 7
    %v9773 = vrot.slane %v9772, 1
    %v9775 = vshll.u32 %v9728, 16
    %v9777 = vsel %vm9750, %v9773, %v9775
    %v9779 = vshrl.u32 %v9735, 16
    %v9781 = vrot.slane %v9779, 7
    %v9782 = vrot.slane %v9781, 1
    %v9784 = vshll.u32 %v9736, 16
    %v9786 = vsel %vm9750, %v9782, %v9784
    %v9787 = vld [vmem:[#allocation3 + $0x200] sm:$0xff]
    %v9788 = vld [vmem:[#allocation3 + $0x208] sm:$0xff]
    %v9789 = vld [vmem:[#allocation3 + $0x210] sm:$0xff]
    %v9790 = vld [vmem:[#allocation3 + $0x218] sm:$0xff]
    %v9791 = vld [vmem:[#allocation3 + $0x220] sm:$0xff]
    %v9792 = vld [vmem:[#allocation3 + $0x228] sm:$0xff]
    %v9793 = vld [vmem:[#allocation3 + $0x230] sm:$0xff]
    %v9794 = vld [vmem:[#allocation3 + $0x238] sm:$0xff]
    %v9795 = vld [vmem:[#allocation3 + $0x240] sm:$0xff]
    %v9796 = vld [vmem:[#allocation3 + $0x248] sm:$0xff]
    %v9797 = vld [vmem:[#allocation3 + $0x250] sm:$0xff]
    %v9798 = vld [vmem:[#allocation3 + $0x258] sm:$0xff]
    %v9799 = vld [vmem:[#allocation3 + $0x260] sm:$0xff]
    %v9800 = vld [vmem:[#allocation3 + $0x268] sm:$0xff]
    %v9801 = vld [vmem:[#allocation3 + $0x270] sm:$0xff]
    %v9802 = vld [vmem:[#allocation3 + $0x278] sm:$0xff]
    %v9803 = vld [vmem:[#allocation3 + $0x280] sm:$0xff]
    %v9804 = vld [vmem:[#allocation3 + $0x288] sm:$0xff]
    %v9805 = vld [vmem:[#allocation3 + $0x290] sm:$0xff]
    %v9806 = vld [vmem:[#allocation3 + $0x298] sm:$0xff]
    %v9807 = vld [vmem:[#allocation3 + $0x2a0] sm:$0xff]
    %v9808 = vld [vmem:[#allocation3 + $0x2a8] sm:$0xff]
    %v9809 = vld [vmem:[#allocation3 + $0x2b0] sm:$0xff]
    %v9810 = vld [vmem:[#allocation3 + $0x2b8] sm:$0xff]
    %v9811 = vld [vmem:[#allocation3 + $0x2c0] sm:$0xff]
    %v9812 = vld [vmem:[#allocation3 + $0x2c8] sm:$0xff]
    %v9813 = vld [vmem:[#allocation3 + $0x2d0] sm:$0xff]
    %v9814 = vld [vmem:[#allocation3 + $0x2d8] sm:$0xff]
    %v9815 = vld [vmem:[#allocation3 + $0x2e0] sm:$0xff]
    %v9816 = vld [vmem:[#allocation3 + $0x2e8] sm:$0xff]
    %v9817 = vld [vmem:[#allocation3 + $0x2f0] sm:$0xff]
    %v9818 = vld [vmem:[#allocation3 + $0x2f8] sm:$0xff]
    %v9819 = vld [vmem:[#allocation3 + $0x300] sm:$0xff]
    %v9820 = vld [vmem:[#allocation3 + $0x308] sm:$0xff]
    %v9821 = vld [vmem:[#allocation3 + $0x310] sm:$0xff]
    %v9822 = vld [vmem:[#allocation3 + $0x318] sm:$0xff]
    %v9823 = vld [vmem:[#allocation3 + $0x320] sm:$0xff]
    %v9824 = vld [vmem:[#allocation3 + $0x328] sm:$0xff]
    %v9825 = vld [vmem:[#allocation3 + $0x330] sm:$0xff]
    %v9826 = vld [vmem:[#allocation3 + $0x338] sm:$0xff]
    %v9827 = vld [vmem:[#allocation3 + $0x340] sm:$0xff]
    %v9828 = vld [vmem:[#allocation3 + $0x348] sm:$0xff]
    %v9829 = vld [vmem:[#allocation3 + $0x350] sm:$0xff]
    %v9830 = vld [vmem:[#allocation3 + $0x358] sm:$0xff]
    %v9831 = vld [vmem:[#allocation3 + $0x360] sm:$0xff]
    %v9832 = vld [vmem:[#allocation3 + $0x368] sm:$0xff]
    %v9833 = vld [vmem:[#allocation3 + $0x370] sm:$0xff]
    %v9834 = vld [vmem:[#allocation3 + $0x378] sm:$0xff]
    %v9835 = vld [vmem:[#allocation3 + $0x380] sm:$0xff]
    %v9836 = vld [vmem:[#allocation3 + $0x388] sm:$0xff]
    %v9837 = vld [vmem:[#allocation3 + $0x390] sm:$0xff]
    %v9838 = vld [vmem:[#allocation3 + $0x398] sm:$0xff]
    %v9839 = vld [vmem:[#allocation3 + $0x3a0] sm:$0xff]
    %v9840 = vld [vmem:[#allocation3 + $0x3a8] sm:$0xff]
    %v9841 = vld [vmem:[#allocation3 + $0x3b0] sm:$0xff]
    %v9842 = vld [vmem:[#allocation3 + $0x3b8] sm:$0xff]
    %v9843 = vld [vmem:[#allocation3 + $0x3c0] sm:$0xff]
    %v9844 = vld [vmem:[#allocation3 + $0x3c8] sm:$0xff]
    %v9845 = vld [vmem:[#allocation3 + $0x3d0] sm:$0xff]
    %v9846 = vld [vmem:[#allocation3 + $0x3d8] sm:$0xff]
    %v9847 = vld [vmem:[#allocation3 + $0x3e0] sm:$0xff]
    %v9848 = vld [vmem:[#allocation3 + $0x3e8] sm:$0xff]
    %v9849 = vld [vmem:[#allocation3 + $0x3f0] sm:$0xff]
    %v9850 = vld [vmem:[#allocation3 + $0x3f8] sm:$0xff]
    %v9851 = vcombine.low %v9759, %v9768
    %v9852 = vcombine.low %v9777, %v9786
    %v9854 = vunpack.c.l.s4 1966171168
    %v9855 = vunpack.c.0.s8 %v9854
    %v9856 = vlaneseq
    %v9857 = vshrl.u32 %v9856, 7
    %v9858 = vsub.s32 %v9855, %v9857
    %v9859 = vrot.slane %v9851, %v9858
    %v9861 = vunpack.c.l.s4 1966171168
    %v9862 = vunpack.c.0.s8 %v9861
    %v9863 = vlaneseq
    %v9864 = vshrl.u32 %v9863, 7
    %v9865 = vsub.s32 %v9862, %v9864
    %v9866 = vrot.slane %v9852, %v9865
    %v9867 = vcombine.low %v9859, %v9866
    %v9868 = vcombine.high %v9859, %v9866
    %v9870 = vunpack.c.l.s4 1966171168
    %v9871 = vunpack.c.0.s8 %v9870
    %v9872 = vlaneseq
    %v9873 = vshrl.u32 %v9872, 7
    %v9874 = vsub.s32 %v9871, %v9873
    %v9875 = vrot.slane %v9867, %v9874
    %v9877 = vunpack.c.l.s4 1966171168
    %v9878 = vunpack.c.0.s8 %v9877
    %v9879 = vlaneseq
    %v9880 = vshrl.u32 %v9879, 7
    %v9881 = vsub.s32 %v9878, %v9880
    %v9882 = vrot.slane %v9868, %v9881
    %9885 = vmatprep.subr.bf16.mxu0 %v9788
    %9886 = vmatpush1.bf16.msra.mxu0 %v9787
    %9887 = vmatprep.subr.bf16.mxu0 %v9792
    %9888 = vmatpush1.bf16.msra.mxu0 %v9791
    %9889 = vmatprep.subr.bf16.mxu0 %v9796
    %9890 = vmatpush1.bf16.msra.mxu0 %v9795
    %9891 = vmatprep.subr.bf16.mxu0 %v9800
    %9892 = vmatpush1.bf16.msra.mxu0 %v9799
    %9893 = vmatprep.subr.bf16.mxu0 %v9804
    %9894 = vmatpush1.bf16.msra.mxu0 %v9803
    %9895 = vmatprep.subr.bf16.mxu0 %v9808
    %9896 = vmatpush1.bf16.msra.mxu0 %v9807
    %9897 = vmatprep.subr.bf16.mxu0 %v9812
    %9898 = vmatpush1.bf16.msra.mxu0 %v9811
    %9899 = vmatprep.subr.bf16.mxu0 %v9816
    %9900 = vmatpush1.bf16.msra.mxu0 %v9815
    %9901 = vmatprep.subr.bf16.mxu0 %v9820
    %9902 = vmatpush1.bf16.msra.mxu0 %v9819
    %9903 = vmatprep.subr.bf16.mxu0 %v9824
    %9904 = vmatpush1.bf16.msra.mxu0 %v9823
    %9905 = vmatprep.subr.bf16.mxu0 %v9828
    %9906 = vmatpush1.bf16.msra.mxu0 %v9827
    %9907 = vmatprep.subr.bf16.mxu0 %v9832
    %9908 = vmatpush1.bf16.msra.mxu0 %v9831
    %9909 = vmatprep.subr.bf16.mxu0 %v9836
    %9910 = vmatpush1.bf16.msra.mxu0 %v9835
    %9911 = vmatprep.subr.bf16.mxu0 %v9840
    %9912 = vmatpush1.bf16.msra.mxu0 %v9839
    %9913 = vmatprep.subr.bf16.mxu0 %v9844
    %9914 = vmatpush1.bf16.msra.mxu0 %v9843
    %9915 = vmatprep.subr.bf16.mxu0 %v9848
    %9916 = vmatpush1.bf16.msra.mxu0 %v9847
    %9917 = vmatprep.mubr.bf16.mxu0 %v9882
    %9918 = vmatmul.mubr.bf16.gmra.mrb[0].mxu0 %v9875
    %v9919 = vpop.f32.mrb[0].mxu0
    %v9920 = vadd.f32 0.0, %v9919
    %v9921 = vpop.f32.mrb[0].mxu0
    %v9922 = vadd.f32 0.0, %v9921
    %v9923 = vpop.f32.mrb[0].mxu0
    %v9924 = vpop.f32.mrb[0].mxu0
    %9925 = vdwg.mxu0
    %9926 = vmatprep.subr.bf16.mxu0 %v9790
    %9927 = vmatpush1.bf16.msra.mxu0 %v9789
    %9928 = vmatprep.subr.bf16.mxu0 %v9794
    %9929 = vmatpush1.bf16.msra.mxu0 %v9793
    %9930 = vmatprep.subr.bf16.mxu0 %v9798
    %9931 = vmatpush1.bf16.msra.mxu0 %v9797
    %9932 = vmatprep.subr.bf16.mxu0 %v9802
    %9933 = vmatpush1.bf16.msra.mxu0 %v9801
    %9934 = vmatprep.subr.bf16.mxu0 %v9806
    %9935 = vmatpush1.bf16.msra.mxu0 %v9805
    %9936 = vmatprep.subr.bf16.mxu0 %v9810
    %9937 = vmatpush1.bf16.msra.mxu0 %v9809
    %9938 = vmatprep.subr.bf16.mxu0 %v9814
    %9939 = vmatpush1.bf16.msra.mxu0 %v9813
    %9940 = vmatprep.subr.bf16.mxu0 %v9818
    %9941 = vmatpush1.bf16.msra.mxu0 %v9817
    %9942 = vmatprep.subr.bf16.mxu0 %v9822
    %9943 = vmatpush1.bf16.msra.mxu0 %v9821
    %9944 = vmatprep.subr.bf16.mxu0 %v9826
    %9945 = vmatpush1.bf16.msra.mxu0 %v9825
    %9946 = vmatprep.subr.bf16.mxu0 %v9830
    %9947 = vmatpush1.bf16.msra.mxu0 %v9829
    %9948 = vmatprep.subr.bf16.mxu0 %v9834
    %9949 = vmatpush1.bf16.msra.mxu0 %v9833
    %9950 = vmatprep.subr.bf16.mxu0 %v9838
    %9951 = vmatpush1.bf16.msra.mxu0 %v9837
    %9952 = vmatprep.subr.bf16.mxu0 %v9842
    %9953 = vmatpush1.bf16.msra.mxu0 %v9841
    %9954 = vmatprep.subr.bf16.mxu0 %v9846
    %9955 = vmatpush1.bf16.msra.mxu0 %v9845
    %9956 = vmatprep.subr.bf16.mxu0 %v9850
    %9957 = vmatpush1.bf16.msra.mxu0 %v9849
    %9958 = vmatprep.mubr.bf16.mxu0 %v9882
    %9959 = vmatmul.mubr.bf16.gmra.mrb[0].mxu0 %v9875
    %v9960 = vpop.f32.mrb[0].mxu0
    %v9961 = vadd.f32 0.0, %v9960
    %v9962 = vpop.f32.mrb[0].mxu0
    %v9963 = vadd.f32 0.0, %v9962
    %v9964 = vpop.f32.mrb[0].mxu0
    %v9965 = vpop.f32.mrb[0].mxu0
    %9966 = vdwg.mxu0
    %v9967 = vcombine.low %v9611, %v9618
    %v9968 = vcombine.low %v9625, %v9632
    %v9970 = vunpack.c.l.s4 1966171168
    %v9971 = vunpack.c.0.s8 %v9970
    %v9972 = vlaneseq
    %v9973 = vshrl.u32 %v9972, 7
    %v9974 = vsub.s32 %v9971, %v9973
    %v9975 = vrot.slane %v9967, %v9974
    %v9977 = vunpack.c.l.s4 1966171168
    %v9978 = vunpack.c.0.s8 %v9977
    %v9979 = vlaneseq
    %v9980 = vshrl.u32 %v9979, 7
    %v9981 = vsub.s32 %v9978, %v9980
    %v9982 = vrot.slane %v9968, %v9981
    %v9983 = vcombine.low %v9975, %v9982
    %v9984 = vcombine.high %v9975, %v9982
    %v9986 = vunpack.c.l.s4 1966171168
    %v9987 = vunpack.c.0.s8 %v9986
    %v9988 = vlaneseq
    %v9989 = vshrl.u32 %v9988, 7
    %v9990 = vsub.s32 %v9987, %v9989
    %v9991 = vrot.slane %v9983, %v9990
    %v9993 = vunpack.c.l.s4 1966171168
    %v9994 = vunpack.c.0.s8 %v9993
    %v9995 = vlaneseq
    %v9996 = vshrl.u32 %v9995, 7
    %v9997 = vsub.s32 %v9994, %v9996
    %v9998 = vrot.slane %v9984, %v9997
    %10001 = vmatprep.subr.bf16.mxu0 %v9634
    %10002 = vmatpush1.bf16.msra.mxu0 %v9633
    %10003 = vmatprep.subr.bf16.mxu0 %v9638
    %10004 = vmatpush1.bf16.msra.mxu0 %v9637
    %10005 = vmatprep.subr.bf16.mxu0 %v9642
    %10006 = vmatpush1.bf16.msra.mxu0 %v9641
    %10007 = vmatprep.subr.bf16.mxu0 %v9646
    %10008 = vmatpush1.bf16.msra.mxu0 %v9645
    %10009 = vmatprep.subr.bf16.mxu0 %v9650
    %10010 = vmatpush1.bf16.msra.mxu0 %v9649
    %10011 = vmatprep.subr.bf16.mxu0 %v9654
    %10012 = vmatpush1.bf16.msra.mxu0 %v9653
    %10013 = vmatprep.subr.bf16.mxu0 %v9658
    %10014 = vmatpush1.bf16.msra.mxu0 %v9657
    %10015 = vmatprep.subr.bf16.mxu0 %v9662
    %10016 = vmatpush1.bf16.msra.mxu0 %v9661
    %10017 = vmatprep.subr.bf16.mxu0 %v9666
    %10018 = vmatpush1.bf16.msra.mxu0 %v9665
    %10019 = vmatprep.subr.bf16.mxu0 %v9670
    %10020 = vmatpush1.bf16.msra.mxu0 %v9669
    %10021 = vmatprep.subr.bf16.mxu0 %v9674
    %10022 = vmatpush1.bf16.msra.mxu0 %v9673
    %10023 = vmatprep.subr.bf16.mxu0 %v9678
    %10024 = vmatpush1.bf16.msra.mxu0 %v9677
    %10025 = vmatprep.subr.bf16.mxu0 %v9682
    %10026 = vmatpush1.bf16.msra.mxu0 %v9681
    %10027 = vmatprep.subr.bf16.mxu0 %v9686
    %10028 = vmatpush1.bf16.msra.mxu0 %v9685
    %10029 = vmatprep.subr.bf16.mxu0 %v9690
    %10030 = vmatpush1.bf16.msra.mxu0 %v9689
    %10031 = vmatprep.subr.bf16.mxu0 %v9694
    %10032 = vmatpush1.bf16.msra.mxu0 %v9693
    %10033 = vmatprep.mubr.bf16.mxu0 %v9998
    %10034 = vmatmul.mubr.bf16.gmra.mrb[0].mxu0 %v9991
    %v10035 = vpop.f32.mrb[0].mxu0
    %v10036 = vadd.f32 %v9920, %v10035
    %v10037 = vpop.f32.mrb[0].mxu0
    %v10038 = vadd.f32 %v9922, %v10037
    %v10039 = vpop.f32.mrb[0].mxu0
    %v10040 = vpop.f32.mrb[0].mxu0
    %10041 = vdwg.mxu0
    %10042 = vmatprep.subr.bf16.mxu0 %v9636
    %10043 = vmatpush1.bf16.msra.mxu0 %v9635
    %10044 = vmatprep.subr.bf16.mxu0 %v9640
    %10045 = vmatpush1.bf16.msra.mxu0 %v9639
    %10046 = vmatprep.subr.bf16.mxu0 %v9644
    %10047 = vmatpush1.bf16.msra.mxu0 %v9643
    %10048 = vmatprep.subr.bf16.mxu0 %v9648
    %10049 = vmatpush1.bf16.msra.mxu0 %v9647
    %10050 = vmatprep.subr.bf16.mxu0 %v9652
    %10051 = vmatpush1.bf16.msra.mxu0 %v9651
    %10052 = vmatprep.subr.bf16.mxu0 %v9656
    %10053 = vmatpush1.bf16.msra.mxu0 %v9655
    %10054 = vmatprep.subr.bf16.mxu0 %v9660
    %10055 = vmatpush1.bf16.msra.mxu0 %v9659
    %10056 = vmatprep.subr.bf16.mxu0 %v9664
    %10057 = vmatpush1.bf16.msra.mxu0 %v9663
    %10058 = vmatprep.subr.bf16.mxu0 %v9668
    %10059 = vmatpush1.bf16.msra.mxu0 %v9667
    %10060 = vmatprep.subr.bf16.mxu0 %v9672
    %10061 = vmatpush1.bf16.msra.mxu0 %v9671
    %10062 = vmatprep.subr.bf16.mxu0 %v9676
    %10063 = vmatpush1.bf16.msra.mxu0 %v9675
    %10064 = vmatprep.subr.bf16.mxu0 %v9680
    %10065 = vmatpush1.bf16.msra.mxu0 %v9679
    %10066 = vmatprep.subr.bf16.mxu0 %v9684
    %10067 = vmatpush1.bf16.msra.mxu0 %v9683
    %10068 = vmatprep.subr.bf16.mxu0 %v9688
    %10069 = vmatpush1.bf16.msra.mxu0 %v9687
    %10070 = vmatprep.subr.bf16.mxu0 %v9692
    %10071 = vmatpush1.bf16.msra.mxu0 %v9691
    %10072 = vmatprep.subr.bf16.mxu0 %v9696
    %10073 = vmatpush1.bf16.msra.mxu0 %v9695
    %10074 = vmatprep.mubr.bf16.mxu0 %v9998
    %10075 = vmatmul.mubr.bf16.gmra.mrb[0].mxu0 %v9991
    %v10076 = vpop.f32.mrb[0].mxu0
    %v10077 = vadd.f32 %v9961, %v10076
    %v10078 = vpop.f32.mrb[0].mxu0
    %v10079 = vadd.f32 %v9963, %v10078
    %v10080 = vpop.f32.mrb[0].mxu0
    %v10081 = vpop.f32.mrb[0].mxu0
    %10082 = vdwg.mxu0
    %v10083 = vld [vmem:[#allocation7] sm:$0xa]
    %v10084 = vld [vmem:[#allocation7 + $0x4] sm:$0xa]
    %v10085 = vld [vmem:[#allocation7 + $0x10] sm:$0xa]
    %v10086 = vld [vmem:[#allocation7 + $0x14] sm:$0xa]
    %v10092 = vunpack.c.l.s4 1966171168
    %v10093 = vunpack.c.0.s8 %v10092
    %v10094 = vlaneseq
    %v10095 = vshrl.u32 %v10094, 7
    %v10096 = vsub.s32 %v10093, %v10095
    %v10097 = vrot.slane %v10083, %v10096
    %v10098 = vcombine.high %v10097, %v10097
    %v10100 = vunpack.c.l.s4 1966171168
    %v10101 = vunpack.c.0.s8 %v10100
    %v10102 = vlaneseq
    %v10103 = vshrl.u32 %v10102, 7
    %v10104 = vsub.s32 %v10101, %v10103
    %v10105 = vrot.slane %v10084, %v10104
    %v10106 = vcombine.high %v10105, %v10105
    %v10108 = vunpack.c.l.s4 1966171168
    %v10109 = vunpack.c.0.s8 %v10108
    %v10110 = vlaneseq
    %v10111 = vshrl.u32 %v10110, 7
    %v10112 = vsub.s32 %v10109, %v10111
    %v10113 = vrot.slane %v10085, %v10112
    %v10114 = vcombine.high %v10113, %v10113
    %v10116 = vunpack.c.l.s4 1966171168
    %v10117 = vunpack.c.0.s8 %v10116
    %v10118 = vlaneseq
    %v10119 = vshrl.u32 %v10118, 7
    %v10120 = vsub.s32 %v10117, %v10119
    %v10121 = vrot.slane %v10086, %v10120
    %v10122 = vcombine.high %v10121, %v10121
    %v10123 = vld [vmem:[#allocation3 + $0x400] sm:$0xff]
    %v10124 = vld [vmem:[#allocation3 + $0x408] sm:$0xff]
    %v10125 = vld [vmem:[#allocation3 + $0x410] sm:$0xff]
    %v10126 = vld [vmem:[#allocation3 + $0x418] sm:$0xff]
    %v10127 = vld [vmem:[#allocation3 + $0x420] sm:$0xff]
    %v10128 = vld [vmem:[#allocation3 + $0x428] sm:$0xff]
    %v10129 = vld [vmem:[#allocation3 + $0x430] sm:$0xff]
    %v10130 = vld [vmem:[#allocation3 + $0x438] sm:$0xff]
    %v10131 = vld [vmem:[#allocation3 + $0x440] sm:$0xff]
    %v10132 = vld [vmem:[#allocation3 + $0x448] sm:$0xff]
    %v10133 = vld [vmem:[#allocation3 + $0x450] sm:$0xff]
    %v10134 = vld [vmem:[#allocation3 + $0x458] sm:$0xff]
    %v10135 = vld [vmem:[#allocation3 + $0x460] sm:$0xff]
    %v10136 = vld [vmem:[#allocation3 + $0x468] sm:$0xff]
    %v10137 = vld [vmem:[#allocation3 + $0x470] sm:$0xff]
    %v10138 = vld [vmem:[#allocation3 + $0x478] sm:$0xff]
    %v10139 = vld [vmem:[#allocation3 + $0x480] sm:$0xff]
    %v10140 = vld [vmem:[#allocation3 + $0x488] sm:$0xff]
    %v10141 = vld [vmem:[#allocation3 + $0x490] sm:$0xff]
    %v10142 = vld [vmem:[#allocation3 + $0x498] sm:$0xff]
    %v10143 = vld [vmem:[#allocation3 + $0x4a0] sm:$0xff]
    %v10144 = vld [vmem:[#allocation3 + $0x4a8] sm:$0xff]
    %v10145 = vld [vmem:[#allocation3 + $0x4b0] sm:$0xff]
    %v10146 = vld [vmem:[#allocation3 + $0x4b8] sm:$0xff]
    %v10147 = vld [vmem:[#allocation3 + $0x4c0] sm:$0xff]
    %v10148 = vld [vmem:[#allocation3 + $0x4c8] sm:$0xff]
    %v10149 = vld [vmem:[#allocation3 + $0x4d0] sm:$0xff]
    %v10150 = vld [vmem:[#allocation3 + $0x4d8] sm:$0xff]
    %v10151 = vld [vmem:[#allocation3 + $0x4e0] sm:$0xff]
    %v10152 = vld [vmem:[#allocation3 + $0x4e8] sm:$0xff]
    %v10153 = vld [vmem:[#allocation3 + $0x4f0] sm:$0xff]
    %v10154 = vld [vmem:[#allocation3 + $0x4f8] sm:$0xff]
    %v10155 = vld [vmem:[#allocation3 + $0x500] sm:$0xff]
    %v10156 = vld [vmem:[#allocation3 + $0x508] sm:$0xff]
    %v10157 = vld [vmem:[#allocation3 + $0x510] sm:$0xff]
    %v10158 = vld [vmem:[#allocation3 + $0x518] sm:$0xff]
    %v10159 = vld [vmem:[#allocation3 + $0x520] sm:$0xff]
    %v10160 = vld [vmem:[#allocation3 + $0x528] sm:$0xff]
    %v10161 = vld [vmem:[#allocation3 + $0x530] sm:$0xff]
    %v10162 = vld [vmem:[#allocation3 + $0x538] sm:$0xff]
    %v10163 = vld [vmem:[#allocation3 + $0x540] sm:$0xff]
    %v10164 = vld [vmem:[#allocation3 + $0x548] sm:$0xff]
    %v10165 = vld [vmem:[#allocation3 + $0x550] sm:$0xff]
    %v10166 = vld [vmem:[#allocation3 + $0x558] sm:$0xff]
    %v10167 = vld [vmem:[#allocation3 + $0x560] sm:$0xff]
    %v10168 = vld [vmem:[#allocation3 + $0x568] sm:$0xff]
    %v10169 = vld [vmem:[#allocation3 + $0x570] sm:$0xff]
    %v10170 = vld [vmem:[#allocation3 + $0x578] sm:$0xff]
    %v10171 = vld [vmem:[#allocation3 + $0x580] sm:$0xff]
    %v10172 = vld [vmem:[#allocation3 + $0x588] sm:$0xff]
    %v10173 = vld [vmem:[#allocation3 + $0x590] sm:$0xff]
    %v10174 = vld [vmem:[#allocation3 + $0x598] sm:$0xff]
    %v10175 = vld [vmem:[#allocation3 + $0x5a0] sm:$0xff]
    %v10176 = vld [vmem:[#allocation3 + $0x5a8] sm:$0xff]
    %v10177 = vld [vmem:[#allocation3 + $0x5b0] sm:$0xff]
    %v10178 = vld [vmem:[#allocation3 + $0x5b8] sm:$0xff]
    %v10179 = vld [vmem:[#allocation3 + $0x5c0] sm:$0xff]
    %v10180 = vld [vmem:[#allocation3 + $0x5c8] sm:$0xff]
    %v10181 = vld [vmem:[#allocation3 + $0x5d0] sm:$0xff]
    %v10182 = vld [vmem:[#allocation3 + $0x5d8] sm:$0xff]
    %v10183 = vld [vmem:[#allocation3 + $0x5e0] sm:$0xff]
    %v10184 = vld [vmem:[#allocation3 + $0x5e8] sm:$0xff]
    %v10185 = vld [vmem:[#allocation3 + $0x5f0] sm:$0xff]
    %v10186 = vld [vmem:[#allocation3 + $0x5f8] sm:$0xff]
    %v10187 = vcombine.low %v10098, %v10106
    %v10188 = vcombine.low %v10114, %v10122
    %v10190 = vunpack.c.l.s4 1966171168
    %v10191 = vunpack.c.0.s8 %v10190
    %v10192 = vlaneseq
    %v10193 = vshrl.u32 %v10192, 7
    %v10194 = vsub.s32 %v10191, %v10193
    %v10195 = vrot.slane %v10187, %v10194
    %v10197 = vunpack.c.l.s4 1966171168
    %v10198 = vunpack.c.0.s8 %v10197
    %v10199 = vlaneseq
    %v10200 = vshrl.u32 %v10199, 7
    %v10201 = vsub.s32 %v10198, %v10200
    %v10202 = vrot.slane %v10188, %v10201
    %v10203 = vcombine.low %v10195, %v10202
    %v10204 = vcombine.high %v10195, %v10202
    %v10206 = vunpack.c.l.s4 1966171168
    %v10207 = vunpack.c.0.s8 %v10206
    %v10208 = vlaneseq
    %v10209 = vshrl.u32 %v10208, 7
    %v10210 = vsub.s32 %v10207, %v10209
    %v10211 = vrot.slane %v10203, %v10210
    %v10213 = vunpack.c.l.s4 1966171168
    %v10214 = vunpack.c.0.s8 %v10213
    %v10215 = vlaneseq
    %v10216 = vshrl.u32 %v10215, 7
    %v10217 = vsub.s32 %v10214, %v10216
    %v10218 = vrot.slane %v10204, %v10217
    %10221 = vmatprep.subr.bf16.mxu0 %v10124
    %10222 = vmatpush1.bf16.msra.mxu0 %v10123
    %10223 = vmatprep.subr.bf16.mxu0 %v10128
    %10224 = vmatpush1.bf16.msra.mxu0 %v10127
    %10225 = vmatprep.subr.bf16.mxu0 %v10132
    %10226 = vmatpush1.bf16.msra.mxu0 %v10131
    %10227 = vmatprep.subr.bf16.mxu0 %v10136
    %10228 = vmatpush1.bf16.msra.mxu0 %v10135
    %10229 = vmatprep.subr.bf16.mxu0 %v10140
    %10230 = vmatpush1.bf16.msra.mxu0 %v10139
    %10231 = vmatprep.subr.bf16.mxu0 %v10144
    %10232 = vmatpush1.bf16.msra.mxu0 %v10143
    %10233 = vmatprep.subr.bf16.mxu0 %v10148
    %10234 = vmatpush1.bf16.msra.mxu0 %v10147
    %10235 = vmatprep.subr.bf16.mxu0 %v10152
    %10236 = vmatpush1.bf16.msra.mxu0 %v10151
    %10237 = vmatprep.subr.bf16.mxu0 %v10156
    %10238 = vmatpush1.bf16.msra.mxu0 %v10155
    %10239 = vmatprep.subr.bf16.mxu0 %v10160
    %10240 = vmatpush1.bf16.msra.mxu0 %v10159
    %10241 = vmatprep.subr.bf16.mxu0 %v10164
    %10242 = vmatpush1.bf16.msra.mxu0 %v10163
    %10243 = vmatprep.subr.bf16.mxu0 %v10168
    %10244 = vmatpush1.bf16.msra.mxu0 %v10167
    %10245 = vmatprep.subr.bf16.mxu0 %v10172
    %10246 = vmatpush1.bf16.msra.mxu0 %v10171
    %10247 = vmatprep.subr.bf16.mxu0 %v10176
    %10248 = vmatpush1.bf16.msra.mxu0 %v10175
    %10249 = vmatprep.subr.bf16.mxu0 %v10180
    %10250 = vmatpush1.bf16.msra.mxu0 %v10179
    %10251 = vmatprep.subr.bf16.mxu0 %v10184
    %10252 = vmatpush1.bf16.msra.mxu0 %v10183
    %10253 = vmatprep.mubr.bf16.mxu0 %v10218
    %10254 = vmatmul.mubr.bf16.gmra.mrb[0].mxu0 %v10211
    %v10255 = vpop.f32.mrb[0].mxu0
    %v10256 = vadd.f32 0.0, %v10255
    %v10257 = vpop.f32.mrb[0].mxu0
    %v10258 = vadd.f32 0.0, %v10257
    %v10259 = vpop.f32.mrb[0].mxu0
    %v10260 = vpop.f32.mrb[0].mxu0
    %10261 = vdwg.mxu0
    %10262 = vmatprep.subr.bf16.mxu0 %v10126
    %10263 = vmatpush1.bf16.msra.mxu0 %v10125
    %10264 = vmatprep.subr.bf16.mxu0 %v10130
    %10265 = vmatpush1.bf16.msra.mxu0 %v10129
    %10266 = vmatprep.subr.bf16.mxu0 %v10134
    %10267 = vmatpush1.bf16.msra.mxu0 %v10133
    %10268 = vmatprep.subr.bf16.mxu0 %v10138
    %10269 = vmatpush1.bf16.msra.mxu0 %v10137
    %10270 = vmatprep.subr.bf16.mxu0 %v10142
    %10271 = vmatpush1.bf16.msra.mxu0 %v10141
    %10272 = vmatprep.subr.bf16.mxu0 %v10146
    %10273 = vmatpush1.bf16.msra.mxu0 %v10145
    %10274 = vmatprep.subr.bf16.mxu0 %v10150
    %10275 = vmatpush1.bf16.msra.mxu0 %v10149
    %10276 = vmatprep.subr.bf16.mxu0 %v10154
    %10277 = vmatpush1.bf16.msra.mxu0 %v10153
    %10278 = vmatprep.subr.bf16.mxu0 %v10158
    %10279 = vmatpush1.bf16.msra.mxu0 %v10157
    %10280 = vmatprep.subr.bf16.mxu0 %v10162
    %10281 = vmatpush1.bf16.msra.mxu0 %v10161
    %10282 = vmatprep.subr.bf16.mxu0 %v10166
    %10283 = vmatpush1.bf16.msra.mxu0 %v10165
    %10284 = vmatprep.subr.bf16.mxu0 %v10170
    %10285 = vmatpush1.bf16.msra.mxu0 %v10169
    %10286 = vmatprep.subr.bf16.mxu0 %v10174
    %10287 = vmatpush1.bf16.msra.mxu0 %v10173
    %10288 = vmatprep.subr.bf16.mxu0 %v10178
    %10289 = vmatpush1.bf16.msra.mxu0 %v10177
    %10290 = vmatprep.subr.bf16.mxu0 %v10182
    %10291 = vmatpush1.bf16.msra.mxu0 %v10181
    %10292 = vmatprep.subr.bf16.mxu0 %v10186
    %10293 = vmatpush1.bf16.msra.mxu0 %v10185
    %10294 = vmatprep.mubr.bf16.mxu0 %v10218
    %10295 = vmatmul.mubr.bf16.gmra.mrb[0].mxu0 %v10211
    %v10296 = vpop.f32.mrb[0].mxu0
    %v10297 = vadd.f32 0.0, %v10296
    %v10298 = vpop.f32.mrb[0].mxu0
    %v10299 = vadd.f32 0.0, %v10298
    %v10300 = vpop.f32.mrb[0].mxu0
    %v10301 = vpop.f32.mrb[0].mxu0
    %10302 = vdwg.mxu0
    %v10303 = vadd.f32 %v10036, %v10256
    %v10304 = vadd.f32 %v10038, %v10258
    %v10305 = vadd.f32 %v10077, %v10297
    %v10306 = vadd.f32 %v10079, %v10299
    %v10307 = vld [vmem:[%s9573] sm:$0x5]
    %v10308 = vld [vmem:[%s9573 + $0x4] sm:$0x5]
    %v10309 = vld [vmem:[%s9573 + $0x10] sm:$0x5]
    %v10310 = vld [vmem:[%s9573 + $0x14] sm:$0x5]
    %v10316 = vunpack.c.l.s4 1966171168
    %v10317 = vunpack.c.0.s8 %v10316
    %v10318 = vlaneseq
    %v10319 = vshrl.u32 %v10318, 7
    %v10320 = vsub.s32 %v10317, %v10319
    %v10321 = vrot.slane %v10307, %v10320
    %v10323 = vunpack.c.l.s4 1966171168
    %v10324 = vunpack.c.0.s8 %v10323
    %v10325 = vlaneseq
    %v10326 = vshrl.u32 %v10325, 7
    %v10327 = vsub.s32 %v10324, %v10326
    %v10328 = vrot.slane %v10308, %v10327
    %v10330 = vunpack.c.l.s4 1966171168
    %v10331 = vunpack.c.0.s8 %v10330
    %v10332 = vlaneseq
    %v10333 = vshrl.u32 %v10332, 7
    %v10334 = vsub.s32 %v10331, %v10333
    %v10335 = vrot.slane %v10309, %v10334
    %v10337 = vunpack.c.l.s4 1966171168
    %v10338 = vunpack.c.0.s8 %v10337
    %v10339 = vlaneseq
    %v10340 = vshrl.u32 %v10339, 7
    %v10341 = vsub.s32 %v10338, %v10340
    %v10342 = vrot.slane %v10310, %v10341
    %v10343 = vld [vmem:[#allocation3 + $0x600] sm:$0xff]
    %v10344 = vld [vmem:[#allocation3 + $0x608] sm:$0xff]
    %v10345 = vld [vmem:[#allocation3 + $0x610] sm:$0xff]
    %v10346 = vld [vmem:[#allocation3 + $0x618] sm:$0xff]
    %v10347 = vld [vmem:[#allocation3 + $0x620] sm:$0xff]
    %v10348 = vld [vmem:[#allocation3 + $0x628] sm:$0xff]
    %v10349 = vld [vmem:[#allocation3 + $0x630] sm:$0xff]
    %v10350 = vld [vmem:[#allocation3 + $0x638] sm:$0xff]
    %v10351 = vld [vmem:[#allocation3 + $0x640] sm:$0xff]
    %v10352 = vld [vmem:[#allocation3 + $0x648] sm:$0xff]
    %v10353 = vld [vmem:[#allocation3 + $0x650] sm:$0xff]
    %v10354 = vld [vmem:[#allocation3 + $0x658] sm:$0xff]
    %v10355 = vld [vmem:[#allocation3 + $0x660] sm:$0xff]
    %v10356 = vld [vmem:[#allocation3 + $0x668] sm:$0xff]
    %v10357 = vld [vmem:[#allocation3 + $0x670] sm:$0xff]
    %v10358 = vld [vmem:[#allocation3 + $0x678] sm:$0xff]
    %v10359 = vld [vmem:[#allocation3 + $0x680] sm:$0xff]
    %v10360 = vld [vmem:[#allocation3 + $0x688] sm:$0xff]
    %v10361 = vld [vmem:[#allocation3 + $0x690] sm:$0xff]
    %v10362 = vld [vmem:[#allocation3 + $0x698] sm:$0xff]
    %v10363 = vld [vmem:[#allocation3 + $0x6a0] sm:$0xff]
    %v10364 = vld [vmem:[#allocation3 + $0x6a8] sm:$0xff]
    %v10365 = vld [vmem:[#allocation3 + $0x6b0] sm:$0xff]
    %v10366 = vld [vmem:[#allocation3 + $0x6b8] sm:$0xff]
    %v10367 = vld [vmem:[#allocation3 + $0x6c0] sm:$0xff]
    %v10368 = vld [vmem:[#allocation3 + $0x6c8] sm:$0xff]
    %v10369 = vld [vmem:[#allocation3 + $0x6d0] sm:$0xff]
    %v10370 = vld [vmem:[#allocation3 + $0x6d8] sm:$0xff]
    %v10371 = vld [vmem:[#allocation3 + $0x6e0] sm:$0xff]
    %v10372 = vld [vmem:[#allocation3 + $0x6e8] sm:$0xff]
    %v10373 = vld [vmem:[#allocation3 + $0x6f0] sm:$0xff]
    %v10374 = vld [vmem:[#allocation3 + $0x6f8] sm:$0xff]
    %v10375 = vld [vmem:[#allocation3 + $0x700] sm:$0xff]
    %v10376 = vld [vmem:[#allocation3 + $0x708] sm:$0xff]
    %v10377 = vld [vmem:[#allocation3 + $0x710] sm:$0xff]
    %v10378 = vld [vmem:[#allocation3 + $0x718] sm:$0xff]
    %v10379 = vld [vmem:[#allocation3 + $0x720] sm:$0xff]
    %v10380 = vld [vmem:[#allocation3 + $0x728] sm:$0xff]
    %v10381 = vld [vmem:[#allocation3 + $0x730] sm:$0xff]
    %v10382 = vld [vmem:[#allocation3 + $0x738] sm:$0xff]
    %v10383 = vld [vmem:[#allocation3 + $0x740] sm:$0xff]
    %v10384 = vld [vmem:[#allocation3 + $0x748] sm:$0xff]
    %v10385 = vld [vmem:[#allocation3 + $0x750] sm:$0xff]
    %v10386 = vld [vmem:[#allocation3 + $0x758] sm:$0xff]
    %v10387 = vld [vmem:[#allocation3 + $0x760] sm:$0xff]
    %v10388 = vld [vmem:[#allocation3 + $0x768] sm:$0xff]
    %v10389 = vld [vmem:[#allocation3 + $0x770] sm:$0xff]
    %v10390 = vld [vmem:[#allocation3 + $0x778] sm:$0xff]
    %v10391 = vld [vmem:[#allocation3 + $0x780] sm:$0xff]
    %v10392 = vld [vmem:[#allocation3 + $0x788] sm:$0xff]
    %v10393 = vld [vmem:[#allocation3 + $0x790] sm:$0xff]
    %v10394 = vld [vmem:[#allocation3 + $0x798] sm:$0xff]
    %v10395 = vld [vmem:[#allocation3 + $0x7a0] sm:$0xff]
    %v10396 = vld [vmem:[#allocation3 + $0x7a8] sm:$0xff]
    %v10397 = vld [vmem:[#allocation3 + $0x7b0] sm:$0xff]
    %v10398 = vld [vmem:[#allocation3 + $0x7b8] sm:$0xff]
    %v10399 = vld [vmem:[#allocation3 + $0x7c0] sm:$0xff]
    %v10400 = vld [vmem:[#allocation3 + $0x7c8] sm:$0xff]
    %v10401 = vld [vmem:[#allocation3 + $0x7d0] sm:$0xff]
    %v10402 = vld [vmem:[#allocation3 + $0x7d8] sm:$0xff]
    %v10403 = vld [vmem:[#allocation3 + $0x7e0] sm:$0xff]
    %v10404 = vld [vmem:[#allocation3 + $0x7e8] sm:$0xff]
    %v10405 = vld [vmem:[#allocation3 + $0x7f0] sm:$0xff]
    %v10406 = vld [vmem:[#allocation3 + $0x7f8] sm:$0xff]
    %v10407 = vcombine.low %v10321, %v10328
    %v10408 = vcombine.low %v10335, %v10342
    %v10410 = vunpack.c.l.s4 1966171168
    %v10411 = vunpack.c.0.s8 %v10410
    %v10412 = vlaneseq
    %v10413 = vshrl.u32 %v10412, 7
    %v10414 = vsub.s32 %v10411, %v10413
    %v10415 = vrot.slane %v10407, %v10414
    %v10417 = vunpack.c.l.s4 1966171168
    %v10418 = vunpack.c.0.s8 %v10417
    %v10419 = vlaneseq
    %v10420 = vshrl.u32 %v10419, 7
    %v10421 = vsub.s32 %v10418, %v10420
    %v10422 = vrot.slane %v10408, %v10421
    %v10423 = vcombine.low %v10415, %v10422
    %v10424 = vcombine.high %v10415, %v10422
    %v10426 = vunpack.c.l.s4 1966171168
    %v10427 = vunpack.c.0.s8 %v10426
    %v10428 = vlaneseq
    %v10429 = vshrl.u32 %v10428, 7
    %v10430 = vsub.s32 %v10427, %v10429
    %v10431 = vrot.slane %v10423, %v10430
    %v10433 = vunpack.c.l.s4 1966171168
    %v10434 = vunpack.c.0.s8 %v10433
    %v10435 = vlaneseq
    %v10436 = vshrl.u32 %v10435, 7
    %v10437 = vsub.s32 %v10434, %v10436
    %v10438 = vrot.slane %v10424, %v10437
    %10441 = vmatprep.subr.bf16.mxu0 %v10344
    %10442 = vmatpush1.bf16.msra.mxu0 %v10343
    %10443 = vmatprep.subr.bf16.mxu0 %v10348
    %10444 = vmatpush1.bf16.msra.mxu0 %v10347
    %10445 = vmatprep.subr.bf16.mxu0 %v10352
    %10446 = vmatpush1.bf16.msra.mxu0 %v10351
    %10447 = vmatprep.subr.bf16.mxu0 %v10356
    %10448 = vmatpush1.bf16.msra.mxu0 %v10355
    %10449 = vmatprep.subr.bf16.mxu0 %v10360
    %10450 = vmatpush1.bf16.msra.mxu0 %v10359
    %10451 = vmatprep.subr.bf16.mxu0 %v10364
    %10452 = vmatpush1.bf16.msra.mxu0 %v10363
    %10453 = vmatprep.subr.bf16.mxu0 %v10368
    %10454 = vmatpush1.bf16.msra.mxu0 %v10367
    %10455 = vmatprep.subr.bf16.mxu0 %v10372
    %10456 = vmatpush1.bf16.msra.mxu0 %v10371
    %10457 = vmatprep.subr.bf16.mxu0 %v10376
    %10458 = vmatpush1.bf16.msra.mxu0 %v10375
    %10459 = vmatprep.subr.bf16.mxu0 %v10380
    %10460 = vmatpush1.bf16.msra.mxu0 %v10379
    %10461 = vmatprep.subr.bf16.mxu0 %v10384
    %10462 = vmatpush1.bf16.msra.mxu0 %v10383
    %10463 = vmatprep.subr.bf16.mxu0 %v10388
    %10464 = vmatpush1.bf16.msra.mxu0 %v10387
    %10465 = vmatprep.subr.bf16.mxu0 %v10392
    %10466 = vmatpush1.bf16.msra.mxu0 %v10391
    %10467 = vmatprep.subr.bf16.mxu0 %v10396
    %10468 = vmatpush1.bf16.msra.mxu0 %v10395
    %10469 = vmatprep.subr.bf16.mxu0 %v10400
    %10470 = vmatpush1.bf16.msra.mxu0 %v10399
    %10471 = vmatprep.subr.bf16.mxu0 %v10404
    %10472 = vmatpush1.bf16.msra.mxu0 %v10403
    %10473 = vmatprep.mubr.bf16.mxu0 %v10438
    %10474 = vmatmul.mubr.bf16.gmra.mrb[0].mxu0 %v10431
    %v10475 = vpop.f32.mrb[0].mxu0
    %v10476 = vadd.f32 0.0, %v10475
    %v10477 = vpop.f32.mrb[0].mxu0
    %v10478 = vadd.f32 0.0, %v10477
    %v10479 = vpop.f32.mrb[0].mxu0
    %v10480 = vpop.f32.mrb[0].mxu0
    %10481 = vdwg.mxu0
    %10482 = vmatprep.subr.bf16.mxu0 %v10346
    %10483 = vmatpush1.bf16.msra.mxu0 %v10345
    %10484 = vmatprep.subr.bf16.mxu0 %v10350
    %10485 = vmatpush1.bf16.msra.mxu0 %v10349
    %10486 = vmatprep.subr.bf16.mxu0 %v10354
    %10487 = vmatpush1.bf16.msra.mxu0 %v10353
    %10488 = vmatprep.subr.bf16.mxu0 %v10358
    %10489 = vmatpush1.bf16.msra.mxu0 %v10357
    %10490 = vmatprep.subr.bf16.mxu0 %v10362
    %10491 = vmatpush1.bf16.msra.mxu0 %v10361
    %10492 = vmatprep.subr.bf16.mxu0 %v10366
    %10493 = vmatpush1.bf16.msra.mxu0 %v10365
    %10494 = vmatprep.subr.bf16.mxu0 %v10370
    %10495 = vmatpush1.bf16.msra.mxu0 %v10369
    %10496 = vmatprep.subr.bf16.mxu0 %v10374
    %10497 = vmatpush1.bf16.msra.mxu0 %v10373
    %10498 = vmatprep.subr.bf16.mxu0 %v10378
    %10499 = vmatpush1.bf16.msra.mxu0 %v10377
    %10500 = vmatprep.subr.bf16.mxu0 %v10382
    %10501 = vmatpush1.bf16.msra.mxu0 %v10381
    %10502 = vmatprep.subr.bf16.mxu0 %v10386
    %10503 = vmatpush1.bf16.msra.mxu0 %v10385
    %10504 = vmatprep.subr.bf16.mxu0 %v10390
    %10505 = vmatpush1.bf16.msra.mxu0 %v10389
    %10506 = vmatprep.subr.bf16.mxu0 %v10394
    %10507 = vmatpush1.bf16.msra.mxu0 %v10393
    %10508 = vmatprep.subr.bf16.mxu0 %v10398
    %10509 = vmatpush1.bf16.msra.mxu0 %v10397
    %10510 = vmatprep.subr.bf16.mxu0 %v10402
    %10511 = vmatpush1.bf16.msra.mxu0 %v10401
    %10512 = vmatprep.subr.bf16.mxu0 %v10406
    %10513 = vmatpush1.bf16.msra.mxu0 %v10405
    %10514 = vmatprep.mubr.bf16.mxu0 %v10438
    %10515 = vmatmul.mubr.bf16.gmra.mrb[0].mxu0 %v10431
    %v10516 = vpop.f32.mrb[0].mxu0
    %v10517 = vadd.f32 0.0, %v10516
    %v10518 = vpop.f32.mrb[0].mxu0
    %v10519 = vadd.f32 0.0, %v10518
    %v10520 = vpop.f32.mrb[0].mxu0
    %v10521 = vpop.f32.mrb[0].mxu0
    %10522 = vdwg.mxu0
    %v10523 = vadd.f32 %v10303, %v10476
    %v10524 = vadd.f32 %v10304, %v10478
    %v10525 = vadd.f32 %v10305, %v10517
    %v10526 = vadd.f32 %v10306, %v10519
    %v10527 = vld [vmem:[%s9573] sm:$0xf]
    %v10528 = vld [vmem:[%s9573 + $0x4] sm:$0xf]
    %v10529 = vld [vmem:[%s9573 + $0x10] sm:$0xf]
    %v10530 = vld [vmem:[%s9573 + $0x14] sm:$0xf]
    %v10536 = vunpack.c.l.s4 1966171168
    %v10537 = vunpack.c.0.s8 %v10536
    %v10538 = vlaneseq
    %v10539 = vshrl.u32 %v10538, 7
    %v10540 = vsub.s32 %v10537, %v10539
    %v10541 = vrot.slane %v10527, %v10540
    %v10542 = vcombine.high %v10541, %v10541
    %v10544 = vunpack.c.l.s4 1966171168
    %v10545 = vunpack.c.0.s8 %v10544
    %v10546 = vlaneseq
    %v10547 = vshrl.u32 %v10546, 7
    %v10548 = vsub.s32 %v10545, %v10547
    %v10549 = vrot.slane %v10528, %v10548
    %v10550 = vcombine.high %v10549, %v10549
    %v10552 = vunpack.c.l.s4 1966171168
    %v10553 = vunpack.c.0.s8 %v10552
    %v10554 = vlaneseq
    %v10555 = vshrl.u32 %v10554, 7
    %v10556 = vsub.s32 %v10553, %v10555
    %v10557 = vrot.slane %v10529, %v10556
    %v10558 = vcombine.high %v10557, %v10557
    %v10560 = vunpack.c.l.s4 1966171168
    %v10561 = vunpack.c.0.s8 %v10560
    %v10562 = vlaneseq
    %v10563 = vshrl.u32 %v10562, 7
    %v10564 = vsub.s32 %v10561, %v10563
    %v10565 = vrot.slane %v10530, %v10564
    %v10566 = vcombine.high %v10565, %v10565
    %v10568 = vshrl.u32 %v10541, 16
    %v10570 = vrot.slane %v10568, 7
    %v10571 = vrot.slane %v10570, 1
    %v10573 = vshll.u32 %v10542, 16
    %v10575 = vsel %vm9750, %v10571, %v10573
    %v10577 = vshrl.u32 %v10549, 16
    %v10579 = vrot.slane %v10577, 7
    %v10580 = vrot.slane %v10579, 1
    %v10582 = vshll.u32 %v10550, 16
    %v10584 = vsel %vm9750, %v10580, %v10582
    %v10586 = vshrl.u32 %v10557, 16
    %v10588 = vrot.slane %v10586, 7
    %v10589 = vrot.slane %v10588, 1
    %v10591 = vshll.u32 %v10558, 16
    %v10593 = vsel %vm9750, %v10589, %v10591
    %v10595 = vshrl.u32 %v10565, 16
    %v10597 = vrot.slane %v10595, 7
    %v10598 = vrot.slane %v10597, 1
    %v10600 = vshll.u32 %v10566, 16
    %v10602 = vsel %vm9750, %v10598, %v10600
    %v10603 = vld [vmem:[#allocation3 + $0x800] sm:$0xff]
    %v10604 = vld [vmem:[#allocation3 + $0x808] sm:$0xff]
    %v10605 = vld [vmem:[#allocation3 + $0x810] sm:$0xff]
    %v10606 = vld [vmem:[#allocation3 + $0x818] sm:$0xff]
    %v10607 = vld [vmem:[#allocation3 + $0x820] sm:$0xff]
    %v10608 = vld [vmem:[#allocation3 + $0x828] sm:$0xff]
    %v10609 = vld [vmem:[#allocation3 + $0x830] sm:$0xff]
    %v10610 = vld [vmem:[#allocation3 + $0x838] sm:$0xff]
    %v10611 = vld [vmem:[#allocation3 + $0x840] sm:$0xff]
    %v10612 = vld [vmem:[#allocation3 + $0x848] sm:$0xff]
    %v10613 = vld [vmem:[#allocation3 + $0x850] sm:$0xff]
    %v10614 = vld [vmem:[#allocation3 + $0x858] sm:$0xff]
    %v10615 = vld [vmem:[#allocation3 + $0x860] sm:$0xff]
    %v10616 = vld [vmem:[#allocation3 + $0x868] sm:$0xff]
    %v10617 = vld [vmem:[#allocation3 + $0x870] sm:$0xff]
    %v10618 = vld [vmem:[#allocation3 + $0x878] sm:$0xff]
    %v10619 = vld [vmem:[#allocation3 + $0x880] sm:$0xff]
    %v10620 = vld [vmem:[#allocation3 + $0x888] sm:$0xff]
    %v10621 = vld [vmem:[#allocation3 + $0x890] sm:$0xff]
    %v10622 = vld [vmem:[#allocation3 + $0x898] sm:$0xff]
    %v10623 = vld [vmem:[#allocation3 + $0x8a0] sm:$0xff]
    %v10624 = vld [vmem:[#allocation3 + $0x8a8] sm:$0xff]
    %v10625 = vld [vmem:[#allocation3 + $0x8b0] sm:$0xff]
    %v10626 = vld [vmem:[#allocation3 + $0x8b8] sm:$0xff]
    %v10627 = vld [vmem:[#allocation3 + $0x8c0] sm:$0xff]
    %v10628 = vld [vmem:[#allocation3 + $0x8c8] sm:$0xff]
    %v10629 = vld [vmem:[#allocation3 + $0x8d0] sm:$0xff]
    %v10630 = vld [vmem:[#allocation3 + $0x8d8] sm:$0xff]
    %v10631 = vld [vmem:[#allocation3 + $0x8e0] sm:$0xff]
    %v10632 = vld [vmem:[#allocation3 + $0x8e8] sm:$0xff]
    %v10633 = vld [vmem:[#allocation3 + $0x8f0] sm:$0xff]
    %v10634 = vld [vmem:[#allocation3 + $0x8f8] sm:$0xff]
    %v10635 = vld [vmem:[#allocation3 + $0x900] sm:$0xff]
    %v10636 = vld [vmem:[#allocation3 + $0x908] sm:$0xff]
    %v10637 = vld [vmem:[#allocation3 + $0x910] sm:$0xff]
    %v10638 = vld [vmem:[#allocation3 + $0x918] sm:$0xff]
    %v10639 = vld [vmem:[#allocation3 + $0x920] sm:$0xff]
    %v10640 = vld [vmem:[#allocation3 + $0x928] sm:$0xff]
    %v10641 = vld [vmem:[#allocation3 + $0x930] sm:$0xff]
    %v10642 = vld [vmem:[#allocation3 + $0x938] sm:$0xff]
    %v10643 = vld [vmem:[#allocation3 + $0x940] sm:$0xff]
    %v10644 = vld [vmem:[#allocation3 + $0x948] sm:$0xff]
    %v10645 = vld [vmem:[#allocation3 + $0x950] sm:$0xff]
    %v10646 = vld [vmem:[#allocation3 + $0x958] sm:$0xff]
    %v10647 = vld [vmem:[#allocation3 + $0x960] sm:$0xff]
    %v10648 = vld [vmem:[#allocation3 + $0x968] sm:$0xff]
    %v10649 = vld [vmem:[#allocation3 + $0x970] sm:$0xff]
    %v10650 = vld [vmem:[#allocation3 + $0x978] sm:$0xff]
    %v10651 = vld [vmem:[#allocation3 + $0x980] sm:$0xff]
    %v10652 = vld [vmem:[#allocation3 + $0x988] sm:$0xff]
    %v10653 = vld [vmem:[#allocation3 + $0x990] sm:$0xff]
    %v10654 = vld [vmem:[#allocation3 + $0x998] sm:$0xff]
    %v10655 = vld [vmem:[#allocation3 + $0x9a0] sm:$0xff]
    %v10656 = vld [vmem:[#allocation3 + $0x9a8] sm:$0xff]
    %v10657 = vld [vmem:[#allocation3 + $0x9b0] sm:$0xff]
    %v10658 = vld [vmem:[#allocation3 + $0x9b8] sm:$0xff]
    %v10659 = vld [vmem:[#allocation3 + $0x9c0] sm:$0xff]
    %v10660 = vld [vmem:[#allocation3 + $0x9c8] sm:$0xff]
    %v10661 = vld [vmem:[#allocation3 + $0x9d0] sm:$0xff]
    %v10662 = vld [vmem:[#allocation3 + $0x9d8] sm:$0xff]
    %v10663 = vld [vmem:[#allocation3 + $0x9e0] sm:$0xff]
    %v10664 = vld [vmem:[#allocation3 + $0x9e8] sm:$0xff]
    %v10665 = vld [vmem:[#allocation3 + $0x9f0] sm:$0xff]
    %v10666 = vld [vmem:[#allocation3 + $0x9f8] sm:$0xff]
    %v10667 = vcombine.low %v10575, %v10584
    %v10668 = vcombine.low %v10593, %v10602
    %v10670 = vunpack.c.l.s4 1966171168
    %v10671 = vunpack.c.0.s8 %v10670
    %v10672 = vlaneseq
    %v10673 = vshrl.u32 %v10672, 7
    %v10674 = vsub.s32 %v10671, %v10673
    %v10675 = vrot.slane %v10667, %v10674
    %v10677 = vunpack.c.l.s4 1966171168
    %v10678 = vunpack.c.0.s8 %v10677
    %v10679 = vlaneseq
    %v10680 = vshrl.u32 %v10679, 7
    %v10681 = vsub.s32 %v10678, %v10680
    %v10682 = vrot.slane %v10668, %v10681
    %v10683 = vcombine.low %v10675, %v10682
    %v10684 = vcombine.high %v10675, %v10682
    %v10686 = vunpack.c.l.s4 1966171168
    %v10687 = vunpack.c.0.s8 %v10686
    %v10688 = vlaneseq
    %v10689 = vshrl.u32 %v10688, 7
    %v10690 = vsub.s32 %v10687, %v10689
    %v10691 = vrot.slane %v10683, %v10690
    %v10693 = vunpack.c.l.s4 1966171168
    %v10694 = vunpack.c.0.s8 %v10693
    %v10695 = vlaneseq
    %v10696 = vshrl.u32 %v10695, 7
    %v10697 = vsub.s32 %v10694, %v10696
    %v10698 = vrot.slane %v10684, %v10697
    %10701 = vmatprep.subr.bf16.mxu0 %v10604
    %10702 = vmatpush1.bf16.msra.mxu0 %v10603
    %10703 = vmatprep.subr.bf16.mxu0 %v10608
    %10704 = vmatpush1.bf16.msra.mxu0 %v10607
    %10705 = vmatprep.subr.bf16.mxu0 %v10612
    %10706 = vmatpush1.bf16.msra.mxu0 %v10611
    %10707 = vmatprep.subr.bf16.mxu0 %v10616
    %10708 = vmatpush1.bf16.msra.mxu0 %v10615
    %10709 = vmatprep.subr.bf16.mxu0 %v10620
    %10710 = vmatpush1.bf16.msra.mxu0 %v10619
    %10711 = vmatprep.subr.bf16.mxu0 %v10624
    %10712 = vmatpush1.bf16.msra.mxu0 %v10623
    %10713 = vmatprep.subr.bf16.mxu0 %v10628
    %10714 = vmatpush1.bf16.msra.mxu0 %v10627
    %10715 = vmatprep.subr.bf16.mxu0 %v10632
    %10716 = vmatpush1.bf16.msra.mxu0 %v10631
    %10717 = vmatprep.subr.bf16.mxu0 %v10636
    %10718 = vmatpush1.bf16.msra.mxu0 %v10635
    %10719 = vmatprep.subr.bf16.mxu0 %v10640
    %10720 = vmatpush1.bf16.msra.mxu0 %v10639
    %10721 = vmatprep.subr.bf16.mxu0 %v10644
    %10722 = vmatpush1.bf16.msra.mxu0 %v10643
    %10723 = vmatprep.subr.bf16.mxu0 %v10648
    %10724 = vmatpush1.bf16.msra.mxu0 %v10647
    %10725 = vmatprep.subr.bf16.mxu0 %v10652
    %10726 = vmatpush1.bf16.msra.mxu0 %v10651
    %10727 = vmatprep.subr.bf16.mxu0 %v10656
    %10728 = vmatpush1.bf16.msra.mxu0 %v10655
    %10729 = vmatprep.subr.bf16.mxu0 %v10660
    %10730 = vmatpush1.bf16.msra.mxu0 %v10659
    %10731 = vmatprep.subr.bf16.mxu0 %v10664
    %10732 = vmatpush1.bf16.msra.mxu0 %v10663
    %10733 = vmatprep.mubr.bf16.mxu0 %v10698
    %10734 = vmatmul.mubr.bf16.gmra.mrb[0].mxu0 %v10691
    %v10735 = vpop.f32.mrb[0].mxu0
    %v10736 = vadd.f32 0.0, %v10735
    %v10737 = vpop.f32.mrb[0].mxu0
    %v10738 = vadd.f32 0.0, %v10737
    %v10739 = vpop.f32.mrb[0].mxu0
    %v10740 = vpop.f32.mrb[0].mxu0
    %10741 = vdwg.mxu0
    %10742 = vmatprep.subr.bf16.mxu0 %v10606
    %10743 = vmatpush1.bf16.msra.mxu0 %v10605
    %10744 = vmatprep.subr.bf16.mxu0 %v10610
    %10745 = vmatpush1.bf16.msra.mxu0 %v10609
    %10746 = vmatprep.subr.bf16.mxu0 %v10614
    %10747 = vmatpush1.bf16.msra.mxu0 %v10613
    %10748 = vmatprep.subr.bf16.mxu0 %v10618
    %10749 = vmatpush1.bf16.msra.mxu0 %v10617
    %10750 = vmatprep.subr.bf16.mxu0 %v10622
    %10751 = vmatpush1.bf16.msra.mxu0 %v10621
    %10752 = vmatprep.subr.bf16.mxu0 %v10626
    %10753 = vmatpush1.bf16.msra.mxu0 %v10625
    %10754 = vmatprep.subr.bf16.mxu0 %v10630
    %10755 = vmatpush1.bf16.msra.mxu0 %v10629
    %10756 = vmatprep.subr.bf16.mxu0 %v10634
    %10757 = vmatpush1.bf16.msra.mxu0 %v10633
    %10758 = vmatprep.subr.bf16.mxu0 %v10638
    %10759 = vmatpush1.bf16.msra.mxu0 %v10637
    %10760 = vmatprep.subr.bf16.mxu0 %v10642
    %10761 = vmatpush1.bf16.msra.mxu0 %v10641
    %10762 = vmatprep.subr.bf16.mxu0 %v10646
    %10763 = vmatpush1.bf16.msra.mxu0 %v10645
    %10764 = vmatprep.subr.bf16.mxu0 %v10650
    %10765 = vmatpush1.bf16.msra.mxu0 %v10649
    %10766 = vmatprep.subr.bf16.mxu0 %v10654
    %10767 = vmatpush1.bf16.msra.mxu0 %v10653
    %10768 = vmatprep.subr.bf16.mxu0 %v10658
    %10769 = vmatpush1.bf16.msra.mxu0 %v10657
    %10770 = vmatprep.subr.bf16.mxu0 %v10662
    %10771 = vmatpush1.bf16.msra.mxu0 %v10661
    %10772 = vmatprep.subr.bf16.mxu0 %v10666
    %10773 = vmatpush1.bf16.msra.mxu0 %v10665
    %10774 = vmatprep.mubr.bf16.mxu0 %v10698
    %10775 = vmatmul.mubr.bf16.gmra.mrb[0].mxu0 %v10691
    %v10776 = vpop.f32.mrb[0].mxu0
    %v10777 = vadd.f32 0.0, %v10776
    %v10778 = vpop.f32.mrb[0].mxu0
    %v10779 = vadd.f32 0.0, %v10778
    %v10780 = vpop.f32.mrb[0].mxu0
    %v10781 = vpop.f32.mrb[0].mxu0
    %10782 = vdwg.mxu0
    %v10783 = vadd.f32 %v10523, %v10736
    %v10784 = vadd.f32 %v10524, %v10738
    %v10785 = vadd.f32 %v10525, %v10777
    %v10786 = vadd.f32 %v10526, %v10779
    %v10787 = vld [vmem:[%s9573] sm:$0xa]
    %v10788 = vld [vmem:[%s9573 + $0x4] sm:$0xa]
    %v10789 = vld [vmem:[%s9573 + $0x10] sm:$0xa]
    %v10790 = vld [vmem:[%s9573 + $0x14] sm:$0xa]
    %v10796 = vunpack.c.l.s4 1966171168
    %v10797 = vunpack.c.0.s8 %v10796
    %v10798 = vlaneseq
    %v10799 = vshrl.u32 %v10798, 7
    %v10800 = vsub.s32 %v10797, %v10799
    %v10801 = vrot.slane %v10787, %v10800
    %v10802 = vcombine.high %v10801, %v10801
    %v10804 = vunpack.c.l.s4 1966171168
    %v10805 = vunpack.c.0.s8 %v10804
    %v10806 = vlaneseq
    %v10807 = vshrl.u32 %v10806, 7
    %v10808 = vsub.s32 %v10805, %v10807
    %v10809 = vrot.slane %v10788, %v10808
    %v10810 = vcombine.high %v10809, %v10809
    %v10812 = vunpack.c.l.s4 1966171168
    %v10813 = vunpack.c.0.s8 %v10812
    %v10814 = vlaneseq
    %v10815 = vshrl.u32 %v10814, 7
    %v10816 = vsub.s32 %v10813, %v10815
    %v10817 = vrot.slane %v10789, %v10816
    %v10818 = vcombine.high %v10817, %v10817
    %v10820 = vunpack.c.l.s4 1966171168
    %v10821 = vunpack.c.0.s8 %v10820
    %v10822 = vlaneseq
    %v10823 = vshrl.u32 %v10822, 7
    %v10824 = vsub.s32 %v10821, %v10823
    %v10825 = vrot.slane %v10790, %v10824
    %v10826 = vcombine.high %v10825, %v10825
    %v10827 = vld [vmem:[#allocation3 + $0xa00] sm:$0xff]
    %v10828 = vld [vmem:[#allocation3 + $0xa08] sm:$0xff]
    %v10829 = vld [vmem:[#allocation3 + $0xa10] sm:$0xff]
    %v10830 = vld [vmem:[#allocation3 + $0xa18] sm:$0xff]
    %v10831 = vld [vmem:[#allocation3 + $0xa20] sm:$0xff]
    %v10832 = vld [vmem:[#allocation3 + $0xa28] sm:$0xff]
    %v10833 = vld [vmem:[#allocation3 + $0xa30] sm:$0xff]
    %v10834 = vld [vmem:[#allocation3 + $0xa38] sm:$0xff]
    %v10835 = vld [vmem:[#allocation3 + $0xa40] sm:$0xff]
    %v10836 = vld [vmem:[#allocation3 + $0xa48] sm:$0xff]
    %v10837 = vld [vmem:[#allocation3 + $0xa50] sm:$0xff]
    %v10838 = vld [vmem:[#allocation3 + $0xa58] sm:$0xff]
    %v10839 = vld [vmem:[#allocation3 + $0xa60] sm:$0xff]
    %v10840 = vld [vmem:[#allocation3 + $0xa68] sm:$0xff]
    %v10841 = vld [vmem:[#allocation3 + $0xa70] sm:$0xff]
    %v10842 = vld [vmem:[#allocation3 + $0xa78] sm:$0xff]
    %v10843 = vld [vmem:[#allocation3 + $0xa80] sm:$0xff]
    %v10844 = vld [vmem:[#allocation3 + $0xa88] sm:$0xff]
    %v10845 = vld [vmem:[#allocation3 + $0xa90] sm:$0xff]
    %v10846 = vld [vmem:[#allocation3 + $0xa98] sm:$0xff]
    %v10847 = vld [vmem:[#allocation3 + $0xaa0] sm:$0xff]
    %v10848 = vld [vmem:[#allocation3 + $0xaa8] sm:$0xff]
    %v10849 = vld [vmem:[#allocation3 + $0xab0] sm:$0xff]
    %v10850 = vld [vmem:[#allocation3 + $0xab8] sm:$0xff]
    %v10851 = vld [vmem:[#allocation3 + $0xac0] sm:$0xff]
    %v10852 = vld [vmem:[#allocation3 + $0xac8] sm:$0xff]
    %v10853 = vld [vmem:[#allocation3 + $0xad0] sm:$0xff]
    %v10854 = vld [vmem:[#allocation3 + $0xad8] sm:$0xff]
    %v10855 = vld [vmem:[#allocation3 + $0xae0] sm:$0xff]
    %v10856 = vld [vmem:[#allocation3 + $0xae8] sm:$0xff]
    %v10857 = vld [vmem:[#allocation3 + $0xaf0] sm:$0xff]
    %v10858 = vld [vmem:[#allocation3 + $0xaf8] sm:$0xff]
    %v10859 = vld [vmem:[#allocation3 + $0xb00] sm:$0xff]
    %v10860 = vld [vmem:[#allocation3 + $0xb08] sm:$0xff]
    %v10861 = vld [vmem:[#allocation3 + $0xb10] sm:$0xff]
    %v10862 = vld [vmem:[#allocation3 + $0xb18] sm:$0xff]
    %v10863 = vld [vmem:[#allocation3 + $0xb20] sm:$0xff]
    %v10864 = vld [vmem:[#allocation3 + $0xb28] sm:$0xff]
    %v10865 = vld [vmem:[#allocation3 + $0xb30] sm:$0xff]
    %v10866 = vld [vmem:[#allocation3 + $0xb38] sm:$0xff]
    %v10867 = vld [vmem:[#allocation3 + $0xb40] sm:$0xff]
    %v10868 = vld [vmem:[#allocation3 + $0xb48] sm:$0xff]
    %v10869 = vld [vmem:[#allocation3 + $0xb50] sm:$0xff]
    %v10870 = vld [vmem:[#allocation3 + $0xb58] sm:$0xff]
    %v10871 = vld [vmem:[#allocation3 + $0xb60] sm:$0xff]
    %v10872 = vld [vmem:[#allocation3 + $0xb68] sm:$0xff]
    %v10873 = vld [vmem:[#allocation3 + $0xb70] sm:$0xff]
    %v10874 = vld [vmem:[#allocation3 + $0xb78] sm:$0xff]
    %v10875 = vld [vmem:[#allocation3 + $0xb80] sm:$0xff]
    %v10876 = vld [vmem:[#allocation3 + $0xb88] sm:$0xff]
    %v10877 = vld [vmem:[#allocation3 + $0xb90] sm:$0xff]
    %v10878 = vld [vmem:[#allocation3 + $0xb98] sm:$0xff]
    %v10879 = vld [vmem:[#allocation3 + $0xba0] sm:$0xff]
    %v10880 = vld [vmem:[#allocation3 + $0xba8] sm:$0xff]
    %v10881 = vld [vmem:[#allocation3 + $0xbb0] sm:$0xff]
    %v10882 = vld [vmem:[#allocation3 + $0xbb8] sm:$0xff]
    %v10883 = vld [vmem:[#allocation3 + $0xbc0] sm:$0xff]
    %v10884 = vld [vmem:[#allocation3 + $0xbc8] sm:$0xff]
    %v10885 = vld [vmem:[#allocation3 + $0xbd0] sm:$0xff]
    %v10886 = vld [vmem:[#allocation3 + $0xbd8] sm:$0xff]
    %v10887 = vld [vmem:[#allocation3 + $0xbe0] sm:$0xff]
    %v10888 = vld [vmem:[#allocation3 + $0xbe8] sm:$0xff]
    %v10889 = vld [vmem:[#allocation3 + $0xbf0] sm:$0xff]
    %v10890 = vld [vmem:[#allocation3 + $0xbf8] sm:$0xff]
    %v10891 = vcombine.low %v10802, %v10810
    %v10892 = vcombine.low %v10818, %v10826
    %v10894 = vunpack.c.l.s4 1966171168
    %v10895 = vunpack.c.0.s8 %v10894
    %v10896 = vlaneseq
    %v10897 = vshrl.u32 %v10896, 7
    %v10898 = vsub.s32 %v10895, %v10897
    %v10899 = vrot.slane %v10891, %v10898
    %v10901 = vunpack.c.l.s4 1966171168
    %v10902 = vunpack.c.0.s8 %v10901
    %v10903 = vlaneseq
    %v10904 = vshrl.u32 %v10903, 7
    %v10905 = vsub.s32 %v10902, %v10904
    %v10906 = vrot.slane %v10892, %v10905
    %v10907 = vcombine.low %v10899, %v10906
    %v10908 = vcombine.high %v10899, %v10906
    %v10910 = vunpack.c.l.s4 1966171168
    %v10911 = vunpack.c.0.s8 %v10910
    %v10912 = vlaneseq
    %v10913 = vshrl.u32 %v10912, 7
    %v10914 = vsub.s32 %v10911, %v10913
    %v10915 = vrot.slane %v10907, %v10914
    %v10917 = vunpack.c.l.s4 1966171168
    %v10918 = vunpack.c.0.s8 %v10917
    %v10919 = vlaneseq
    %v10920 = vshrl.u32 %v10919, 7
    %v10921 = vsub.s32 %v10918, %v10920
    %v10922 = vrot.slane %v10908, %v10921
    %10925 = vmatprep.subr.bf16.mxu0 %v10828
    %10926 = vmatpush1.bf16.msra.mxu0 %v10827
    %10927 = vmatprep.subr.bf16.mxu0 %v10832
    %10928 = vmatpush1.bf16.msra.mxu0 %v10831
    %10929 = vmatprep.subr.bf16.mxu0 %v10836
    %10930 = vmatpush1.bf16.msra.mxu0 %v10835
    %10931 = vmatprep.subr.bf16.mxu0 %v10840
    %10932 = vmatpush1.bf16.msra.mxu0 %v10839
    %10933 = vmatprep.subr.bf16.mxu0 %v10844
    %10934 = vmatpush1.bf16.msra.mxu0 %v10843
    %10935 = vmatprep.subr.bf16.mxu0 %v10848
    %10936 = vmatpush1.bf16.msra.mxu0 %v10847
    %10937 = vmatprep.subr.bf16.mxu0 %v10852
    %10938 = vmatpush1.bf16.msra.mxu0 %v10851
    %10939 = vmatprep.subr.bf16.mxu0 %v10856
    %10940 = vmatpush1.bf16.msra.mxu0 %v10855
    %10941 = vmatprep.subr.bf16.mxu0 %v10860
    %10942 = vmatpush1.bf16.msra.mxu0 %v10859
    %10943 = vmatprep.subr.bf16.mxu0 %v10864
    %10944 = vmatpush1.bf16.msra.mxu0 %v10863
    %10945 = vmatprep.subr.bf16.mxu0 %v10868
    %10946 = vmatpush1.bf16.msra.mxu0 %v10867
    %10947 = vmatprep.subr.bf16.mxu0 %v10872
    %10948 = vmatpush1.bf16.msra.mxu0 %v10871
    %10949 = vmatprep.subr.bf16.mxu0 %v10876
    %10950 = vmatpush1.bf16.msra.mxu0 %v10875
    %10951 = vmatprep.subr.bf16.mxu0 %v10880
    %10952 = vmatpush1.bf16.msra.mxu0 %v10879
    %10953 = vmatprep.subr.bf16.mxu0 %v10884
    %10954 = vmatpush1.bf16.msra.mxu0 %v10883
    %10955 = vmatprep.subr.bf16.mxu0 %v10888
    %10956 = vmatpush1.bf16.msra.mxu0 %v10887
    %10957 = vmatprep.mubr.bf16.mxu0 %v10922
    %10958 = vmatmul.mubr.bf16.gmra.mrb[0].mxu0 %v10915
    %v10959 = vpop.f32.mrb[0].mxu0
    %v10960 = vadd.f32 0.0, %v10959
    %v10961 = vpop.f32.mrb[0].mxu0
    %v10962 = vadd.f32 0.0, %v10961
    %v10963 = vpop.f32.mrb[0].mxu0
    %v10964 = vpop.f32.mrb[0].mxu0
    %10965 = vdwg.mxu0
    %10966 = vmatprep.subr.bf16.mxu0 %v10830
    %10967 = vmatpush1.bf16.msra.mxu0 %v10829
    %10968 = vmatprep.subr.bf16.mxu0 %v10834
    %10969 = vmatpush1.bf16.msra.mxu0 %v10833
    %10970 = vmatprep.subr.bf16.mxu0 %v10838
    %10971 = vmatpush1.bf16.msra.mxu0 %v10837
    %10972 = vmatprep.subr.bf16.mxu0 %v10842
    %10973 = vmatpush1.bf16.msra.mxu0 %v10841
    %10974 = vmatprep.subr.bf16.mxu0 %v10846
    %10975 = vmatpush1.bf16.msra.mxu0 %v10845
    %10976 = vmatprep.subr.bf16.mxu0 %v10850
    %10977 = vmatpush1.bf16.msra.mxu0 %v10849
    %10978 = vmatprep.subr.bf16.mxu0 %v10854
    %10979 = vmatpush1.bf16.msra.mxu0 %v10853
    %10980 = vmatprep.subr.bf16.mxu0 %v10858
    %10981 = vmatpush1.bf16.msra.mxu0 %v10857
    %10982 = vmatprep.subr.bf16.mxu0 %v10862
    %10983 = vmatpush1.bf16.msra.mxu0 %v10861
    %10984 = vmatprep.subr.bf16.mxu0 %v10866
    %10985 = vmatpush1.bf16.msra.mxu0 %v10865
    %10986 = vmatprep.subr.bf16.mxu0 %v10870
    %10987 = vmatpush1.bf16.msra.mxu0 %v10869
    %10988 = vmatprep.subr.bf16.mxu0 %v10874
    %10989 = vmatpush1.bf16.msra.mxu0 %v10873
    %10990 = vmatprep.subr.bf16.mxu0 %v10878
    %10991 = vmatpush1.bf16.msra.mxu0 %v10877
    %10992 = vmatprep.subr.bf16.mxu0 %v10882
    %10993 = vmatpush1.bf16.msra.mxu0 %v10881
    %10994 = vmatprep.subr.bf16.mxu0 %v10886
    %10995 = vmatpush1.bf16.msra.mxu0 %v10885
    %10996 = vmatprep.subr.bf16.mxu0 %v10890
    %10997 = vmatpush1.bf16.msra.mxu0 %v10889
    %10998 = vmatprep.mubr.bf16.mxu0 %v10922
    %10999 = vmatmul.mubr.bf16.gmra.mrb[0].mxu0 %v10915
    %v11000 = vpop.f32.mrb[0].mxu0
    %v11001 = vadd.f32 0.0, %v11000
    %v11002 = vpop.f32.mrb[0].mxu0
    %v11003 = vadd.f32 0.0, %v11002
    %v11004 = vpop.f32.mrb[0].mxu0
    %v11005 = vpop.f32.mrb[0].mxu0
    %11006 = vdwg.mxu0
    %v11007 = vadd.f32 %v10783, %v10960
    %v11008 = vadd.f32 %v10784, %v10962
    %v11009 = vadd.f32 %v10785, %v11001
    %v11010 = vadd.f32 %v10786, %v11003
    %s11011 = scalar_lea.vmem [#allocation7], 8
    %v11012 = vld [vmem:[%s11011] sm:$0x5]
    %v11013 = vld [vmem:[%s11011 + $0x4] sm:$0x5]
    %v11014 = vld [vmem:[%s11011 + $0x10] sm:$0x5]
    %v11015 = vld [vmem:[%s11011 + $0x14] sm:$0x5]
    %v11021 = vunpack.c.l.s4 1966171168
    %v11022 = vunpack.c.0.s8 %v11021
    %v11023 = vlaneseq
    %v11024 = vshrl.u32 %v11023, 7
    %v11025 = vsub.s32 %v11022, %v11024
    %v11026 = vrot.slane %v11012, %v11025
    %v11028 = vunpack.c.l.s4 1966171168
    %v11029 = vunpack.c.0.s8 %v11028
    %v11030 = vlaneseq
    %v11031 = vshrl.u32 %v11030, 7
    %v11032 = vsub.s32 %v11029, %v11031
    %v11033 = vrot.slane %v11013, %v11032
    %v11035 = vunpack.c.l.s4 1966171168
    %v11036 = vunpack.c.0.s8 %v11035
    %v11037 = vlaneseq
    %v11038 = vshrl.u32 %v11037, 7
    %v11039 = vsub.s32 %v11036, %v11038
    %v11040 = vrot.slane %v11014, %v11039
    %v11042 = vunpack.c.l.s4 1966171168
    %v11043 = vunpack.c.0.s8 %v11042
    %v11044 = vlaneseq
    %v11045 = vshrl.u32 %v11044, 7
    %v11046 = vsub.s32 %v11043, %v11045
    %v11047 = vrot.slane %v11015, %v11046
    %v11048 = vld [vmem:[#allocation3 + $0xc00] sm:$0xff]
    %v11049 = vld [vmem:[#allocation3 + $0xc08] sm:$0xff]
    %v11050 = vld [vmem:[#allocation3 + $0xc10] sm:$0xff]
    %v11051 = vld [vmem:[#allocation3 + $0xc18] sm:$0xff]
    %v11052 = vld [vmem:[#allocation3 + $0xc20] sm:$0xff]
    %v11053 = vld [vmem:[#allocation3 + $0xc28] sm:$0xff]
    %v11054 = vld [vmem:[#allocation3 + $0xc30] sm:$0xff]
    %v11055 = vld [vmem:[#allocation3 + $0xc38] sm:$0xff]
    %v11056 = vld [vmem:[#allocation3 + $0xc40] sm:$0xff]
    %v11057 = vld [vmem:[#allocation3 + $0xc48] sm:$0xff]
    %v11058 = vld [vmem:[#allocation3 + $0xc50] sm:$0xff]
    %v11059 = vld [vmem:[#allocation3 + $0xc58] sm:$0xff]
    %v11060 = vld [vmem:[#allocation3 + $0xc60] sm:$0xff]
    %v11061 = vld [vmem:[#allocation3 + $0xc68] sm:$0xff]
    %v11062 = vld [vmem:[#allocation3 + $0xc70] sm:$0xff]
    %v11063 = vld [vmem:[#allocation3 + $0xc78] sm:$0xff]
    %v11064 = vld [vmem:[#allocation3 + $0xc80] sm:$0xff]
    %v11065 = vld [vmem:[#allocation3 + $0xc88] sm:$0xff]
    %v11066 = vld [vmem:[#allocation3 + $0xc90] sm:$0xff]
    %v11067 = vld [vmem:[#allocation3 + $0xc98] sm:$0xff]
    %v11068 = vld [vmem:[#allocation3 + $0xca0] sm:$0xff]
    %v11069 = vld [vmem:[#allocation3 + $0xca8] sm:$0xff]
    %v11070 = vld [vmem:[#allocation3 + $0xcb0] sm:$0xff]
    %v11071 = vld [vmem:[#allocation3 + $0xcb8] sm:$0xff]
    %v11072 = vld [vmem:[#allocation3 + $0xcc0] sm:$0xff]
    %v11073 = vld [vmem:[#allocation3 + $0xcc8] sm:$0xff]
    %v11074 = vld [vmem:[#allocation3 + $0xcd0] sm:$0xff]
    %v11075 = vld [vmem:[#allocation3 + $0xcd8] sm:$0xff]
    %v11076 = vld [vmem:[#allocation3 + $0xce0] sm:$0xff]
    %v11077 = vld [vmem:[#allocation3 + $0xce8] sm:$0xff]
    %v11078 = vld [vmem:[#allocation3 + $0xcf0] sm:$0xff]
    %v11079 = vld [vmem:[#allocation3 + $0xcf8] sm:$0xff]
    %v11080 = vld [vmem:[#allocation3 + $0xd00] sm:$0xff]
    %v11081 = vld [vmem:[#allocation3 + $0xd08] sm:$0xff]
    %v11082 = vld [vmem:[#allocation3 + $0xd10] sm:$0xff]
    %v11083 = vld [vmem:[#allocation3 + $0xd18] sm:$0xff]
    %v11084 = vld [vmem:[#allocation3 + $0xd20] sm:$0xff]
    %v11085 = vld [vmem:[#allocation3 + $0xd28] sm:$0xff]
    %v11086 = vld [vmem:[#allocation3 + $0xd30] sm:$0xff]
    %v11087 = vld [vmem:[#allocation3 + $0xd38] sm:$0xff]
    %v11088 = vld [vmem:[#allocation3 + $0xd40] sm:$0xff]
    %v11089 = vld [vmem:[#allocation3 + $0xd48] sm:$0xff]
    %v11090 = vld [vmem:[#allocation3 + $0xd50] sm:$0xff]
    %v11091 = vld [vmem:[#allocation3 + $0xd58] sm:$0xff]
    %v11092 = vld [vmem:[#allocation3 + $0xd60] sm:$0xff]
    %v11093 = vld [vmem:[#allocation3 + $0xd68] sm:$0xff]
    %v11094 = vld [vmem:[#allocation3 + $0xd70] sm:$0xff]
    %v11095 = vld [vmem:[#allocation3 + $0xd78] sm:$0xff]
    %v11096 = vld [vmem:[#allocation3 + $0xd80] sm:$0xff]
    %v11097 = vld [vmem:[#allocation3 + $0xd88] sm:$0xff]
    %v11098 = vld [vmem:[#allocation3 + $0xd90] sm:$0xff]
    %v11099 = vld [vmem:[#allocation3 + $0xd98] sm:$0xff]
    %v11100 = vld [vmem:[#allocation3 + $0xda0] sm:$0xff]
    %v11101 = vld [vmem:[#allocation3 + $0xda8] sm:$0xff]
    %v11102 = vld [vmem:[#allocation3 + $0xdb0] sm:$0xff]
    %v11103 = vld [vmem:[#allocation3 + $0xdb8] sm:$0xff]
    %v11104 = vld [vmem:[#allocation3 + $0xdc0] sm:$0xff]
    %v11105 = vld [vmem:[#allocation3 + $0xdc8] sm:$0xff]
    %v11106 = vld [vmem:[#allocation3 + $0xdd0] sm:$0xff]
    %v11107 = vld [vmem:[#allocation3 + $0xdd8] sm:$0xff]
    %v11108 = vld [vmem:[#allocation3 + $0xde0] sm:$0xff]
    %v11109 = vld [vmem:[#allocation3 + $0xde8] sm:$0xff]
    %v11110 = vld [vmem:[#allocation3 + $0xdf0] sm:$0xff]
    %v11111 = vld [vmem:[#allocation3 + $0xdf8] sm:$0xff]
    %v11112 = vcombine.low %v11026, %v11033
    %v11113 = vcombine.low %v11040, %v11047
    %v11115 = vunpack.c.l.s4 1966171168
    %v11116 = vunpack.c.0.s8 %v11115
    %v11117 = vlaneseq
    %v11118 = vshrl.u32 %v11117, 7
    %v11119 = vsub.s32 %v11116, %v11118
    %v11120 = vrot.slane %v11112, %v11119
    %v11122 = vunpack.c.l.s4 1966171168
    %v11123 = vunpack.c.0.s8 %v11122
    %v11124 = vlaneseq
    %v11125 = vshrl.u32 %v11124, 7
    %v11126 = vsub.s32 %v11123, %v11125
    %v11127 = vrot.slane %v11113, %v11126
    %v11128 = vcombine.low %v11120, %v11127
    %v11129 = vcombine.high %v11120, %v11127
    %v11131 = vunpack.c.l.s4 1966171168
    %v11132 = vunpack.c.0.s8 %v11131
    %v11133 = vlaneseq
    %v11134 = vshrl.u32 %v11133, 7
    %v11135 = vsub.s32 %v11132, %v11134
    %v11136 = vrot.slane %v11128, %v11135
    %v11138 = vunpack.c.l.s4 1966171168
    %v11139 = vunpack.c.0.s8 %v11138
    %v11140 = vlaneseq
    %v11141 = vshrl.u32 %v11140, 7
    %v11142 = vsub.s32 %v11139, %v11141
    %v11143 = vrot.slane %v11129, %v11142
    %11146 = vmatprep.subr.bf16.mxu0 %v11049
    %11147 = vmatpush1.bf16.msra.mxu0 %v11048
    %11148 = vmatprep.subr.bf16.mxu0 %v11053
    %11149 = vmatpush1.bf16.msra.mxu0 %v11052
    %11150 = vmatprep.subr.bf16.mxu0 %v11057
    %11151 = vmatpush1.bf16.msra.mxu0 %v11056
    %11152 = vmatprep.subr.bf16.mxu0 %v11061
    %11153 = vmatpush1.bf16.msra.mxu0 %v11060
    %11154 = vmatprep.subr.bf16.mxu0 %v11065
    %11155 = vmatpush1.bf16.msra.mxu0 %v11064
    %11156 = vmatprep.subr.bf16.mxu0 %v11069
    %11157 = vmatpush1.bf16.msra.mxu0 %v11068
    %11158 = vmatprep.subr.bf16.mxu0 %v11073
    %11159 = vmatpush1.bf16.msra.mxu0 %v11072
    %11160 = vmatprep.subr.bf16.mxu0 %v11077
    %11161 = vmatpush1.bf16.msra.mxu0 %v11076
    %11162 = vmatprep.subr.bf16.mxu0 %v11081
    %11163 = vmatpush1.bf16.msra.mxu0 %v11080
    %11164 = vmatprep.subr.bf16.mxu0 %v11085
    %11165 = vmatpush1.bf16.msra.mxu0 %v11084
    %11166 = vmatprep.subr.bf16.mxu0 %v11089
    %11167 = vmatpush1.bf16.msra.mxu0 %v11088
    %11168 = vmatprep.subr.bf16.mxu0 %v11093
    %11169 = vmatpush1.bf16.msra.mxu0 %v11092
    %11170 = vmatprep.subr.bf16.mxu0 %v11097
    %11171 = vmatpush1.bf16.msra.mxu0 %v11096
    %11172 = vmatprep.subr.bf16.mxu0 %v11101
    %11173 = vmatpush1.bf16.msra.mxu0 %v11100
    %11174 = vmatprep.subr.bf16.mxu0 %v11105
    %11175 = vmatpush1.bf16.msra.mxu0 %v11104
    %11176 = vmatprep.subr.bf16.mxu0 %v11109
    %11177 = vmatpush1.bf16.msra.mxu0 %v11108
    %11178 = vmatprep.mubr.bf16.mxu0 %v11143
    %11179 = vmatmul.mubr.bf16.gmra.mrb[0].mxu0 %v11136
    %v11180 = vpop.f32.mrb[0].mxu0
    %v11181 = vadd.f32 0.0, %v11180
    %v11182 = vpop.f32.mrb[0].mxu0
    %v11183 = vadd.f32 0.0, %v11182
    %v11184 = vpop.f32.mrb[0].mxu0
    %v11185 = vpop.f32.mrb[0].mxu0
    %11186 = vdwg.mxu0
    %11187 = vmatprep.subr.bf16.mxu0 %v11051
    %11188 = vmatpush1.bf16.msra.mxu0 %v11050
    %11189 = vmatprep.subr.bf16.mxu0 %v11055
    %11190 = vmatpush1.bf16.msra.mxu0 %v11054
    %11191 = vmatprep.subr.bf16.mxu0 %v11059
    %11192 = vmatpush1.bf16.msra.mxu0 %v11058
    %11193 = vmatprep.subr.bf16.mxu0 %v11063
    %11194 = vmatpush1.bf16.msra.mxu0 %v11062
    %11195 = vmatprep.subr.bf16.mxu0 %v11067
    %11196 = vmatpush1.bf16.msra.mxu0 %v11066
    %11197 = vmatprep.subr.bf16.mxu0 %v11071
    %11198 = vmatpush1.bf16.msra.mxu0 %v11070
    %11199 = vmatprep.subr.bf16.mxu0 %v11075
    %11200 = vmatpush1.bf16.msra.mxu0 %v11074
    %11201 = vmatprep.subr.bf16.mxu0 %v11079
    %11202 = vmatpush1.bf16.msra.mxu0 %v11078
    %11203 = vmatprep.subr.bf16.mxu0 %v11083
    %11204 = vmatpush1.bf16.msra.mxu0 %v11082
    %11205 = vmatprep.subr.bf16.mxu0 %v11087
    %11206 = vmatpush1.bf16.msra.mxu0 %v11086
    %11207 = vmatprep.subr.bf16.mxu0 %v11091
    %11208 = vmatpush1.bf16.msra.mxu0 %v11090
    %11209 = vmatprep.subr.bf16.mxu0 %v11095
    %11210 = vmatpush1.bf16.msra.mxu0 %v11094
    %11211 = vmatprep.subr.bf16.mxu0 %v11099
    %11212 = vmatpush1.bf16.msra.mxu0 %v11098
    %11213 = vmatprep.subr.bf16.mxu0 %v11103
    %11214 = vmatpush1.bf16.msra.mxu0 %v11102
    %11215 = vmatprep.subr.bf16.mxu0 %v11107
    %11216 = vmatpush1.bf16.msra.mxu0 %v11106
    %11217 = vmatprep.subr.bf16.mxu0 %v11111
    %11218 = vmatpush1.bf16.msra.mxu0 %v11110
    %11219 = vmatprep.mubr.bf16.mxu0 %v11143
    %11220 = vmatmul.mubr.bf16.gmra.mrb[0].mxu0 %v11136
    %v11221 = vpop.f32.mrb[0].mxu0
    %v11222 = vadd.f32 0.0, %v11221
    %v11223 = vpop.f32.mrb[0].mxu0
    %v11224 = vadd.f32 0.0, %v11223
    %v11225 = vpop.f32.mrb[0].mxu0
    %v11226 = vpop.f32.mrb[0].mxu0
    %11227 = vdwg.mxu0
    %v11228 = vadd.f32 %v11007, %v11181
    %v11229 = vadd.f32 %v11008, %v11183
    %v11230 = vadd.f32 %v11009, %v11222
    %v11231 = vadd.f32 %v11010, %v11224
    %v11232 = vld [vmem:[%s11011] sm:$0xf]
    %v11233 = vld [vmem:[%s11011 + $0x4] sm:$0xf]
    %v11234 = vld [vmem:[%s11011 + $0x10] sm:$0xf]
    %v11235 = vld [vmem:[%s11011 + $0x14] sm:$0xf]
    %v11241 = vunpack.c.l.s4 1966171168
    %v11242 = vunpack.c.0.s8 %v11241
    %v11243 = vlaneseq
    %v11244 = vshrl.u32 %v11243, 7
    %v11245 = vsub.s32 %v11242, %v11244
    %v11246 = vrot.slane %v11232, %v11245
    %v11247 = vcombine.high %v11246, %v11246
    %v11249 = vunpack.c.l.s4 1966171168
    %v11250 = vunpack.c.0.s8 %v11249
    %v11251 = vlaneseq
    %v11252 = vshrl.u32 %v11251, 7
    %v11253 = vsub.s32 %v11250, %v11252
    %v11254 = vrot.slane %v11233, %v11253
    %v11255 = vcombine.high %v11254, %v11254
    %v11257 = vunpack.c.l.s4 1966171168
    %v11258 = vunpack.c.0.s8 %v11257
    %v11259 = vlaneseq
    %v11260 = vshrl.u32 %v11259, 7
    %v11261 = vsub.s32 %v11258, %v11260
    %v11262 = vrot.slane %v11234, %v11261
    %v11263 = vcombine.high %v11262, %v11262
    %v11265 = vunpack.c.l.s4 1966171168
    %v11266 = vunpack.c.0.s8 %v11265
    %v11267 = vlaneseq
    %v11268 = vshrl.u32 %v11267, 7
    %v11269 = vsub.s32 %v11266, %v11268
    %v11270 = vrot.slane %v11235, %v11269
    %v11271 = vcombine.high %v11270, %v11270
    %v11273 = vshrl.u32 %v11246, 16
    %v11275 = vrot.slane %v11273, 7
    %v11276 = vrot.slane %v11275, 1
    %v11278 = vshll.u32 %v11247, 16
    %v11280 = vsel %vm9750, %v11276, %v11278
    %v11282 = vshrl.u32 %v11254, 16
    %v11284 = vrot.slane %v11282, 7
    %v11285 = vrot.slane %v11284, 1
    %v11287 = vshll.u32 %v11255, 16
    %v11289 = vsel %vm9750, %v11285, %v11287
    %v11291 = vshrl.u32 %v11262, 16
    %v11293 = vrot.slane %v11291, 7
    %v11294 = vrot.slane %v11293, 1
    %v11296 = vshll.u32 %v11263, 16
    %v11298 = vsel %vm9750, %v11294, %v11296
    %v11300 = vshrl.u32 %v11270, 16
    %v11302 = vrot.slane %v11300, 7
    %v11303 = vrot.slane %v11302, 1
    %v11305 = vshll.u32 %v11271, 16
    %v11307 = vsel %vm9750, %v11303, %v11305
    %v11308 = vld [vmem:[#allocation3 + $0xe00] sm:$0xff]
    %v11309 = vld [vmem:[#allocation3 + $0xe08] sm:$0xff]
    %v11310 = vld [vmem:[#allocation3 + $0xe10] sm:$0xff]
    %v11311 = vld [vmem:[#allocation3 + $0xe18] sm:$0xff]
    %v11312 = vld [vmem:[#allocation3 + $0xe20] sm:$0xff]
    %v11313 = vld [vmem:[#allocation3 + $0xe28] sm:$0xff]
    %v11314 = vld [vmem:[#allocation3 + $0xe30] sm:$0xff]
    %v11315 = vld [vmem:[#allocation3 + $0xe38] sm:$0xff]
    %v11316 = vld [vmem:[#allocation3 + $0xe40] sm:$0xff]
    %v11317 = vld [vmem:[#allocation3 + $0xe48] sm:$0xff]
    %v11318 = vld [vmem:[#allocation3 + $0xe50] sm:$0xff]
    %v11319 = vld [vmem:[#allocation3 + $0xe58] sm:$0xff]
    %v11320 = vld [vmem:[#allocation3 + $0xe60] sm:$0xff]
    %v11321 = vld [vmem:[#allocation3 + $0xe68] sm:$0xff]
    %v11322 = vld [vmem:[#allocation3 + $0xe70] sm:$0xff]
    %v11323 = vld [vmem:[#allocation3 + $0xe78] sm:$0xff]
    %v11324 = vld [vmem:[#allocation3 + $0xe80] sm:$0xff]
    %v11325 = vld [vmem:[#allocation3 + $0xe88] sm:$0xff]
    %v11326 = vld [vmem:[#allocation3 + $0xe90] sm:$0xff]
    %v11327 = vld [vmem:[#allocation3 + $0xe98] sm:$0xff]
    %v11328 = vld [vmem:[#allocation3 + $0xea0] sm:$0xff]
    %v11329 = vld [vmem:[#allocation3 + $0xea8] sm:$0xff]
    %v11330 = vld [vmem:[#allocation3 + $0xeb0] sm:$0xff]
    %v11331 = vld [vmem:[#allocation3 + $0xeb8] sm:$0xff]
    %v11332 = vld [vmem:[#allocation3 + $0xec0] sm:$0xff]
    %v11333 = vld [vmem:[#allocation3 + $0xec8] sm:$0xff]
    %v11334 = vld [vmem:[#allocation3 + $0xed0] sm:$0xff]
    %v11335 = vld [vmem:[#allocation3 + $0xed8] sm:$0xff]
    %v11336 = vld [vmem:[#allocation3 + $0xee0] sm:$0xff]
    %v11337 = vld [vmem:[#allocation3 + $0xee8] sm:$0xff]
    %v11338 = vld [vmem:[#allocation3 + $0xef0] sm:$0xff]
    %v11339 = vld [vmem:[#allocation3 + $0xef8] sm:$0xff]
    %v11340 = vld [vmem:[#allocation3 + $0xf00] sm:$0xff]
    %v11341 = vld [vmem:[#allocation3 + $0xf08] sm:$0xff]
    %v11342 = vld [vmem:[#allocation3 + $0xf10] sm:$0xff]
    %v11343 = vld [vmem:[#allocation3 + $0xf18] sm:$0xff]
    %v11344 = vld [vmem:[#allocation3 + $0xf20] sm:$0xff]
    %v11345 = vld [vmem:[#allocation3 + $0xf28] sm:$0xff]
    %v11346 = vld [vmem:[#allocation3 + $0xf30] sm:$0xff]
    %v11347 = vld [vmem:[#allocation3 + $0xf38] sm:$0xff]
    %v11348 = vld [vmem:[#allocation3 + $0xf40] sm:$0xff]
    %v11349 = vld [vmem:[#allocation3 + $0xf48] sm:$0xff]
    %v11350 = vld [vmem:[#allocation3 + $0xf50] sm:$0xff]
    %v11351 = vld [vmem:[#allocation3 + $0xf58] sm:$0xff]
    %v11352 = vld [vmem:[#allocation3 + $0xf60] sm:$0xff]
    %v11353 = vld [vmem:[#allocation3 + $0xf68] sm:$0xff]
    %v11354 = vld [vmem:[#allocation3 + $0xf70] sm:$0xff]
    %v11355 = vld [vmem:[#allocation3 + $0xf78] sm:$0xff]
    %v11356 = vld [vmem:[#allocation3 + $0xf80] sm:$0xff]
    %v11357 = vld [vmem:[#allocation3 + $0xf88] sm:$0xff]
    %v11358 = vld [vmem:[#allocation3 + $0xf90] sm:$0xff]
    %v11359 = vld [vmem:[#allocation3 + $0xf98] sm:$0xff]
    %v11360 = vld [vmem:[#allocation3 + $0xfa0] sm:$0xff]
    %v11361 = vld [vmem:[#allocation3 + $0xfa8] sm:$0xff]
    %v11362 = vld [vmem:[#allocation3 + $0xfb0] sm:$0xff]
    %v11363 = vld [vmem:[#allocation3 + $0xfb8] sm:$0xff]
    %v11364 = vld [vmem:[#allocation3 + $0xfc0] sm:$0xff]
    %v11365 = vld [vmem:[#allocation3 + $0xfc8] sm:$0xff]
    %v11366 = vld [vmem:[#allocation3 + $0xfd0] sm:$0xff]
    %v11367 = vld [vmem:[#allocation3 + $0xfd8] sm:$0xff]
    %v11368 = vld [vmem:[#allocation3 + $0xfe0] sm:$0xff]
    %v11369 = vld [vmem:[#allocation3 + $0xfe8] sm:$0xff]
    %v11370 = vld [vmem:[#allocation3 + $0xff0] sm:$0xff]
    %v11371 = vld [vmem:[#allocation3 + $0xff8] sm:$0xff]
    %v11372 = vcombine.low %v11280, %v11289
    %v11373 = vcombine.low %v11298, %v11307
    %v11375 = vunpack.c.l.s4 1966171168
    %v11376 = vunpack.c.0.s8 %v11375
    %v11377 = vlaneseq
    %v11378 = vshrl.u32 %v11377, 7
    %v11379 = vsub.s32 %v11376, %v11378
    %v11380 = vrot.slane %v11372, %v11379
    %v11382 = vunpack.c.l.s4 1966171168
    %v11383 = vunpack.c.0.s8 %v11382
    %v11384 = vlaneseq
    %v11385 = vshrl.u32 %v11384, 7
    %v11386 = vsub.s32 %v11383, %v11385
    %v11387 = vrot.slane %v11373, %v11386
    %v11388 = vcombine.low %v11380, %v11387
    %v11389 = vcombine.high %v11380, %v11387
    %v11391 = vunpack.c.l.s4 1966171168
    %v11392 = vunpack.c.0.s8 %v11391
    %v11393 = vlaneseq
    %v11394 = vshrl.u32 %v11393, 7
    %v11395 = vsub.s32 %v11392, %v11394
    %v11396 = vrot.slane %v11388, %v11395
    %v11398 = vunpack.c.l.s4 1966171168
    %v11399 = vunpack.c.0.s8 %v11398
    %v11400 = vlaneseq
    %v11401 = vshrl.u32 %v11400, 7
    %v11402 = vsub.s32 %v11399, %v11401
    %v11403 = vrot.slane %v11389, %v11402
    %11406 = vmatprep.subr.bf16.mxu0 %v11309
    %11407 = vmatpush1.bf16.msra.mxu0 %v11308
    %11408 = vmatprep.subr.bf16.mxu0 %v11313
    %11409 = vmatpush1.bf16.msra.mxu0 %v11312
    %11410 = vmatprep.subr.bf16.mxu0 %v11317
    %11411 = vmatpush1.bf16.msra.mxu0 %v11316
    %11412 = vmatprep.subr.bf16.mxu0 %v11321
    %11413 = vmatpush1.bf16.msra.mxu0 %v11320
    %11414 = vmatprep.subr.bf16.mxu0 %v11325
    %11415 = vmatpush1.bf16.msra.mxu0 %v11324
    %11416 = vmatprep.subr.bf16.mxu0 %v11329
    %11417 = vmatpush1.bf16.msra.mxu0 %v11328
    %11418 = vmatprep.subr.bf16.mxu0 %v11333
    %11419 = vmatpush1.bf16.msra.mxu0 %v11332
    %11420 = vmatprep.subr.bf16.mxu0 %v11337
    %11421 = vmatpush1.bf16.msra.mxu0 %v11336
    %11422 = vmatprep.subr.bf16.mxu0 %v11341
    %11423 = vmatpush1.bf16.msra.mxu0 %v11340
    %11424 = vmatprep.subr.bf16.mxu0 %v11345
    %11425 = vmatpush1.bf16.msra.mxu0 %v11344
    %11426 = vmatprep.subr.bf16.mxu0 %v11349
    %11427 = vmatpush1.bf16.msra.mxu0 %v11348
    %11428 = vmatprep.subr.bf16.mxu0 %v11353
    %11429 = vmatpush1.bf16.msra.mxu0 %v11352
    %11430 = vmatprep.subr.bf16.mxu0 %v11357
    %11431 = vmatpush1.bf16.msra.mxu0 %v11356
    %11432 = vmatprep.subr.bf16.mxu0 %v11361
    %11433 = vmatpush1.bf16.msra.mxu0 %v11360
    %11434 = vmatprep.subr.bf16.mxu0 %v11365
    %11435 = vmatpush1.bf16.msra.mxu0 %v11364
    %11436 = vmatprep.subr.bf16.mxu0 %v11369
    %11437 = vmatpush1.bf16.msra.mxu0 %v11368
    %11438 = vmatprep.mubr.bf16.mxu0 %v11403
    %11439 = vmatmul.mubr.bf16.gmra.mrb[0].mxu0 %v11396
    %v11440 = vpop.f32.mrb[0].mxu0
    %v11441 = vadd.f32 0.0, %v11440
    %v11442 = vpop.f32.mrb[0].mxu0
    %v11443 = vadd.f32 0.0, %v11442
    %v11444 = vpop.f32.mrb[0].mxu0
    %v11445 = vpop.f32.mrb[0].mxu0
    %11446 = vdwg.mxu0
    %11447 = vmatprep.subr.bf16.mxu0 %v11311
    %11448 = vmatpush1.bf16.msra.mxu0 %v11310
    %11449 = vmatprep.subr.bf16.mxu0 %v11315
    %11450 = vmatpush1.bf16.msra.mxu0 %v11314
    %11451 = vmatprep.subr.bf16.mxu0 %v11319
    %11452 = vmatpush1.bf16.msra.mxu0 %v11318
    %11453 = vmatprep.subr.bf16.mxu0 %v11323
    %11454 = vmatpush1.bf16.msra.mxu0 %v11322
    %11455 = vmatprep.subr.bf16.mxu0 %v11327
    %11456 = vmatpush1.bf16.msra.mxu0 %v11326
    %11457 = vmatprep.subr.bf16.mxu0 %v11331
    %11458 = vmatpush1.bf16.msra.mxu0 %v11330
    %11459 = vmatprep.subr.bf16.mxu0 %v11335
    %11460 = vmatpush1.bf16.msra.mxu0 %v11334
    %11461 = vmatprep.subr.bf16.mxu0 %v11339
    %11462 = vmatpush1.bf16.msra.mxu0 %v11338
    %11463 = vmatprep.subr.bf16.mxu0 %v11343
    %11464 = vmatpush1.bf16.msra.mxu0 %v11342
    %11465 = vmatprep.subr.bf16.mxu0 %v11347
    %11466 = vmatpush1.bf16.msra.mxu0 %v11346
    %11467 = vmatprep.subr.bf16.mxu0 %v11351
    %11468 = vmatpush1.bf16.msra.mxu0 %v11350
    %11469 = vmatprep.subr.bf16.mxu0 %v11355
    %11470 = vmatpush1.bf16.msra.mxu0 %v11354
    %11471 = vmatprep.subr.bf16.mxu0 %v11359
    %11472 = vmatpush1.bf16.msra.mxu0 %v11358
    %11473 = vmatprep.subr.bf16.mxu0 %v11363
    %11474 = vmatpush1.bf16.msra.mxu0 %v11362
    %11475 = vmatprep.subr.bf16.mxu0 %v11367
    %11476 = vmatpush1.bf16.msra.mxu0 %v11366
    %11477 = vmatprep.subr.bf16.mxu0 %v11371
    %11478 = vmatpush1.bf16.msra.mxu0 %v11370
    %11479 = vmatprep.mubr.bf16.mxu0 %v11403
    %11480 = vmatmul.mubr.bf16.gmra.mrb[0].mxu0 %v11396
    %v11481 = vpop.f32.mrb[0].mxu0
    %v11482 = vadd.f32 0.0, %v11481
    %v11483 = vpop.f32.mrb[0].mxu0
    %v11484 = vadd.f32 0.0, %v11483
    %v11485 = vpop.f32.mrb[0].mxu0
    %v11486 = vpop.f32.mrb[0].mxu0
    %11487 = vdwg.mxu0
    %v11488 = vadd.f32 %v11228, %v11441
    %v11489 = vadd.f32 %v11229, %v11443
    %v11490 = vadd.f32 %v11230, %v11482
    %v11491 = vadd.f32 %v11231, %v11484
    %v11492 = vld [vmem:[%s11011] sm:$0xa]
    %v11493 = vld [vmem:[%s11011 + $0x4] sm:$0xa]
    %v11494 = vld [vmem:[%s11011 + $0x10] sm:$0xa]
    %v11495 = vld [vmem:[%s11011 + $0x14] sm:$0xa]
    %v11501 = vunpack.c.l.s4 1966171168
    %v11502 = vunpack.c.0.s8 %v11501
    %v11503 = vlaneseq
    %v11504 = vshrl.u32 %v11503, 7
    %v11505 = vsub.s32 %v11502, %v11504
    %v11506 = vrot.slane %v11492, %v11505
    %v11507 = vcombine.high %v11506, %v11506
    %v11509 = vunpack.c.l.s4 1966171168
    %v11510 = vunpack.c.0.s8 %v11509
    %v11511 = vlaneseq
    %v11512 = vshrl.u32 %v11511, 7
    %v11513 = vsub.s32 %v11510, %v11512
    %v11514 = vrot.slane %v11493, %v11513
    %v11515 = vcombine.high %v11514, %v11514
    %v11517 = vunpack.c.l.s4 1966171168
    %v11518 = vunpack.c.0.s8 %v11517
    %v11519 = vlaneseq
    %v11520 = vshrl.u32 %v11519, 7
    %v11521 = vsub.s32 %v11518, %v11520
    %v11522 = vrot.slane %v11494, %v11521
    %v11523 = vcombine.high %v11522, %v11522
    %v11525 = vunpack.c.l.s4 1966171168
    %v11526 = vunpack.c.0.s8 %v11525
    %v11527 = vlaneseq
    %v11528 = vshrl.u32 %v11527, 7
    %v11529 = vsub.s32 %v11526, %v11528
    %v11530 = vrot.slane %v11495, %v11529
    %v11531 = vcombine.high %v11530, %v11530
    %v11532 = vld [vmem:[#allocation3 + $0x1000] sm:$0xff]
    %v11533 = vld [vmem:[#allocation3 + $0x1008] sm:$0xff]
    %v11534 = vld [vmem:[#allocation3 + $0x1010] sm:$0xff]
    %v11535 = vld [vmem:[#allocation3 + $0x1018] sm:$0xff]
    %v11536 = vld [vmem:[#allocation3 + $0x1020] sm:$0xff]
    %v11537 = vld [vmem:[#allocation3 + $0x1028] sm:$0xff]
    %v11538 = vld [vmem:[#allocation3 + $0x1030] sm:$0xff]
    %v11539 = vld [vmem:[#allocation3 + $0x1038] sm:$0xff]
    %v11540 = vld [vmem:[#allocation3 + $0x1040] sm:$0xff]
    %v11541 = vld [vmem:[#allocation3 + $0x1048] sm:$0xff]
    %v11542 = vld [vmem:[#allocation3 + $0x1050] sm:$0xff]
    %v11543 = vld [vmem:[#allocation3 + $0x1058] sm:$0xff]
    %v11544 = vld [vmem:[#allocation3 + $0x1060] sm:$0xff]
    %v11545 = vld [vmem:[#allocation3 + $0x1068] sm:$0xff]
    %v11546 = vld [vmem:[#allocation3 + $0x1070] sm:$0xff]
    %v11547 = vld [vmem:[#allocation3 + $0x1078] sm:$0xff]
    %v11548 = vld [vmem:[#allocation3 + $0x1080] sm:$0xff]
    %v11549 = vld [vmem:[#allocation3 + $0x1088] sm:$0xff]
    %v11550 = vld [vmem:[#allocation3 + $0x1090] sm:$0xff]
    %v11551 = vld [vmem:[#allocation3 + $0x1098] sm:$0xff]
    %v11552 = vld [vmem:[#allocation3 + $0x10a0] sm:$0xff]
    %v11553 = vld [vmem:[#allocation3 + $0x10a8] sm:$0xff]
    %v11554 = vld [vmem:[#allocation3 + $0x10b0] sm:$0xff]
    %v11555 = vld [vmem:[#allocation3 + $0x10b8] sm:$0xff]
    %v11556 = vld [vmem:[#allocation3 + $0x10c0] sm:$0xff]
    %v11557 = vld [vmem:[#allocation3 + $0x10c8] sm:$0xff]
    %v11558 = vld [vmem:[#allocation3 + $0x10d0] sm:$0xff]
    %v11559 = vld [vmem:[#allocation3 + $0x10d8] sm:$0xff]
    %v11560 = vld [vmem:[#allocation3 + $0x10e0] sm:$0xff]
    %v11561 = vld [vmem:[#allocation3 + $0x10e8] sm:$0xff]
    %v11562 = vld [vmem:[#allocation3 + $0x10f0] sm:$0xff]
    %v11563 = vld [vmem:[#allocation3 + $0x10f8] sm:$0xff]
    %v11564 = vld [vmem:[#allocation3 + $0x1100] sm:$0xff]
    %v11565 = vld [vmem:[#allocation3 + $0x1108] sm:$0xff]
    %v11566 = vld [vmem:[#allocation3 + $0x1110] sm:$0xff]
    %v11567 = vld [vmem:[#allocation3 + $0x1118] sm:$0xff]
    %v11568 = vld [vmem:[#allocation3 + $0x1120] sm:$0xff]
    %v11569 = vld [vmem:[#allocation3 + $0x1128] sm:$0xff]
    %v11570 = vld [vmem:[#allocation3 + $0x1130] sm:$0xff]
    %v11571 = vld [vmem:[#allocation3 + $0x1138] sm:$0xff]
    %v11572 = vld [vmem:[#allocation3 + $0x1140] sm:$0xff]
    %v11573 = vld [vmem:[#allocation3 + $0x1148] sm:$0xff]
    %v11574 = vld [vmem:[#allocation3 + $0x1150] sm:$0xff]
    %v11575 = vld [vmem:[#allocation3 + $0x1158] sm:$0xff]
    %v11576 = vld [vmem:[#allocation3 + $0x1160] sm:$0xff]
    %v11577 = vld [vmem:[#allocation3 + $0x1168] sm:$0xff]
    %v11578 = vld [vmem:[#allocation3 + $0x1170] sm:$0xff]
    %v11579 = vld [vmem:[#allocation3 + $0x1178] sm:$0xff]
    %v11580 = vld [vmem:[#allocation3 + $0x1180] sm:$0xff]
    %v11581 = vld [vmem:[#allocation3 + $0x1188] sm:$0xff]
    %v11582 = vld [vmem:[#allocation3 + $0x1190] sm:$0xff]
    %v11583 = vld [vmem:[#allocation3 + $0x1198] sm:$0xff]
    %v11584 = vld [vmem:[#allocation3 + $0x11a0] sm:$0xff]
    %v11585 = vld [vmem:[#allocation3 + $0x11a8] sm:$0xff]
    %v11586 = vld [vmem:[#allocation3 + $0x11b0] sm:$0xff]
    %v11587 = vld [vmem:[#allocation3 + $0x11b8] sm:$0xff]
    %v11588 = vld [vmem:[#allocation3 + $0x11c0] sm:$0xff]
    %v11589 = vld [vmem:[#allocation3 + $0x11c8] sm:$0xff]
    %v11590 = vld [vmem:[#allocation3 + $0x11d0] sm:$0xff]
    %v11591 = vld [vmem:[#allocation3 + $0x11d8] sm:$0xff]
    %v11592 = vld [vmem:[#allocation3 + $0x11e0] sm:$0xff]
    %v11593 = vld [vmem:[#allocation3 + $0x11e8] sm:$0xff]
    %v11594 = vld [vmem:[#allocation3 + $0x11f0] sm:$0xff]
    %v11595 = vld [vmem:[#allocation3 + $0x11f8] sm:$0xff]
    %v11596 = vcombine.low %v11507, %v11515
    %v11597 = vcombine.low %v11523, %v11531
    %v11599 = vunpack.c.l.s4 1966171168
    %v11600 = vunpack.c.0.s8 %v11599
    %v11601 = vlaneseq
    %v11602 = vshrl.u32 %v11601, 7
    %v11603 = vsub.s32 %v11600, %v11602
    %v11604 = vrot.slane %v11596, %v11603
    %v11606 = vunpack.c.l.s4 1966171168
    %v11607 = vunpack.c.0.s8 %v11606
    %v11608 = vlaneseq
    %v11609 = vshrl.u32 %v11608, 7
    %v11610 = vsub.s32 %v11607, %v11609
    %v11611 = vrot.slane %v11597, %v11610
    %v11612 = vcombine.low %v11604, %v11611
    %v11613 = vcombine.high %v11604, %v11611
    %v11615 = vunpack.c.l.s4 1966171168
    %v11616 = vunpack.c.0.s8 %v11615
    %v11617 = vlaneseq
    %v11618 = vshrl.u32 %v11617, 7
    %v11619 = vsub.s32 %v11616, %v11618
    %v11620 = vrot.slane %v11612, %v11619
    %v11622 = vunpack.c.l.s4 1966171168
    %v11623 = vunpack.c.0.s8 %v11622
    %v11624 = vlaneseq
    %v11625 = vshrl.u32 %v11624, 7
    %v11626 = vsub.s32 %v11623, %v11625
    %v11627 = vrot.slane %v11613, %v11626
    %11630 = vmatprep.subr.bf16.mxu0 %v11533
    %11631 = vmatpush1.bf16.msra.mxu0 %v11532
    %11632 = vmatprep.subr.bf16.mxu0 %v11537
    %11633 = vmatpush1.bf16.msra.mxu0 %v11536
    %11634 = vmatprep.subr.bf16.mxu0 %v11541
    %11635 = vmatpush1.bf16.msra.mxu0 %v11540
    %11636 = vmatprep.subr.bf16.mxu0 %v11545
    %11637 = vmatpush1.bf16.msra.mxu0 %v11544
    %11638 = vmatprep.subr.bf16.mxu0 %v11549
    %11639 = vmatpush1.bf16.msra.mxu0 %v11548
    %11640 = vmatprep.subr.bf16.mxu0 %v11553
    %11641 = vmatpush1.bf16.msra.mxu0 %v11552
    %11642 = vmatprep.subr.bf16.mxu0 %v11557
    %11643 = vmatpush1.bf16.msra.mxu0 %v11556
    %11644 = vmatprep.subr.bf16.mxu0 %v11561
    %11645 = vmatpush1.bf16.msra.mxu0 %v11560
    %11646 = vmatprep.subr.bf16.mxu0 %v11565
    %11647 = vmatpush1.bf16.msra.mxu0 %v11564
    %11648 = vmatprep.subr.bf16.mxu0 %v11569
    %11649 = vmatpush1.bf16.msra.mxu0 %v11568
    %11650 = vmatprep.subr.bf16.mxu0 %v11573
    %11651 = vmatpush1.bf16.msra.mxu0 %v11572
    %11652 = vmatprep.subr.bf16.mxu0 %v11577
    %11653 = vmatpush1.bf16.msra.mxu0 %v11576
    %11654 = vmatprep.subr.bf16.mxu0 %v11581
    %11655 = vmatpush1.bf16.msra.mxu0 %v11580
    %11656 = vmatprep.subr.bf16.mxu0 %v11585
    %11657 = vmatpush1.bf16.msra.mxu0 %v11584
    %11658 = vmatprep.subr.bf16.mxu0 %v11589
    %11659 = vmatpush1.bf16.msra.mxu0 %v11588
    %11660 = vmatprep.subr.bf16.mxu0 %v11593
    %11661 = vmatpush1.bf16.msra.mxu0 %v11592
    %11662 = vmatprep.mubr.bf16.mxu0 %v11627
    %11663 = vmatmul.mubr.bf16.gmra.mrb[0].mxu0 %v11620
    %v11664 = vpop.f32.mrb[0].mxu0
    %v11665 = vadd.f32 0.0, %v11664
    %v11666 = vpop.f32.mrb[0].mxu0
    %v11667 = vadd.f32 0.0, %v11666
    %v11668 = vpop.f32.mrb[0].mxu0
    %v11669 = vpop.f32.mrb[0].mxu0
    %11670 = vdwg.mxu0
    %11671 = vmatprep.subr.bf16.mxu0 %v11535
    %11672 = vmatpush1.bf16.msra.mxu0 %v11534
    %11673 = vmatprep.subr.bf16.mxu0 %v11539
    %11674 = vmatpush1.bf16.msra.mxu0 %v11538
    %11675 = vmatprep.subr.bf16.mxu0 %v11543
    %11676 = vmatpush1.bf16.msra.mxu0 %v11542
    %11677 = vmatprep.subr.bf16.mxu0 %v11547
    %11678 = vmatpush1.bf16.msra.mxu0 %v11546
    %11679 = vmatprep.subr.bf16.mxu0 %v11551
    %11680 = vmatpush1.bf16.msra.mxu0 %v11550
    %11681 = vmatprep.subr.bf16.mxu0 %v11555
    %11682 = vmatpush1.bf16.msra.mxu0 %v11554
    %11683 = vmatprep.subr.bf16.mxu0 %v11559
    %11684 = vmatpush1.bf16.msra.mxu0 %v11558
    %11685 = vmatprep.subr.bf16.mxu0 %v11563
    %11686 = vmatpush1.bf16.msra.mxu0 %v11562
    %11687 = vmatprep.subr.bf16.mxu0 %v11567
    %11688 = vmatpush1.bf16.msra.mxu0 %v11566
    %11689 = vmatprep.subr.bf16.mxu0 %v11571
    %11690 = vmatpush1.bf16.msra.mxu0 %v11570
    %11691 = vmatprep.subr.bf16.mxu0 %v11575
    %11692 = vmatpush1.bf16.msra.mxu0 %v11574
    %11693 = vmatprep.subr.bf16.mxu0 %v11579
    %11694 = vmatpush1.bf16.msra.mxu0 %v11578
    %11695 = vmatprep.subr.bf16.mxu0 %v11583
    %11696 = vmatpush1.bf16.msra.mxu0 %v11582
    %11697 = vmatprep.subr.bf16.mxu0 %v11587
    %11698 = vmatpush1.bf16.msra.mxu0 %v11586
    %11699 = vmatprep.subr.bf16.mxu0 %v11591
    %11700 = vmatpush1.bf16.msra.mxu0 %v11590
    %11701 = vmatprep.subr.bf16.mxu0 %v11595
    %11702 = vmatpush1.bf16.msra.mxu0 %v11594
    %11703 = vmatprep.mubr.bf16.mxu0 %v11627
    %11704 = vmatmul.mubr.bf16.gmra.mrb[0].mxu0 %v11620
    %v11705 = vpop.f32.mrb[0].mxu0
    %v11706 = vadd.f32 0.0, %v11705
    %v11707 = vpop.f32.mrb[0].mxu0
    %v11708 = vadd.f32 0.0, %v11707
    %v11709 = vpop.f32.mrb[0].mxu0
    %v11710 = vpop.f32.mrb[0].mxu0
    %11711 = vdwg.mxu0
    %v11712 = vadd.f32 %v11488, %v11665
    %v11713 = vadd.f32 %v11489, %v11667
    %v11714 = vadd.f32 %v11490, %v11706
    %v11715 = vadd.f32 %v11491, %v11708
    %v11716 = vld [vmem:[#allocation17] sm:$0xf]
    %v11718 = vlaneseq
    %v11719 = vshrl.u32 %v11718, 7
    %v11720 = vsub.s32 0, %v11719
    %v11721 = vrot.slane %v11716, %v11720
    %v11722 = vlaneseq
    %v11723 = vshrl.u32 %v11722, 7
    %v11724 = vsub.s32 1, %v11723
    %v11725 = vrot.slane %v11716, %v11724
    %v11726 = vlaneseq
    %v11727 = vshrl.u32 %v11726, 7
    %v11728 = vsub.s32 2, %v11727
    %v11729 = vrot.slane %v11716, %v11728
    %v11730 = vlaneseq
    %v11731 = vshrl.u32 %v11730, 7
    %v11732 = vsub.s32 3, %v11731
    %v11733 = vrot.slane %v11716, %v11732
    %v11738 = vadd.f32 %v11712, %v11721
    %v11739 = vadd.f32 %v11713, %v11725
    %v11740 = vadd.f32 %v11714, %v11729
    %v11741 = vadd.f32 %v11715, %v11733
    %v11742 = vmax.f32 %v11738, 0.0
    %v11743 = vmax.f32 %v11739, 0.0
    %v11744 = vmax.f32 %v11740, 0.0
    %v11745 = vmax.f32 %v11741, 0.0
    %v11750 = vcombine.low %v11742, %v11743
    %v11751 = vcombine.high %v11742, %v11743
    %v11752 = vcombine.low %v11744, %v11745
    %v11753 = vcombine.high %v11744, %v11745
    %v11758 = vrot.slane %v11750, 6
    %v11759 = vrot.slane %v11758, 4
    %v11760 = vrot.slane %v11752, 6
    %v11761 = vrot.slane %v11760, 4
    %v11762 = vrot.slane %v11751, 6
    %v11763 = vrot.slane %v11762, 4
    %v11764 = vrot.slane %v11753, 6
    %v11765 = vrot.slane %v11764, 4
    %v11770 = vmax.f32 %v11750, %v11759
    %v11771 = vmax.f32 %v11752, %v11761
    %v11772 = vmax.f32 %v11751, %v11763
    %v11773 = vmax.f32 %v11753, %v11765
    %v11778 = vcombine.high %v11770, %v11770
    %v11779 = vcombine.high %v11771, %v11771
    %v11780 = vcombine.high %v11772, %v11772
    %v11781 = vcombine.high %v11773, %v11773
    %v11786 = vsel %vm6617, %v11770, -inf
    %v11787 = vrot.slane %v11786, 4
    %v11788 = vmax.f32 %v11786, %v11787
    %v11789 = vrot.slane %v11788, 2
    %v11790 = vmax.f32 %v11788, %v11789
    %v11791 = vrot.slane %v11790, 1
    %v11792 = vmax.f32 %v11790, %v11791
    %v11793 = vsel %vm6617, %v11778, -inf
    %v11794 = vrot.slane %v11793, 4
    %v11795 = vmax.f32 %v11793, %v11794
    %v11796 = vrot.slane %v11795, 2
    %v11797 = vmax.f32 %v11795, %v11796
    %v11798 = vrot.slane %v11797, 1
    %v11799 = vmax.f32 %v11797, %v11798
    %v11800 = vsel %vm6617, %v11771, -inf
    %v11801 = vrot.slane %v11800, 4
    %v11802 = vmax.f32 %v11800, %v11801
    %v11803 = vrot.slane %v11802, 2
    %v11804 = vmax.f32 %v11802, %v11803
    %v11805 = vrot.slane %v11804, 1
    %v11806 = vmax.f32 %v11804, %v11805
    %v11807 = vsel %vm6617, %v11779, -inf
    %v11808 = vrot.slane %v11807, 4
    %v11809 = vmax.f32 %v11807, %v11808
    %v11810 = vrot.slane %v11809, 2
    %v11811 = vmax.f32 %v11809, %v11810
    %v11812 = vrot.slane %v11811, 1
    %v11813 = vmax.f32 %v11811, %v11812
    %v11814 = vsel %vm6617, %v11772, -inf
    %v11815 = vrot.slane %v11814, 4
    %v11816 = vmax.f32 %v11814, %v11815
    %v11817 = vrot.slane %v11816, 2
    %v11818 = vmax.f32 %v11816, %v11817
    %v11819 = vrot.slane %v11818, 1
    %v11820 = vmax.f32 %v11818, %v11819
    %v11821 = vsel %vm6617, %v11780, -inf
    %v11822 = vrot.slane %v11821, 4
    %v11823 = vmax.f32 %v11821, %v11822
    %v11824 = vrot.slane %v11823, 2
    %v11825 = vmax.f32 %v11823, %v11824
    %v11826 = vrot.slane %v11825, 1
    %v11827 = vmax.f32 %v11825, %v11826
    %v11828 = vsel %vm6617, %v11773, -inf
    %v11829 = vrot.slane %v11828, 4
    %v11830 = vmax.f32 %v11828, %v11829
    %v11831 = vrot.slane %v11830, 2
    %v11832 = vmax.f32 %v11830, %v11831
    %v11833 = vrot.slane %v11832, 1
    %v11834 = vmax.f32 %v11832, %v11833
    %v11835 = vsel %vm6617, %v11781, -inf
    %v11836 = vrot.slane %v11835, 4
    %v11837 = vmax.f32 %v11835, %v11836
    %v11838 = vrot.slane %v11837, 2
    %v11839 = vmax.f32 %v11837, %v11838
    %v11840 = vrot.slane %v11839, 1
    %v11841 = vmax.f32 %v11839, %v11840
    %v11850 = vcombine.low %v11792, %v11799
    %v11851 = vcombine.low %v11806, %v11813
    %v11853 = vunpack.c.l.s4 1966171168
    %v11854 = vunpack.c.0.s8 %v11853
    %v11855 = vlaneseq
    %v11856 = vshrl.u32 %v11855, 7
    %v11857 = vsub.s32 %v11854, %v11856
    %v11858 = vrot.slane %v11850, %v11857
    %v11860 = vunpack.c.l.s4 1966171168
    %v11861 = vunpack.c.0.s8 %v11860
    %v11862 = vlaneseq
    %v11863 = vshrl.u32 %v11862, 7
    %v11864 = vsub.s32 %v11861, %v11863
    %v11865 = vrot.slane %v11851, %v11864
    %v11866 = vcombine.low %v11858, %v11865
    %v11868 = vunpack.c.l.s4 1966171168
    %v11869 = vunpack.c.0.s8 %v11868
    %v11870 = vlaneseq
    %v11871 = vshrl.u32 %v11870, 7
    %v11872 = vsub.s32 %v11869, %v11871
    %v11873 = vrot.slane %v11866, %v11872
    %v11874 = vcombine.low %v11820, %v11827
    %v11875 = vcombine.low %v11834, %v11841
    %v11877 = vunpack.c.l.s4 1966171168
    %v11878 = vunpack.c.0.s8 %v11877
    %v11879 = vlaneseq
    %v11880 = vshrl.u32 %v11879, 7
    %v11881 = vsub.s32 %v11878, %v11880
    %v11882 = vrot.slane %v11874, %v11881
    %v11884 = vunpack.c.l.s4 1966171168
    %v11885 = vunpack.c.0.s8 %v11884
    %v11886 = vlaneseq
    %v11887 = vshrl.u32 %v11886, 7
    %v11888 = vsub.s32 %v11885, %v11887
    %v11889 = vrot.slane %v11875, %v11888
    %v11890 = vcombine.low %v11882, %v11889
    %v11892 = vunpack.c.l.s4 1966171168
    %v11893 = vunpack.c.0.s8 %v11892
    %v11894 = vlaneseq
    %v11895 = vshrl.u32 %v11894, 7
    %v11896 = vsub.s32 %v11893, %v11895
    %v11897 = vrot.slane %v11890, %v11896
    %v11900 = vlaneseq
    %vm11901 = vcmp.ge.s32.totalorder %v11900, 0
    %vm11902 = vcmp.lt.s32.totalorder %v11900, 512
    %vm11903 = vmand %vm11901, %vm11902
    %11904 = vst.msk [vmem:[#allocation19] sm:$0xf] %vm11903, %v11873
    %11905 = vst.msk [vmem:[#allocation19 + $0x4] sm:$0xf] %vm11903, %v11897
    // Predicated region
    $region54: #{custom_encoder.1} parent=1 // pred_check
      _
    $region55: #{custom_encoder.1} parent=1 // pred_check_branch
      %11907 = sbr.rel (0) target = $region57
    $region56: #{custom_encoder.1} parent=1 // pred_region
      %s11909 = ssub.s32 128, 128
      %11910 = vsyncadd [#allocation10], %s11909
      %s11911 = sshll.u32 [#allocation19], 4
      %s11912 = int_to_ptr.vmem [resolvable:$true] %s11911
      %11917 = dma.vmem_to_hbm [thread:$0]  %s11912, 128, %s9, [#allocation10], 64, 64, 4
    $region57: #{custom_encoder.1} parent=1 // pred_fallthru
      _
    // Predicated region
    $region58: #{custom_encoder.1} parent=1 // pred_check
      _
    $region59: #{custom_encoder.1} parent=1 // pred_check_branch
      %11919 = sbr.rel (0) target = $region61
    $region60: #{custom_encoder.1} parent=1 // pred_region
      %11920 = dma.done [#allocation10], 128
    $region61: #{custom_encoder.1} parent=1 // pred_fallthru
      _
    %11921 = vsyncpa [#allocation9], 1
    %11922 = vsyncpa [#allocation12], 1
    %11923 = vsyncpa [#allocation15], 1
    %11924 = vsyncpa [#allocation18], 1
    %11925 = vsyncpa [#allocation10], 1
  %11926 = vsyncmov [#allocation4]
  %s11927 = vpop.sfrf %11926
  %p11928 = scmp.eq.s32.totalorder %s11927, 0
  %p11929 = pneg %p11928
  %11931 = shalt.err (%p11929)
  %s11932 = scalar_lea.sflag [#allocation4], 1
  %11933 = vsyncmov %s11932
  %s11934 = vpop.sfrf %11933
  %p11935 = scmp.eq.s32.totalorder %s11934, 0
  %p11936 = pneg %p11935
  %11938 = shalt.err (%p11936)

</llo_original>
